<compile_context>
chip_gen: v6e
topology: v6e:2x2x1
jax: 0.10.0
libtpu: 0.0.40
codegen_flags: <defaults>
</compile_context>

<pallas_src>
import functools

import jax
import jax.numpy as jnp
from jax.experimental import pallas as pl
from jax.experimental.pallas import tpu as pltpu


# ---------------------------------------------------------------------------
# Kernel
# ---------------------------------------------------------------------------
def mlp_kernel(x_ref, w1_ref, b1_ref, w2_ref, b2_ref, o_ref):
    # First Linear on the MXU: bf16 operands, f32 accumulation.
    x_bf = x_ref[...].astype(jnp.bfloat16)   # no-op when x already arrives as bf16
    h = jnp.dot(x_bf, w1_ref[...], preferred_element_type=jnp.float32)
    h = h + b1_ref[...]                      # BN already folded into W1/b1
    # SiLU in f32. sigmoid lowers to exp (+ recip) on the EUP slot; only if a bundle
    # dump ever shows VALU binding, switch to:
    #   h = h * pl.reciprocal(1.0 + jnp.exp(-h), approx=True)
    h = h * jax.nn.sigmoid(h)
    # Dropout (eval) = identity.
    # Output Linear: downcast activations to bf16 only for the MXU op.
    out = jnp.dot(h.astype(jnp.bfloat16), w2_ref[...],
                  preferred_element_type=jnp.float32)
    out = out + b2_ref[...]
    o_ref[...] = out.astype(o_ref.dtype)


# ---------------------------------------------------------------------------
# Tiling heuristics
# ---------------------------------------------------------------------------
_TB_CANDIDATES = (1024, 512, 256, 128, 64, 32, 16, 8)
_VMEM_BUDGET = 24 * 1024 * 1024        # leave headroom under the 32 MiB scoped limit


def _num_tensorcores_per_chip():
    """Best-effort detection of dual-TensorCore chips (v4 / v5p / v7x)."""
    try:
        kind = jax.devices()[0].device_kind.lower()
    except Exception:
        return 1
    for tag in ("v4", "v5p", "v7"):
        if tag in kind:
            return 2
    return 1


def _vmem_bytes(tb, d_in, h, d_out, act_bytes, out_bytes):
    """Rough VMEM footprint: double-buffered streaming x / out tiles,
    single-buffered bf16 weights, f32 biases."""
    x_buf = 2 * tb * d_in * act_bytes
    o_buf = 2 * tb * d_out * out_bytes
    w_buf = (d_in * h + h * d_out) * 2      # bf16, single-buffered (pl.Buffered(1))
    b_buf = (h + d_out) * 4
    return x_buf + o_buf + w_buf + b_buf


def _pick_tb(B, d_in, h, d_out, act_bytes, out_bytes, num_tc=1,
             vmem_budget=_VMEM_BUDGET):
    """Pick the batch tile.

    v5e/v6e (single TC): biggest tile that divides B and fits VMEM (grid is a serial
    loop -- extra steps are pure overhead).  Dual-TC chips: prefer an even number of
    grid steps so ("parallel",) megacore sharding keeps both cores busy.
    """
    def fits(tb):
        return _vmem_bytes(tb, d_in, h, d_out, act_bytes, out_bytes) <= vmem_budget

    if num_tc >= 2:
        for cand in _TB_CANDIDATES:
            n = B // cand
            if B % cand == 0 and n >= num_tc and n % num_tc == 0 and fits(cand):
                return cand
        for cand in _TB_CANDIDATES:
            if B % cand == 0 and B // cand >= 2 and fits(cand):
                return cand

    # Single TC (or fallback): one big tile.
    if B <= _TB_CANDIDATES[0] and fits(B):
        return B                      # block == full dim is always legal
    for cand in _TB_CANDIDATES:
        if B % cand == 0 and fits(cand):
            return cand
    return B


def _resident_spec(shape):
    """BlockSpec for a block that is identical for every grid step (weights/biases).
    Single-buffer it when the installed Pallas supports pipeline_mode."""
    index_map = lambda i: (0, 0)
    if hasattr(pl, "Buffered"):
        try:
            return pl.BlockSpec(shape, index_map, pipeline_mode=pl.Buffered(1))
        except TypeError:
            pass
    return pl.BlockSpec(shape, index_map)


# ---------------------------------------------------------------------------
# Parameter prep (one-time, NOT per forward step)
# ---------------------------------------------------------------------------
def prepare_params(w1, b1, gamma, beta, running_mean, running_var, w2, b2, eps=1e-5):
    """Fold eval-mode BatchNorm1d into the first Linear and cast weights to bf16."""
    scale = gamma / jnp.sqrt(running_var + eps)              # (H,)
    shift = beta - running_mean * scale                      # (H,)
    w1_folded = (w1 * scale[None, :]).astype(jnp.bfloat16)   # (D_in, H)
    b1_folded = (b1 * scale + shift).astype(jnp.float32)     # (H,)
    w2_bf = w2.astype(jnp.bfloat16)
    return (w1_folded,
            b1_folded.reshape(1, -1),
            w2_bf,
            b2.astype(jnp.float32).reshape(1, -1))


# ---------------------------------------------------------------------------
# Forward
# ---------------------------------------------------------------------------
@functools.partial(jax.jit, static_argnames=("tb", "out_dtype"))
def _forward_jit(x, w1, b1, w2, b2, *, tb, out_dtype):
    B, D_in = x.shape
    H = w1.shape[1]
    D_out = w2.shape[1]
    assert B % tb == 0, (B, tb)
    grid = (B // tb,)

    cost = pl.CostEstimate(
        flops=2 * B * D_in * H + 2 * B * H * D_out,
        transcendentals=2 * B * H,   # sigmoid ~ exp + reciprocal per hidden activation
        bytes_accessed=(x.size * x.dtype.itemsize
                        + w1.size * w1.dtype.itemsize
                        + w2.size * w2.dtype.itemsize
                        + b1.size * b1.dtype.itemsize
                        + b2.size * b2.dtype.itemsize
                        + B * D_out * jnp.dtype(out_dtype).itemsize),
    )

    return pl.pallas_call(
        mlp_kernel,
        out_shape=jax.ShapeDtypeStruct((B, D_out), out_dtype),
        grid_spec=pltpu.PrefetchScalarGridSpec(
            num_scalar_prefetch=0,
            grid=grid,
            in_specs=[
                pl.BlockSpec((tb, D_in), lambda i: (i, 0)),   # x tile (streamed)
                _resident_spec((D_in, H)),                    # W1 (bf16, resident, 1-buf)
                _resident_spec((1, H)),                       # b1 (BN folded, f32)
                _resident_spec((H, D_out)),                   # W2 (bf16, resident, 1-buf)
                _resident_spec((1, D_out)),                   # b2 (f32)
            ],
            out_specs=pl.BlockSpec((tb, D_out), lambda i: (i, 0)),
        ),
        compiler_params=pltpu.CompilerParams(
            dimension_semantics=("parallel",),
            # Explicit budget: v5e's scoped default is only 16 MiB; 32 MiB fits every
            # generation (v7x physical is 64 MiB) and covers the larger batch tiles.
            vmem_limit_bytes=32 * 1024 * 1024,
        ),
        cost_estimate=cost,
    )(x, w1, b1, w2, b2)


def simple_mlp_forward(x, w1, b1, w2, b2, *, tb=None, out_dtype=None):
    """Fused SimpleMLP forward (eval mode). x: (B, D_in), any float dtype.
    Pass x already in bf16 (and out_dtype=bf16) to halve activation HBM traffic;
    no wrapper-side casts are inserted."""
    B, D_in = x.shape
    H = w1.shape[1]
    D_out = w2.shape[1]
    if out_dtype is None:
        out_dtype = x.dtype
    if tb is None:
        tb = _pick_tb(B, D_in, H, D_out,
                      act_bytes=x.dtype.itemsize,
                      out_bytes=jnp.dtype(out_dtype).itemsize,
                      num_tc=_num_tensorcores_per_chip())
    return _forward_jit(x, w1, b1, w2, b2, tb=tb, out_dtype=jnp.dtype(out_dtype))


# ---------------------------------------------------------------------------
# Init / reference
# ---------------------------------------------------------------------------
def init_params(key, input_size=512, hidden_size=512, output_size=512):
    """Deterministic parameter init matching SimpleMLP shapes (f32 'checkpoint')."""
    k1, k2, k3, k4 = jax.random.split(key, 4)
    w1 = jax.random.normal(k1, (input_size, hidden_size), jnp.float32) * 0.02
    b1 = jax.random.normal(k2, (hidden_size,), jnp.float32) * 0.01
    gamma = jnp.ones((hidden_size,), jnp.float32)
    beta = jnp.zeros((hidden_size,), jnp.float32)
    running_mean = jnp.zeros((hidden_size,), jnp.float32)
    running_var = jnp.ones((hidden_size,), jnp.float32)
    w2 = jax.random.normal(k3, (hidden_size, output_size), jnp.float32) * 0.02
    b2 = jax.random.normal(k4, (output_size,), jnp.float32) * 0.01
    return w1, b1, gamma, beta, running_mean, running_var, w2, b2


def reference_forward(x, w1, b1, gamma, beta, running_mean, running_var, w2, b2,
                      eps=1e-5):
    h = x @ w1 + b1
    h = (h - running_mean) / jnp.sqrt(running_var + eps) * gamma + beta
    h = h * jax.nn.sigmoid(h)
    return h @ w2 + b2


# ---------------------------------------------------------------------------
# Demo / self-test
# ---------------------------------------------------------------------------
if __name__ == "__main__":
    key = jax.random.PRNGKey(0)
    kx, kp = jax.random.split(key)

    INPUT, HIDDEN, OUTPUT = 512, 512, 512   # SimpleMLP defaults
    BATCH = 512                             # single-TC: tb=512 (1 step); dual-TC: tb=256 (2 even steps)

    x = jax.random.normal(kx, (BATCH, INPUT), jnp.float32)
    raw_params = init_params(kp, INPUT, HIDDEN, OUTPUT)
    params = prepare_params(*raw_params)    # one-time BN fold + bf16 weight cast

    # f32-in / f32-out path (numerical check against the f32 reference).
    out = simple_mlp_forward(x, *params)
    out = jax.block_until_ready(out)

    ref = reference_forward(x, *raw_params)
    assert out.shape == (BATCH, OUTPUT)
    # bf16 matmul operands with f32 accumulation: loosen tolerance vs f32 reference.
    assert jnp.allclose(out, ref, atol=2e-2, rtol=2e-2), \
        float(jnp.max(jnp.abs(out - ref)))

    # bf16-in / bf16-out path (what a bf16 producer/consumer would use; halves
    # activation HBM traffic -- no wrapper-side casts inside the forward).
    x_bf = x.astype(jnp.bfloat16)
    out_bf = simple_mlp_forward(x_bf, *params, out_dtype=jnp.bfloat16)
    out_bf = jax.block_until_ready(out_bf)
    assert out_bf.shape == (BATCH, OUTPUT) and out_bf.dtype == jnp.bfloat16
    assert jnp.allclose(out_bf.astype(jnp.float32), ref, atol=6e-2, rtol=6e-2), \
        float(jnp.max(jnp.abs(out_bf.astype(jnp.float32) - ref)))

    print("KERNEL_OK")
</pallas_src>

<mosaic_0001>
module attributes {stable_mosaic.version = 11 : i64} {
  func.func @mlp_kernel(%arg0: i32, %arg1: memref<512x512xf32, #tpu.memory_space<vmem>>, %arg2: memref<512x512xbf16, #tpu.memory_space<vmem>>, %arg3: memref<1x512xf32, #tpu.memory_space<vmem>>, %arg4: memref<512x512xbf16, #tpu.memory_space<vmem>>, %arg5: memref<1x512xf32, #tpu.memory_space<vmem>>, %arg6: memref<512x512xf32, #tpu.memory_space<vmem>>) attributes {dimension_semantics = [#tpu.dimension_semantics<parallel>], iteration_bounds = array<i64: 1>, scalar_prefetch = 0 : i64, scratch_operands = 0 : i64, tpu.core_type = #tpu.core_type<tc>, window_params = [{transform_indices = @transform_0, window_bounds = array<i64: 512, 512>}, {pipeline_mode = #tpu.pipeline_mode<synchronous>, transform_indices = @transform_1, window_bounds = array<i64: 512, 512>}, {pipeline_mode = #tpu.pipeline_mode<synchronous>, transform_indices = @transform_2, window_bounds = array<i64: 1, 512>}, {pipeline_mode = #tpu.pipeline_mode<synchronous>, transform_indices = @transform_3, window_bounds = array<i64: 512, 512>}, {pipeline_mode = #tpu.pipeline_mode<synchronous>, transform_indices = @transform_4, window_bounds = array<i64: 1, 512>}, {transform_indices = @transform_5, window_bounds = array<i64: 512, 512>}]} {
    %c0 = arith.constant 0 : index
    %c0_0 = arith.constant 0 : index
    %0 = vector.load %arg1[%c0, %c0_0] : memref<512x512xf32, #tpu.memory_space<vmem>>, vector<512x512xf32>
    %1 = arith.truncf %0 : vector<512x512xf32> to vector<512x512xbf16>
    %c0_1 = arith.constant 0 : index
    %c0_2 = arith.constant 0 : index
    %2 = vector.load %arg2[%c0_1, %c0_2] : memref<512x512xbf16, #tpu.memory_space<vmem>>, vector<512x512xbf16>
    %cst = arith.constant dense<0.000000e+00> : vector<512x512xf32>
    %3 = tpu.matmul %1, %2, %cst {dimension_numbers = #tpu.dot_dimension_numbers<[1], [0], [0], [1], [0, 0, 1, 1], [], []>} : vector<512x512xbf16>, vector<512x512xbf16>, vector<512x512xf32> -> vector<512x512xf32>
    %c0_3 = arith.constant 0 : index
    %c0_4 = arith.constant 0 : index
    %4 = vector.load %arg3[%c0_3, %c0_4] : memref<1x512xf32, #tpu.memory_space<vmem>>, vector<1x512xf32>
    %5 = vector.broadcast %4 : vector<1x512xf32> to vector<512x512xf32>
    %6 = arith.addf %3, %5 : vector<512x512xf32>
    %7 = arith.negf %6 : vector<512x512xf32>
    %8 = math.exp %7 : vector<512x512xf32>
    %cst_5 = arith.constant 1.000000e+00 : f32
    %9 = vector.broadcast %cst_5 : f32 to vector<512x512xf32>
    %10 = arith.addf %9, %8 : vector<512x512xf32>
    %11 = arith.divf %9, %10 : vector<512x512xf32>
    %12 = arith.mulf %6, %11 : vector<512x512xf32>
    %13 = arith.truncf %12 : vector<512x512xf32> to vector<512x512xbf16>
    %c0_6 = arith.constant 0 : index
    %c0_7 = arith.constant 0 : index
    %14 = vector.load %arg4[%c0_6, %c0_7] : memref<512x512xbf16, #tpu.memory_space<vmem>>, vector<512x512xbf16>
    %cst_8 = arith.constant dense<0.000000e+00> : vector<512x512xf32>
    %15 = tpu.matmul %13, %14, %cst_8 {dimension_numbers = #tpu.dot_dimension_numbers<[1], [0], [0], [1], [0, 0, 1, 1], [], []>} : vector<512x512xbf16>, vector<512x512xbf16>, vector<512x512xf32> -> vector<512x512xf32>
    %c0_9 = arith.constant 0 : index
    %c0_10 = arith.constant 0 : index
    %16 = vector.load %arg5[%c0_9, %c0_10] : memref<1x512xf32, #tpu.memory_space<vmem>>, vector<1x512xf32>
    %17 = vector.broadcast %16 : vector<1x512xf32> to vector<512x512xf32>
    %18 = arith.addf %15, %17 : vector<512x512xf32>
    %c0_11 = arith.constant 0 : index
    %c0_12 = arith.constant 0 : index
    %19 = vector.load %arg6[%c0_11, %c0_12] : memref<512x512xf32, #tpu.memory_space<vmem>>, vector<512x512xf32>
    tpu.vector_store %arg6[%c0_11, %c0_12], %18 {strides = array<i32>} : memref<512x512xf32, #tpu.memory_space<vmem>>, vector<512x512xf32>,
    return
  }
  func.func @transform_0(%arg0: i32) -> (i32, i32) {
    %c0_i32 = arith.constant 0 : i32
    %c0_i32_0 = arith.constant 0 : i32
    return %arg0, %c0_i32 : i32, i32
  }
  func.func @transform_1(%arg0: i32) -> (i32, i32) {
    %c0_i32 = arith.constant 0 : i32
    %c0_i32_0 = arith.constant 0 : i32
    %c0_i32_1 = arith.constant 0 : i32
    return %c0_i32, %c0_i32_0 : i32, i32
  }
  func.func @transform_2(%arg0: i32) -> (i32, i32) {
    %c0_i32 = arith.constant 0 : i32
    %c0_i32_0 = arith.constant 0 : i32
    %c0_i32_1 = arith.constant 0 : i32
    return %c0_i32, %c0_i32_0 : i32, i32
  }
  func.func @transform_3(%arg0: i32) -> (i32, i32) {
    %c0_i32 = arith.constant 0 : i32
    %c0_i32_0 = arith.constant 0 : i32
    %c0_i32_1 = arith.constant 0 : i32
    return %c0_i32, %c0_i32_0 : i32, i32
  }
  func.func @transform_4(%arg0: i32) -> (i32, i32) {
    %c0_i32 = arith.constant 0 : i32
    %c0_i32_0 = arith.constant 0 : i32
    %c0_i32_1 = arith.constant 0 : i32
    return %c0_i32, %c0_i32_0 : i32, i32
  }
  func.func @transform_5(%arg0: i32) -> (i32, i32) {
    %c0_i32 = arith.constant 0 : i32
    %c0_i32_0 = arith.constant 0 : i32
    return %arg0, %c0_i32 : i32, i32
  }
}

</mosaic_0001>

<llo_original>
// kernel: _forward_jit.1
$region0: #{_forward_jit.1}
  #allocation0 [shape = 'u32[]', space=smem, size = 0x4, offset = 0x4, fixed_abs, tag = 'smem constant byte address 0x4 - core index']
  #allocation1 [shape = 'u32[144,128]{1,0:T(1,128)}', space=vmem, size = 0x12000, scoped, tag = 'internal scratch']
  %s0 = inlined_call_operand.hbm [shape: f32[512,512], index: 0, kind: input, shape index: {}]
  %s1 = inlined_call_operand.hbm [shape: bf16[512,512], index: 1, kind: input, shape index: {}]
  %s2 = inlined_call_operand.hbm [shape: f32[1,512], index: 2, kind: input, shape index: {}]
  %s3 = inlined_call_operand.hbm [shape: bf16[512,512], index: 3, kind: input, shape index: {}]
  %s4 = inlined_call_operand.vmem [shape: f32[1,512], index: 4, kind: input, shape index: {}]
  %s5 = inlined_call_operand.hbm [shape: f32[512,512], index: 5, kind: output, shape index: {}]
  %s6 = sld [smem:[#allocation0]]
  $region46: #{_forward_jit.1} parent=0
    _
  %s8 = ssub.s32 1, %s6
  %s9 = scalar_select 0, %s8, %s6
  $region1: #{_forward_jit.1} parent=0
    #allocation2 [shape = 'u8[1048576]{0}', space=vmem, size = 0x100000, scoped, tag = 'input window, operand 0, single buffered']
    #allocation3 [shape = 's32[1]{0}', space=sflag, size = 0x4, scoped, tag = 'scoped memory for _forward_jit.1']
    #allocation4 [shape = 's32[1]{0}', space=sflag, size = 0x4, scoped, tag = 'scoped memory for _forward_jit.1']
    #allocation5 [shape = 'u8[524288]{0}', space=vmem, size = 0x80000, scoped, tag = 'input window, operand 1, single buffered']
    #allocation6 [shape = 's32[1]{0}', space=sflag, size = 0x4, scoped, tag = 'scoped memory for _forward_jit.1']
    #allocation7 [shape = 'u8[2048]{0}', space=vmem, size = 0x800, scoped, tag = 'input window, operand 2, single buffered']
    #allocation8 [shape = 'u8[524288]{0}', space=vmem, size = 0x80000, scoped, tag = 'input window, operand 3, single buffered']
    #allocation9 [shape = 's32[1]{0}', space=sflag, size = 0x4, scoped, tag = 'scoped memory for _forward_jit.1']
    #allocation10 [shape = 'u8[1048576]{0}', space=vmem, size = 0x100000, scoped, tag = 'output window, operand 0, single buffered']
    %10 = vsyncpa [#allocation3], 0
    %11 = vsyncpa [#allocation6], 0
    %12 = vsyncpa [#allocation9], 0
    %13 = vsyncpa [#allocation4], 0
    // Predicated region
    $region2: #{_forward_jit.1} parent=1 // pred_check
      _
    $region3: #{_forward_jit.1} parent=1 // pred_check_branch
      %15 = sbr.rel (0) target = $region5
    $region4: #{_forward_jit.1} parent=1 // pred_region
      %s17 = ssub.s32 32768, 32768
      %18 = vsyncadd [#allocation3], %s17
      %s19 = sshll.u32 [#allocation2], 4
      %s20 = int_to_ptr.vmem [resolvable:$true] %s19
      %25 = dma.hbm_to_vmem [thread:$0]  %s0, 32768, %s20, [#allocation3], 512, 512, 32
    $region5: #{_forward_jit.1} parent=1 // pred_fallthru
      _
    // Predicated region
    $region6: #{_forward_jit.1} parent=1 // pred_check
      _
    $region7: #{_forward_jit.1} parent=1 // pred_check_branch
      %27 = sbr.rel (0) target = $region9
    $region8: #{_forward_jit.1} parent=1 // pred_region
      %s29 = ssub.s32 16384, 16384
      %30 = vsyncadd [#allocation6], %s29
      %s31 = sshll.u32 [#allocation5], 4
      %s32 = int_to_ptr.vmem [resolvable:$true] %s31
      %37 = dma.hbm_to_vmem [thread:$0]  %s1, 16384, %s32, [#allocation6], 256, 256, 16
    $region9: #{_forward_jit.1} parent=1 // pred_fallthru
      _
    // Predicated region
    $region10: #{_forward_jit.1} parent=1 // pred_check
      _
    $region11: #{_forward_jit.1} parent=1 // pred_check_branch
      %39 = sbr.rel (0) target = $region13
    $region12: #{_forward_jit.1} parent=1 // pred_region
      %s41 = ssub.s32 64, 64
      %42 = vsyncadd [#allocation6], %s41
      %s44 = sshll.u32 [#allocation7], 4
      %s45 = int_to_ptr.vmem [resolvable:$true] %s44
      %47 = dma.hbm_to_vmem [thread:$0]  %s2, 64, %s45, [#allocation6]
    $region13: #{_forward_jit.1} parent=1 // pred_fallthru
      _
    // Predicated region
    $region14: #{_forward_jit.1} parent=1 // pred_check
      _
    $region15: #{_forward_jit.1} parent=1 // pred_check_branch
      %49 = sbr.rel (0) target = $region17
    $region16: #{_forward_jit.1} parent=1 // pred_region
      %s51 = ssub.s32 16384, 16384
      %52 = vsyncadd [#allocation9], %s51
      %s53 = sshll.u32 [#allocation8], 4
      %s54 = int_to_ptr.vmem [resolvable:$true] %s53
      %59 = dma.hbm_to_vmem [thread:$0]  %s3, 16384, %s54, [#allocation9], 256, 256, 16
    $region17: #{_forward_jit.1} parent=1 // pred_fallthru
      _
    // Predicated region
    $region18: #{_forward_jit.1} parent=1 // pred_check
      _
    $region19: #{_forward_jit.1} parent=1 // pred_check_branch
      %61 = sbr.rel (0) target = $region21
    $region20: #{_forward_jit.1} parent=1 // pred_region
      _
    $region21: #{_forward_jit.1} parent=1 // pred_fallthru
      _
    // Predicated region
    $region22: #{_forward_jit.1} parent=1 // pred_check
      _
    $region23: #{_forward_jit.1} parent=1 // pred_check_branch
      %63 = sbr.rel (0) target = $region25
    $region24: #{_forward_jit.1} parent=1 // pred_region
      %64 = dma.done [#allocation3], 32768
    $region25: #{_forward_jit.1} parent=1 // pred_fallthru
      _
    // Predicated region
    $region26: #{_forward_jit.1} parent=1 // pred_check
      _
    $region27: #{_forward_jit.1} parent=1 // pred_check_branch
      %66 = sbr.rel (0) target = $region29
    $region28: #{_forward_jit.1} parent=1 // pred_region
      %67 = dma.done [#allocation6], 16384
    $region29: #{_forward_jit.1} parent=1 // pred_fallthru
      _
    // Predicated region
    $region30: #{_forward_jit.1} parent=1 // pred_check
      _
    $region31: #{_forward_jit.1} parent=1 // pred_check_branch
      %69 = sbr.rel (0) target = $region33
    $region32: #{_forward_jit.1} parent=1 // pred_region
      %70 = dma.done [#allocation6], 64
    $region33: #{_forward_jit.1} parent=1 // pred_fallthru
      _
    // Predicated region
    $region34: #{_forward_jit.1} parent=1 // pred_check
      _
    $region35: #{_forward_jit.1} parent=1 // pred_check_branch
      %72 = sbr.rel (0) target = $region37
    $region36: #{_forward_jit.1} parent=1 // pred_region
      %73 = dma.done [#allocation9], 16384
    $region37: #{_forward_jit.1} parent=1 // pred_fallthru
      _
    %v74 = vld [vmem:[#allocation2] sm:$0xff]
    %v75 = vld [vmem:[#allocation2 + $0x8] sm:$0xff]
    %v76 = vld [vmem:[#allocation2 + $0x10] sm:$0xff]
    %v77 = vld [vmem:[#allocation2 + $0x18] sm:$0xff]
    %v78 = vld [vmem:[#allocation2 + $0x20] sm:$0xff]
    %v79 = vld [vmem:[#allocation2 + $0x28] sm:$0xff]
    %v80 = vld [vmem:[#allocation2 + $0x30] sm:$0xff]
    %v81 = vld [vmem:[#allocation2 + $0x38] sm:$0xff]
    %v82 = vld [vmem:[#allocation2 + $0x40] sm:$0xff]
    %v83 = vld [vmem:[#allocation2 + $0x48] sm:$0xff]
    %v84 = vld [vmem:[#allocation2 + $0x50] sm:$0xff]
    %v85 = vld [vmem:[#allocation2 + $0x58] sm:$0xff]
    %v86 = vld [vmem:[#allocation2 + $0x60] sm:$0xff]
    %v87 = vld [vmem:[#allocation2 + $0x68] sm:$0xff]
    %v88 = vld [vmem:[#allocation2 + $0x70] sm:$0xff]
    %v89 = vld [vmem:[#allocation2 + $0x78] sm:$0xff]
    %v90 = vld [vmem:[#allocation2 + $0x80] sm:$0xff]
    %v91 = vld [vmem:[#allocation2 + $0x88] sm:$0xff]
    %v92 = vld [vmem:[#allocation2 + $0x90] sm:$0xff]
    %v93 = vld [vmem:[#allocation2 + $0x98] sm:$0xff]
    %v94 = vld [vmem:[#allocation2 + $0xa0] sm:$0xff]
    %v95 = vld [vmem:[#allocation2 + $0xa8] sm:$0xff]
    %v96 = vld [vmem:[#allocation2 + $0xb0] sm:$0xff]
    %v97 = vld [vmem:[#allocation2 + $0xb8] sm:$0xff]
    %v98 = vld [vmem:[#allocation2 + $0xc0] sm:$0xff]
    %v99 = vld [vmem:[#allocation2 + $0xc8] sm:$0xff]
    %v100 = vld [vmem:[#allocation2 + $0xd0] sm:$0xff]
    %v101 = vld [vmem:[#allocation2 + $0xd8] sm:$0xff]
    %v102 = vld [vmem:[#allocation2 + $0xe0] sm:$0xff]
    %v103 = vld [vmem:[#allocation2 + $0xe8] sm:$0xff]
    %v104 = vld [vmem:[#allocation2 + $0xf0] sm:$0xff]
    %v105 = vld [vmem:[#allocation2 + $0xf8] sm:$0xff]
    %v106 = vld [vmem:[#allocation2 + $0x100] sm:$0xff]
    %v107 = vld [vmem:[#allocation2 + $0x108] sm:$0xff]
    %v108 = vld [vmem:[#allocation2 + $0x110] sm:$0xff]
    %v109 = vld [vmem:[#allocation2 + $0x118] sm:$0xff]
    %v110 = vld [vmem:[#allocation2 + $0x120] sm:$0xff]
    %v111 = vld [vmem:[#allocation2 + $0x128] sm:$0xff]
    %v112 = vld [vmem:[#allocation2 + $0x130] sm:$0xff]
    %v113 = vld [vmem:[#allocation2 + $0x138] sm:$0xff]
    %v114 = vld [vmem:[#allocation2 + $0x140] sm:$0xff]
    %v115 = vld [vmem:[#allocation2 + $0x148] sm:$0xff]
    %v116 = vld [vmem:[#allocation2 + $0x150] sm:$0xff]
    %v117 = vld [vmem:[#allocation2 + $0x158] sm:$0xff]
    %v118 = vld [vmem:[#allocation2 + $0x160] sm:$0xff]
    %v119 = vld [vmem:[#allocation2 + $0x168] sm:$0xff]
    %v120 = vld [vmem:[#allocation2 + $0x170] sm:$0xff]
    %v121 = vld [vmem:[#allocation2 + $0x178] sm:$0xff]
    %v122 = vld [vmem:[#allocation2 + $0x180] sm:$0xff]
    %v123 = vld [vmem:[#allocation2 + $0x188] sm:$0xff]
    %v124 = vld [vmem:[#allocation2 + $0x190] sm:$0xff]
    %v125 = vld [vmem:[#allocation2 + $0x198] sm:$0xff]
    %v126 = vld [vmem:[#allocation2 + $0x1a0] sm:$0xff]
    %v127 = vld [vmem:[#allocation2 + $0x1a8] sm:$0xff]
    %v128 = vld [vmem:[#allocation2 + $0x1b0] sm:$0xff]
    %v129 = vld [vmem:[#allocation2 + $0x1b8] sm:$0xff]
    %v130 = vld [vmem:[#allocation2 + $0x1c0] sm:$0xff]
    %v131 = vld [vmem:[#allocation2 + $0x1c8] sm:$0xff]
    %v132 = vld [vmem:[#allocation2 + $0x1d0] sm:$0xff]
    %v133 = vld [vmem:[#allocation2 + $0x1d8] sm:$0xff]
    %v134 = vld [vmem:[#allocation2 + $0x1e0] sm:$0xff]
    %v135 = vld [vmem:[#allocation2 + $0x1e8] sm:$0xff]
    %v136 = vld [vmem:[#allocation2 + $0x1f0] sm:$0xff]
    %v137 = vld [vmem:[#allocation2 + $0x1f8] sm:$0xff]
    %v138 = vld [vmem:[#allocation2 + $0x200] sm:$0xff]
    %v139 = vld [vmem:[#allocation2 + $0x208] sm:$0xff]
    %v140 = vld [vmem:[#allocation2 + $0x210] sm:$0xff]
    %v141 = vld [vmem:[#allocation2 + $0x218] sm:$0xff]
    %v142 = vld [vmem:[#allocation2 + $0x220] sm:$0xff]
    %v143 = vld [vmem:[#allocation2 + $0x228] sm:$0xff]
    %v144 = vld [vmem:[#allocation2 + $0x230] sm:$0xff]
    %v145 = vld [vmem:[#allocation2 + $0x238] sm:$0xff]
    %v146 = vld [vmem:[#allocation2 + $0x240] sm:$0xff]
    %v147 = vld [vmem:[#allocation2 + $0x248] sm:$0xff]
    %v148 = vld [vmem:[#allocation2 + $0x250] sm:$0xff]
    %v149 = vld [vmem:[#allocation2 + $0x258] sm:$0xff]
    %v150 = vld [vmem:[#allocation2 + $0x260] sm:$0xff]
    %v151 = vld [vmem:[#allocation2 + $0x268] sm:$0xff]
    %v152 = vld [vmem:[#allocation2 + $0x270] sm:$0xff]
    %v153 = vld [vmem:[#allocation2 + $0x278] sm:$0xff]
    %v154 = vld [vmem:[#allocation2 + $0x280] sm:$0xff]
    %v155 = vld [vmem:[#allocation2 + $0x288] sm:$0xff]
    %v156 = vld [vmem:[#allocation2 + $0x290] sm:$0xff]
    %v157 = vld [vmem:[#allocation2 + $0x298] sm:$0xff]
    %v158 = vld [vmem:[#allocation2 + $0x2a0] sm:$0xff]
    %v159 = vld [vmem:[#allocation2 + $0x2a8] sm:$0xff]
    %v160 = vld [vmem:[#allocation2 + $0x2b0] sm:$0xff]
    %v161 = vld [vmem:[#allocation2 + $0x2b8] sm:$0xff]
    %v162 = vld [vmem:[#allocation2 + $0x2c0] sm:$0xff]
    %v163 = vld [vmem:[#allocation2 + $0x2c8] sm:$0xff]
    %v164 = vld [vmem:[#allocation2 + $0x2d0] sm:$0xff]
    %v165 = vld [vmem:[#allocation2 + $0x2d8] sm:$0xff]
    %v166 = vld [vmem:[#allocation2 + $0x2e0] sm:$0xff]
    %v167 = vld [vmem:[#allocation2 + $0x2e8] sm:$0xff]
    %v168 = vld [vmem:[#allocation2 + $0x2f0] sm:$0xff]
    %v169 = vld [vmem:[#allocation2 + $0x2f8] sm:$0xff]
    %v170 = vld [vmem:[#allocation2 + $0x300] sm:$0xff]
    %v171 = vld [vmem:[#allocation2 + $0x308] sm:$0xff]
    %v172 = vld [vmem:[#allocation2 + $0x310] sm:$0xff]
    %v173 = vld [vmem:[#allocation2 + $0x318] sm:$0xff]
    %v174 = vld [vmem:[#allocation2 + $0x320] sm:$0xff]
    %v175 = vld [vmem:[#allocation2 + $0x328] sm:$0xff]
    %v176 = vld [vmem:[#allocation2 + $0x330] sm:$0xff]
    %v177 = vld [vmem:[#allocation2 + $0x338] sm:$0xff]
    %v178 = vld [vmem:[#allocation2 + $0x340] sm:$0xff]
    %v179 = vld [vmem:[#allocation2 + $0x348] sm:$0xff]
    %v180 = vld [vmem:[#allocation2 + $0x350] sm:$0xff]
    %v181 = vld [vmem:[#allocation2 + $0x358] sm:$0xff]
    %v182 = vld [vmem:[#allocation2 + $0x360] sm:$0xff]
    %v183 = vld [vmem:[#allocation2 + $0x368] sm:$0xff]
    %v184 = vld [vmem:[#allocation2 + $0x370] sm:$0xff]
    %v185 = vld [vmem:[#allocation2 + $0x378] sm:$0xff]
    %v186 = vld [vmem:[#allocation2 + $0x380] sm:$0xff]
    %v187 = vld [vmem:[#allocation2 + $0x388] sm:$0xff]
    %v188 = vld [vmem:[#allocation2 + $0x390] sm:$0xff]
    %v189 = vld [vmem:[#allocation2 + $0x398] sm:$0xff]
    %v190 = vld [vmem:[#allocation2 + $0x3a0] sm:$0xff]
    %v191 = vld [vmem:[#allocation2 + $0x3a8] sm:$0xff]
    %v192 = vld [vmem:[#allocation2 + $0x3b0] sm:$0xff]
    %v193 = vld [vmem:[#allocation2 + $0x3b8] sm:$0xff]
    %v194 = vld [vmem:[#allocation2 + $0x3c0] sm:$0xff]
    %v195 = vld [vmem:[#allocation2 + $0x3c8] sm:$0xff]
    %v196 = vld [vmem:[#allocation2 + $0x3d0] sm:$0xff]
    %v197 = vld [vmem:[#allocation2 + $0x3d8] sm:$0xff]
    %v198 = vld [vmem:[#allocation2 + $0x3e0] sm:$0xff]
    %v199 = vld [vmem:[#allocation2 + $0x3e8] sm:$0xff]
    %v200 = vld [vmem:[#allocation2 + $0x3f0] sm:$0xff]
    %v201 = vld [vmem:[#allocation2 + $0x3f8] sm:$0xff]
    %v202 = vld [vmem:[#allocation2 + $0x400] sm:$0xff]
    %v203 = vld [vmem:[#allocation2 + $0x408] sm:$0xff]
    %v204 = vld [vmem:[#allocation2 + $0x410] sm:$0xff]
    %v205 = vld [vmem:[#allocation2 + $0x418] sm:$0xff]
    %v206 = vld [vmem:[#allocation2 + $0x420] sm:$0xff]
    %v207 = vld [vmem:[#allocation2 + $0x428] sm:$0xff]
    %v208 = vld [vmem:[#allocation2 + $0x430] sm:$0xff]
    %v209 = vld [vmem:[#allocation2 + $0x438] sm:$0xff]
    %v210 = vld [vmem:[#allocation2 + $0x440] sm:$0xff]
    %v211 = vld [vmem:[#allocation2 + $0x448] sm:$0xff]
    %v212 = vld [vmem:[#allocation2 + $0x450] sm:$0xff]
    %v213 = vld [vmem:[#allocation2 + $0x458] sm:$0xff]
    %v214 = vld [vmem:[#allocation2 + $0x460] sm:$0xff]
    %v215 = vld [vmem:[#allocation2 + $0x468] sm:$0xff]
    %v216 = vld [vmem:[#allocation2 + $0x470] sm:$0xff]
    %v217 = vld [vmem:[#allocation2 + $0x478] sm:$0xff]
    %v218 = vld [vmem:[#allocation2 + $0x480] sm:$0xff]
    %v219 = vld [vmem:[#allocation2 + $0x488] sm:$0xff]
    %v220 = vld [vmem:[#allocation2 + $0x490] sm:$0xff]
    %v221 = vld [vmem:[#allocation2 + $0x498] sm:$0xff]
    %v222 = vld [vmem:[#allocation2 + $0x4a0] sm:$0xff]
    %v223 = vld [vmem:[#allocation2 + $0x4a8] sm:$0xff]
    %v224 = vld [vmem:[#allocation2 + $0x4b0] sm:$0xff]
    %v225 = vld [vmem:[#allocation2 + $0x4b8] sm:$0xff]
    %v226 = vld [vmem:[#allocation2 + $0x4c0] sm:$0xff]
    %v227 = vld [vmem:[#allocation2 + $0x4c8] sm:$0xff]
    %v228 = vld [vmem:[#allocation2 + $0x4d0] sm:$0xff]
    %v229 = vld [vmem:[#allocation2 + $0x4d8] sm:$0xff]
    %v230 = vld [vmem:[#allocation2 + $0x4e0] sm:$0xff]
    %v231 = vld [vmem:[#allocation2 + $0x4e8] sm:$0xff]
    %v232 = vld [vmem:[#allocation2 + $0x4f0] sm:$0xff]
    %v233 = vld [vmem:[#allocation2 + $0x4f8] sm:$0xff]
    %v234 = vld [vmem:[#allocation2 + $0x500] sm:$0xff]
    %v235 = vld [vmem:[#allocation2 + $0x508] sm:$0xff]
    %v236 = vld [vmem:[#allocation2 + $0x510] sm:$0xff]
    %v237 = vld [vmem:[#allocation2 + $0x518] sm:$0xff]
    %v238 = vld [vmem:[#allocation2 + $0x520] sm:$0xff]
    %v239 = vld [vmem:[#allocation2 + $0x528] sm:$0xff]
    %v240 = vld [vmem:[#allocation2 + $0x530] sm:$0xff]
    %v241 = vld [vmem:[#allocation2 + $0x538] sm:$0xff]
    %v242 = vld [vmem:[#allocation2 + $0x540] sm:$0xff]
    %v243 = vld [vmem:[#allocation2 + $0x548] sm:$0xff]
    %v244 = vld [vmem:[#allocation2 + $0x550] sm:$0xff]
    %v245 = vld [vmem:[#allocation2 + $0x558] sm:$0xff]
    %v246 = vld [vmem:[#allocation2 + $0x560] sm:$0xff]
    %v247 = vld [vmem:[#allocation2 + $0x568] sm:$0xff]
    %v248 = vld [vmem:[#allocation2 + $0x570] sm:$0xff]
    %v249 = vld [vmem:[#allocation2 + $0x578] sm:$0xff]
    %v250 = vld [vmem:[#allocation2 + $0x580] sm:$0xff]
    %v251 = vld [vmem:[#allocation2 + $0x588] sm:$0xff]
    %v252 = vld [vmem:[#allocation2 + $0x590] sm:$0xff]
    %v253 = vld [vmem:[#allocation2 + $0x598] sm:$0xff]
    %v254 = vld [vmem:[#allocation2 + $0x5a0] sm:$0xff]
    %v255 = vld [vmem:[#allocation2 + $0x5a8] sm:$0xff]
    %v256 = vld [vmem:[#allocation2 + $0x5b0] sm:$0xff]
    %v257 = vld [vmem:[#allocation2 + $0x5b8] sm:$0xff]
    %v258 = vld [vmem:[#allocation2 + $0x5c0] sm:$0xff]
    %v259 = vld [vmem:[#allocation2 + $0x5c8] sm:$0xff]
    %v260 = vld [vmem:[#allocation2 + $0x5d0] sm:$0xff]
    %v261 = vld [vmem:[#allocation2 + $0x5d8] sm:$0xff]
    %v262 = vld [vmem:[#allocation2 + $0x5e0] sm:$0xff]
    %v263 = vld [vmem:[#allocation2 + $0x5e8] sm:$0xff]
    %v264 = vld [vmem:[#allocation2 + $0x5f0] sm:$0xff]
    %v265 = vld [vmem:[#allocation2 + $0x5f8] sm:$0xff]
    %v266 = vld [vmem:[#allocation2 + $0x600] sm:$0xff]
    %v267 = vld [vmem:[#allocation2 + $0x608] sm:$0xff]
    %v268 = vld [vmem:[#allocation2 + $0x610] sm:$0xff]
    %v269 = vld [vmem:[#allocation2 + $0x618] sm:$0xff]
    %v270 = vld [vmem:[#allocation2 + $0x620] sm:$0xff]
    %v271 = vld [vmem:[#allocation2 + $0x628] sm:$0xff]
    %v272 = vld [vmem:[#allocation2 + $0x630] sm:$0xff]
    %v273 = vld [vmem:[#allocation2 + $0x638] sm:$0xff]
    %v274 = vld [vmem:[#allocation2 + $0x640] sm:$0xff]
    %v275 = vld [vmem:[#allocation2 + $0x648] sm:$0xff]
    %v276 = vld [vmem:[#allocation2 + $0x650] sm:$0xff]
    %v277 = vld [vmem:[#allocation2 + $0x658] sm:$0xff]
    %v278 = vld [vmem:[#allocation2 + $0x660] sm:$0xff]
    %v279 = vld [vmem:[#allocation2 + $0x668] sm:$0xff]
    %v280 = vld [vmem:[#allocation2 + $0x670] sm:$0xff]
    %v281 = vld [vmem:[#allocation2 + $0x678] sm:$0xff]
    %v282 = vld [vmem:[#allocation2 + $0x680] sm:$0xff]
    %v283 = vld [vmem:[#allocation2 + $0x688] sm:$0xff]
    %v284 = vld [vmem:[#allocation2 + $0x690] sm:$0xff]
    %v285 = vld [vmem:[#allocation2 + $0x698] sm:$0xff]
    %v286 = vld [vmem:[#allocation2 + $0x6a0] sm:$0xff]
    %v287 = vld [vmem:[#allocation2 + $0x6a8] sm:$0xff]
    %v288 = vld [vmem:[#allocation2 + $0x6b0] sm:$0xff]
    %v289 = vld [vmem:[#allocation2 + $0x6b8] sm:$0xff]
    %v290 = vld [vmem:[#allocation2 + $0x6c0] sm:$0xff]
    %v291 = vld [vmem:[#allocation2 + $0x6c8] sm:$0xff]
    %v292 = vld [vmem:[#allocation2 + $0x6d0] sm:$0xff]
    %v293 = vld [vmem:[#allocation2 + $0x6d8] sm:$0xff]
    %v294 = vld [vmem:[#allocation2 + $0x6e0] sm:$0xff]
    %v295 = vld [vmem:[#allocation2 + $0x6e8] sm:$0xff]
    %v296 = vld [vmem:[#allocation2 + $0x6f0] sm:$0xff]
    %v297 = vld [vmem:[#allocation2 + $0x6f8] sm:$0xff]
    %v298 = vld [vmem:[#allocation2 + $0x700] sm:$0xff]
    %v299 = vld [vmem:[#allocation2 + $0x708] sm:$0xff]
    %v300 = vld [vmem:[#allocation2 + $0x710] sm:$0xff]
    %v301 = vld [vmem:[#allocation2 + $0x718] sm:$0xff]
    %v302 = vld [vmem:[#allocation2 + $0x720] sm:$0xff]
    %v303 = vld [vmem:[#allocation2 + $0x728] sm:$0xff]
    %v304 = vld [vmem:[#allocation2 + $0x730] sm:$0xff]
    %v305 = vld [vmem:[#allocation2 + $0x738] sm:$0xff]
    %v306 = vld [vmem:[#allocation2 + $0x740] sm:$0xff]
    %v307 = vld [vmem:[#allocation2 + $0x748] sm:$0xff]
    %v308 = vld [vmem:[#allocation2 + $0x750] sm:$0xff]
    %v309 = vld [vmem:[#allocation2 + $0x758] sm:$0xff]
    %v310 = vld [vmem:[#allocation2 + $0x760] sm:$0xff]
    %v311 = vld [vmem:[#allocation2 + $0x768] sm:$0xff]
    %v312 = vld [vmem:[#allocation2 + $0x770] sm:$0xff]
    %v313 = vld [vmem:[#allocation2 + $0x778] sm:$0xff]
    %v314 = vld [vmem:[#allocation2 + $0x780] sm:$0xff]
    %v315 = vld [vmem:[#allocation2 + $0x788] sm:$0xff]
    %v316 = vld [vmem:[#allocation2 + $0x790] sm:$0xff]
    %v317 = vld [vmem:[#allocation2 + $0x798] sm:$0xff]
    %v318 = vld [vmem:[#allocation2 + $0x7a0] sm:$0xff]
    %v319 = vld [vmem:[#allocation2 + $0x7a8] sm:$0xff]
    %v320 = vld [vmem:[#allocation2 + $0x7b0] sm:$0xff]
    %v321 = vld [vmem:[#allocation2 + $0x7b8] sm:$0xff]
    %v322 = vld [vmem:[#allocation2 + $0x7c0] sm:$0xff]
    %v323 = vld [vmem:[#allocation2 + $0x7c8] sm:$0xff]
    %v324 = vld [vmem:[#allocation2 + $0x7d0] sm:$0xff]
    %v325 = vld [vmem:[#allocation2 + $0x7d8] sm:$0xff]
    %v326 = vld [vmem:[#allocation2 + $0x7e0] sm:$0xff]
    %v327 = vld [vmem:[#allocation2 + $0x7e8] sm:$0xff]
    %v328 = vld [vmem:[#allocation2 + $0x7f0] sm:$0xff]
    %v329 = vld [vmem:[#allocation2 + $0x7f8] sm:$0xff]
    %v330 = vpack.c.bf16 %v78, %v74
    %v331 = vpack.c.bf16 %v79, %v75
    %v332 = vpack.c.bf16 %v80, %v76
    %v333 = vpack.c.bf16 %v81, %v77
    %v334 = vpack.c.bf16 %v86, %v82
    %v335 = vpack.c.bf16 %v87, %v83
    %v336 = vpack.c.bf16 %v88, %v84
    %v337 = vpack.c.bf16 %v89, %v85
    %v338 = vpack.c.bf16 %v94, %v90
    %v339 = vpack.c.bf16 %v95, %v91
    %v340 = vpack.c.bf16 %v96, %v92
    %v341 = vpack.c.bf16 %v97, %v93
    %v342 = vpack.c.bf16 %v102, %v98
    %v343 = vpack.c.bf16 %v103, %v99
    %v344 = vpack.c.bf16 %v104, %v100
    %v345 = vpack.c.bf16 %v105, %v101
    %v346 = vpack.c.bf16 %v110, %v106
    %v347 = vpack.c.bf16 %v111, %v107
    %v348 = vpack.c.bf16 %v112, %v108
    %v349 = vpack.c.bf16 %v113, %v109
    %v350 = vpack.c.bf16 %v118, %v114
    %v351 = vpack.c.bf16 %v119, %v115
    %v352 = vpack.c.bf16 %v120, %v116
    %v353 = vpack.c.bf16 %v121, %v117
    %v354 = vpack.c.bf16 %v126, %v122
    %v355 = vpack.c.bf16 %v127, %v123
    %v356 = vpack.c.bf16 %v128, %v124
    %v357 = vpack.c.bf16 %v129, %v125
    %v358 = vpack.c.bf16 %v134, %v130
    %v359 = vpack.c.bf16 %v135, %v131
    %v360 = vpack.c.bf16 %v136, %v132
    %v361 = vpack.c.bf16 %v137, %v133
    %v362 = vpack.c.bf16 %v142, %v138
    %v363 = vpack.c.bf16 %v143, %v139
    %v364 = vpack.c.bf16 %v144, %v140
    %v365 = vpack.c.bf16 %v145, %v141
    %v366 = vpack.c.bf16 %v150, %v146
    %v367 = vpack.c.bf16 %v151, %v147
    %v368 = vpack.c.bf16 %v152, %v148
    %v369 = vpack.c.bf16 %v153, %v149
    %v370 = vpack.c.bf16 %v158, %v154
    %v371 = vpack.c.bf16 %v159, %v155
    %v372 = vpack.c.bf16 %v160, %v156
    %v373 = vpack.c.bf16 %v161, %v157
    %v374 = vpack.c.bf16 %v166, %v162
    %v375 = vpack.c.bf16 %v167, %v163
    %v376 = vpack.c.bf16 %v168, %v164
    %v377 = vpack.c.bf16 %v169, %v165
    %v378 = vpack.c.bf16 %v174, %v170
    %v379 = vpack.c.bf16 %v175, %v171
    %v380 = vpack.c.bf16 %v176, %v172
    %v381 = vpack.c.bf16 %v177, %v173
    %v382 = vpack.c.bf16 %v182, %v178
    %v383 = vpack.c.bf16 %v183, %v179
    %v384 = vpack.c.bf16 %v184, %v180
    %v385 = vpack.c.bf16 %v185, %v181
    %v386 = vpack.c.bf16 %v190, %v186
    %v387 = vpack.c.bf16 %v191, %v187
    %v388 = vpack.c.bf16 %v192, %v188
    %v389 = vpack.c.bf16 %v193, %v189
    %v390 = vpack.c.bf16 %v198, %v194
    %v391 = vpack.c.bf16 %v199, %v195
    %v392 = vpack.c.bf16 %v200, %v196
    %v393 = vpack.c.bf16 %v201, %v197
    %v394 = vpack.c.bf16 %v206, %v202
    %v395 = vpack.c.bf16 %v207, %v203
    %v396 = vpack.c.bf16 %v208, %v204
    %v397 = vpack.c.bf16 %v209, %v205
    %v398 = vpack.c.bf16 %v214, %v210
    %v399 = vpack.c.bf16 %v215, %v211
    %v400 = vpack.c.bf16 %v216, %v212
    %v401 = vpack.c.bf16 %v217, %v213
    %v402 = vpack.c.bf16 %v222, %v218
    %v403 = vpack.c.bf16 %v223, %v219
    %v404 = vpack.c.bf16 %v224, %v220
    %v405 = vpack.c.bf16 %v225, %v221
    %v406 = vpack.c.bf16 %v230, %v226
    %v407 = vpack.c.bf16 %v231, %v227
    %v408 = vpack.c.bf16 %v232, %v228
    %v409 = vpack.c.bf16 %v233, %v229
    %v410 = vpack.c.bf16 %v238, %v234
    %v411 = vpack.c.bf16 %v239, %v235
    %v412 = vpack.c.bf16 %v240, %v236
    %v413 = vpack.c.bf16 %v241, %v237
    %v414 = vpack.c.bf16 %v246, %v242
    %v415 = vpack.c.bf16 %v247, %v243
    %v416 = vpack.c.bf16 %v248, %v244
    %v417 = vpack.c.bf16 %v249, %v245
    %v418 = vpack.c.bf16 %v254, %v250
    %v419 = vpack.c.bf16 %v255, %v251
    %v420 = vpack.c.bf16 %v256, %v252
    %v421 = vpack.c.bf16 %v257, %v253
    %v422 = vpack.c.bf16 %v262, %v258
    %v423 = vpack.c.bf16 %v263, %v259
    %v424 = vpack.c.bf16 %v264, %v260
    %v425 = vpack.c.bf16 %v265, %v261
    %v426 = vpack.c.bf16 %v270, %v266
    %v427 = vpack.c.bf16 %v271, %v267
    %v428 = vpack.c.bf16 %v272, %v268
    %v429 = vpack.c.bf16 %v273, %v269
    %v430 = vpack.c.bf16 %v278, %v274
    %v431 = vpack.c.bf16 %v279, %v275
    %v432 = vpack.c.bf16 %v280, %v276
    %v433 = vpack.c.bf16 %v281, %v277
    %v434 = vpack.c.bf16 %v286, %v282
    %v435 = vpack.c.bf16 %v287, %v283
    %v436 = vpack.c.bf16 %v288, %v284
    %v437 = vpack.c.bf16 %v289, %v285
    %v438 = vpack.c.bf16 %v294, %v290
    %v439 = vpack.c.bf16 %v295, %v291
    %v440 = vpack.c.bf16 %v296, %v292
    %v441 = vpack.c.bf16 %v297, %v293
    %v442 = vpack.c.bf16 %v302, %v298
    %v443 = vpack.c.bf16 %v303, %v299
    %v444 = vpack.c.bf16 %v304, %v300
    %v445 = vpack.c.bf16 %v305, %v301
    %v446 = vpack.c.bf16 %v310, %v306
    %v447 = vpack.c.bf16 %v311, %v307
    %v448 = vpack.c.bf16 %v312, %v308
    %v449 = vpack.c.bf16 %v313, %v309
    %v450 = vpack.c.bf16 %v318, %v314
    %v451 = vpack.c.bf16 %v319, %v315
    %v452 = vpack.c.bf16 %v320, %v316
    %v453 = vpack.c.bf16 %v321, %v317
    %v454 = vpack.c.bf16 %v326, %v322
    %v455 = vpack.c.bf16 %v327, %v323
    %v456 = vpack.c.bf16 %v328, %v324
    %v457 = vpack.c.bf16 %v329, %v325
    %v458 = vld [vmem:[#allocation5] sm:$0xff]
    %v459 = vld [vmem:[#allocation5 + $0x8] sm:$0xff]
    %v460 = vld [vmem:[#allocation5 + $0x10] sm:$0xff]
    %v461 = vld [vmem:[#allocation5 + $0x18] sm:$0xff]
    %v462 = vld [vmem:[#allocation5 + $0x20] sm:$0xff]
    %v463 = vld [vmem:[#allocation5 + $0x28] sm:$0xff]
    %v464 = vld [vmem:[#allocation5 + $0x30] sm:$0xff]
    %v465 = vld [vmem:[#allocation5 + $0x38] sm:$0xff]
    %v466 = vld [vmem:[#allocation5 + $0x40] sm:$0xff]
    %v467 = vld [vmem:[#allocation5 + $0x48] sm:$0xff]
    %v468 = vld [vmem:[#allocation5 + $0x50] sm:$0xff]
    %v469 = vld [vmem:[#allocation5 + $0x58] sm:$0xff]
    %v470 = vld [vmem:[#allocation5 + $0x60] sm:$0xff]
    %v471 = vld [vmem:[#allocation5 + $0x68] sm:$0xff]
    %v472 = vld [vmem:[#allocation5 + $0x70] sm:$0xff]
    %v473 = vld [vmem:[#allocation5 + $0x78] sm:$0xff]
    %v474 = vld [vmem:[#allocation5 + $0x80] sm:$0xff]
    %v475 = vld [vmem:[#allocation5 + $0x88] sm:$0xff]
    %v476 = vld [vmem:[#allocation5 + $0x90] sm:$0xff]
    %v477 = vld [vmem:[#allocation5 + $0x98] sm:$0xff]
    %v478 = vld [vmem:[#allocation5 + $0xa0] sm:$0xff]
    %v479 = vld [vmem:[#allocation5 + $0xa8] sm:$0xff]
    %v480 = vld [vmem:[#allocation5 + $0xb0] sm:$0xff]
    %v481 = vld [vmem:[#allocation5 + $0xb8] sm:$0xff]
    %v482 = vld [vmem:[#allocation5 + $0xc0] sm:$0xff]
    %v483 = vld [vmem:[#allocation5 + $0xc8] sm:$0xff]
    %v484 = vld [vmem:[#allocation5 + $0xd0] sm:$0xff]
    %v485 = vld [vmem:[#allocation5 + $0xd8] sm:$0xff]
    %v486 = vld [vmem:[#allocation5 + $0xe0] sm:$0xff]
    %v487 = vld [vmem:[#allocation5 + $0xe8] sm:$0xff]
    %v488 = vld [vmem:[#allocation5 + $0xf0] sm:$0xff]
    %v489 = vld [vmem:[#allocation5 + $0xf8] sm:$0xff]
    %v490 = vld [vmem:[#allocation5 + $0x100] sm:$0xff]
    %v491 = vld [vmem:[#allocation5 + $0x108] sm:$0xff]
    %v492 = vld [vmem:[#allocation5 + $0x110] sm:$0xff]
    %v493 = vld [vmem:[#allocation5 + $0x118] sm:$0xff]
    %v494 = vld [vmem:[#allocation5 + $0x120] sm:$0xff]
    %v495 = vld [vmem:[#allocation5 + $0x128] sm:$0xff]
    %v496 = vld [vmem:[#allocation5 + $0x130] sm:$0xff]
    %v497 = vld [vmem:[#allocation5 + $0x138] sm:$0xff]
    %v498 = vld [vmem:[#allocation5 + $0x140] sm:$0xff]
    %v499 = vld [vmem:[#allocation5 + $0x148] sm:$0xff]
    %v500 = vld [vmem:[#allocation5 + $0x150] sm:$0xff]
    %v501 = vld [vmem:[#allocation5 + $0x158] sm:$0xff]
    %v502 = vld [vmem:[#allocation5 + $0x160] sm:$0xff]
    %v503 = vld [vmem:[#allocation5 + $0x168] sm:$0xff]
    %v504 = vld [vmem:[#allocation5 + $0x170] sm:$0xff]
    %v505 = vld [vmem:[#allocation5 + $0x178] sm:$0xff]
    %v506 = vld [vmem:[#allocation5 + $0x180] sm:$0xff]
    %v507 = vld [vmem:[#allocation5 + $0x188] sm:$0xff]
    %v508 = vld [vmem:[#allocation5 + $0x190] sm:$0xff]
    %v509 = vld [vmem:[#allocation5 + $0x198] sm:$0xff]
    %v510 = vld [vmem:[#allocation5 + $0x1a0] sm:$0xff]
    %v511 = vld [vmem:[#allocation5 + $0x1a8] sm:$0xff]
    %v512 = vld [vmem:[#allocation5 + $0x1b0] sm:$0xff]
    %v513 = vld [vmem:[#allocation5 + $0x1b8] sm:$0xff]
    %v514 = vld [vmem:[#allocation5 + $0x1c0] sm:$0xff]
    %v515 = vld [vmem:[#allocation5 + $0x1c8] sm:$0xff]
    %v516 = vld [vmem:[#allocation5 + $0x1d0] sm:$0xff]
    %v517 = vld [vmem:[#allocation5 + $0x1d8] sm:$0xff]
    %v518 = vld [vmem:[#allocation5 + $0x1e0] sm:$0xff]
    %v519 = vld [vmem:[#allocation5 + $0x1e8] sm:$0xff]
    %v520 = vld [vmem:[#allocation5 + $0x1f0] sm:$0xff]
    %v521 = vld [vmem:[#allocation5 + $0x1f8] sm:$0xff]
    %v522 = vld [vmem:[#allocation5 + $0x200] sm:$0xff]
    %v523 = vld [vmem:[#allocation5 + $0x208] sm:$0xff]
    %v524 = vld [vmem:[#allocation5 + $0x210] sm:$0xff]
    %v525 = vld [vmem:[#allocation5 + $0x218] sm:$0xff]
    %v526 = vld [vmem:[#allocation5 + $0x220] sm:$0xff]
    %v527 = vld [vmem:[#allocation5 + $0x228] sm:$0xff]
    %v528 = vld [vmem:[#allocation5 + $0x230] sm:$0xff]
    %v529 = vld [vmem:[#allocation5 + $0x238] sm:$0xff]
    %v530 = vld [vmem:[#allocation5 + $0x240] sm:$0xff]
    %v531 = vld [vmem:[#allocation5 + $0x248] sm:$0xff]
    %v532 = vld [vmem:[#allocation5 + $0x250] sm:$0xff]
    %v533 = vld [vmem:[#allocation5 + $0x258] sm:$0xff]
    %v534 = vld [vmem:[#allocation5 + $0x260] sm:$0xff]
    %v535 = vld [vmem:[#allocation5 + $0x268] sm:$0xff]
    %v536 = vld [vmem:[#allocation5 + $0x270] sm:$0xff]
    %v537 = vld [vmem:[#allocation5 + $0x278] sm:$0xff]
    %v538 = vld [vmem:[#allocation5 + $0x280] sm:$0xff]
    %v539 = vld [vmem:[#allocation5 + $0x288] sm:$0xff]
    %v540 = vld [vmem:[#allocation5 + $0x290] sm:$0xff]
    %v541 = vld [vmem:[#allocation5 + $0x298] sm:$0xff]
    %v542 = vld [vmem:[#allocation5 + $0x2a0] sm:$0xff]
    %v543 = vld [vmem:[#allocation5 + $0x2a8] sm:$0xff]
    %v544 = vld [vmem:[#allocation5 + $0x2b0] sm:$0xff]
    %v545 = vld [vmem:[#allocation5 + $0x2b8] sm:$0xff]
    %v546 = vld [vmem:[#allocation5 + $0x2c0] sm:$0xff]
    %v547 = vld [vmem:[#allocation5 + $0x2c8] sm:$0xff]
    %v548 = vld [vmem:[#allocation5 + $0x2d0] sm:$0xff]
    %v549 = vld [vmem:[#allocation5 + $0x2d8] sm:$0xff]
    %v550 = vld [vmem:[#allocation5 + $0x2e0] sm:$0xff]
    %v551 = vld [vmem:[#allocation5 + $0x2e8] sm:$0xff]
    %v552 = vld [vmem:[#allocation5 + $0x2f0] sm:$0xff]
    %v553 = vld [vmem:[#allocation5 + $0x2f8] sm:$0xff]
    %v554 = vld [vmem:[#allocation5 + $0x300] sm:$0xff]
    %v555 = vld [vmem:[#allocation5 + $0x308] sm:$0xff]
    %v556 = vld [vmem:[#allocation5 + $0x310] sm:$0xff]
    %v557 = vld [vmem:[#allocation5 + $0x318] sm:$0xff]
    %v558 = vld [vmem:[#allocation5 + $0x320] sm:$0xff]
    %v559 = vld [vmem:[#allocation5 + $0x328] sm:$0xff]
    %v560 = vld [vmem:[#allocation5 + $0x330] sm:$0xff]
    %v561 = vld [vmem:[#allocation5 + $0x338] sm:$0xff]
    %v562 = vld [vmem:[#allocation5 + $0x340] sm:$0xff]
    %v563 = vld [vmem:[#allocation5 + $0x348] sm:$0xff]
    %v564 = vld [vmem:[#allocation5 + $0x350] sm:$0xff]
    %v565 = vld [vmem:[#allocation5 + $0x358] sm:$0xff]
    %v566 = vld [vmem:[#allocation5 + $0x360] sm:$0xff]
    %v567 = vld [vmem:[#allocation5 + $0x368] sm:$0xff]
    %v568 = vld [vmem:[#allocation5 + $0x370] sm:$0xff]
    %v569 = vld [vmem:[#allocation5 + $0x378] sm:$0xff]
    %v570 = vld [vmem:[#allocation5 + $0x380] sm:$0xff]
    %v571 = vld [vmem:[#allocation5 + $0x388] sm:$0xff]
    %v572 = vld [vmem:[#allocation5 + $0x390] sm:$0xff]
    %v573 = vld [vmem:[#allocation5 + $0x398] sm:$0xff]
    %v574 = vld [vmem:[#allocation5 + $0x3a0] sm:$0xff]
    %v575 = vld [vmem:[#allocation5 + $0x3a8] sm:$0xff]
    %v576 = vld [vmem:[#allocation5 + $0x3b0] sm:$0xff]
    %v577 = vld [vmem:[#allocation5 + $0x3b8] sm:$0xff]
    %v578 = vld [vmem:[#allocation5 + $0x3c0] sm:$0xff]
    %v579 = vld [vmem:[#allocation5 + $0x3c8] sm:$0xff]
    %v580 = vld [vmem:[#allocation5 + $0x3d0] sm:$0xff]
    %v581 = vld [vmem:[#allocation5 + $0x3d8] sm:$0xff]
    %v582 = vld [vmem:[#allocation5 + $0x3e0] sm:$0xff]
    %v583 = vld [vmem:[#allocation5 + $0x3e8] sm:$0xff]
    %v584 = vld [vmem:[#allocation5 + $0x3f0] sm:$0xff]
    %v585 = vld [vmem:[#allocation5 + $0x3f8] sm:$0xff]
    %v586 = vld [vmem:[#allocation7] sm:$0xf]
    %v588 = vlaneseq
    %v589 = vshrl.u32 %v588, 7
    %v590 = vsub.s32 0, %v589
    %v591 = vrot.slane %v586, %v590
    %v592 = vlaneseq
    %v593 = vshrl.u32 %v592, 7
    %v594 = vsub.s32 1, %v593
    %v595 = vrot.slane %v586, %v594
    %v596 = vlaneseq
    %v597 = vshrl.u32 %v596, 7
    %v598 = vsub.s32 2, %v597
    %v599 = vrot.slane %v586, %v598
    %v600 = vlaneseq
    %v601 = vshrl.u32 %v600, 7
    %v602 = vsub.s32 3, %v601
    %v603 = vrot.slane %v586, %v602
    %v736 = vunpack.c.l.b16 %v458
    %v737 = vunpack.c.h.b16 %v458
    %v738 = vunpack.c.l.b16 %v459
    %v739 = vunpack.c.h.b16 %v459
    %v740 = vunpack.c.l.b16 %v460
    %v741 = vunpack.c.h.b16 %v460
    %v742 = vunpack.c.l.b16 %v461
    %v743 = vunpack.c.h.b16 %v461
    %v744 = vunpack.c.l.b16 %v462
    %v745 = vunpack.c.h.b16 %v462
    %v746 = vunpack.c.l.b16 %v463
    %v747 = vunpack.c.h.b16 %v463
    %v748 = vunpack.c.l.b16 %v464
    %v749 = vunpack.c.h.b16 %v464
    %v750 = vunpack.c.l.b16 %v465
    %v751 = vunpack.c.h.b16 %v465
    %v752 = vunpack.c.l.b16 %v466
    %v753 = vunpack.c.h.b16 %v466
    %v754 = vunpack.c.l.b16 %v467
    %v755 = vunpack.c.h.b16 %v467
    %v756 = vunpack.c.l.b16 %v468
    %v757 = vunpack.c.h.b16 %v468
    %v758 = vunpack.c.l.b16 %v469
    %v759 = vunpack.c.h.b16 %v469
    %v760 = vunpack.c.l.b16 %v470
    %v761 = vunpack.c.h.b16 %v470
    %v762 = vunpack.c.l.b16 %v471
    %v763 = vunpack.c.h.b16 %v471
    %v764 = vunpack.c.l.b16 %v472
    %v765 = vunpack.c.h.b16 %v472
    %v766 = vunpack.c.l.b16 %v473
    %v767 = vunpack.c.h.b16 %v473
    %v768 = vunpack.c.l.b16 %v474
    %v769 = vunpack.c.h.b16 %v474
    %v770 = vunpack.c.l.b16 %v475
    %v771 = vunpack.c.h.b16 %v475
    %v772 = vunpack.c.l.b16 %v476
    %v773 = vunpack.c.h.b16 %v476
    %v774 = vunpack.c.l.b16 %v477
    %v775 = vunpack.c.h.b16 %v477
    %v776 = vunpack.c.l.b16 %v478
    %v777 = vunpack.c.h.b16 %v478
    %v778 = vunpack.c.l.b16 %v479
    %v779 = vunpack.c.h.b16 %v479
    %v780 = vunpack.c.l.b16 %v480
    %v781 = vunpack.c.h.b16 %v480
    %v782 = vunpack.c.l.b16 %v481
    %v783 = vunpack.c.h.b16 %v481
    %v784 = vunpack.c.l.b16 %v482
    %v785 = vunpack.c.h.b16 %v482
    %v786 = vunpack.c.l.b16 %v483
    %v787 = vunpack.c.h.b16 %v483
    %v788 = vunpack.c.l.b16 %v484
    %v789 = vunpack.c.h.b16 %v484
    %v790 = vunpack.c.l.b16 %v485
    %v791 = vunpack.c.h.b16 %v485
    %v792 = vunpack.c.l.b16 %v486
    %v793 = vunpack.c.h.b16 %v486
    %v794 = vunpack.c.l.b16 %v487
    %v795 = vunpack.c.h.b16 %v487
    %v796 = vunpack.c.l.b16 %v488
    %v797 = vunpack.c.h.b16 %v488
    %v798 = vunpack.c.l.b16 %v489
    %v799 = vunpack.c.h.b16 %v489
    %v800 = vunpack.c.l.b16 %v490
    %v801 = vunpack.c.h.b16 %v490
    %v802 = vunpack.c.l.b16 %v491
    %v803 = vunpack.c.h.b16 %v491
    %v804 = vunpack.c.l.b16 %v492
    %v805 = vunpack.c.h.b16 %v492
    %v806 = vunpack.c.l.b16 %v493
    %v807 = vunpack.c.h.b16 %v493
    %v808 = vunpack.c.l.b16 %v494
    %v809 = vunpack.c.h.b16 %v494
    %v810 = vunpack.c.l.b16 %v495
    %v811 = vunpack.c.h.b16 %v495
    %v812 = vunpack.c.l.b16 %v496
    %v813 = vunpack.c.h.b16 %v496
    %v814 = vunpack.c.l.b16 %v497
    %v815 = vunpack.c.h.b16 %v497
    %v816 = vunpack.c.l.b16 %v498
    %v817 = vunpack.c.h.b16 %v498
    %v818 = vunpack.c.l.b16 %v499
    %v819 = vunpack.c.h.b16 %v499
    %v820 = vunpack.c.l.b16 %v500
    %v821 = vunpack.c.h.b16 %v500
    %v822 = vunpack.c.l.b16 %v501
    %v823 = vunpack.c.h.b16 %v501
    %v824 = vunpack.c.l.b16 %v502
    %v825 = vunpack.c.h.b16 %v502
    %v826 = vunpack.c.l.b16 %v503
    %v827 = vunpack.c.h.b16 %v503
    %v828 = vunpack.c.l.b16 %v504
    %v829 = vunpack.c.h.b16 %v504
    %v830 = vunpack.c.l.b16 %v505
    %v831 = vunpack.c.h.b16 %v505
    %v832 = vunpack.c.l.b16 %v506
    %v833 = vunpack.c.h.b16 %v506
    %v834 = vunpack.c.l.b16 %v507
    %v835 = vunpack.c.h.b16 %v507
    %v836 = vunpack.c.l.b16 %v508
    %v837 = vunpack.c.h.b16 %v508
    %v838 = vunpack.c.l.b16 %v509
    %v839 = vunpack.c.h.b16 %v509
    %v840 = vunpack.c.l.b16 %v510
    %v841 = vunpack.c.h.b16 %v510
    %v842 = vunpack.c.l.b16 %v511
    %v843 = vunpack.c.h.b16 %v511
    %v844 = vunpack.c.l.b16 %v512
    %v845 = vunpack.c.h.b16 %v512
    %v846 = vunpack.c.l.b16 %v513
    %v847 = vunpack.c.h.b16 %v513
    %v848 = vunpack.c.l.b16 %v514
    %v849 = vunpack.c.h.b16 %v514
    %v850 = vunpack.c.l.b16 %v515
    %v851 = vunpack.c.h.b16 %v515
    %v852 = vunpack.c.l.b16 %v516
    %v853 = vunpack.c.h.b16 %v516
    %v854 = vunpack.c.l.b16 %v517
    %v855 = vunpack.c.h.b16 %v517
    %v856 = vunpack.c.l.b16 %v518
    %v857 = vunpack.c.h.b16 %v518
    %v858 = vunpack.c.l.b16 %v519
    %v859 = vunpack.c.h.b16 %v519
    %v860 = vunpack.c.l.b16 %v520
    %v861 = vunpack.c.h.b16 %v520
    %v862 = vunpack.c.l.b16 %v521
    %v863 = vunpack.c.h.b16 %v521
    %v864 = vunpack.c.l.b16 %v522
    %v865 = vunpack.c.h.b16 %v522
    %v866 = vunpack.c.l.b16 %v523
    %v867 = vunpack.c.h.b16 %v523
    %v868 = vunpack.c.l.b16 %v524
    %v869 = vunpack.c.h.b16 %v524
    %v870 = vunpack.c.l.b16 %v525
    %v871 = vunpack.c.h.b16 %v525
    %v872 = vunpack.c.l.b16 %v526
    %v873 = vunpack.c.h.b16 %v526
    %v874 = vunpack.c.l.b16 %v527
    %v875 = vunpack.c.h.b16 %v527
    %v876 = vunpack.c.l.b16 %v528
    %v877 = vunpack.c.h.b16 %v528
    %v878 = vunpack.c.l.b16 %v529
    %v879 = vunpack.c.h.b16 %v529
    %v880 = vunpack.c.l.b16 %v530
    %v881 = vunpack.c.h.b16 %v530
    %v882 = vunpack.c.l.b16 %v531
    %v883 = vunpack.c.h.b16 %v531
    %v884 = vunpack.c.l.b16 %v532
    %v885 = vunpack.c.h.b16 %v532
    %v886 = vunpack.c.l.b16 %v533
    %v887 = vunpack.c.h.b16 %v533
    %v888 = vunpack.c.l.b16 %v534
    %v889 = vunpack.c.h.b16 %v534
    %v890 = vunpack.c.l.b16 %v535
    %v891 = vunpack.c.h.b16 %v535
    %v892 = vunpack.c.l.b16 %v536
    %v893 = vunpack.c.h.b16 %v536
    %v894 = vunpack.c.l.b16 %v537
    %v895 = vunpack.c.h.b16 %v537
    %v896 = vunpack.c.l.b16 %v538
    %v897 = vunpack.c.h.b16 %v538
    %v898 = vunpack.c.l.b16 %v539
    %v899 = vunpack.c.h.b16 %v539
    %v900 = vunpack.c.l.b16 %v540
    %v901 = vunpack.c.h.b16 %v540
    %v902 = vunpack.c.l.b16 %v541
    %v903 = vunpack.c.h.b16 %v541
    %v904 = vunpack.c.l.b16 %v542
    %v905 = vunpack.c.h.b16 %v542
    %v906 = vunpack.c.l.b16 %v543
    %v907 = vunpack.c.h.b16 %v543
    %v908 = vunpack.c.l.b16 %v544
    %v909 = vunpack.c.h.b16 %v544
    %v910 = vunpack.c.l.b16 %v545
    %v911 = vunpack.c.h.b16 %v545
    %v912 = vunpack.c.l.b16 %v546
    %v913 = vunpack.c.h.b16 %v546
    %v914 = vunpack.c.l.b16 %v547
    %v915 = vunpack.c.h.b16 %v547
    %v916 = vunpack.c.l.b16 %v548
    %v917 = vunpack.c.h.b16 %v548
    %v918 = vunpack.c.l.b16 %v549
    %v919 = vunpack.c.h.b16 %v549
    %v920 = vunpack.c.l.b16 %v550
    %v921 = vunpack.c.h.b16 %v550
    %v922 = vunpack.c.l.b16 %v551
    %v923 = vunpack.c.h.b16 %v551
    %v924 = vunpack.c.l.b16 %v552
    %v925 = vunpack.c.h.b16 %v552
    %v926 = vunpack.c.l.b16 %v553
    %v927 = vunpack.c.h.b16 %v553
    %v928 = vunpack.c.l.b16 %v554
    %v929 = vunpack.c.h.b16 %v554
    %v930 = vunpack.c.l.b16 %v555
    %v931 = vunpack.c.h.b16 %v555
    %v932 = vunpack.c.l.b16 %v556
    %v933 = vunpack.c.h.b16 %v556
    %v934 = vunpack.c.l.b16 %v557
    %v935 = vunpack.c.h.b16 %v557
    %v936 = vunpack.c.l.b16 %v558
    %v937 = vunpack.c.h.b16 %v558
    %v938 = vunpack.c.l.b16 %v559
    %v939 = vunpack.c.h.b16 %v559
    %v940 = vunpack.c.l.b16 %v560
    %v941 = vunpack.c.h.b16 %v560
    %v942 = vunpack.c.l.b16 %v561
    %v943 = vunpack.c.h.b16 %v561
    %v944 = vunpack.c.l.b16 %v562
    %v945 = vunpack.c.h.b16 %v562
    %v946 = vunpack.c.l.b16 %v563
    %v947 = vunpack.c.h.b16 %v563
    %v948 = vunpack.c.l.b16 %v564
    %v949 = vunpack.c.h.b16 %v564
    %v950 = vunpack.c.l.b16 %v565
    %v951 = vunpack.c.h.b16 %v565
    %v952 = vunpack.c.l.b16 %v566
    %v953 = vunpack.c.h.b16 %v566
    %v954 = vunpack.c.l.b16 %v567
    %v955 = vunpack.c.h.b16 %v567
    %v956 = vunpack.c.l.b16 %v568
    %v957 = vunpack.c.h.b16 %v568
    %v958 = vunpack.c.l.b16 %v569
    %v959 = vunpack.c.h.b16 %v569
    %v960 = vunpack.c.l.b16 %v570
    %v961 = vunpack.c.h.b16 %v570
    %v962 = vunpack.c.l.b16 %v571
    %v963 = vunpack.c.h.b16 %v571
    %v964 = vunpack.c.l.b16 %v572
    %v965 = vunpack.c.h.b16 %v572
    %v966 = vunpack.c.l.b16 %v573
    %v967 = vunpack.c.h.b16 %v573
    %v968 = vunpack.c.l.b16 %v574
    %v969 = vunpack.c.h.b16 %v574
    %v970 = vunpack.c.l.b16 %v575
    %v971 = vunpack.c.h.b16 %v575
    %v972 = vunpack.c.l.b16 %v576
    %v973 = vunpack.c.h.b16 %v576
    %v974 = vunpack.c.l.b16 %v577
    %v975 = vunpack.c.h.b16 %v577
    %v976 = vunpack.c.l.b16 %v578
    %v977 = vunpack.c.h.b16 %v578
    %v978 = vunpack.c.l.b16 %v579
    %v979 = vunpack.c.h.b16 %v579
    %v980 = vunpack.c.l.b16 %v580
    %v981 = vunpack.c.h.b16 %v580
    %v982 = vunpack.c.l.b16 %v581
    %v983 = vunpack.c.h.b16 %v581
    %v984 = vunpack.c.l.b16 %v582
    %v985 = vunpack.c.h.b16 %v582
    %v986 = vunpack.c.l.b16 %v583
    %v987 = vunpack.c.h.b16 %v583
    %v988 = vunpack.c.l.b16 %v584
    %v989 = vunpack.c.h.b16 %v584
    %v990 = vunpack.c.l.b16 %v585
    %v991 = vunpack.c.h.b16 %v585
    %v992 = vpack.c.b16 %v740, %v736
    %v993 = vpack.c.b16 %v741, %v737
    %v994 = vpack.c.b16 %v742, %v738
    %v995 = vpack.c.b16 %v743, %v739
    %v996 = vpack.c.b16 %v748, %v744
    %v997 = vpack.c.b16 %v749, %v745
    %v998 = vpack.c.b16 %v750, %v746
    %v999 = vpack.c.b16 %v751, %v747
    %v1000 = vpack.c.b16 %v756, %v752
    %v1001 = vpack.c.b16 %v757, %v753
    %v1002 = vpack.c.b16 %v758, %v754
    %v1003 = vpack.c.b16 %v759, %v755
    %v1004 = vpack.c.b16 %v764, %v760
    %v1005 = vpack.c.b16 %v765, %v761
    %v1006 = vpack.c.b16 %v766, %v762
    %v1007 = vpack.c.b16 %v767, %v763
    %v1008 = vpack.c.b16 %v772, %v768
    %v1009 = vpack.c.b16 %v773, %v769
    %v1010 = vpack.c.b16 %v774, %v770
    %v1011 = vpack.c.b16 %v775, %v771
    %v1012 = vpack.c.b16 %v780, %v776
    %v1013 = vpack.c.b16 %v781, %v777
    %v1014 = vpack.c.b16 %v782, %v778
    %v1015 = vpack.c.b16 %v783, %v779
    %v1016 = vpack.c.b16 %v788, %v784
    %v1017 = vpack.c.b16 %v789, %v785
    %v1018 = vpack.c.b16 %v790, %v786
    %v1019 = vpack.c.b16 %v791, %v787
    %v1020 = vpack.c.b16 %v796, %v792
    %v1021 = vpack.c.b16 %v797, %v793
    %v1022 = vpack.c.b16 %v798, %v794
    %v1023 = vpack.c.b16 %v799, %v795
    %v1024 = vpack.c.b16 %v804, %v800
    %v1025 = vpack.c.b16 %v805, %v801
    %v1026 = vpack.c.b16 %v806, %v802
    %v1027 = vpack.c.b16 %v807, %v803
    %v1028 = vpack.c.b16 %v812, %v808
    %v1029 = vpack.c.b16 %v813, %v809
    %v1030 = vpack.c.b16 %v814, %v810
    %v1031 = vpack.c.b16 %v815, %v811
    %v1032 = vpack.c.b16 %v820, %v816
    %v1033 = vpack.c.b16 %v821, %v817
    %v1034 = vpack.c.b16 %v822, %v818
    %v1035 = vpack.c.b16 %v823, %v819
    %v1036 = vpack.c.b16 %v828, %v824
    %v1037 = vpack.c.b16 %v829, %v825
    %v1038 = vpack.c.b16 %v830, %v826
    %v1039 = vpack.c.b16 %v831, %v827
    %v1040 = vpack.c.b16 %v836, %v832
    %v1041 = vpack.c.b16 %v837, %v833
    %v1042 = vpack.c.b16 %v838, %v834
    %v1043 = vpack.c.b16 %v839, %v835
    %v1044 = vpack.c.b16 %v844, %v840
    %v1045 = vpack.c.b16 %v845, %v841
    %v1046 = vpack.c.b16 %v846, %v842
    %v1047 = vpack.c.b16 %v847, %v843
    %v1048 = vpack.c.b16 %v852, %v848
    %v1049 = vpack.c.b16 %v853, %v849
    %v1050 = vpack.c.b16 %v854, %v850
    %v1051 = vpack.c.b16 %v855, %v851
    %v1052 = vpack.c.b16 %v860, %v856
    %v1053 = vpack.c.b16 %v861, %v857
    %v1054 = vpack.c.b16 %v862, %v858
    %v1055 = vpack.c.b16 %v863, %v859
    %v1056 = vpack.c.b16 %v868, %v864
    %v1057 = vpack.c.b16 %v869, %v865
    %v1058 = vpack.c.b16 %v870, %v866
    %v1059 = vpack.c.b16 %v871, %v867
    %v1060 = vpack.c.b16 %v876, %v872
    %v1061 = vpack.c.b16 %v877, %v873
    %v1062 = vpack.c.b16 %v878, %v874
    %v1063 = vpack.c.b16 %v879, %v875
    %v1064 = vpack.c.b16 %v884, %v880
    %v1065 = vpack.c.b16 %v885, %v881
    %v1066 = vpack.c.b16 %v886, %v882
    %v1067 = vpack.c.b16 %v887, %v883
    %v1068 = vpack.c.b16 %v892, %v888
    %v1069 = vpack.c.b16 %v893, %v889
    %v1070 = vpack.c.b16 %v894, %v890
    %v1071 = vpack.c.b16 %v895, %v891
    %v1072 = vpack.c.b16 %v900, %v896
    %v1073 = vpack.c.b16 %v901, %v897
    %v1074 = vpack.c.b16 %v902, %v898
    %v1075 = vpack.c.b16 %v903, %v899
    %v1076 = vpack.c.b16 %v908, %v904
    %v1077 = vpack.c.b16 %v909, %v905
    %v1078 = vpack.c.b16 %v910, %v906
    %v1079 = vpack.c.b16 %v911, %v907
    %v1080 = vpack.c.b16 %v916, %v912
    %v1081 = vpack.c.b16 %v917, %v913
    %v1082 = vpack.c.b16 %v918, %v914
    %v1083 = vpack.c.b16 %v919, %v915
    %v1084 = vpack.c.b16 %v924, %v920
    %v1085 = vpack.c.b16 %v925, %v921
    %v1086 = vpack.c.b16 %v926, %v922
    %v1087 = vpack.c.b16 %v927, %v923
    %v1088 = vpack.c.b16 %v932, %v928
    %v1089 = vpack.c.b16 %v933, %v929
    %v1090 = vpack.c.b16 %v934, %v930
    %v1091 = vpack.c.b16 %v935, %v931
    %v1092 = vpack.c.b16 %v940, %v936
    %v1093 = vpack.c.b16 %v941, %v937
    %v1094 = vpack.c.b16 %v942, %v938
    %v1095 = vpack.c.b16 %v943, %v939
    %v1096 = vpack.c.b16 %v948, %v944
    %v1097 = vpack.c.b16 %v949, %v945
    %v1098 = vpack.c.b16 %v950, %v946
    %v1099 = vpack.c.b16 %v951, %v947
    %v1100 = vpack.c.b16 %v956, %v952
    %v1101 = vpack.c.b16 %v957, %v953
    %v1102 = vpack.c.b16 %v958, %v954
    %v1103 = vpack.c.b16 %v959, %v955
    %v1104 = vpack.c.b16 %v964, %v960
    %v1105 = vpack.c.b16 %v965, %v961
    %v1106 = vpack.c.b16 %v966, %v962
    %v1107 = vpack.c.b16 %v967, %v963
    %v1108 = vpack.c.b16 %v972, %v968
    %v1109 = vpack.c.b16 %v973, %v969
    %v1110 = vpack.c.b16 %v974, %v970
    %v1111 = vpack.c.b16 %v975, %v971
    %v1112 = vpack.c.b16 %v980, %v976
    %v1113 = vpack.c.b16 %v981, %v977
    %v1114 = vpack.c.b16 %v982, %v978
    %v1115 = vpack.c.b16 %v983, %v979
    %v1116 = vpack.c.b16 %v988, %v984
    %v1117 = vpack.c.b16 %v989, %v985
    %v1118 = vpack.c.b16 %v990, %v986
    %v1119 = vpack.c.b16 %v991, %v987
    %1248 = vmatprep.subr.bf16.mxu0 %v1021
    %1249 = vmatpush1.bf16.msra.mxu0 %v1020
    %1250 = vmatprep.subr.bf16.mxu0 %v1017
    %1251 = vmatpush1.bf16.msra.mxu0 %v1016
    %1252 = vmatprep.subr.bf16.mxu0 %v1013
    %1253 = vmatpush1.bf16.msra.mxu0 %v1012
    %1254 = vmatprep.subr.bf16.mxu0 %v1009
    %1255 = vmatpush1.bf16.msra.mxu0 %v1008
    %1256 = vmatprep.subr.bf16.mxu0 %v1005
    %1257 = vmatpush1.bf16.msra.mxu0 %v1004
    %1258 = vmatprep.subr.bf16.mxu0 %v1001
    %1259 = vmatpush1.bf16.msra.mxu0 %v1000
    %1260 = vmatprep.subr.bf16.mxu0 %v997
    %1261 = vmatpush1.bf16.msra.mxu0 %v996
    %1262 = vmatprep.subr.bf16.mxu0 %v993
    %1263 = vmatpush1.bf16.msra.mxu0 %v992
    %1264 = vmatprep.subr.bf16.mxu0 %v1053
    %1265 = vmatpush2.bf16.msra.mxu0 %v1052
    %1266 = vmatprep.subr.bf16.mxu0 %v1049
    %1267 = vmatpush2.bf16.msra.mxu0 %v1048
    %1268 = vmatprep.subr.bf16.mxu0 %v1045
    %1269 = vmatpush2.bf16.msra.mxu0 %v1044
    %1270 = vmatprep.subr.bf16.mxu0 %v1041
    %1271 = vmatpush2.bf16.msra.mxu0 %v1040
    %1272 = vmatprep.subr.bf16.mxu0 %v1037
    %1273 = vmatpush2.bf16.msra.mxu0 %v1036
    %1274 = vmatprep.subr.bf16.mxu0 %v1033
    %1275 = vmatpush2.bf16.msra.mxu0 %v1032
    %1276 = vmatprep.subr.bf16.mxu0 %v1029
    %1277 = vmatpush2.bf16.msra.mxu0 %v1028
    %1278 = vmatprep.subr.bf16.mxu0 %v1025
    %1279 = vmatpush2.bf16.msra.mxu0 %v1024
    %1280 = vmatprep.mubr.bf16.mxu0 %v331
    %1281 = vmatmul.mubr.bf16.gmra.mxu0 %v330
    %v1282 = vpop.f32.mrf.mxu0
    %v1283 = vadd.f32 %v591, %v1282
    %v1284 = vpop.f32.mrf.mxu0
    %v1285 = vadd.f32 %v595, %v1284
    %v1286 = vpop.f32.mrf.mxu0
    %v1287 = vadd.f32 %v591, %v1286
    %v1288 = vpop.f32.mrf.mxu0
    %v1289 = vadd.f32 %v595, %v1288
    %1290 = vmatprep.mubr.bf16.mxu0 %v335
    %1291 = vmatmul.mubr.bf16.gmra.mxu0 %v334
    %v1292 = vpop.f32.mrf.mxu0
    %v1293 = vadd.f32 %v591, %v1292
    %v1294 = vpop.f32.mrf.mxu0
    %v1295 = vadd.f32 %v595, %v1294
    %v1296 = vpop.f32.mrf.mxu0
    %v1297 = vadd.f32 %v591, %v1296
    %v1298 = vpop.f32.mrf.mxu0
    %v1299 = vadd.f32 %v595, %v1298
    %1300 = vmatprep.mubr.bf16.mxu0 %v339
    %1301 = vmatmul.mubr.bf16.gmra.mxu0 %v338
    %v1302 = vpop.f32.mrf.mxu0
    %v1303 = vadd.f32 %v591, %v1302
    %v1304 = vpop.f32.mrf.mxu0
    %v1305 = vadd.f32 %v595, %v1304
    %v1306 = vpop.f32.mrf.mxu0
    %v1307 = vadd.f32 %v591, %v1306
    %v1308 = vpop.f32.mrf.mxu0
    %v1309 = vadd.f32 %v595, %v1308
    %1310 = vmatprep.mubr.bf16.mxu0 %v343
    %1311 = vmatmul.mubr.bf16.gmra.mxu0 %v342
    %v1312 = vpop.f32.mrf.mxu0
    %v1313 = vadd.f32 %v591, %v1312
    %v1314 = vpop.f32.mrf.mxu0
    %v1315 = vadd.f32 %v595, %v1314
    %v1316 = vpop.f32.mrf.mxu0
    %v1317 = vadd.f32 %v591, %v1316
    %v1318 = vpop.f32.mrf.mxu0
    %v1319 = vadd.f32 %v595, %v1318
    %1320 = vmatprep.mubr.bf16.mxu0 %v347
    %1321 = vmatmul.mubr.bf16.gmra.mxu0 %v346
    %v1322 = vpop.f32.mrf.mxu0
    %v1323 = vadd.f32 %v591, %v1322
    %v1324 = vpop.f32.mrf.mxu0
    %v1325 = vadd.f32 %v595, %v1324
    %v1326 = vpop.f32.mrf.mxu0
    %v1327 = vadd.f32 %v591, %v1326
    %v1328 = vpop.f32.mrf.mxu0
    %v1329 = vadd.f32 %v595, %v1328
    %1330 = vmatprep.mubr.bf16.mxu0 %v351
    %1331 = vmatmul.mubr.bf16.gmra.mxu0 %v350
    %v1332 = vpop.f32.mrf.mxu0
    %v1333 = vadd.f32 %v591, %v1332
    %v1334 = vpop.f32.mrf.mxu0
    %v1335 = vadd.f32 %v595, %v1334
    %v1336 = vpop.f32.mrf.mxu0
    %v1337 = vadd.f32 %v591, %v1336
    %v1338 = vpop.f32.mrf.mxu0
    %v1339 = vadd.f32 %v595, %v1338
    %1340 = vmatprep.mubr.bf16.mxu0 %v355
    %1341 = vmatmul.mubr.bf16.gmra.mxu0 %v354
    %v1342 = vpop.f32.mrf.mxu0
    %v1343 = vadd.f32 %v591, %v1342
    %v1344 = vpop.f32.mrf.mxu0
    %v1345 = vadd.f32 %v595, %v1344
    %v1346 = vpop.f32.mrf.mxu0
    %v1347 = vadd.f32 %v591, %v1346
    %v1348 = vpop.f32.mrf.mxu0
    %v1349 = vadd.f32 %v595, %v1348
    %1350 = vmatprep.mubr.bf16.mxu0 %v359
    %1351 = vmatmul.mubr.bf16.gmra.mxu0 %v358
    %v1352 = vpop.f32.mrf.mxu0
    %v1353 = vadd.f32 %v591, %v1352
    %v1354 = vpop.f32.mrf.mxu0
    %v1355 = vadd.f32 %v595, %v1354
    %v1356 = vpop.f32.mrf.mxu0
    %v1357 = vadd.f32 %v591, %v1356
    %v1358 = vpop.f32.mrf.mxu0
    %v1359 = vadd.f32 %v595, %v1358
    %1360 = vmatprep.mubr.bf16.mxu0 %v363
    %1361 = vmatmul.mubr.bf16.gmra.mxu0 %v362
    %v1362 = vpop.f32.mrf.mxu0
    %v1363 = vadd.f32 %v591, %v1362
    %v1364 = vpop.f32.mrf.mxu0
    %v1365 = vadd.f32 %v595, %v1364
    %v1366 = vpop.f32.mrf.mxu0
    %v1367 = vadd.f32 %v591, %v1366
    %v1368 = vpop.f32.mrf.mxu0
    %v1369 = vadd.f32 %v595, %v1368
    %1370 = vmatprep.mubr.bf16.mxu0 %v367
    %1371 = vmatmul.mubr.bf16.gmra.mxu0 %v366
    %v1372 = vpop.f32.mrf.mxu0
    %v1373 = vadd.f32 %v591, %v1372
    %v1374 = vpop.f32.mrf.mxu0
    %v1375 = vadd.f32 %v595, %v1374
    %v1376 = vpop.f32.mrf.mxu0
    %v1377 = vadd.f32 %v591, %v1376
    %v1378 = vpop.f32.mrf.mxu0
    %v1379 = vadd.f32 %v595, %v1378
    %1380 = vmatprep.mubr.bf16.mxu0 %v371
    %1381 = vmatmul.mubr.bf16.gmra.mxu0 %v370
    %v1382 = vpop.f32.mrf.mxu0
    %v1383 = vadd.f32 %v591, %v1382
    %v1384 = vpop.f32.mrf.mxu0
    %v1385 = vadd.f32 %v595, %v1384
    %v1386 = vpop.f32.mrf.mxu0
    %v1387 = vadd.f32 %v591, %v1386
    %v1388 = vpop.f32.mrf.mxu0
    %v1389 = vadd.f32 %v595, %v1388
    %1390 = vmatprep.mubr.bf16.mxu0 %v375
    %1391 = vmatmul.mubr.bf16.gmra.mxu0 %v374
    %v1392 = vpop.f32.mrf.mxu0
    %v1393 = vadd.f32 %v591, %v1392
    %v1394 = vpop.f32.mrf.mxu0
    %v1395 = vadd.f32 %v595, %v1394
    %v1396 = vpop.f32.mrf.mxu0
    %v1397 = vadd.f32 %v591, %v1396
    %v1398 = vpop.f32.mrf.mxu0
    %v1399 = vadd.f32 %v595, %v1398
    %1400 = vmatprep.mubr.bf16.mxu0 %v379
    %1401 = vmatmul.mubr.bf16.gmra.mxu0 %v378
    %v1402 = vpop.f32.mrf.mxu0
    %v1403 = vadd.f32 %v591, %v1402
    %v1404 = vpop.f32.mrf.mxu0
    %v1405 = vadd.f32 %v595, %v1404
    %v1406 = vpop.f32.mrf.mxu0
    %v1407 = vadd.f32 %v591, %v1406
    %v1408 = vpop.f32.mrf.mxu0
    %v1409 = vadd.f32 %v595, %v1408
    %1410 = vmatprep.mubr.bf16.mxu0 %v383
    %1411 = vmatmul.mubr.bf16.gmra.mxu0 %v382
    %v1412 = vpop.f32.mrf.mxu0
    %v1413 = vadd.f32 %v591, %v1412
    %v1414 = vpop.f32.mrf.mxu0
    %v1415 = vadd.f32 %v595, %v1414
    %v1416 = vpop.f32.mrf.mxu0
    %v1417 = vadd.f32 %v591, %v1416
    %v1418 = vpop.f32.mrf.mxu0
    %v1419 = vadd.f32 %v595, %v1418
    %1420 = vmatprep.mubr.bf16.mxu0 %v387
    %1421 = vmatmul.mubr.bf16.gmra.mxu0 %v386
    %v1422 = vpop.f32.mrf.mxu0
    %v1423 = vadd.f32 %v591, %v1422
    %v1424 = vpop.f32.mrf.mxu0
    %v1425 = vadd.f32 %v595, %v1424
    %v1426 = vpop.f32.mrf.mxu0
    %v1427 = vadd.f32 %v591, %v1426
    %v1428 = vpop.f32.mrf.mxu0
    %v1429 = vadd.f32 %v595, %v1428
    %1430 = vmatprep.mubr.bf16.mxu0 %v391
    %1431 = vmatmul.mubr.bf16.gmra.mxu0 %v390
    %v1432 = vpop.f32.mrf.mxu0
    %v1433 = vadd.f32 %v591, %v1432
    %v1434 = vpop.f32.mrf.mxu0
    %v1435 = vadd.f32 %v595, %v1434
    %v1436 = vpop.f32.mrf.mxu0
    %v1437 = vadd.f32 %v591, %v1436
    %v1438 = vpop.f32.mrf.mxu0
    %v1439 = vadd.f32 %v595, %v1438
    %1440 = vmatprep.mubr.bf16.mxu0 %v395
    %1441 = vmatmul.mubr.bf16.gmra.mxu0 %v394
    %v1442 = vpop.f32.mrf.mxu0
    %v1443 = vadd.f32 %v591, %v1442
    %v1444 = vpop.f32.mrf.mxu0
    %v1445 = vadd.f32 %v595, %v1444
    %v1446 = vpop.f32.mrf.mxu0
    %v1447 = vadd.f32 %v591, %v1446
    %v1448 = vpop.f32.mrf.mxu0
    %v1449 = vadd.f32 %v595, %v1448
    %1450 = vmatprep.mubr.bf16.mxu0 %v399
    %1451 = vmatmul.mubr.bf16.gmra.mxu0 %v398
    %v1452 = vpop.f32.mrf.mxu0
    %v1453 = vadd.f32 %v591, %v1452
    %v1454 = vpop.f32.mrf.mxu0
    %v1455 = vadd.f32 %v595, %v1454
    %v1456 = vpop.f32.mrf.mxu0
    %v1457 = vadd.f32 %v591, %v1456
    %v1458 = vpop.f32.mrf.mxu0
    %v1459 = vadd.f32 %v595, %v1458
    %1460 = vmatprep.mubr.bf16.mxu0 %v403
    %1461 = vmatmul.mubr.bf16.gmra.mxu0 %v402
    %v1462 = vpop.f32.mrf.mxu0
    %v1463 = vadd.f32 %v591, %v1462
    %v1464 = vpop.f32.mrf.mxu0
    %v1465 = vadd.f32 %v595, %v1464
    %v1466 = vpop.f32.mrf.mxu0
    %v1467 = vadd.f32 %v591, %v1466
    %v1468 = vpop.f32.mrf.mxu0
    %v1469 = vadd.f32 %v595, %v1468
    %1470 = vmatprep.mubr.bf16.mxu0 %v407
    %1471 = vmatmul.mubr.bf16.gmra.mxu0 %v406
    %v1472 = vpop.f32.mrf.mxu0
    %v1473 = vadd.f32 %v591, %v1472
    %v1474 = vpop.f32.mrf.mxu0
    %v1475 = vadd.f32 %v595, %v1474
    %v1476 = vpop.f32.mrf.mxu0
    %v1477 = vadd.f32 %v591, %v1476
    %v1478 = vpop.f32.mrf.mxu0
    %v1479 = vadd.f32 %v595, %v1478
    %1480 = vmatprep.mubr.bf16.mxu0 %v411
    %1481 = vmatmul.mubr.bf16.gmra.mxu0 %v410
    %v1482 = vpop.f32.mrf.mxu0
    %v1483 = vadd.f32 %v591, %v1482
    %v1484 = vpop.f32.mrf.mxu0
    %v1485 = vadd.f32 %v595, %v1484
    %v1486 = vpop.f32.mrf.mxu0
    %v1487 = vadd.f32 %v591, %v1486
    %v1488 = vpop.f32.mrf.mxu0
    %v1489 = vadd.f32 %v595, %v1488
    %1490 = vmatprep.mubr.bf16.mxu0 %v415
    %1491 = vmatmul.mubr.bf16.gmra.mxu0 %v414
    %v1492 = vpop.f32.mrf.mxu0
    %v1493 = vadd.f32 %v591, %v1492
    %v1494 = vpop.f32.mrf.mxu0
    %v1495 = vadd.f32 %v595, %v1494
    %v1496 = vpop.f32.mrf.mxu0
    %v1497 = vadd.f32 %v591, %v1496
    %v1498 = vpop.f32.mrf.mxu0
    %v1499 = vadd.f32 %v595, %v1498
    %1500 = vmatprep.mubr.bf16.mxu0 %v419
    %1501 = vmatmul.mubr.bf16.gmra.mxu0 %v418
    %v1502 = vpop.f32.mrf.mxu0
    %v1503 = vadd.f32 %v591, %v1502
    %v1504 = vpop.f32.mrf.mxu0
    %v1505 = vadd.f32 %v595, %v1504
    %v1506 = vpop.f32.mrf.mxu0
    %v1507 = vadd.f32 %v591, %v1506
    %v1508 = vpop.f32.mrf.mxu0
    %v1509 = vadd.f32 %v595, %v1508
    %1510 = vmatprep.mubr.bf16.mxu0 %v423
    %1511 = vmatmul.mubr.bf16.gmra.mxu0 %v422
    %v1512 = vpop.f32.mrf.mxu0
    %v1513 = vadd.f32 %v591, %v1512
    %v1514 = vpop.f32.mrf.mxu0
    %v1515 = vadd.f32 %v595, %v1514
    %v1516 = vpop.f32.mrf.mxu0
    %v1517 = vadd.f32 %v591, %v1516
    %v1518 = vpop.f32.mrf.mxu0
    %v1519 = vadd.f32 %v595, %v1518
    %1520 = vmatprep.mubr.bf16.mxu0 %v427
    %1521 = vmatmul.mubr.bf16.gmra.mxu0 %v426
    %v1522 = vpop.f32.mrf.mxu0
    %v1523 = vadd.f32 %v591, %v1522
    %v1524 = vpop.f32.mrf.mxu0
    %v1525 = vadd.f32 %v595, %v1524
    %v1526 = vpop.f32.mrf.mxu0
    %v1527 = vadd.f32 %v591, %v1526
    %v1528 = vpop.f32.mrf.mxu0
    %v1529 = vadd.f32 %v595, %v1528
    %1530 = vmatprep.mubr.bf16.mxu0 %v431
    %1531 = vmatmul.mubr.bf16.gmra.mxu0 %v430
    %v1532 = vpop.f32.mrf.mxu0
    %v1533 = vadd.f32 %v591, %v1532
    %v1534 = vpop.f32.mrf.mxu0
    %v1535 = vadd.f32 %v595, %v1534
    %v1536 = vpop.f32.mrf.mxu0
    %v1537 = vadd.f32 %v591, %v1536
    %v1538 = vpop.f32.mrf.mxu0
    %v1539 = vadd.f32 %v595, %v1538
    %1540 = vmatprep.mubr.bf16.mxu0 %v435
    %1541 = vmatmul.mubr.bf16.gmra.mxu0 %v434
    %v1542 = vpop.f32.mrf.mxu0
    %v1543 = vadd.f32 %v591, %v1542
    %v1544 = vpop.f32.mrf.mxu0
    %v1545 = vadd.f32 %v595, %v1544
    %v1546 = vpop.f32.mrf.mxu0
    %v1547 = vadd.f32 %v591, %v1546
    %v1548 = vpop.f32.mrf.mxu0
    %v1549 = vadd.f32 %v595, %v1548
    %1550 = vmatprep.mubr.bf16.mxu0 %v439
    %1551 = vmatmul.mubr.bf16.gmra.mxu0 %v438
    %v1552 = vpop.f32.mrf.mxu0
    %v1553 = vadd.f32 %v591, %v1552
    %v1554 = vpop.f32.mrf.mxu0
    %v1555 = vadd.f32 %v595, %v1554
    %v1556 = vpop.f32.mrf.mxu0
    %v1557 = vadd.f32 %v591, %v1556
    %v1558 = vpop.f32.mrf.mxu0
    %v1559 = vadd.f32 %v595, %v1558
    %1560 = vmatprep.mubr.bf16.mxu0 %v443
    %1561 = vmatmul.mubr.bf16.gmra.mxu0 %v442
    %v1562 = vpop.f32.mrf.mxu0
    %v1563 = vadd.f32 %v591, %v1562
    %v1564 = vpop.f32.mrf.mxu0
    %v1565 = vadd.f32 %v595, %v1564
    %v1566 = vpop.f32.mrf.mxu0
    %v1567 = vadd.f32 %v591, %v1566
    %v1568 = vpop.f32.mrf.mxu0
    %v1569 = vadd.f32 %v595, %v1568
    %1570 = vmatprep.mubr.bf16.mxu0 %v447
    %1571 = vmatmul.mubr.bf16.gmra.mxu0 %v446
    %v1572 = vpop.f32.mrf.mxu0
    %v1573 = vadd.f32 %v591, %v1572
    %v1574 = vpop.f32.mrf.mxu0
    %v1575 = vadd.f32 %v595, %v1574
    %v1576 = vpop.f32.mrf.mxu0
    %v1577 = vadd.f32 %v591, %v1576
    %v1578 = vpop.f32.mrf.mxu0
    %v1579 = vadd.f32 %v595, %v1578
    %1580 = vmatprep.mubr.bf16.mxu0 %v451
    %1581 = vmatmul.mubr.bf16.gmra.mxu0 %v450
    %v1582 = vpop.f32.mrf.mxu0
    %v1583 = vadd.f32 %v591, %v1582
    %v1584 = vpop.f32.mrf.mxu0
    %v1585 = vadd.f32 %v595, %v1584
    %v1586 = vpop.f32.mrf.mxu0
    %v1587 = vadd.f32 %v591, %v1586
    %v1588 = vpop.f32.mrf.mxu0
    %v1589 = vadd.f32 %v595, %v1588
    %1590 = vmatprep.mubr.bf16.mxu0 %v455
    %1591 = vmatmul.mubr.bf16.gmra.mxu0 %v454
    %v1592 = vpop.f32.mrf.mxu0
    %v1593 = vadd.f32 %v591, %v1592
    %v1594 = vpop.f32.mrf.mxu0
    %v1595 = vadd.f32 %v595, %v1594
    %v1596 = vpop.f32.mrf.mxu0
    %v1597 = vadd.f32 %v591, %v1596
    %v1598 = vpop.f32.mrf.mxu0
    %v1599 = vadd.f32 %v595, %v1598
    %1600 = vdwg.mxu0
    %1601 = vmatprep.subr.bf16.mxu0 %v1085
    %1602 = vmatpush1.bf16.msra.mxu0 %v1084
    %1603 = vmatprep.subr.bf16.mxu0 %v1081
    %1604 = vmatpush1.bf16.msra.mxu0 %v1080
    %1605 = vmatprep.subr.bf16.mxu0 %v1077
    %1606 = vmatpush1.bf16.msra.mxu0 %v1076
    %1607 = vmatprep.subr.bf16.mxu0 %v1073
    %1608 = vmatpush1.bf16.msra.mxu0 %v1072
    %1609 = vmatprep.subr.bf16.mxu0 %v1069
    %1610 = vmatpush1.bf16.msra.mxu0 %v1068
    %1611 = vmatprep.subr.bf16.mxu0 %v1065
    %1612 = vmatpush1.bf16.msra.mxu0 %v1064
    %1613 = vmatprep.subr.bf16.mxu0 %v1061
    %1614 = vmatpush1.bf16.msra.mxu0 %v1060
    %1615 = vmatprep.subr.bf16.mxu0 %v1057
    %1616 = vmatpush1.bf16.msra.mxu0 %v1056
    %1617 = vmatprep.subr.bf16.mxu0 %v1117
    %1618 = vmatpush2.bf16.msra.mxu0 %v1116
    %1619 = vmatprep.subr.bf16.mxu0 %v1113
    %1620 = vmatpush2.bf16.msra.mxu0 %v1112
    %1621 = vmatprep.subr.bf16.mxu0 %v1109
    %1622 = vmatpush2.bf16.msra.mxu0 %v1108
    %1623 = vmatprep.subr.bf16.mxu0 %v1105
    %1624 = vmatpush2.bf16.msra.mxu0 %v1104
    %1625 = vmatprep.subr.bf16.mxu0 %v1101
    %1626 = vmatpush2.bf16.msra.mxu0 %v1100
    %1627 = vmatprep.subr.bf16.mxu0 %v1097
    %1628 = vmatpush2.bf16.msra.mxu0 %v1096
    %1629 = vmatprep.subr.bf16.mxu0 %v1093
    %1630 = vmatpush2.bf16.msra.mxu0 %v1092
    %1631 = vmatprep.subr.bf16.mxu0 %v1089
    %1632 = vmatpush2.bf16.msra.mxu0 %v1088
    %1633 = vmatprep.mubr.bf16.mxu0 %v333
    %1634 = vmatmul.mubr.bf16.gmra.mxu0 %v332
    %v1635 = vpop.f32.mrf.mxu0
    %v1636 = vadd.f32 %v1283, %v1635
    %v1637 = vpop.f32.mrf.mxu0
    %v1638 = vadd.f32 %v1285, %v1637
    %v1639 = vpop.f32.mrf.mxu0
    %v1640 = vadd.f32 %v1287, %v1639
    %v1641 = vpop.f32.mrf.mxu0
    %v1642 = vadd.f32 %v1289, %v1641
    %1643 = vmatprep.mubr.bf16.mxu0 %v337
    %1644 = vmatmul.mubr.bf16.gmra.mxu0 %v336
    %v1645 = vpop.f32.mrf.mxu0
    %v1646 = vadd.f32 %v1293, %v1645
    %v1647 = vpop.f32.mrf.mxu0
    %v1648 = vadd.f32 %v1295, %v1647
    %v1649 = vpop.f32.mrf.mxu0
    %v1650 = vadd.f32 %v1297, %v1649
    %v1651 = vpop.f32.mrf.mxu0
    %v1652 = vadd.f32 %v1299, %v1651
    %1653 = vmatprep.mubr.bf16.mxu0 %v341
    %1654 = vmatmul.mubr.bf16.gmra.mxu0 %v340
    %v1655 = vpop.f32.mrf.mxu0
    %v1656 = vadd.f32 %v1303, %v1655
    %v1657 = vpop.f32.mrf.mxu0
    %v1658 = vadd.f32 %v1305, %v1657
    %v1659 = vpop.f32.mrf.mxu0
    %v1660 = vadd.f32 %v1307, %v1659
    %v1661 = vpop.f32.mrf.mxu0
    %v1662 = vadd.f32 %v1309, %v1661
    %1663 = vmatprep.mubr.bf16.mxu0 %v345
    %1664 = vmatmul.mubr.bf16.gmra.mxu0 %v344
    %v1665 = vpop.f32.mrf.mxu0
    %v1666 = vadd.f32 %v1313, %v1665
    %v1667 = vpop.f32.mrf.mxu0
    %v1668 = vadd.f32 %v1315, %v1667
    %v1669 = vpop.f32.mrf.mxu0
    %v1670 = vadd.f32 %v1317, %v1669
    %v1671 = vpop.f32.mrf.mxu0
    %v1672 = vadd.f32 %v1319, %v1671
    %1673 = vmatprep.mubr.bf16.mxu0 %v349
    %1674 = vmatmul.mubr.bf16.gmra.mxu0 %v348
    %v1675 = vpop.f32.mrf.mxu0
    %v1676 = vadd.f32 %v1323, %v1675
    %v1677 = vpop.f32.mrf.mxu0
    %v1678 = vadd.f32 %v1325, %v1677
    %v1679 = vpop.f32.mrf.mxu0
    %v1680 = vadd.f32 %v1327, %v1679
    %v1681 = vpop.f32.mrf.mxu0
    %v1682 = vadd.f32 %v1329, %v1681
    %1683 = vmatprep.mubr.bf16.mxu0 %v353
    %1684 = vmatmul.mubr.bf16.gmra.mxu0 %v352
    %v1685 = vpop.f32.mrf.mxu0
    %v1686 = vadd.f32 %v1333, %v1685
    %v1687 = vpop.f32.mrf.mxu0
    %v1688 = vadd.f32 %v1335, %v1687
    %v1689 = vpop.f32.mrf.mxu0
    %v1690 = vadd.f32 %v1337, %v1689
    %v1691 = vpop.f32.mrf.mxu0
    %v1692 = vadd.f32 %v1339, %v1691
    %1693 = vmatprep.mubr.bf16.mxu0 %v357
    %1694 = vmatmul.mubr.bf16.gmra.mxu0 %v356
    %v1695 = vpop.f32.mrf.mxu0
    %v1696 = vadd.f32 %v1343, %v1695
    %v1697 = vpop.f32.mrf.mxu0
    %v1698 = vadd.f32 %v1345, %v1697
    %v1699 = vpop.f32.mrf.mxu0
    %v1700 = vadd.f32 %v1347, %v1699
    %v1701 = vpop.f32.mrf.mxu0
    %v1702 = vadd.f32 %v1349, %v1701
    %1703 = vmatprep.mubr.bf16.mxu0 %v361
    %1704 = vmatmul.mubr.bf16.gmra.mxu0 %v360
    %v1705 = vpop.f32.mrf.mxu0
    %v1706 = vadd.f32 %v1353, %v1705
    %v1707 = vpop.f32.mrf.mxu0
    %v1708 = vadd.f32 %v1355, %v1707
    %v1709 = vpop.f32.mrf.mxu0
    %v1710 = vadd.f32 %v1357, %v1709
    %v1711 = vpop.f32.mrf.mxu0
    %v1712 = vadd.f32 %v1359, %v1711
    %1713 = vmatprep.mubr.bf16.mxu0 %v365
    %1714 = vmatmul.mubr.bf16.gmra.mxu0 %v364
    %v1715 = vpop.f32.mrf.mxu0
    %v1716 = vadd.f32 %v1363, %v1715
    %v1717 = vpop.f32.mrf.mxu0
    %v1718 = vadd.f32 %v1365, %v1717
    %v1719 = vpop.f32.mrf.mxu0
    %v1720 = vadd.f32 %v1367, %v1719
    %v1721 = vpop.f32.mrf.mxu0
    %v1722 = vadd.f32 %v1369, %v1721
    %1723 = vmatprep.mubr.bf16.mxu0 %v369
    %1724 = vmatmul.mubr.bf16.gmra.mxu0 %v368
    %v1725 = vpop.f32.mrf.mxu0
    %v1726 = vadd.f32 %v1373, %v1725
    %v1727 = vpop.f32.mrf.mxu0
    %v1728 = vadd.f32 %v1375, %v1727
    %v1729 = vpop.f32.mrf.mxu0
    %v1730 = vadd.f32 %v1377, %v1729
    %v1731 = vpop.f32.mrf.mxu0
    %v1732 = vadd.f32 %v1379, %v1731
    %1733 = vmatprep.mubr.bf16.mxu0 %v373
    %1734 = vmatmul.mubr.bf16.gmra.mxu0 %v372
    %v1735 = vpop.f32.mrf.mxu0
    %v1736 = vadd.f32 %v1383, %v1735
    %v1737 = vpop.f32.mrf.mxu0
    %v1738 = vadd.f32 %v1385, %v1737
    %v1739 = vpop.f32.mrf.mxu0
    %v1740 = vadd.f32 %v1387, %v1739
    %v1741 = vpop.f32.mrf.mxu0
    %v1742 = vadd.f32 %v1389, %v1741
    %1743 = vmatprep.mubr.bf16.mxu0 %v377
    %1744 = vmatmul.mubr.bf16.gmra.mxu0 %v376
    %v1745 = vpop.f32.mrf.mxu0
    %v1746 = vadd.f32 %v1393, %v1745
    %v1747 = vpop.f32.mrf.mxu0
    %v1748 = vadd.f32 %v1395, %v1747
    %v1749 = vpop.f32.mrf.mxu0
    %v1750 = vadd.f32 %v1397, %v1749
    %v1751 = vpop.f32.mrf.mxu0
    %v1752 = vadd.f32 %v1399, %v1751
    %1753 = vmatprep.mubr.bf16.mxu0 %v381
    %1754 = vmatmul.mubr.bf16.gmra.mxu0 %v380
    %v1755 = vpop.f32.mrf.mxu0
    %v1756 = vadd.f32 %v1403, %v1755
    %v1757 = vpop.f32.mrf.mxu0
    %v1758 = vadd.f32 %v1405, %v1757
    %v1759 = vpop.f32.mrf.mxu0
    %v1760 = vadd.f32 %v1407, %v1759
    %v1761 = vpop.f32.mrf.mxu0
    %v1762 = vadd.f32 %v1409, %v1761
    %1763 = vmatprep.mubr.bf16.mxu0 %v385
    %1764 = vmatmul.mubr.bf16.gmra.mxu0 %v384
    %v1765 = vpop.f32.mrf.mxu0
    %v1766 = vadd.f32 %v1413, %v1765
    %v1767 = vpop.f32.mrf.mxu0
    %v1768 = vadd.f32 %v1415, %v1767
    %v1769 = vpop.f32.mrf.mxu0
    %v1770 = vadd.f32 %v1417, %v1769
    %v1771 = vpop.f32.mrf.mxu0
    %v1772 = vadd.f32 %v1419, %v1771
    %1773 = vmatprep.mubr.bf16.mxu0 %v389
    %1774 = vmatmul.mubr.bf16.gmra.mxu0 %v388
    %v1775 = vpop.f32.mrf.mxu0
    %v1776 = vadd.f32 %v1423, %v1775
    %v1777 = vpop.f32.mrf.mxu0
    %v1778 = vadd.f32 %v1425, %v1777
    %v1779 = vpop.f32.mrf.mxu0
    %v1780 = vadd.f32 %v1427, %v1779
    %v1781 = vpop.f32.mrf.mxu0
    %v1782 = vadd.f32 %v1429, %v1781
    %1783 = vmatprep.mubr.bf16.mxu0 %v393
    %1784 = vmatmul.mubr.bf16.gmra.mxu0 %v392
    %v1785 = vpop.f32.mrf.mxu0
    %v1786 = vadd.f32 %v1433, %v1785
    %v1787 = vpop.f32.mrf.mxu0
    %v1788 = vadd.f32 %v1435, %v1787
    %v1789 = vpop.f32.mrf.mxu0
    %v1790 = vadd.f32 %v1437, %v1789
    %v1791 = vpop.f32.mrf.mxu0
    %v1792 = vadd.f32 %v1439, %v1791
    %1793 = vmatprep.mubr.bf16.mxu0 %v397
    %1794 = vmatmul.mubr.bf16.gmra.mxu0 %v396
    %v1795 = vpop.f32.mrf.mxu0
    %v1796 = vadd.f32 %v1443, %v1795
    %v1797 = vpop.f32.mrf.mxu0
    %v1798 = vadd.f32 %v1445, %v1797
    %v1799 = vpop.f32.mrf.mxu0
    %v1800 = vadd.f32 %v1447, %v1799
    %v1801 = vpop.f32.mrf.mxu0
    %v1802 = vadd.f32 %v1449, %v1801
    %1803 = vmatprep.mubr.bf16.mxu0 %v401
    %1804 = vmatmul.mubr.bf16.gmra.mxu0 %v400
    %v1805 = vpop.f32.mrf.mxu0
    %v1806 = vadd.f32 %v1453, %v1805
    %v1807 = vpop.f32.mrf.mxu0
    %v1808 = vadd.f32 %v1455, %v1807
    %v1809 = vpop.f32.mrf.mxu0
    %v1810 = vadd.f32 %v1457, %v1809
    %v1811 = vpop.f32.mrf.mxu0
    %v1812 = vadd.f32 %v1459, %v1811
    %1813 = vmatprep.mubr.bf16.mxu0 %v405
    %1814 = vmatmul.mubr.bf16.gmra.mxu0 %v404
    %v1815 = vpop.f32.mrf.mxu0
    %v1816 = vadd.f32 %v1463, %v1815
    %v1817 = vpop.f32.mrf.mxu0
    %v1818 = vadd.f32 %v1465, %v1817
    %v1819 = vpop.f32.mrf.mxu0
    %v1820 = vadd.f32 %v1467, %v1819
    %v1821 = vpop.f32.mrf.mxu0
    %v1822 = vadd.f32 %v1469, %v1821
    %1823 = vmatprep.mubr.bf16.mxu0 %v409
    %1824 = vmatmul.mubr.bf16.gmra.mxu0 %v408
    %v1825 = vpop.f32.mrf.mxu0
    %v1826 = vadd.f32 %v1473, %v1825
    %v1827 = vpop.f32.mrf.mxu0
    %v1828 = vadd.f32 %v1475, %v1827
    %v1829 = vpop.f32.mrf.mxu0
    %v1830 = vadd.f32 %v1477, %v1829
    %v1831 = vpop.f32.mrf.mxu0
    %v1832 = vadd.f32 %v1479, %v1831
    %1833 = vmatprep.mubr.bf16.mxu0 %v413
    %1834 = vmatmul.mubr.bf16.gmra.mxu0 %v412
    %v1835 = vpop.f32.mrf.mxu0
    %v1836 = vadd.f32 %v1483, %v1835
    %v1837 = vpop.f32.mrf.mxu0
    %v1838 = vadd.f32 %v1485, %v1837
    %v1839 = vpop.f32.mrf.mxu0
    %v1840 = vadd.f32 %v1487, %v1839
    %v1841 = vpop.f32.mrf.mxu0
    %v1842 = vadd.f32 %v1489, %v1841
    %1843 = vmatprep.mubr.bf16.mxu0 %v417
    %1844 = vmatmul.mubr.bf16.gmra.mxu0 %v416
    %v1845 = vpop.f32.mrf.mxu0
    %v1846 = vadd.f32 %v1493, %v1845
    %v1847 = vpop.f32.mrf.mxu0
    %v1848 = vadd.f32 %v1495, %v1847
    %v1849 = vpop.f32.mrf.mxu0
    %v1850 = vadd.f32 %v1497, %v1849
    %v1851 = vpop.f32.mrf.mxu0
    %v1852 = vadd.f32 %v1499, %v1851
    %1853 = vmatprep.mubr.bf16.mxu0 %v421
    %1854 = vmatmul.mubr.bf16.gmra.mxu0 %v420
    %v1855 = vpop.f32.mrf.mxu0
    %v1856 = vadd.f32 %v1503, %v1855
    %v1857 = vpop.f32.mrf.mxu0
    %v1858 = vadd.f32 %v1505, %v1857
    %v1859 = vpop.f32.mrf.mxu0
    %v1860 = vadd.f32 %v1507, %v1859
    %v1861 = vpop.f32.mrf.mxu0
    %v1862 = vadd.f32 %v1509, %v1861
    %1863 = vmatprep.mubr.bf16.mxu0 %v425
    %1864 = vmatmul.mubr.bf16.gmra.mxu0 %v424
    %v1865 = vpop.f32.mrf.mxu0
    %v1866 = vadd.f32 %v1513, %v1865
    %v1867 = vpop.f32.mrf.mxu0
    %v1868 = vadd.f32 %v1515, %v1867
    %v1869 = vpop.f32.mrf.mxu0
    %v1870 = vadd.f32 %v1517, %v1869
    %v1871 = vpop.f32.mrf.mxu0
    %v1872 = vadd.f32 %v1519, %v1871
    %1873 = vmatprep.mubr.bf16.mxu0 %v429
    %1874 = vmatmul.mubr.bf16.gmra.mxu0 %v428
    %v1875 = vpop.f32.mrf.mxu0
    %v1876 = vadd.f32 %v1523, %v1875
    %v1877 = vpop.f32.mrf.mxu0
    %v1878 = vadd.f32 %v1525, %v1877
    %v1879 = vpop.f32.mrf.mxu0
    %v1880 = vadd.f32 %v1527, %v1879
    %v1881 = vpop.f32.mrf.mxu0
    %v1882 = vadd.f32 %v1529, %v1881
    %1883 = vmatprep.mubr.bf16.mxu0 %v433
    %1884 = vmatmul.mubr.bf16.gmra.mxu0 %v432
    %v1885 = vpop.f32.mrf.mxu0
    %v1886 = vadd.f32 %v1533, %v1885
    %v1887 = vpop.f32.mrf.mxu0
    %v1888 = vadd.f32 %v1535, %v1887
    %v1889 = vpop.f32.mrf.mxu0
    %v1890 = vadd.f32 %v1537, %v1889
    %v1891 = vpop.f32.mrf.mxu0
    %v1892 = vadd.f32 %v1539, %v1891
    %1893 = vmatprep.mubr.bf16.mxu0 %v437
    %1894 = vmatmul.mubr.bf16.gmra.mxu0 %v436
    %v1895 = vpop.f32.mrf.mxu0
    %v1896 = vadd.f32 %v1543, %v1895
    %v1897 = vpop.f32.mrf.mxu0
    %v1898 = vadd.f32 %v1545, %v1897
    %v1899 = vpop.f32.mrf.mxu0
    %v1900 = vadd.f32 %v1547, %v1899
    %v1901 = vpop.f32.mrf.mxu0
    %v1902 = vadd.f32 %v1549, %v1901
    %1903 = vmatprep.mubr.bf16.mxu0 %v441
    %1904 = vmatmul.mubr.bf16.gmra.mxu0 %v440
    %v1905 = vpop.f32.mrf.mxu0
    %v1906 = vadd.f32 %v1553, %v1905
    %v1907 = vpop.f32.mrf.mxu0
    %v1908 = vadd.f32 %v1555, %v1907
    %v1909 = vpop.f32.mrf.mxu0
    %v1910 = vadd.f32 %v1557, %v1909
    %v1911 = vpop.f32.mrf.mxu0
    %v1912 = vadd.f32 %v1559, %v1911
    %1913 = vmatprep.mubr.bf16.mxu0 %v445
    %1914 = vmatmul.mubr.bf16.gmra.mxu0 %v444
    %v1915 = vpop.f32.mrf.mxu0
    %v1916 = vadd.f32 %v1563, %v1915
    %v1917 = vpop.f32.mrf.mxu0
    %v1918 = vadd.f32 %v1565, %v1917
    %v1919 = vpop.f32.mrf.mxu0
    %v1920 = vadd.f32 %v1567, %v1919
    %v1921 = vpop.f32.mrf.mxu0
    %v1922 = vadd.f32 %v1569, %v1921
    %1923 = vmatprep.mubr.bf16.mxu0 %v449
    %1924 = vmatmul.mubr.bf16.gmra.mxu0 %v448
    %v1925 = vpop.f32.mrf.mxu0
    %v1926 = vadd.f32 %v1573, %v1925
    %v1927 = vpop.f32.mrf.mxu0
    %v1928 = vadd.f32 %v1575, %v1927
    %v1929 = vpop.f32.mrf.mxu0
    %v1930 = vadd.f32 %v1577, %v1929
    %v1931 = vpop.f32.mrf.mxu0
    %v1932 = vadd.f32 %v1579, %v1931
    %1933 = vmatprep.mubr.bf16.mxu0 %v453
    %1934 = vmatmul.mubr.bf16.gmra.mxu0 %v452
    %v1935 = vpop.f32.mrf.mxu0
    %v1936 = vadd.f32 %v1583, %v1935
    %v1937 = vpop.f32.mrf.mxu0
    %v1938 = vadd.f32 %v1585, %v1937
    %v1939 = vpop.f32.mrf.mxu0
    %v1940 = vadd.f32 %v1587, %v1939
    %v1941 = vpop.f32.mrf.mxu0
    %v1942 = vadd.f32 %v1589, %v1941
    %1943 = vmatprep.mubr.bf16.mxu0 %v457
    %1944 = vmatmul.mubr.bf16.gmra.mxu0 %v456
    %v1945 = vpop.f32.mrf.mxu0
    %v1946 = vadd.f32 %v1593, %v1945
    %v1947 = vpop.f32.mrf.mxu0
    %v1948 = vadd.f32 %v1595, %v1947
    %v1949 = vpop.f32.mrf.mxu0
    %v1950 = vadd.f32 %v1597, %v1949
    %v1951 = vpop.f32.mrf.mxu0
    %v1952 = vadd.f32 %v1599, %v1951
    %1953 = vdwg.mxu0
    %1954 = vmatprep.subr.bf16.mxu0 %v1023
    %1955 = vmatpush1.bf16.msra.mxu0 %v1022
    %1956 = vmatprep.subr.bf16.mxu0 %v1019
    %1957 = vmatpush1.bf16.msra.mxu0 %v1018
    %1958 = vmatprep.subr.bf16.mxu0 %v1015
    %1959 = vmatpush1.bf16.msra.mxu0 %v1014
    %1960 = vmatprep.subr.bf16.mxu0 %v1011
    %1961 = vmatpush1.bf16.msra.mxu0 %v1010
    %1962 = vmatprep.subr.bf16.mxu0 %v1007
    %1963 = vmatpush1.bf16.msra.mxu0 %v1006
    %1964 = vmatprep.subr.bf16.mxu0 %v1003
    %1965 = vmatpush1.bf16.msra.mxu0 %v1002
    %1966 = vmatprep.subr.bf16.mxu0 %v999
    %1967 = vmatpush1.bf16.msra.mxu0 %v998
    %1968 = vmatprep.subr.bf16.mxu0 %v995
    %1969 = vmatpush1.bf16.msra.mxu0 %v994
    %1970 = vmatprep.subr.bf16.mxu0 %v1055
    %1971 = vmatpush2.bf16.msra.mxu0 %v1054
    %1972 = vmatprep.subr.bf16.mxu0 %v1051
    %1973 = vmatpush2.bf16.msra.mxu0 %v1050
    %1974 = vmatprep.subr.bf16.mxu0 %v1047
    %1975 = vmatpush2.bf16.msra.mxu0 %v1046
    %1976 = vmatprep.subr.bf16.mxu0 %v1043
    %1977 = vmatpush2.bf16.msra.mxu0 %v1042
    %1978 = vmatprep.subr.bf16.mxu0 %v1039
    %1979 = vmatpush2.bf16.msra.mxu0 %v1038
    %1980 = vmatprep.subr.bf16.mxu0 %v1035
    %1981 = vmatpush2.bf16.msra.mxu0 %v1034
    %1982 = vmatprep.subr.bf16.mxu0 %v1031
    %1983 = vmatpush2.bf16.msra.mxu0 %v1030
    %1984 = vmatprep.subr.bf16.mxu0 %v1027
    %1985 = vmatpush2.bf16.msra.mxu0 %v1026
    %1986 = vmatprep.mubr.bf16.mxu0 %v331
    %1987 = vmatmul.mubr.bf16.gmra.mxu0 %v330
    %v1988 = vpop.f32.mrf.mxu0
    %v1989 = vadd.f32 %v599, %v1988
    %v1990 = vpop.f32.mrf.mxu0
    %v1991 = vadd.f32 %v603, %v1990
    %v1992 = vpop.f32.mrf.mxu0
    %v1993 = vadd.f32 %v599, %v1992
    %v1994 = vpop.f32.mrf.mxu0
    %v1995 = vadd.f32 %v603, %v1994
    %1996 = vmatprep.mubr.bf16.mxu0 %v335
    %1997 = vmatmul.mubr.bf16.gmra.mxu0 %v334
    %v1998 = vpop.f32.mrf.mxu0
    %v1999 = vadd.f32 %v599, %v1998
    %v2000 = vpop.f32.mrf.mxu0
    %v2001 = vadd.f32 %v603, %v2000
    %v2002 = vpop.f32.mrf.mxu0
    %v2003 = vadd.f32 %v599, %v2002
    %v2004 = vpop.f32.mrf.mxu0
    %v2005 = vadd.f32 %v603, %v2004
    %2006 = vmatprep.mubr.bf16.mxu0 %v339
    %2007 = vmatmul.mubr.bf16.gmra.mxu0 %v338
    %v2008 = vpop.f32.mrf.mxu0
    %v2009 = vadd.f32 %v599, %v2008
    %v2010 = vpop.f32.mrf.mxu0
    %v2011 = vadd.f32 %v603, %v2010
    %v2012 = vpop.f32.mrf.mxu0
    %v2013 = vadd.f32 %v599, %v2012
    %v2014 = vpop.f32.mrf.mxu0
    %v2015 = vadd.f32 %v603, %v2014
    %2016 = vmatprep.mubr.bf16.mxu0 %v343
    %2017 = vmatmul.mubr.bf16.gmra.mxu0 %v342
    %v2018 = vpop.f32.mrf.mxu0
    %v2019 = vadd.f32 %v599, %v2018
    %v2020 = vpop.f32.mrf.mxu0
    %v2021 = vadd.f32 %v603, %v2020
    %v2022 = vpop.f32.mrf.mxu0
    %v2023 = vadd.f32 %v599, %v2022
    %v2024 = vpop.f32.mrf.mxu0
    %v2025 = vadd.f32 %v603, %v2024
    %2026 = vmatprep.mubr.bf16.mxu0 %v347
    %2027 = vmatmul.mubr.bf16.gmra.mxu0 %v346
    %v2028 = vpop.f32.mrf.mxu0
    %v2029 = vadd.f32 %v599, %v2028
    %v2030 = vpop.f32.mrf.mxu0
    %v2031 = vadd.f32 %v603, %v2030
    %v2032 = vpop.f32.mrf.mxu0
    %v2033 = vadd.f32 %v599, %v2032
    %v2034 = vpop.f32.mrf.mxu0
    %v2035 = vadd.f32 %v603, %v2034
    %2036 = vmatprep.mubr.bf16.mxu0 %v351
    %2037 = vmatmul.mubr.bf16.gmra.mxu0 %v350
    %v2038 = vpop.f32.mrf.mxu0
    %v2039 = vadd.f32 %v599, %v2038
    %v2040 = vpop.f32.mrf.mxu0
    %v2041 = vadd.f32 %v603, %v2040
    %v2042 = vpop.f32.mrf.mxu0
    %v2043 = vadd.f32 %v599, %v2042
    %v2044 = vpop.f32.mrf.mxu0
    %v2045 = vadd.f32 %v603, %v2044
    %2046 = vmatprep.mubr.bf16.mxu0 %v355
    %2047 = vmatmul.mubr.bf16.gmra.mxu0 %v354
    %v2048 = vpop.f32.mrf.mxu0
    %v2049 = vadd.f32 %v599, %v2048
    %v2050 = vpop.f32.mrf.mxu0
    %v2051 = vadd.f32 %v603, %v2050
    %v2052 = vpop.f32.mrf.mxu0
    %v2053 = vadd.f32 %v599, %v2052
    %v2054 = vpop.f32.mrf.mxu0
    %v2055 = vadd.f32 %v603, %v2054
    %2056 = vmatprep.mubr.bf16.mxu0 %v359
    %2057 = vmatmul.mubr.bf16.gmra.mxu0 %v358
    %v2058 = vpop.f32.mrf.mxu0
    %v2059 = vadd.f32 %v599, %v2058
    %v2060 = vpop.f32.mrf.mxu0
    %v2061 = vadd.f32 %v603, %v2060
    %v2062 = vpop.f32.mrf.mxu0
    %v2063 = vadd.f32 %v599, %v2062
    %v2064 = vpop.f32.mrf.mxu0
    %v2065 = vadd.f32 %v603, %v2064
    %2066 = vmatprep.mubr.bf16.mxu0 %v363
    %2067 = vmatmul.mubr.bf16.gmra.mxu0 %v362
    %v2068 = vpop.f32.mrf.mxu0
    %v2069 = vadd.f32 %v599, %v2068
    %v2070 = vpop.f32.mrf.mxu0
    %v2071 = vadd.f32 %v603, %v2070
    %v2072 = vpop.f32.mrf.mxu0
    %v2073 = vadd.f32 %v599, %v2072
    %v2074 = vpop.f32.mrf.mxu0
    %v2075 = vadd.f32 %v603, %v2074
    %2076 = vmatprep.mubr.bf16.mxu0 %v367
    %2077 = vmatmul.mubr.bf16.gmra.mxu0 %v366
    %v2078 = vpop.f32.mrf.mxu0
    %v2079 = vadd.f32 %v599, %v2078
    %v2080 = vpop.f32.mrf.mxu0
    %v2081 = vadd.f32 %v603, %v2080
    %v2082 = vpop.f32.mrf.mxu0
    %v2083 = vadd.f32 %v599, %v2082
    %v2084 = vpop.f32.mrf.mxu0
    %v2085 = vadd.f32 %v603, %v2084
    %2086 = vmatprep.mubr.bf16.mxu0 %v371
    %2087 = vmatmul.mubr.bf16.gmra.mxu0 %v370
    %v2088 = vpop.f32.mrf.mxu0
    %v2089 = vadd.f32 %v599, %v2088
    %v2090 = vpop.f32.mrf.mxu0
    %v2091 = vadd.f32 %v603, %v2090
    %v2092 = vpop.f32.mrf.mxu0
    %v2093 = vadd.f32 %v599, %v2092
    %v2094 = vpop.f32.mrf.mxu0
    %v2095 = vadd.f32 %v603, %v2094
    %2096 = vmatprep.mubr.bf16.mxu0 %v375
    %2097 = vmatmul.mubr.bf16.gmra.mxu0 %v374
    %v2098 = vpop.f32.mrf.mxu0
    %v2099 = vadd.f32 %v599, %v2098
    %v2100 = vpop.f32.mrf.mxu0
    %v2101 = vadd.f32 %v603, %v2100
    %v2102 = vpop.f32.mrf.mxu0
    %v2103 = vadd.f32 %v599, %v2102
    %v2104 = vpop.f32.mrf.mxu0
    %v2105 = vadd.f32 %v603, %v2104
    %2106 = vmatprep.mubr.bf16.mxu0 %v379
    %2107 = vmatmul.mubr.bf16.gmra.mxu0 %v378
    %v2108 = vpop.f32.mrf.mxu0
    %v2109 = vadd.f32 %v599, %v2108
    %v2110 = vpop.f32.mrf.mxu0
    %v2111 = vadd.f32 %v603, %v2110
    %v2112 = vpop.f32.mrf.mxu0
    %v2113 = vadd.f32 %v599, %v2112
    %v2114 = vpop.f32.mrf.mxu0
    %v2115 = vadd.f32 %v603, %v2114
    %2116 = vmatprep.mubr.bf16.mxu0 %v383
    %2117 = vmatmul.mubr.bf16.gmra.mxu0 %v382
    %v2118 = vpop.f32.mrf.mxu0
    %v2119 = vadd.f32 %v599, %v2118
    %v2120 = vpop.f32.mrf.mxu0
    %v2121 = vadd.f32 %v603, %v2120
    %v2122 = vpop.f32.mrf.mxu0
    %v2123 = vadd.f32 %v599, %v2122
    %v2124 = vpop.f32.mrf.mxu0
    %v2125 = vadd.f32 %v603, %v2124
    %2126 = vmatprep.mubr.bf16.mxu0 %v387
    %2127 = vmatmul.mubr.bf16.gmra.mxu0 %v386
    %v2128 = vpop.f32.mrf.mxu0
    %v2129 = vadd.f32 %v599, %v2128
    %v2130 = vpop.f32.mrf.mxu0
    %v2131 = vadd.f32 %v603, %v2130
    %v2132 = vpop.f32.mrf.mxu0
    %v2133 = vadd.f32 %v599, %v2132
    %v2134 = vpop.f32.mrf.mxu0
    %v2135 = vadd.f32 %v603, %v2134
    %2136 = vmatprep.mubr.bf16.mxu0 %v391
    %2137 = vmatmul.mubr.bf16.gmra.mxu0 %v390
    %v2138 = vpop.f32.mrf.mxu0
    %v2139 = vadd.f32 %v599, %v2138
    %v2140 = vpop.f32.mrf.mxu0
    %v2141 = vadd.f32 %v603, %v2140
    %v2142 = vpop.f32.mrf.mxu0
    %v2143 = vadd.f32 %v599, %v2142
    %v2144 = vpop.f32.mrf.mxu0
    %v2145 = vadd.f32 %v603, %v2144
    %2146 = vmatprep.mubr.bf16.mxu0 %v395
    %2147 = vmatmul.mubr.bf16.gmra.mxu0 %v394
    %v2148 = vpop.f32.mrf.mxu0
    %v2149 = vadd.f32 %v599, %v2148
    %v2150 = vpop.f32.mrf.mxu0
    %v2151 = vadd.f32 %v603, %v2150
    %v2152 = vpop.f32.mrf.mxu0
    %v2153 = vadd.f32 %v599, %v2152
    %v2154 = vpop.f32.mrf.mxu0
    %v2155 = vadd.f32 %v603, %v2154
    %2156 = vmatprep.mubr.bf16.mxu0 %v399
    %2157 = vmatmul.mubr.bf16.gmra.mxu0 %v398
    %v2158 = vpop.f32.mrf.mxu0
    %v2159 = vadd.f32 %v599, %v2158
    %v2160 = vpop.f32.mrf.mxu0
    %v2161 = vadd.f32 %v603, %v2160
    %v2162 = vpop.f32.mrf.mxu0
    %v2163 = vadd.f32 %v599, %v2162
    %v2164 = vpop.f32.mrf.mxu0
    %v2165 = vadd.f32 %v603, %v2164
    %2166 = vmatprep.mubr.bf16.mxu0 %v403
    %2167 = vmatmul.mubr.bf16.gmra.mxu0 %v402
    %v2168 = vpop.f32.mrf.mxu0
    %v2169 = vadd.f32 %v599, %v2168
    %v2170 = vpop.f32.mrf.mxu0
    %v2171 = vadd.f32 %v603, %v2170
    %v2172 = vpop.f32.mrf.mxu0
    %v2173 = vadd.f32 %v599, %v2172
    %v2174 = vpop.f32.mrf.mxu0
    %v2175 = vadd.f32 %v603, %v2174
    %2176 = vmatprep.mubr.bf16.mxu0 %v407
    %2177 = vmatmul.mubr.bf16.gmra.mxu0 %v406
    %v2178 = vpop.f32.mrf.mxu0
    %v2179 = vadd.f32 %v599, %v2178
    %v2180 = vpop.f32.mrf.mxu0
    %v2181 = vadd.f32 %v603, %v2180
    %v2182 = vpop.f32.mrf.mxu0
    %v2183 = vadd.f32 %v599, %v2182
    %v2184 = vpop.f32.mrf.mxu0
    %v2185 = vadd.f32 %v603, %v2184
    %2186 = vmatprep.mubr.bf16.mxu0 %v411
    %2187 = vmatmul.mubr.bf16.gmra.mxu0 %v410
    %v2188 = vpop.f32.mrf.mxu0
    %v2189 = vadd.f32 %v599, %v2188
    %v2190 = vpop.f32.mrf.mxu0
    %v2191 = vadd.f32 %v603, %v2190
    %v2192 = vpop.f32.mrf.mxu0
    %v2193 = vadd.f32 %v599, %v2192
    %v2194 = vpop.f32.mrf.mxu0
    %v2195 = vadd.f32 %v603, %v2194
    %2196 = vmatprep.mubr.bf16.mxu0 %v415
    %2197 = vmatmul.mubr.bf16.gmra.mxu0 %v414
    %v2198 = vpop.f32.mrf.mxu0
    %v2199 = vadd.f32 %v599, %v2198
    %v2200 = vpop.f32.mrf.mxu0
    %v2201 = vadd.f32 %v603, %v2200
    %v2202 = vpop.f32.mrf.mxu0
    %v2203 = vadd.f32 %v599, %v2202
    %v2204 = vpop.f32.mrf.mxu0
    %v2205 = vadd.f32 %v603, %v2204
    %2206 = vmatprep.mubr.bf16.mxu0 %v419
    %2207 = vmatmul.mubr.bf16.gmra.mxu0 %v418
    %v2208 = vpop.f32.mrf.mxu0
    %v2209 = vadd.f32 %v599, %v2208
    %v2210 = vpop.f32.mrf.mxu0
    %v2211 = vadd.f32 %v603, %v2210
    %v2212 = vpop.f32.mrf.mxu0
    %v2213 = vadd.f32 %v599, %v2212
    %v2214 = vpop.f32.mrf.mxu0
    %v2215 = vadd.f32 %v603, %v2214
    %2216 = vmatprep.mubr.bf16.mxu0 %v423
    %2217 = vmatmul.mubr.bf16.gmra.mxu0 %v422
    %v2218 = vpop.f32.mrf.mxu0
    %v2219 = vadd.f32 %v599, %v2218
    %v2220 = vpop.f32.mrf.mxu0
    %v2221 = vadd.f32 %v603, %v2220
    %v2222 = vpop.f32.mrf.mxu0
    %v2223 = vadd.f32 %v599, %v2222
    %v2224 = vpop.f32.mrf.mxu0
    %v2225 = vadd.f32 %v603, %v2224
    %2226 = vmatprep.mubr.bf16.mxu0 %v427
    %2227 = vmatmul.mubr.bf16.gmra.mxu0 %v426
    %v2228 = vpop.f32.mrf.mxu0
    %v2229 = vadd.f32 %v599, %v2228
    %v2230 = vpop.f32.mrf.mxu0
    %v2231 = vadd.f32 %v603, %v2230
    %v2232 = vpop.f32.mrf.mxu0
    %v2233 = vadd.f32 %v599, %v2232
    %v2234 = vpop.f32.mrf.mxu0
    %v2235 = vadd.f32 %v603, %v2234
    %2236 = vmatprep.mubr.bf16.mxu0 %v431
    %2237 = vmatmul.mubr.bf16.gmra.mxu0 %v430
    %v2238 = vpop.f32.mrf.mxu0
    %v2239 = vadd.f32 %v599, %v2238
    %v2240 = vpop.f32.mrf.mxu0
    %v2241 = vadd.f32 %v603, %v2240
    %v2242 = vpop.f32.mrf.mxu0
    %v2243 = vadd.f32 %v599, %v2242
    %v2244 = vpop.f32.mrf.mxu0
    %v2245 = vadd.f32 %v603, %v2244
    %2246 = vmatprep.mubr.bf16.mxu0 %v435
    %2247 = vmatmul.mubr.bf16.gmra.mxu0 %v434
    %v2248 = vpop.f32.mrf.mxu0
    %v2249 = vadd.f32 %v599, %v2248
    %v2250 = vpop.f32.mrf.mxu0
    %v2251 = vadd.f32 %v603, %v2250
    %v2252 = vpop.f32.mrf.mxu0
    %v2253 = vadd.f32 %v599, %v2252
    %v2254 = vpop.f32.mrf.mxu0
    %v2255 = vadd.f32 %v603, %v2254
    %2256 = vmatprep.mubr.bf16.mxu0 %v439
    %2257 = vmatmul.mubr.bf16.gmra.mxu0 %v438
    %v2258 = vpop.f32.mrf.mxu0
    %v2259 = vadd.f32 %v599, %v2258
    %v2260 = vpop.f32.mrf.mxu0
    %v2261 = vadd.f32 %v603, %v2260
    %v2262 = vpop.f32.mrf.mxu0
    %v2263 = vadd.f32 %v599, %v2262
    %v2264 = vpop.f32.mrf.mxu0
    %v2265 = vadd.f32 %v603, %v2264
    %2266 = vmatprep.mubr.bf16.mxu0 %v443
    %2267 = vmatmul.mubr.bf16.gmra.mxu0 %v442
    %v2268 = vpop.f32.mrf.mxu0
    %v2269 = vadd.f32 %v599, %v2268
    %v2270 = vpop.f32.mrf.mxu0
    %v2271 = vadd.f32 %v603, %v2270
    %v2272 = vpop.f32.mrf.mxu0
    %v2273 = vadd.f32 %v599, %v2272
    %v2274 = vpop.f32.mrf.mxu0
    %v2275 = vadd.f32 %v603, %v2274
    %2276 = vmatprep.mubr.bf16.mxu0 %v447
    %2277 = vmatmul.mubr.bf16.gmra.mxu0 %v446
    %v2278 = vpop.f32.mrf.mxu0
    %v2279 = vadd.f32 %v599, %v2278
    %v2280 = vpop.f32.mrf.mxu0
    %v2281 = vadd.f32 %v603, %v2280
    %v2282 = vpop.f32.mrf.mxu0
    %v2283 = vadd.f32 %v599, %v2282
    %v2284 = vpop.f32.mrf.mxu0
    %v2285 = vadd.f32 %v603, %v2284
    %2286 = vmatprep.mubr.bf16.mxu0 %v451
    %2287 = vmatmul.mubr.bf16.gmra.mxu0 %v450
    %v2288 = vpop.f32.mrf.mxu0
    %v2289 = vadd.f32 %v599, %v2288
    %v2290 = vpop.f32.mrf.mxu0
    %v2291 = vadd.f32 %v603, %v2290
    %v2292 = vpop.f32.mrf.mxu0
    %v2293 = vadd.f32 %v599, %v2292
    %v2294 = vpop.f32.mrf.mxu0
    %v2295 = vadd.f32 %v603, %v2294
    %2296 = vmatprep.mubr.bf16.mxu0 %v455
    %2297 = vmatmul.mubr.bf16.gmra.mxu0 %v454
    %v2298 = vpop.f32.mrf.mxu0
    %v2299 = vadd.f32 %v599, %v2298
    %v2300 = vpop.f32.mrf.mxu0
    %v2301 = vadd.f32 %v603, %v2300
    %v2302 = vpop.f32.mrf.mxu0
    %v2303 = vadd.f32 %v599, %v2302
    %v2304 = vpop.f32.mrf.mxu0
    %v2305 = vadd.f32 %v603, %v2304
    %2306 = vdwg.mxu0
    %2307 = vmatprep.subr.bf16.mxu0 %v1087
    %2308 = vmatpush1.bf16.msra.mxu0 %v1086
    %2309 = vmatprep.subr.bf16.mxu0 %v1083
    %2310 = vmatpush1.bf16.msra.mxu0 %v1082
    %2311 = vmatprep.subr.bf16.mxu0 %v1079
    %2312 = vmatpush1.bf16.msra.mxu0 %v1078
    %2313 = vmatprep.subr.bf16.mxu0 %v1075
    %2314 = vmatpush1.bf16.msra.mxu0 %v1074
    %2315 = vmatprep.subr.bf16.mxu0 %v1071
    %2316 = vmatpush1.bf16.msra.mxu0 %v1070
    %2317 = vmatprep.subr.bf16.mxu0 %v1067
    %2318 = vmatpush1.bf16.msra.mxu0 %v1066
    %2319 = vmatprep.subr.bf16.mxu0 %v1063
    %2320 = vmatpush1.bf16.msra.mxu0 %v1062
    %2321 = vmatprep.subr.bf16.mxu0 %v1059
    %2322 = vmatpush1.bf16.msra.mxu0 %v1058
    %2323 = vmatprep.subr.bf16.mxu0 %v1119
    %2324 = vmatpush2.bf16.msra.mxu0 %v1118
    %2325 = vmatprep.subr.bf16.mxu0 %v1115
    %2326 = vmatpush2.bf16.msra.mxu0 %v1114
    %2327 = vmatprep.subr.bf16.mxu0 %v1111
    %2328 = vmatpush2.bf16.msra.mxu0 %v1110
    %2329 = vmatprep.subr.bf16.mxu0 %v1107
    %2330 = vmatpush2.bf16.msra.mxu0 %v1106
    %2331 = vmatprep.subr.bf16.mxu0 %v1103
    %2332 = vmatpush2.bf16.msra.mxu0 %v1102
    %2333 = vmatprep.subr.bf16.mxu0 %v1099
    %2334 = vmatpush2.bf16.msra.mxu0 %v1098
    %2335 = vmatprep.subr.bf16.mxu0 %v1095
    %2336 = vmatpush2.bf16.msra.mxu0 %v1094
    %2337 = vmatprep.subr.bf16.mxu0 %v1091
    %2338 = vmatpush2.bf16.msra.mxu0 %v1090
    %2339 = vmatprep.mubr.bf16.mxu0 %v333
    %2340 = vmatmul.mubr.bf16.gmra.mxu0 %v332
    %v2341 = vpop.f32.mrf.mxu0
    %v2342 = vadd.f32 %v1989, %v2341
    %v2343 = vpop.f32.mrf.mxu0
    %v2344 = vadd.f32 %v1991, %v2343
    %v2345 = vpop.f32.mrf.mxu0
    %v2346 = vadd.f32 %v1993, %v2345
    %v2347 = vpop.f32.mrf.mxu0
    %v2348 = vadd.f32 %v1995, %v2347
    %2349 = vmatprep.mubr.bf16.mxu0 %v337
    %2350 = vmatmul.mubr.bf16.gmra.mxu0 %v336
    %v2351 = vpop.f32.mrf.mxu0
    %v2352 = vadd.f32 %v1999, %v2351
    %v2353 = vpop.f32.mrf.mxu0
    %v2354 = vadd.f32 %v2001, %v2353
    %v2355 = vpop.f32.mrf.mxu0
    %v2356 = vadd.f32 %v2003, %v2355
    %v2357 = vpop.f32.mrf.mxu0
    %v2358 = vadd.f32 %v2005, %v2357
    %2359 = vmatprep.mubr.bf16.mxu0 %v341
    %2360 = vmatmul.mubr.bf16.gmra.mxu0 %v340
    %v2361 = vpop.f32.mrf.mxu0
    %v2362 = vadd.f32 %v2009, %v2361
    %v2363 = vpop.f32.mrf.mxu0
    %v2364 = vadd.f32 %v2011, %v2363
    %v2365 = vpop.f32.mrf.mxu0
    %v2366 = vadd.f32 %v2013, %v2365
    %v2367 = vpop.f32.mrf.mxu0
    %v2368 = vadd.f32 %v2015, %v2367
    %2369 = vmatprep.mubr.bf16.mxu0 %v345
    %2370 = vmatmul.mubr.bf16.gmra.mxu0 %v344
    %v2371 = vpop.f32.mrf.mxu0
    %v2372 = vadd.f32 %v2019, %v2371
    %v2373 = vpop.f32.mrf.mxu0
    %v2374 = vadd.f32 %v2021, %v2373
    %v2375 = vpop.f32.mrf.mxu0
    %v2376 = vadd.f32 %v2023, %v2375
    %v2377 = vpop.f32.mrf.mxu0
    %v2378 = vadd.f32 %v2025, %v2377
    %2379 = vmatprep.mubr.bf16.mxu0 %v349
    %2380 = vmatmul.mubr.bf16.gmra.mxu0 %v348
    %v2381 = vpop.f32.mrf.mxu0
    %v2382 = vadd.f32 %v2029, %v2381
    %v2383 = vpop.f32.mrf.mxu0
    %v2384 = vadd.f32 %v2031, %v2383
    %v2385 = vpop.f32.mrf.mxu0
    %v2386 = vadd.f32 %v2033, %v2385
    %v2387 = vpop.f32.mrf.mxu0
    %v2388 = vadd.f32 %v2035, %v2387
    %2389 = vmatprep.mubr.bf16.mxu0 %v353
    %2390 = vmatmul.mubr.bf16.gmra.mxu0 %v352
    %v2391 = vpop.f32.mrf.mxu0
    %v2392 = vadd.f32 %v2039, %v2391
    %v2393 = vpop.f32.mrf.mxu0
    %v2394 = vadd.f32 %v2041, %v2393
    %v2395 = vpop.f32.mrf.mxu0
    %v2396 = vadd.f32 %v2043, %v2395
    %v2397 = vpop.f32.mrf.mxu0
    %v2398 = vadd.f32 %v2045, %v2397
    %2399 = vmatprep.mubr.bf16.mxu0 %v357
    %2400 = vmatmul.mubr.bf16.gmra.mxu0 %v356
    %v2401 = vpop.f32.mrf.mxu0
    %v2402 = vadd.f32 %v2049, %v2401
    %v2403 = vpop.f32.mrf.mxu0
    %v2404 = vadd.f32 %v2051, %v2403
    %v2405 = vpop.f32.mrf.mxu0
    %v2406 = vadd.f32 %v2053, %v2405
    %v2407 = vpop.f32.mrf.mxu0
    %v2408 = vadd.f32 %v2055, %v2407
    %2409 = vmatprep.mubr.bf16.mxu0 %v361
    %2410 = vmatmul.mubr.bf16.gmra.mxu0 %v360
    %v2411 = vpop.f32.mrf.mxu0
    %v2412 = vadd.f32 %v2059, %v2411
    %v2413 = vpop.f32.mrf.mxu0
    %v2414 = vadd.f32 %v2061, %v2413
    %v2415 = vpop.f32.mrf.mxu0
    %v2416 = vadd.f32 %v2063, %v2415
    %v2417 = vpop.f32.mrf.mxu0
    %v2418 = vadd.f32 %v2065, %v2417
    %2419 = vmatprep.mubr.bf16.mxu0 %v365
    %2420 = vmatmul.mubr.bf16.gmra.mxu0 %v364
    %v2421 = vpop.f32.mrf.mxu0
    %v2422 = vadd.f32 %v2069, %v2421
    %v2423 = vpop.f32.mrf.mxu0
    %v2424 = vadd.f32 %v2071, %v2423
    %v2425 = vpop.f32.mrf.mxu0
    %v2426 = vadd.f32 %v2073, %v2425
    %v2427 = vpop.f32.mrf.mxu0
    %v2428 = vadd.f32 %v2075, %v2427
    %2429 = vmatprep.mubr.bf16.mxu0 %v369
    %2430 = vmatmul.mubr.bf16.gmra.mxu0 %v368
    %v2431 = vpop.f32.mrf.mxu0
    %v2432 = vadd.f32 %v2079, %v2431
    %v2433 = vpop.f32.mrf.mxu0
    %v2434 = vadd.f32 %v2081, %v2433
    %v2435 = vpop.f32.mrf.mxu0
    %v2436 = vadd.f32 %v2083, %v2435
    %v2437 = vpop.f32.mrf.mxu0
    %v2438 = vadd.f32 %v2085, %v2437
    %2439 = vmatprep.mubr.bf16.mxu0 %v373
    %2440 = vmatmul.mubr.bf16.gmra.mxu0 %v372
    %v2441 = vpop.f32.mrf.mxu0
    %v2442 = vadd.f32 %v2089, %v2441
    %v2443 = vpop.f32.mrf.mxu0
    %v2444 = vadd.f32 %v2091, %v2443
    %v2445 = vpop.f32.mrf.mxu0
    %v2446 = vadd.f32 %v2093, %v2445
    %v2447 = vpop.f32.mrf.mxu0
    %v2448 = vadd.f32 %v2095, %v2447
    %2449 = vmatprep.mubr.bf16.mxu0 %v377
    %2450 = vmatmul.mubr.bf16.gmra.mxu0 %v376
    %v2451 = vpop.f32.mrf.mxu0
    %v2452 = vadd.f32 %v2099, %v2451
    %v2453 = vpop.f32.mrf.mxu0
    %v2454 = vadd.f32 %v2101, %v2453
    %v2455 = vpop.f32.mrf.mxu0
    %v2456 = vadd.f32 %v2103, %v2455
    %v2457 = vpop.f32.mrf.mxu0
    %v2458 = vadd.f32 %v2105, %v2457
    %2459 = vmatprep.mubr.bf16.mxu0 %v381
    %2460 = vmatmul.mubr.bf16.gmra.mxu0 %v380
    %v2461 = vpop.f32.mrf.mxu0
    %v2462 = vadd.f32 %v2109, %v2461
    %v2463 = vpop.f32.mrf.mxu0
    %v2464 = vadd.f32 %v2111, %v2463
    %v2465 = vpop.f32.mrf.mxu0
    %v2466 = vadd.f32 %v2113, %v2465
    %v2467 = vpop.f32.mrf.mxu0
    %v2468 = vadd.f32 %v2115, %v2467
    %2469 = vmatprep.mubr.bf16.mxu0 %v385
    %2470 = vmatmul.mubr.bf16.gmra.mxu0 %v384
    %v2471 = vpop.f32.mrf.mxu0
    %v2472 = vadd.f32 %v2119, %v2471
    %v2473 = vpop.f32.mrf.mxu0
    %v2474 = vadd.f32 %v2121, %v2473
    %v2475 = vpop.f32.mrf.mxu0
    %v2476 = vadd.f32 %v2123, %v2475
    %v2477 = vpop.f32.mrf.mxu0
    %v2478 = vadd.f32 %v2125, %v2477
    %2479 = vmatprep.mubr.bf16.mxu0 %v389
    %2480 = vmatmul.mubr.bf16.gmra.mxu0 %v388
    %v2481 = vpop.f32.mrf.mxu0
    %v2482 = vadd.f32 %v2129, %v2481
    %v2483 = vpop.f32.mrf.mxu0
    %v2484 = vadd.f32 %v2131, %v2483
    %v2485 = vpop.f32.mrf.mxu0
    %v2486 = vadd.f32 %v2133, %v2485
    %v2487 = vpop.f32.mrf.mxu0
    %v2488 = vadd.f32 %v2135, %v2487
    %2489 = vmatprep.mubr.bf16.mxu0 %v393
    %2490 = vmatmul.mubr.bf16.gmra.mxu0 %v392
    %v2491 = vpop.f32.mrf.mxu0
    %v2492 = vadd.f32 %v2139, %v2491
    %v2493 = vpop.f32.mrf.mxu0
    %v2494 = vadd.f32 %v2141, %v2493
    %v2495 = vpop.f32.mrf.mxu0
    %v2496 = vadd.f32 %v2143, %v2495
    %v2497 = vpop.f32.mrf.mxu0
    %v2498 = vadd.f32 %v2145, %v2497
    %2499 = vmatprep.mubr.bf16.mxu0 %v397
    %2500 = vmatmul.mubr.bf16.gmra.mxu0 %v396
    %v2501 = vpop.f32.mrf.mxu0
    %v2502 = vadd.f32 %v2149, %v2501
    %v2503 = vpop.f32.mrf.mxu0
    %v2504 = vadd.f32 %v2151, %v2503
    %v2505 = vpop.f32.mrf.mxu0
    %v2506 = vadd.f32 %v2153, %v2505
    %v2507 = vpop.f32.mrf.mxu0
    %v2508 = vadd.f32 %v2155, %v2507
    %2509 = vmatprep.mubr.bf16.mxu0 %v401
    %2510 = vmatmul.mubr.bf16.gmra.mxu0 %v400
    %v2511 = vpop.f32.mrf.mxu0
    %v2512 = vadd.f32 %v2159, %v2511
    %v2513 = vpop.f32.mrf.mxu0
    %v2514 = vadd.f32 %v2161, %v2513
    %v2515 = vpop.f32.mrf.mxu0
    %v2516 = vadd.f32 %v2163, %v2515
    %v2517 = vpop.f32.mrf.mxu0
    %v2518 = vadd.f32 %v2165, %v2517
    %2519 = vmatprep.mubr.bf16.mxu0 %v405
    %2520 = vmatmul.mubr.bf16.gmra.mxu0 %v404
    %v2521 = vpop.f32.mrf.mxu0
    %v2522 = vadd.f32 %v2169, %v2521
    %v2523 = vpop.f32.mrf.mxu0
    %v2524 = vadd.f32 %v2171, %v2523
    %v2525 = vpop.f32.mrf.mxu0
    %v2526 = vadd.f32 %v2173, %v2525
    %v2527 = vpop.f32.mrf.mxu0
    %v2528 = vadd.f32 %v2175, %v2527
    %2529 = vmatprep.mubr.bf16.mxu0 %v409
    %2530 = vmatmul.mubr.bf16.gmra.mxu0 %v408
    %v2531 = vpop.f32.mrf.mxu0
    %v2532 = vadd.f32 %v2179, %v2531
    %v2533 = vpop.f32.mrf.mxu0
    %v2534 = vadd.f32 %v2181, %v2533
    %v2535 = vpop.f32.mrf.mxu0
    %v2536 = vadd.f32 %v2183, %v2535
    %v2537 = vpop.f32.mrf.mxu0
    %v2538 = vadd.f32 %v2185, %v2537
    %2539 = vmatprep.mubr.bf16.mxu0 %v413
    %2540 = vmatmul.mubr.bf16.gmra.mxu0 %v412
    %v2541 = vpop.f32.mrf.mxu0
    %v2542 = vadd.f32 %v2189, %v2541
    %v2543 = vpop.f32.mrf.mxu0
    %v2544 = vadd.f32 %v2191, %v2543
    %v2545 = vpop.f32.mrf.mxu0
    %v2546 = vadd.f32 %v2193, %v2545
    %v2547 = vpop.f32.mrf.mxu0
    %v2548 = vadd.f32 %v2195, %v2547
    %2549 = vmatprep.mubr.bf16.mxu0 %v417
    %2550 = vmatmul.mubr.bf16.gmra.mxu0 %v416
    %v2551 = vpop.f32.mrf.mxu0
    %v2552 = vadd.f32 %v2199, %v2551
    %v2553 = vpop.f32.mrf.mxu0
    %v2554 = vadd.f32 %v2201, %v2553
    %v2555 = vpop.f32.mrf.mxu0
    %v2556 = vadd.f32 %v2203, %v2555
    %v2557 = vpop.f32.mrf.mxu0
    %v2558 = vadd.f32 %v2205, %v2557
    %2559 = vmatprep.mubr.bf16.mxu0 %v421
    %2560 = vmatmul.mubr.bf16.gmra.mxu0 %v420
    %v2561 = vpop.f32.mrf.mxu0
    %v2562 = vadd.f32 %v2209, %v2561
    %v2563 = vpop.f32.mrf.mxu0
    %v2564 = vadd.f32 %v2211, %v2563
    %v2565 = vpop.f32.mrf.mxu0
    %v2566 = vadd.f32 %v2213, %v2565
    %v2567 = vpop.f32.mrf.mxu0
    %v2568 = vadd.f32 %v2215, %v2567
    %2569 = vmatprep.mubr.bf16.mxu0 %v425
    %2570 = vmatmul.mubr.bf16.gmra.mxu0 %v424
    %v2571 = vpop.f32.mrf.mxu0
    %v2572 = vadd.f32 %v2219, %v2571
    %v2573 = vpop.f32.mrf.mxu0
    %v2574 = vadd.f32 %v2221, %v2573
    %v2575 = vpop.f32.mrf.mxu0
    %v2576 = vadd.f32 %v2223, %v2575
    %v2577 = vpop.f32.mrf.mxu0
    %v2578 = vadd.f32 %v2225, %v2577
    %2579 = vmatprep.mubr.bf16.mxu0 %v429
    %2580 = vmatmul.mubr.bf16.gmra.mxu0 %v428
    %v2581 = vpop.f32.mrf.mxu0
    %v2582 = vadd.f32 %v2229, %v2581
    %v2583 = vpop.f32.mrf.mxu0
    %v2584 = vadd.f32 %v2231, %v2583
    %v2585 = vpop.f32.mrf.mxu0
    %v2586 = vadd.f32 %v2233, %v2585
    %v2587 = vpop.f32.mrf.mxu0
    %v2588 = vadd.f32 %v2235, %v2587
    %2589 = vmatprep.mubr.bf16.mxu0 %v433
    %2590 = vmatmul.mubr.bf16.gmra.mxu0 %v432
    %v2591 = vpop.f32.mrf.mxu0
    %v2592 = vadd.f32 %v2239, %v2591
    %v2593 = vpop.f32.mrf.mxu0
    %v2594 = vadd.f32 %v2241, %v2593
    %v2595 = vpop.f32.mrf.mxu0
    %v2596 = vadd.f32 %v2243, %v2595
    %v2597 = vpop.f32.mrf.mxu0
    %v2598 = vadd.f32 %v2245, %v2597
    %2599 = vmatprep.mubr.bf16.mxu0 %v437
    %2600 = vmatmul.mubr.bf16.gmra.mxu0 %v436
    %v2601 = vpop.f32.mrf.mxu0
    %v2602 = vadd.f32 %v2249, %v2601
    %v2603 = vpop.f32.mrf.mxu0
    %v2604 = vadd.f32 %v2251, %v2603
    %v2605 = vpop.f32.mrf.mxu0
    %v2606 = vadd.f32 %v2253, %v2605
    %v2607 = vpop.f32.mrf.mxu0
    %v2608 = vadd.f32 %v2255, %v2607
    %2609 = vmatprep.mubr.bf16.mxu0 %v441
    %2610 = vmatmul.mubr.bf16.gmra.mxu0 %v440
    %v2611 = vpop.f32.mrf.mxu0
    %v2612 = vadd.f32 %v2259, %v2611
    %v2613 = vpop.f32.mrf.mxu0
    %v2614 = vadd.f32 %v2261, %v2613
    %v2615 = vpop.f32.mrf.mxu0
    %v2616 = vadd.f32 %v2263, %v2615
    %v2617 = vpop.f32.mrf.mxu0
    %v2618 = vadd.f32 %v2265, %v2617
    %2619 = vmatprep.mubr.bf16.mxu0 %v445
    %2620 = vmatmul.mubr.bf16.gmra.mxu0 %v444
    %v2621 = vpop.f32.mrf.mxu0
    %v2622 = vadd.f32 %v2269, %v2621
    %v2623 = vpop.f32.mrf.mxu0
    %v2624 = vadd.f32 %v2271, %v2623
    %v2625 = vpop.f32.mrf.mxu0
    %v2626 = vadd.f32 %v2273, %v2625
    %v2627 = vpop.f32.mrf.mxu0
    %v2628 = vadd.f32 %v2275, %v2627
    %2629 = vmatprep.mubr.bf16.mxu0 %v449
    %2630 = vmatmul.mubr.bf16.gmra.mxu0 %v448
    %v2631 = vpop.f32.mrf.mxu0
    %v2632 = vadd.f32 %v2279, %v2631
    %v2633 = vpop.f32.mrf.mxu0
    %v2634 = vadd.f32 %v2281, %v2633
    %v2635 = vpop.f32.mrf.mxu0
    %v2636 = vadd.f32 %v2283, %v2635
    %v2637 = vpop.f32.mrf.mxu0
    %v2638 = vadd.f32 %v2285, %v2637
    %2639 = vmatprep.mubr.bf16.mxu0 %v453
    %2640 = vmatmul.mubr.bf16.gmra.mxu0 %v452
    %v2641 = vpop.f32.mrf.mxu0
    %v2642 = vadd.f32 %v2289, %v2641
    %v2643 = vpop.f32.mrf.mxu0
    %v2644 = vadd.f32 %v2291, %v2643
    %v2645 = vpop.f32.mrf.mxu0
    %v2646 = vadd.f32 %v2293, %v2645
    %v2647 = vpop.f32.mrf.mxu0
    %v2648 = vadd.f32 %v2295, %v2647
    %2649 = vmatprep.mubr.bf16.mxu0 %v457
    %2650 = vmatmul.mubr.bf16.gmra.mxu0 %v456
    %v2651 = vpop.f32.mrf.mxu0
    %v2652 = vadd.f32 %v2299, %v2651
    %v2653 = vpop.f32.mrf.mxu0
    %v2654 = vadd.f32 %v2301, %v2653
    %v2655 = vpop.f32.mrf.mxu0
    %v2656 = vadd.f32 %v2303, %v2655
    %v2657 = vpop.f32.mrf.mxu0
    %v2658 = vadd.f32 %v2305, %v2657
    %2659 = vdwg.mxu0
    %v2660 = vxor.u32 %v1636, 2147483648
    %v2661 = vxor.u32 %v1638, 2147483648
    %v2662 = vxor.u32 %v2342, 2147483648
    %v2663 = vxor.u32 %v2344, 2147483648
    %v2664 = vxor.u32 %v1640, 2147483648
    %v2665 = vxor.u32 %v1642, 2147483648
    %v2666 = vxor.u32 %v2346, 2147483648
    %v2667 = vxor.u32 %v2348, 2147483648
    %v2668 = vxor.u32 %v1646, 2147483648
    %v2669 = vxor.u32 %v1648, 2147483648
    %v2670 = vxor.u32 %v2352, 2147483648
    %v2671 = vxor.u32 %v2354, 2147483648
    %v2672 = vxor.u32 %v1650, 2147483648
    %v2673 = vxor.u32 %v1652, 2147483648
    %v2674 = vxor.u32 %v2356, 2147483648
    %v2675 = vxor.u32 %v2358, 2147483648
    %v2676 = vxor.u32 %v1656, 2147483648
    %v2677 = vxor.u32 %v1658, 2147483648
    %v2678 = vxor.u32 %v2362, 2147483648
    %v2679 = vxor.u32 %v2364, 2147483648
    %v2680 = vxor.u32 %v1660, 2147483648
    %v2681 = vxor.u32 %v1662, 2147483648
    %v2682 = vxor.u32 %v2366, 2147483648
    %v2683 = vxor.u32 %v2368, 2147483648
    %v2684 = vxor.u32 %v1666, 2147483648
    %v2685 = vxor.u32 %v1668, 2147483648
    %v2686 = vxor.u32 %v2372, 2147483648
    %v2687 = vxor.u32 %v2374, 2147483648
    %v2688 = vxor.u32 %v1670, 2147483648
    %v2689 = vxor.u32 %v1672, 2147483648
    %v2690 = vxor.u32 %v2376, 2147483648
    %v2691 = vxor.u32 %v2378, 2147483648
    %v2692 = vxor.u32 %v1676, 2147483648
    %v2693 = vxor.u32 %v1678, 2147483648
    %v2694 = vxor.u32 %v2382, 2147483648
    %v2695 = vxor.u32 %v2384, 2147483648
    %v2696 = vxor.u32 %v1680, 2147483648
    %v2697 = vxor.u32 %v1682, 2147483648
    %v2698 = vxor.u32 %v2386, 2147483648
    %v2699 = vxor.u32 %v2388, 2147483648
    %v2700 = vxor.u32 %v1686, 2147483648
    %v2701 = vxor.u32 %v1688, 2147483648
    %v2702 = vxor.u32 %v2392, 2147483648
    %v2703 = vxor.u32 %v2394, 2147483648
    %v2704 = vxor.u32 %v1690, 2147483648
    %v2705 = vxor.u32 %v1692, 2147483648
    %v2706 = vxor.u32 %v2396, 2147483648
    %v2707 = vxor.u32 %v2398, 2147483648
    %v2708 = vxor.u32 %v1696, 2147483648
    %v2709 = vxor.u32 %v1698, 2147483648
    %v2710 = vxor.u32 %v2402, 2147483648
    %v2711 = vxor.u32 %v2404, 2147483648
    %v2712 = vxor.u32 %v1700, 2147483648
    %v2713 = vxor.u32 %v1702, 2147483648
    %v2714 = vxor.u32 %v2406, 2147483648
    %v2715 = vxor.u32 %v2408, 2147483648
    %v2716 = vxor.u32 %v1706, 2147483648
    %v2717 = vxor.u32 %v1708, 2147483648
    %v2718 = vxor.u32 %v2412, 2147483648
    %v2719 = vxor.u32 %v2414, 2147483648
    %v2720 = vxor.u32 %v1710, 2147483648
    %v2721 = vxor.u32 %v1712, 2147483648
    %v2722 = vxor.u32 %v2416, 2147483648
    %v2723 = vxor.u32 %v2418, 2147483648
    %v2724 = vxor.u32 %v1716, 2147483648
    %v2725 = vxor.u32 %v1718, 2147483648
    %v2726 = vxor.u32 %v2422, 2147483648
    %v2727 = vxor.u32 %v2424, 2147483648
    %v2728 = vxor.u32 %v1720, 2147483648
    %v2729 = vxor.u32 %v1722, 2147483648
    %v2730 = vxor.u32 %v2426, 2147483648
    %v2731 = vxor.u32 %v2428, 2147483648
    %v2732 = vxor.u32 %v1726, 2147483648
    %v2733 = vxor.u32 %v1728, 2147483648
    %v2734 = vxor.u32 %v2432, 2147483648
    %v2735 = vxor.u32 %v2434, 2147483648
    %v2736 = vxor.u32 %v1730, 2147483648
    %v2737 = vxor.u32 %v1732, 2147483648
    %v2738 = vxor.u32 %v2436, 2147483648
    %v2739 = vxor.u32 %v2438, 2147483648
    %v2740 = vxor.u32 %v1736, 2147483648
    %v2741 = vxor.u32 %v1738, 2147483648
    %v2742 = vxor.u32 %v2442, 2147483648
    %v2743 = vxor.u32 %v2444, 2147483648
    %v2744 = vxor.u32 %v1740, 2147483648
    %v2745 = vxor.u32 %v1742, 2147483648
    %v2746 = vxor.u32 %v2446, 2147483648
    %v2747 = vxor.u32 %v2448, 2147483648
    %v2748 = vxor.u32 %v1746, 2147483648
    %v2749 = vxor.u32 %v1748, 2147483648
    %v2750 = vxor.u32 %v2452, 2147483648
    %v2751 = vxor.u32 %v2454, 2147483648
    %v2752 = vxor.u32 %v1750, 2147483648
    %v2753 = vxor.u32 %v1752, 2147483648
    %v2754 = vxor.u32 %v2456, 2147483648
    %v2755 = vxor.u32 %v2458, 2147483648
    %v2756 = vxor.u32 %v1756, 2147483648
    %v2757 = vxor.u32 %v1758, 2147483648
    %v2758 = vxor.u32 %v2462, 2147483648
    %v2759 = vxor.u32 %v2464, 2147483648
    %v2760 = vxor.u32 %v1760, 2147483648
    %v2761 = vxor.u32 %v1762, 2147483648
    %v2762 = vxor.u32 %v2466, 2147483648
    %v2763 = vxor.u32 %v2468, 2147483648
    %v2764 = vxor.u32 %v1766, 2147483648
    %v2765 = vxor.u32 %v1768, 2147483648
    %v2766 = vxor.u32 %v2472, 2147483648
    %v2767 = vxor.u32 %v2474, 2147483648
    %v2768 = vxor.u32 %v1770, 2147483648
    %v2769 = vxor.u32 %v1772, 2147483648
    %v2770 = vxor.u32 %v2476, 2147483648
    %v2771 = vxor.u32 %v2478, 2147483648
    %v2772 = vxor.u32 %v1776, 2147483648
    %v2773 = vxor.u32 %v1778, 2147483648
    %v2774 = vxor.u32 %v2482, 2147483648
    %v2775 = vxor.u32 %v2484, 2147483648
    %v2776 = vxor.u32 %v1780, 2147483648
    %v2777 = vxor.u32 %v1782, 2147483648
    %v2778 = vxor.u32 %v2486, 2147483648
    %v2779 = vxor.u32 %v2488, 2147483648
    %v2780 = vxor.u32 %v1786, 2147483648
    %v2781 = vxor.u32 %v1788, 2147483648
    %v2782 = vxor.u32 %v2492, 2147483648
    %v2783 = vxor.u32 %v2494, 2147483648
    %v2784 = vxor.u32 %v1790, 2147483648
    %v2785 = vxor.u32 %v1792, 2147483648
    %v2786 = vxor.u32 %v2496, 2147483648
    %v2787 = vxor.u32 %v2498, 2147483648
    %v2788 = vxor.u32 %v1796, 2147483648
    %v2789 = vxor.u32 %v1798, 2147483648
    %v2790 = vxor.u32 %v2502, 2147483648
    %v2791 = vxor.u32 %v2504, 2147483648
    %v2792 = vxor.u32 %v1800, 2147483648
    %v2793 = vxor.u32 %v1802, 2147483648
    %v2794 = vxor.u32 %v2506, 2147483648
    %v2795 = vxor.u32 %v2508, 2147483648
    %v2796 = vxor.u32 %v1806, 2147483648
    %v2797 = vxor.u32 %v1808, 2147483648
    %v2798 = vxor.u32 %v2512, 2147483648
    %v2799 = vxor.u32 %v2514, 2147483648
    %v2800 = vxor.u32 %v1810, 2147483648
    %v2801 = vxor.u32 %v1812, 2147483648
    %v2802 = vxor.u32 %v2516, 2147483648
    %v2803 = vxor.u32 %v2518, 2147483648
    %v2804 = vxor.u32 %v1816, 2147483648
    %v2805 = vxor.u32 %v1818, 2147483648
    %v2806 = vxor.u32 %v2522, 2147483648
    %v2807 = vxor.u32 %v2524, 2147483648
    %v2808 = vxor.u32 %v1820, 2147483648
    %v2809 = vxor.u32 %v1822, 2147483648
    %v2810 = vxor.u32 %v2526, 2147483648
    %v2811 = vxor.u32 %v2528, 2147483648
    %v2812 = vxor.u32 %v1826, 2147483648
    %v2813 = vxor.u32 %v1828, 2147483648
    %v2814 = vxor.u32 %v2532, 2147483648
    %v2815 = vxor.u32 %v2534, 2147483648
    %v2816 = vxor.u32 %v1830, 2147483648
    %v2817 = vxor.u32 %v1832, 2147483648
    %v2818 = vxor.u32 %v2536, 2147483648
    %v2819 = vxor.u32 %v2538, 2147483648
    %v2820 = vxor.u32 %v1836, 2147483648
    %v2821 = vxor.u32 %v1838, 2147483648
    %v2822 = vxor.u32 %v2542, 2147483648
    %v2823 = vxor.u32 %v2544, 2147483648
    %v2824 = vxor.u32 %v1840, 2147483648
    %v2825 = vxor.u32 %v1842, 2147483648
    %v2826 = vxor.u32 %v2546, 2147483648
    %v2827 = vxor.u32 %v2548, 2147483648
    %v2828 = vxor.u32 %v1846, 2147483648
    %v2829 = vxor.u32 %v1848, 2147483648
    %v2830 = vxor.u32 %v2552, 2147483648
    %v2831 = vxor.u32 %v2554, 2147483648
    %v2832 = vxor.u32 %v1850, 2147483648
    %v2833 = vxor.u32 %v1852, 2147483648
    %v2834 = vxor.u32 %v2556, 2147483648
    %v2835 = vxor.u32 %v2558, 2147483648
    %v2836 = vxor.u32 %v1856, 2147483648
    %v2837 = vxor.u32 %v1858, 2147483648
    %v2838 = vxor.u32 %v2562, 2147483648
    %v2839 = vxor.u32 %v2564, 2147483648
    %v2840 = vxor.u32 %v1860, 2147483648
    %v2841 = vxor.u32 %v1862, 2147483648
    %v2842 = vxor.u32 %v2566, 2147483648
    %v2843 = vxor.u32 %v2568, 2147483648
    %v2844 = vxor.u32 %v1866, 2147483648
    %v2845 = vxor.u32 %v1868, 2147483648
    %v2846 = vxor.u32 %v2572, 2147483648
    %v2847 = vxor.u32 %v2574, 2147483648
    %v2848 = vxor.u32 %v1870, 2147483648
    %v2849 = vxor.u32 %v1872, 2147483648
    %v2850 = vxor.u32 %v2576, 2147483648
    %v2851 = vxor.u32 %v2578, 2147483648
    %v2852 = vxor.u32 %v1876, 2147483648
    %v2853 = vxor.u32 %v1878, 2147483648
    %v2854 = vxor.u32 %v2582, 2147483648
    %v2855 = vxor.u32 %v2584, 2147483648
    %v2856 = vxor.u32 %v1880, 2147483648
    %v2857 = vxor.u32 %v1882, 2147483648
    %v2858 = vxor.u32 %v2586, 2147483648
    %v2859 = vxor.u32 %v2588, 2147483648
    %v2860 = vxor.u32 %v1886, 2147483648
    %v2861 = vxor.u32 %v1888, 2147483648
    %v2862 = vxor.u32 %v2592, 2147483648
    %v2863 = vxor.u32 %v2594, 2147483648
    %v2864 = vxor.u32 %v1890, 2147483648
    %v2865 = vxor.u32 %v1892, 2147483648
    %v2866 = vxor.u32 %v2596, 2147483648
    %v2867 = vxor.u32 %v2598, 2147483648
    %v2868 = vxor.u32 %v1896, 2147483648
    %v2869 = vxor.u32 %v1898, 2147483648
    %v2870 = vxor.u32 %v2602, 2147483648
    %v2871 = vxor.u32 %v2604, 2147483648
    %v2872 = vxor.u32 %v1900, 2147483648
    %v2873 = vxor.u32 %v1902, 2147483648
    %v2874 = vxor.u32 %v2606, 2147483648
    %v2875 = vxor.u32 %v2608, 2147483648
    %v2876 = vxor.u32 %v1906, 2147483648
    %v2877 = vxor.u32 %v1908, 2147483648
    %v2878 = vxor.u32 %v2612, 2147483648
    %v2879 = vxor.u32 %v2614, 2147483648
    %v2880 = vxor.u32 %v1910, 2147483648
    %v2881 = vxor.u32 %v1912, 2147483648
    %v2882 = vxor.u32 %v2616, 2147483648
    %v2883 = vxor.u32 %v2618, 2147483648
    %v2884 = vxor.u32 %v1916, 2147483648
    %v2885 = vxor.u32 %v1918, 2147483648
    %v2886 = vxor.u32 %v2622, 2147483648
    %v2887 = vxor.u32 %v2624, 2147483648
    %v2888 = vxor.u32 %v1920, 2147483648
    %v2889 = vxor.u32 %v1922, 2147483648
    %v2890 = vxor.u32 %v2626, 2147483648
    %v2891 = vxor.u32 %v2628, 2147483648
    %v2892 = vxor.u32 %v1926, 2147483648
    %v2893 = vxor.u32 %v1928, 2147483648
    %v2894 = vxor.u32 %v2632, 2147483648
    %v2895 = vxor.u32 %v2634, 2147483648
    %v2896 = vxor.u32 %v1930, 2147483648
    %v2897 = vxor.u32 %v1932, 2147483648
    %v2898 = vxor.u32 %v2636, 2147483648
    %v2899 = vxor.u32 %v2638, 2147483648
    %v2900 = vxor.u32 %v1936, 2147483648
    %v2901 = vxor.u32 %v1938, 2147483648
    %v2902 = vxor.u32 %v2642, 2147483648
    %v2903 = vxor.u32 %v2644, 2147483648
    %v2904 = vxor.u32 %v1940, 2147483648
    %v2905 = vxor.u32 %v1942, 2147483648
    %v2906 = vxor.u32 %v2646, 2147483648
    %v2907 = vxor.u32 %v2648, 2147483648
    %v2908 = vxor.u32 %v1946, 2147483648
    %v2909 = vxor.u32 %v1948, 2147483648
    %v2910 = vxor.u32 %v2652, 2147483648
    %v2911 = vxor.u32 %v2654, 2147483648
    %v2912 = vxor.u32 %v1950, 2147483648
    %v2913 = vxor.u32 %v1952, 2147483648
    %v2914 = vxor.u32 %v2656, 2147483648
    %v2915 = vxor.u32 %v2658, 2147483648
    %v2916 = vmul.f32 %v2660, 1.442695
    %v2917 = vpow.pop %v2916
    %v2918 = vmul.f32 %v2661, 1.442695
    %v2919 = vpow.pop %v2918
    %v2920 = vmul.f32 %v2662, 1.442695
    %v2921 = vpow.pop %v2920
    %v2922 = vmul.f32 %v2663, 1.442695
    %v2923 = vpow.pop %v2922
    %v2924 = vmul.f32 %v2664, 1.442695
    %v2925 = vpow.pop %v2924
    %v2926 = vmul.f32 %v2665, 1.442695
    %v2927 = vpow.pop %v2926
    %v2928 = vmul.f32 %v2666, 1.442695
    %v2929 = vpow.pop %v2928
    %v2930 = vmul.f32 %v2667, 1.442695
    %v2931 = vpow.pop %v2930
    %v2932 = vmul.f32 %v2668, 1.442695
    %v2933 = vpow.pop %v2932
    %v2934 = vmul.f32 %v2669, 1.442695
    %v2935 = vpow.pop %v2934
    %v2936 = vmul.f32 %v2670, 1.442695
    %v2937 = vpow.pop %v2936
    %v2938 = vmul.f32 %v2671, 1.442695
    %v2939 = vpow.pop %v2938
    %v2940 = vmul.f32 %v2672, 1.442695
    %v2941 = vpow.pop %v2940
    %v2942 = vmul.f32 %v2673, 1.442695
    %v2943 = vpow.pop %v2942
    %v2944 = vmul.f32 %v2674, 1.442695
    %v2945 = vpow.pop %v2944
    %v2946 = vmul.f32 %v2675, 1.442695
    %v2947 = vpow.pop %v2946
    %v2948 = vmul.f32 %v2676, 1.442695
    %v2949 = vpow.pop %v2948
    %v2950 = vmul.f32 %v2677, 1.442695
    %v2951 = vpow.pop %v2950
    %v2952 = vmul.f32 %v2678, 1.442695
    %v2953 = vpow.pop %v2952
    %v2954 = vmul.f32 %v2679, 1.442695
    %v2955 = vpow.pop %v2954
    %v2956 = vmul.f32 %v2680, 1.442695
    %v2957 = vpow.pop %v2956
    %v2958 = vmul.f32 %v2681, 1.442695
    %v2959 = vpow.pop %v2958
    %v2960 = vmul.f32 %v2682, 1.442695
    %v2961 = vpow.pop %v2960
    %v2962 = vmul.f32 %v2683, 1.442695
    %v2963 = vpow.pop %v2962
    %v2964 = vmul.f32 %v2684, 1.442695
    %v2965 = vpow.pop %v2964
    %v2966 = vmul.f32 %v2685, 1.442695
    %v2967 = vpow.pop %v2966
    %v2968 = vmul.f32 %v2686, 1.442695
    %v2969 = vpow.pop %v2968
    %v2970 = vmul.f32 %v2687, 1.442695
    %v2971 = vpow.pop %v2970
    %v2972 = vmul.f32 %v2688, 1.442695
    %v2973 = vpow.pop %v2972
    %v2974 = vmul.f32 %v2689, 1.442695
    %v2975 = vpow.pop %v2974
    %v2976 = vmul.f32 %v2690, 1.442695
    %v2977 = vpow.pop %v2976
    %v2978 = vmul.f32 %v2691, 1.442695
    %v2979 = vpow.pop %v2978
    %v2980 = vmul.f32 %v2692, 1.442695
    %v2981 = vpow.pop %v2980
    %v2982 = vmul.f32 %v2693, 1.442695
    %v2983 = vpow.pop %v2982
    %v2984 = vmul.f32 %v2694, 1.442695
    %v2985 = vpow.pop %v2984
    %v2986 = vmul.f32 %v2695, 1.442695
    %v2987 = vpow.pop %v2986
    %v2988 = vmul.f32 %v2696, 1.442695
    %v2989 = vpow.pop %v2988
    %v2990 = vmul.f32 %v2697, 1.442695
    %v2991 = vpow.pop %v2990
    %v2992 = vmul.f32 %v2698, 1.442695
    %v2993 = vpow.pop %v2992
    %v2994 = vmul.f32 %v2699, 1.442695
    %v2995 = vpow.pop %v2994
    %v2996 = vmul.f32 %v2700, 1.442695
    %v2997 = vpow.pop %v2996
    %v2998 = vmul.f32 %v2701, 1.442695
    %v2999 = vpow.pop %v2998
    %v3000 = vmul.f32 %v2702, 1.442695
    %v3001 = vpow.pop %v3000
    %v3002 = vmul.f32 %v2703, 1.442695
    %v3003 = vpow.pop %v3002
    %v3004 = vmul.f32 %v2704, 1.442695
    %v3005 = vpow.pop %v3004
    %v3006 = vmul.f32 %v2705, 1.442695
    %v3007 = vpow.pop %v3006
    %v3008 = vmul.f32 %v2706, 1.442695
    %v3009 = vpow.pop %v3008
    %v3010 = vmul.f32 %v2707, 1.442695
    %v3011 = vpow.pop %v3010
    %v3012 = vmul.f32 %v2708, 1.442695
    %v3013 = vpow.pop %v3012
    %v3014 = vmul.f32 %v2709, 1.442695
    %v3015 = vpow.pop %v3014
    %v3016 = vmul.f32 %v2710, 1.442695
    %v3017 = vpow.pop %v3016
    %v3018 = vmul.f32 %v2711, 1.442695
    %v3019 = vpow.pop %v3018
    %v3020 = vmul.f32 %v2712, 1.442695
    %v3021 = vpow.pop %v3020
    %v3022 = vmul.f32 %v2713, 1.442695
    %v3023 = vpow.pop %v3022
    %v3024 = vmul.f32 %v2714, 1.442695
    %v3025 = vpow.pop %v3024
    %v3026 = vmul.f32 %v2715, 1.442695
    %v3027 = vpow.pop %v3026
    %v3028 = vmul.f32 %v2716, 1.442695
    %v3029 = vpow.pop %v3028
    %v3030 = vmul.f32 %v2717, 1.442695
    %v3031 = vpow.pop %v3030
    %v3032 = vmul.f32 %v2718, 1.442695
    %v3033 = vpow.pop %v3032
    %v3034 = vmul.f32 %v2719, 1.442695
    %v3035 = vpow.pop %v3034
    %v3036 = vmul.f32 %v2720, 1.442695
    %v3037 = vpow.pop %v3036
    %v3038 = vmul.f32 %v2721, 1.442695
    %v3039 = vpow.pop %v3038
    %v3040 = vmul.f32 %v2722, 1.442695
    %v3041 = vpow.pop %v3040
    %v3042 = vmul.f32 %v2723, 1.442695
    %v3043 = vpow.pop %v3042
    %v3044 = vmul.f32 %v2724, 1.442695
    %v3045 = vpow.pop %v3044
    %v3046 = vmul.f32 %v2725, 1.442695
    %v3047 = vpow.pop %v3046
    %v3048 = vmul.f32 %v2726, 1.442695
    %v3049 = vpow.pop %v3048
    %v3050 = vmul.f32 %v2727, 1.442695
    %v3051 = vpow.pop %v3050
    %v3052 = vmul.f32 %v2728, 1.442695
    %v3053 = vpow.pop %v3052
    %v3054 = vmul.f32 %v2729, 1.442695
    %v3055 = vpow.pop %v3054
    %v3056 = vmul.f32 %v2730, 1.442695
    %v3057 = vpow.pop %v3056
    %v3058 = vmul.f32 %v2731, 1.442695
    %v3059 = vpow.pop %v3058
    %v3060 = vmul.f32 %v2732, 1.442695
    %v3061 = vpow.pop %v3060
    %v3062 = vmul.f32 %v2733, 1.442695
    %v3063 = vpow.pop %v3062
    %v3064 = vmul.f32 %v2734, 1.442695
    %v3065 = vpow.pop %v3064
    %v3066 = vmul.f32 %v2735, 1.442695
    %v3067 = vpow.pop %v3066
    %v3068 = vmul.f32 %v2736, 1.442695
    %v3069 = vpow.pop %v3068
    %v3070 = vmul.f32 %v2737, 1.442695
    %v3071 = vpow.pop %v3070
    %v3072 = vmul.f32 %v2738, 1.442695
    %v3073 = vpow.pop %v3072
    %v3074 = vmul.f32 %v2739, 1.442695
    %v3075 = vpow.pop %v3074
    %v3076 = vmul.f32 %v2740, 1.442695
    %v3077 = vpow.pop %v3076
    %v3078 = vmul.f32 %v2741, 1.442695
    %v3079 = vpow.pop %v3078
    %v3080 = vmul.f32 %v2742, 1.442695
    %v3081 = vpow.pop %v3080
    %v3082 = vmul.f32 %v2743, 1.442695
    %v3083 = vpow.pop %v3082
    %v3084 = vmul.f32 %v2744, 1.442695
    %v3085 = vpow.pop %v3084
    %v3086 = vmul.f32 %v2745, 1.442695
    %v3087 = vpow.pop %v3086
    %v3088 = vmul.f32 %v2746, 1.442695
    %v3089 = vpow.pop %v3088
    %v3090 = vmul.f32 %v2747, 1.442695
    %v3091 = vpow.pop %v3090
    %v3092 = vmul.f32 %v2748, 1.442695
    %v3093 = vpow.pop %v3092
    %v3094 = vmul.f32 %v2749, 1.442695
    %v3095 = vpow.pop %v3094
    %v3096 = vmul.f32 %v2750, 1.442695
    %v3097 = vpow.pop %v3096
    %v3098 = vmul.f32 %v2751, 1.442695
    %v3099 = vpow.pop %v3098
    %v3100 = vmul.f32 %v2752, 1.442695
    %v3101 = vpow.pop %v3100
    %v3102 = vmul.f32 %v2753, 1.442695
    %v3103 = vpow.pop %v3102
    %v3104 = vmul.f32 %v2754, 1.442695
    %v3105 = vpow.pop %v3104
    %v3106 = vmul.f32 %v2755, 1.442695
    %v3107 = vpow.pop %v3106
    %v3108 = vmul.f32 %v2756, 1.442695
    %v3109 = vpow.pop %v3108
    %v3110 = vmul.f32 %v2757, 1.442695
    %v3111 = vpow.pop %v3110
    %v3112 = vmul.f32 %v2758, 1.442695
    %v3113 = vpow.pop %v3112
    %v3114 = vmul.f32 %v2759, 1.442695
    %v3115 = vpow.pop %v3114
    %v3116 = vmul.f32 %v2760, 1.442695
    %v3117 = vpow.pop %v3116
    %v3118 = vmul.f32 %v2761, 1.442695
    %v3119 = vpow.pop %v3118
    %v3120 = vmul.f32 %v2762, 1.442695
    %v3121 = vpow.pop %v3120
    %v3122 = vmul.f32 %v2763, 1.442695
    %v3123 = vpow.pop %v3122
    %v3124 = vmul.f32 %v2764, 1.442695
    %v3125 = vpow.pop %v3124
    %v3126 = vmul.f32 %v2765, 1.442695
    %v3127 = vpow.pop %v3126
    %v3128 = vmul.f32 %v2766, 1.442695
    %v3129 = vpow.pop %v3128
    %v3130 = vmul.f32 %v2767, 1.442695
    %v3131 = vpow.pop %v3130
    %v3132 = vmul.f32 %v2768, 1.442695
    %v3133 = vpow.pop %v3132
    %v3134 = vmul.f32 %v2769, 1.442695
    %v3135 = vpow.pop %v3134
    %v3136 = vmul.f32 %v2770, 1.442695
    %v3137 = vpow.pop %v3136
    %v3138 = vmul.f32 %v2771, 1.442695
    %v3139 = vpow.pop %v3138
    %v3140 = vmul.f32 %v2772, 1.442695
    %v3141 = vpow.pop %v3140
    %v3142 = vmul.f32 %v2773, 1.442695
    %v3143 = vpow.pop %v3142
    %v3144 = vmul.f32 %v2774, 1.442695
    %v3145 = vpow.pop %v3144
    %v3146 = vmul.f32 %v2775, 1.442695
    %v3147 = vpow.pop %v3146
    %v3148 = vmul.f32 %v2776, 1.442695
    %v3149 = vpow.pop %v3148
    %v3150 = vmul.f32 %v2777, 1.442695
    %v3151 = vpow.pop %v3150
    %v3152 = vmul.f32 %v2778, 1.442695
    %v3153 = vpow.pop %v3152
    %v3154 = vmul.f32 %v2779, 1.442695
    %v3155 = vpow.pop %v3154
    %v3156 = vmul.f32 %v2780, 1.442695
    %v3157 = vpow.pop %v3156
    %v3158 = vmul.f32 %v2781, 1.442695
    %v3159 = vpow.pop %v3158
    %v3160 = vmul.f32 %v2782, 1.442695
    %v3161 = vpow.pop %v3160
    %v3162 = vmul.f32 %v2783, 1.442695
    %v3163 = vpow.pop %v3162
    %v3164 = vmul.f32 %v2784, 1.442695
    %v3165 = vpow.pop %v3164
    %v3166 = vmul.f32 %v2785, 1.442695
    %v3167 = vpow.pop %v3166
    %v3168 = vmul.f32 %v2786, 1.442695
    %v3169 = vpow.pop %v3168
    %v3170 = vmul.f32 %v2787, 1.442695
    %v3171 = vpow.pop %v3170
    %v3172 = vmul.f32 %v2788, 1.442695
    %v3173 = vpow.pop %v3172
    %v3174 = vmul.f32 %v2789, 1.442695
    %v3175 = vpow.pop %v3174
    %v3176 = vmul.f32 %v2790, 1.442695
    %v3177 = vpow.pop %v3176
    %v3178 = vmul.f32 %v2791, 1.442695
    %v3179 = vpow.pop %v3178
    %v3180 = vmul.f32 %v2792, 1.442695
    %v3181 = vpow.pop %v3180
    %v3182 = vmul.f32 %v2793, 1.442695
    %v3183 = vpow.pop %v3182
    %v3184 = vmul.f32 %v2794, 1.442695
    %v3185 = vpow.pop %v3184
    %v3186 = vmul.f32 %v2795, 1.442695
    %v3187 = vpow.pop %v3186
    %v3188 = vmul.f32 %v2796, 1.442695
    %v3189 = vpow.pop %v3188
    %v3190 = vmul.f32 %v2797, 1.442695
    %v3191 = vpow.pop %v3190
    %v3192 = vmul.f32 %v2798, 1.442695
    %v3193 = vpow.pop %v3192
    %v3194 = vmul.f32 %v2799, 1.442695
    %v3195 = vpow.pop %v3194
    %v3196 = vmul.f32 %v2800, 1.442695
    %v3197 = vpow.pop %v3196
    %v3198 = vmul.f32 %v2801, 1.442695
    %v3199 = vpow.pop %v3198
    %v3200 = vmul.f32 %v2802, 1.442695
    %v3201 = vpow.pop %v3200
    %v3202 = vmul.f32 %v2803, 1.442695
    %v3203 = vpow.pop %v3202
    %v3204 = vmul.f32 %v2804, 1.442695
    %v3205 = vpow.pop %v3204
    %v3206 = vmul.f32 %v2805, 1.442695
    %v3207 = vpow.pop %v3206
    %v3208 = vmul.f32 %v2806, 1.442695
    %v3209 = vpow.pop %v3208
    %v3210 = vmul.f32 %v2807, 1.442695
    %v3211 = vpow.pop %v3210
    %v3212 = vmul.f32 %v2808, 1.442695
    %v3213 = vpow.pop %v3212
    %v3214 = vmul.f32 %v2809, 1.442695
    %v3215 = vpow.pop %v3214
    %v3216 = vmul.f32 %v2810, 1.442695
    %v3217 = vpow.pop %v3216
    %v3218 = vmul.f32 %v2811, 1.442695
    %v3219 = vpow.pop %v3218
    %v3220 = vmul.f32 %v2812, 1.442695
    %v3221 = vpow.pop %v3220
    %v3222 = vmul.f32 %v2813, 1.442695
    %v3223 = vpow.pop %v3222
    %v3224 = vmul.f32 %v2814, 1.442695
    %v3225 = vpow.pop %v3224
    %v3226 = vmul.f32 %v2815, 1.442695
    %v3227 = vpow.pop %v3226
    %v3228 = vmul.f32 %v2816, 1.442695
    %v3229 = vpow.pop %v3228
    %v3230 = vmul.f32 %v2817, 1.442695
    %v3231 = vpow.pop %v3230
    %v3232 = vmul.f32 %v2818, 1.442695
    %v3233 = vpow.pop %v3232
    %v3234 = vmul.f32 %v2819, 1.442695
    %v3235 = vpow.pop %v3234
    %v3236 = vmul.f32 %v2820, 1.442695
    %v3237 = vpow.pop %v3236
    %v3238 = vmul.f32 %v2821, 1.442695
    %v3239 = vpow.pop %v3238
    %v3240 = vmul.f32 %v2822, 1.442695
    %v3241 = vpow.pop %v3240
    %v3242 = vmul.f32 %v2823, 1.442695
    %v3243 = vpow.pop %v3242
    %v3244 = vmul.f32 %v2824, 1.442695
    %v3245 = vpow.pop %v3244
    %v3246 = vmul.f32 %v2825, 1.442695
    %v3247 = vpow.pop %v3246
    %v3248 = vmul.f32 %v2826, 1.442695
    %v3249 = vpow.pop %v3248
    %v3250 = vmul.f32 %v2827, 1.442695
    %v3251 = vpow.pop %v3250
    %v3252 = vmul.f32 %v2828, 1.442695
    %v3253 = vpow.pop %v3252
    %v3254 = vmul.f32 %v2829, 1.442695
    %v3255 = vpow.pop %v3254
    %v3256 = vmul.f32 %v2830, 1.442695
    %v3257 = vpow.pop %v3256
    %v3258 = vmul.f32 %v2831, 1.442695
    %v3259 = vpow.pop %v3258
    %v3260 = vmul.f32 %v2832, 1.442695
    %v3261 = vpow.pop %v3260
    %v3262 = vmul.f32 %v2833, 1.442695
    %v3263 = vpow.pop %v3262
    %v3264 = vmul.f32 %v2834, 1.442695
    %v3265 = vpow.pop %v3264
    %v3266 = vmul.f32 %v2835, 1.442695
    %v3267 = vpow.pop %v3266
    %v3268 = vmul.f32 %v2836, 1.442695
    %v3269 = vpow.pop %v3268
    %v3270 = vmul.f32 %v2837, 1.442695
    %v3271 = vpow.pop %v3270
    %v3272 = vmul.f32 %v2838, 1.442695
    %v3273 = vpow.pop %v3272
    %v3274 = vmul.f32 %v2839, 1.442695
    %v3275 = vpow.pop %v3274
    %v3276 = vmul.f32 %v2840, 1.442695
    %v3277 = vpow.pop %v3276
    %v3278 = vmul.f32 %v2841, 1.442695
    %v3279 = vpow.pop %v3278
    %v3280 = vmul.f32 %v2842, 1.442695
    %v3281 = vpow.pop %v3280
    %v3282 = vmul.f32 %v2843, 1.442695
    %v3283 = vpow.pop %v3282
    %v3284 = vmul.f32 %v2844, 1.442695
    %v3285 = vpow.pop %v3284
    %v3286 = vmul.f32 %v2845, 1.442695
    %v3287 = vpow.pop %v3286
    %v3288 = vmul.f32 %v2846, 1.442695
    %v3289 = vpow.pop %v3288
    %v3290 = vmul.f32 %v2847, 1.442695
    %v3291 = vpow.pop %v3290
    %v3292 = vmul.f32 %v2848, 1.442695
    %v3293 = vpow.pop %v3292
    %v3294 = vmul.f32 %v2849, 1.442695
    %v3295 = vpow.pop %v3294
    %v3296 = vmul.f32 %v2850, 1.442695
    %v3297 = vpow.pop %v3296
    %v3298 = vmul.f32 %v2851, 1.442695
    %v3299 = vpow.pop %v3298
    %v3300 = vmul.f32 %v2852, 1.442695
    %v3301 = vpow.pop %v3300
    %v3302 = vmul.f32 %v2853, 1.442695
    %v3303 = vpow.pop %v3302
    %v3304 = vmul.f32 %v2854, 1.442695
    %v3305 = vpow.pop %v3304
    %v3306 = vmul.f32 %v2855, 1.442695
    %v3307 = vpow.pop %v3306
    %v3308 = vmul.f32 %v2856, 1.442695
    %v3309 = vpow.pop %v3308
    %v3310 = vmul.f32 %v2857, 1.442695
    %v3311 = vpow.pop %v3310
    %v3312 = vmul.f32 %v2858, 1.442695
    %v3313 = vpow.pop %v3312
    %v3314 = vmul.f32 %v2859, 1.442695
    %v3315 = vpow.pop %v3314
    %v3316 = vmul.f32 %v2860, 1.442695
    %v3317 = vpow.pop %v3316
    %v3318 = vmul.f32 %v2861, 1.442695
    %v3319 = vpow.pop %v3318
    %v3320 = vmul.f32 %v2862, 1.442695
    %v3321 = vpow.pop %v3320
    %v3322 = vmul.f32 %v2863, 1.442695
    %v3323 = vpow.pop %v3322
    %v3324 = vmul.f32 %v2864, 1.442695
    %v3325 = vpow.pop %v3324
    %v3326 = vmul.f32 %v2865, 1.442695
    %v3327 = vpow.pop %v3326
    %v3328 = vmul.f32 %v2866, 1.442695
    %v3329 = vpow.pop %v3328
    %v3330 = vmul.f32 %v2867, 1.442695
    %v3331 = vpow.pop %v3330
    %v3332 = vmul.f32 %v2868, 1.442695
    %v3333 = vpow.pop %v3332
    %v3334 = vmul.f32 %v2869, 1.442695
    %v3335 = vpow.pop %v3334
    %v3336 = vmul.f32 %v2870, 1.442695
    %v3337 = vpow.pop %v3336
    %v3338 = vmul.f32 %v2871, 1.442695
    %v3339 = vpow.pop %v3338
    %v3340 = vmul.f32 %v2872, 1.442695
    %v3341 = vpow.pop %v3340
    %v3342 = vmul.f32 %v2873, 1.442695
    %v3343 = vpow.pop %v3342
    %v3344 = vmul.f32 %v2874, 1.442695
    %v3345 = vpow.pop %v3344
    %v3346 = vmul.f32 %v2875, 1.442695
    %v3347 = vpow.pop %v3346
    %v3348 = vmul.f32 %v2876, 1.442695
    %v3349 = vpow.pop %v3348
    %v3350 = vmul.f32 %v2877, 1.442695
    %v3351 = vpow.pop %v3350
    %v3352 = vmul.f32 %v2878, 1.442695
    %v3353 = vpow.pop %v3352
    %v3354 = vmul.f32 %v2879, 1.442695
    %v3355 = vpow.pop %v3354
    %v3356 = vmul.f32 %v2880, 1.442695
    %v3357 = vpow.pop %v3356
    %v3358 = vmul.f32 %v2881, 1.442695
    %v3359 = vpow.pop %v3358
    %v3360 = vmul.f32 %v2882, 1.442695
    %v3361 = vpow.pop %v3360
    %v3362 = vmul.f32 %v2883, 1.442695
    %v3363 = vpow.pop %v3362
    %v3364 = vmul.f32 %v2884, 1.442695
    %v3365 = vpow.pop %v3364
    %v3366 = vmul.f32 %v2885, 1.442695
    %v3367 = vpow.pop %v3366
    %v3368 = vmul.f32 %v2886, 1.442695
    %v3369 = vpow.pop %v3368
    %v3370 = vmul.f32 %v2887, 1.442695
    %v3371 = vpow.pop %v3370
    %v3372 = vmul.f32 %v2888, 1.442695
    %v3373 = vpow.pop %v3372
    %v3374 = vmul.f32 %v2889, 1.442695
    %v3375 = vpow.pop %v3374
    %v3376 = vmul.f32 %v2890, 1.442695
    %v3377 = vpow.pop %v3376
    %v3378 = vmul.f32 %v2891, 1.442695
    %v3379 = vpow.pop %v3378
    %v3380 = vmul.f32 %v2892, 1.442695
    %v3381 = vpow.pop %v3380
    %v3382 = vmul.f32 %v2893, 1.442695
    %v3383 = vpow.pop %v3382
    %v3384 = vmul.f32 %v2894, 1.442695
    %v3385 = vpow.pop %v3384
    %v3386 = vmul.f32 %v2895, 1.442695
    %v3387 = vpow.pop %v3386
    %v3388 = vmul.f32 %v2896, 1.442695
    %v3389 = vpow.pop %v3388
    %v3390 = vmul.f32 %v2897, 1.442695
    %v3391 = vpow.pop %v3390
    %v3392 = vmul.f32 %v2898, 1.442695
    %v3393 = vpow.pop %v3392
    %v3394 = vmul.f32 %v2899, 1.442695
    %v3395 = vpow.pop %v3394
    %v3396 = vmul.f32 %v2900, 1.442695
    %v3397 = vpow.pop %v3396
    %v3398 = vmul.f32 %v2901, 1.442695
    %v3399 = vpow.pop %v3398
    %v3400 = vmul.f32 %v2902, 1.442695
    %v3401 = vpow.pop %v3400
    %v3402 = vmul.f32 %v2903, 1.442695
    %v3403 = vpow.pop %v3402
    %v3404 = vmul.f32 %v2904, 1.442695
    %v3405 = vpow.pop %v3404
    %v3406 = vmul.f32 %v2905, 1.442695
    %v3407 = vpow.pop %v3406
    %v3408 = vmul.f32 %v2906, 1.442695
    %v3409 = vpow.pop %v3408
    %v3410 = vmul.f32 %v2907, 1.442695
    %v3411 = vpow.pop %v3410
    %v3412 = vmul.f32 %v2908, 1.442695
    %v3413 = vpow.pop %v3412
    %v3414 = vmul.f32 %v2909, 1.442695
    %v3415 = vpow.pop %v3414
    %v3416 = vmul.f32 %v2910, 1.442695
    %v3417 = vpow.pop %v3416
    %v3418 = vmul.f32 %v2911, 1.442695
    %v3419 = vpow.pop %v3418
    %v3420 = vmul.f32 %v2912, 1.442695
    %v3421 = vpow.pop %v3420
    %v3422 = vmul.f32 %v2913, 1.442695
    %v3423 = vpow.pop %v3422
    %v3424 = vmul.f32 %v2914, 1.442695
    %v3425 = vpow.pop %v3424
    %v3426 = vmul.f32 %v2915, 1.442695
    %v3427 = vpow.pop %v3426
    %v3428 = vadd.f32 %v2917, 1.0
    %v3429 = vadd.f32 %v2919, 1.0
    %v3430 = vadd.f32 %v2921, 1.0
    %v3431 = vadd.f32 %v2923, 1.0
    %v3432 = vadd.f32 %v2925, 1.0
    %v3433 = vadd.f32 %v2927, 1.0
    %v3434 = vadd.f32 %v2929, 1.0
    %v3435 = vadd.f32 %v2931, 1.0
    %v3436 = vadd.f32 %v2933, 1.0
    %v3437 = vadd.f32 %v2935, 1.0
    %v3438 = vadd.f32 %v2937, 1.0
    %v3439 = vadd.f32 %v2939, 1.0
    %v3440 = vadd.f32 %v2941, 1.0
    %v3441 = vadd.f32 %v2943, 1.0
    %v3442 = vadd.f32 %v2945, 1.0
    %v3443 = vadd.f32 %v2947, 1.0
    %v3444 = vadd.f32 %v2949, 1.0
    %v3445 = vadd.f32 %v2951, 1.0
    %v3446 = vadd.f32 %v2953, 1.0
    %v3447 = vadd.f32 %v2955, 1.0
    %v3448 = vadd.f32 %v2957, 1.0
    %v3449 = vadd.f32 %v2959, 1.0
    %v3450 = vadd.f32 %v2961, 1.0
    %v3451 = vadd.f32 %v2963, 1.0
    %v3452 = vadd.f32 %v2965, 1.0
    %v3453 = vadd.f32 %v2967, 1.0
    %v3454 = vadd.f32 %v2969, 1.0
    %v3455 = vadd.f32 %v2971, 1.0
    %v3456 = vadd.f32 %v2973, 1.0
    %v3457 = vadd.f32 %v2975, 1.0
    %v3458 = vadd.f32 %v2977, 1.0
    %v3459 = vadd.f32 %v2979, 1.0
    %v3460 = vadd.f32 %v2981, 1.0
    %v3461 = vadd.f32 %v2983, 1.0
    %v3462 = vadd.f32 %v2985, 1.0
    %v3463 = vadd.f32 %v2987, 1.0
    %v3464 = vadd.f32 %v2989, 1.0
    %v3465 = vadd.f32 %v2991, 1.0
    %v3466 = vadd.f32 %v2993, 1.0
    %v3467 = vadd.f32 %v2995, 1.0
    %v3468 = vadd.f32 %v2997, 1.0
    %v3469 = vadd.f32 %v2999, 1.0
    %v3470 = vadd.f32 %v3001, 1.0
    %v3471 = vadd.f32 %v3003, 1.0
    %v3472 = vadd.f32 %v3005, 1.0
    %v3473 = vadd.f32 %v3007, 1.0
    %v3474 = vadd.f32 %v3009, 1.0
    %v3475 = vadd.f32 %v3011, 1.0
    %v3476 = vadd.f32 %v3013, 1.0
    %v3477 = vadd.f32 %v3015, 1.0
    %v3478 = vadd.f32 %v3017, 1.0
    %v3479 = vadd.f32 %v3019, 1.0
    %v3480 = vadd.f32 %v3021, 1.0
    %v3481 = vadd.f32 %v3023, 1.0
    %v3482 = vadd.f32 %v3025, 1.0
    %v3483 = vadd.f32 %v3027, 1.0
    %v3484 = vadd.f32 %v3029, 1.0
    %v3485 = vadd.f32 %v3031, 1.0
    %v3486 = vadd.f32 %v3033, 1.0
    %v3487 = vadd.f32 %v3035, 1.0
    %v3488 = vadd.f32 %v3037, 1.0
    %v3489 = vadd.f32 %v3039, 1.0
    %v3490 = vadd.f32 %v3041, 1.0
    %v3491 = vadd.f32 %v3043, 1.0
    %v3492 = vadd.f32 %v3045, 1.0
    %v3493 = vadd.f32 %v3047, 1.0
    %v3494 = vadd.f32 %v3049, 1.0
    %v3495 = vadd.f32 %v3051, 1.0
    %v3496 = vadd.f32 %v3053, 1.0
    %v3497 = vadd.f32 %v3055, 1.0
    %v3498 = vadd.f32 %v3057, 1.0
    %v3499 = vadd.f32 %v3059, 1.0
    %v3500 = vadd.f32 %v3061, 1.0
    %v3501 = vadd.f32 %v3063, 1.0
    %v3502 = vadd.f32 %v3065, 1.0
    %v3503 = vadd.f32 %v3067, 1.0
    %v3504 = vadd.f32 %v3069, 1.0
    %v3505 = vadd.f32 %v3071, 1.0
    %v3506 = vadd.f32 %v3073, 1.0
    %v3507 = vadd.f32 %v3075, 1.0
    %v3508 = vadd.f32 %v3077, 1.0
    %v3509 = vadd.f32 %v3079, 1.0
    %v3510 = vadd.f32 %v3081, 1.0
    %v3511 = vadd.f32 %v3083, 1.0
    %v3512 = vadd.f32 %v3085, 1.0
    %v3513 = vadd.f32 %v3087, 1.0
    %v3514 = vadd.f32 %v3089, 1.0
    %v3515 = vadd.f32 %v3091, 1.0
    %v3516 = vadd.f32 %v3093, 1.0
    %v3517 = vadd.f32 %v3095, 1.0
    %v3518 = vadd.f32 %v3097, 1.0
    %v3519 = vadd.f32 %v3099, 1.0
    %v3520 = vadd.f32 %v3101, 1.0
    %v3521 = vadd.f32 %v3103, 1.0
    %v3522 = vadd.f32 %v3105, 1.0
    %v3523 = vadd.f32 %v3107, 1.0
    %v3524 = vadd.f32 %v3109, 1.0
    %v3525 = vadd.f32 %v3111, 1.0
    %v3526 = vadd.f32 %v3113, 1.0
    %v3527 = vadd.f32 %v3115, 1.0
    %v3528 = vadd.f32 %v3117, 1.0
    %v3529 = vadd.f32 %v3119, 1.0
    %v3530 = vadd.f32 %v3121, 1.0
    %v3531 = vadd.f32 %v3123, 1.0
    %v3532 = vadd.f32 %v3125, 1.0
    %v3533 = vadd.f32 %v3127, 1.0
    %v3534 = vadd.f32 %v3129, 1.0
    %v3535 = vadd.f32 %v3131, 1.0
    %v3536 = vadd.f32 %v3133, 1.0
    %v3537 = vadd.f32 %v3135, 1.0
    %v3538 = vadd.f32 %v3137, 1.0
    %v3539 = vadd.f32 %v3139, 1.0
    %v3540 = vadd.f32 %v3141, 1.0
    %v3541 = vadd.f32 %v3143, 1.0
    %v3542 = vadd.f32 %v3145, 1.0
    %v3543 = vadd.f32 %v3147, 1.0
    %v3544 = vadd.f32 %v3149, 1.0
    %v3545 = vadd.f32 %v3151, 1.0
    %v3546 = vadd.f32 %v3153, 1.0
    %v3547 = vadd.f32 %v3155, 1.0
    %v3548 = vadd.f32 %v3157, 1.0
    %v3549 = vadd.f32 %v3159, 1.0
    %v3550 = vadd.f32 %v3161, 1.0
    %v3551 = vadd.f32 %v3163, 1.0
    %v3552 = vadd.f32 %v3165, 1.0
    %v3553 = vadd.f32 %v3167, 1.0
    %v3554 = vadd.f32 %v3169, 1.0
    %v3555 = vadd.f32 %v3171, 1.0
    %v3556 = vadd.f32 %v3173, 1.0
    %v3557 = vadd.f32 %v3175, 1.0
    %v3558 = vadd.f32 %v3177, 1.0
    %v3559 = vadd.f32 %v3179, 1.0
    %v3560 = vadd.f32 %v3181, 1.0
    %v3561 = vadd.f32 %v3183, 1.0
    %v3562 = vadd.f32 %v3185, 1.0
    %v3563 = vadd.f32 %v3187, 1.0
    %v3564 = vadd.f32 %v3189, 1.0
    %v3565 = vadd.f32 %v3191, 1.0
    %v3566 = vadd.f32 %v3193, 1.0
    %v3567 = vadd.f32 %v3195, 1.0
    %v3568 = vadd.f32 %v3197, 1.0
    %v3569 = vadd.f32 %v3199, 1.0
    %v3570 = vadd.f32 %v3201, 1.0
    %v3571 = vadd.f32 %v3203, 1.0
    %v3572 = vadd.f32 %v3205, 1.0
    %v3573 = vadd.f32 %v3207, 1.0
    %v3574 = vadd.f32 %v3209, 1.0
    %v3575 = vadd.f32 %v3211, 1.0
    %v3576 = vadd.f32 %v3213, 1.0
    %v3577 = vadd.f32 %v3215, 1.0
    %v3578 = vadd.f32 %v3217, 1.0
    %v3579 = vadd.f32 %v3219, 1.0
    %v3580 = vadd.f32 %v3221, 1.0
    %v3581 = vadd.f32 %v3223, 1.0
    %v3582 = vadd.f32 %v3225, 1.0
    %v3583 = vadd.f32 %v3227, 1.0
    %v3584 = vadd.f32 %v3229, 1.0
    %v3585 = vadd.f32 %v3231, 1.0
    %v3586 = vadd.f32 %v3233, 1.0
    %v3587 = vadd.f32 %v3235, 1.0
    %v3588 = vadd.f32 %v3237, 1.0
    %v3589 = vadd.f32 %v3239, 1.0
    %v3590 = vadd.f32 %v3241, 1.0
    %v3591 = vadd.f32 %v3243, 1.0
    %v3592 = vadd.f32 %v3245, 1.0
    %v3593 = vadd.f32 %v3247, 1.0
    %v3594 = vadd.f32 %v3249, 1.0
    %v3595 = vadd.f32 %v3251, 1.0
    %v3596 = vadd.f32 %v3253, 1.0
    %v3597 = vadd.f32 %v3255, 1.0
    %v3598 = vadd.f32 %v3257, 1.0
    %v3599 = vadd.f32 %v3259, 1.0
    %v3600 = vadd.f32 %v3261, 1.0
    %v3601 = vadd.f32 %v3263, 1.0
    %v3602 = vadd.f32 %v3265, 1.0
    %v3603 = vadd.f32 %v3267, 1.0
    %v3604 = vadd.f32 %v3269, 1.0
    %v3605 = vadd.f32 %v3271, 1.0
    %v3606 = vadd.f32 %v3273, 1.0
    %v3607 = vadd.f32 %v3275, 1.0
    %v3608 = vadd.f32 %v3277, 1.0
    %v3609 = vadd.f32 %v3279, 1.0
    %v3610 = vadd.f32 %v3281, 1.0
    %v3611 = vadd.f32 %v3283, 1.0
    %v3612 = vadd.f32 %v3285, 1.0
    %v3613 = vadd.f32 %v3287, 1.0
    %v3614 = vadd.f32 %v3289, 1.0
    %v3615 = vadd.f32 %v3291, 1.0
    %v3616 = vadd.f32 %v3293, 1.0
    %v3617 = vadd.f32 %v3295, 1.0
    %v3618 = vadd.f32 %v3297, 1.0
    %v3619 = vadd.f32 %v3299, 1.0
    %v3620 = vadd.f32 %v3301, 1.0
    %v3621 = vadd.f32 %v3303, 1.0
    %v3622 = vadd.f32 %v3305, 1.0
    %v3623 = vadd.f32 %v3307, 1.0
    %v3624 = vadd.f32 %v3309, 1.0
    %v3625 = vadd.f32 %v3311, 1.0
    %v3626 = vadd.f32 %v3313, 1.0
    %v3627 = vadd.f32 %v3315, 1.0
    %v3628 = vadd.f32 %v3317, 1.0
    %v3629 = vadd.f32 %v3319, 1.0
    %v3630 = vadd.f32 %v3321, 1.0
    %v3631 = vadd.f32 %v3323, 1.0
    %v3632 = vadd.f32 %v3325, 1.0
    %v3633 = vadd.f32 %v3327, 1.0
    %v3634 = vadd.f32 %v3329, 1.0
    %v3635 = vadd.f32 %v3331, 1.0
    %v3636 = vadd.f32 %v3333, 1.0
    %v3637 = vadd.f32 %v3335, 1.0
    %v3638 = vadd.f32 %v3337, 1.0
    %v3639 = vadd.f32 %v3339, 1.0
    %v3640 = vadd.f32 %v3341, 1.0
    %v3641 = vadd.f32 %v3343, 1.0
    %v3642 = vadd.f32 %v3345, 1.0
    %v3643 = vadd.f32 %v3347, 1.0
    %v3644 = vadd.f32 %v3349, 1.0
    %v3645 = vadd.f32 %v3351, 1.0
    %v3646 = vadd.f32 %v3353, 1.0
    %v3647 = vadd.f32 %v3355, 1.0
    %v3648 = vadd.f32 %v3357, 1.0
    %v3649 = vadd.f32 %v3359, 1.0
    %v3650 = vadd.f32 %v3361, 1.0
    %v3651 = vadd.f32 %v3363, 1.0
    %v3652 = vadd.f32 %v3365, 1.0
    %v3653 = vadd.f32 %v3367, 1.0
    %v3654 = vadd.f32 %v3369, 1.0
    %v3655 = vadd.f32 %v3371, 1.0
    %v3656 = vadd.f32 %v3373, 1.0
    %v3657 = vadd.f32 %v3375, 1.0
    %v3658 = vadd.f32 %v3377, 1.0
    %v3659 = vadd.f32 %v3379, 1.0
    %v3660 = vadd.f32 %v3381, 1.0
    %v3661 = vadd.f32 %v3383, 1.0
    %v3662 = vadd.f32 %v3385, 1.0
    %v3663 = vadd.f32 %v3387, 1.0
    %v3664 = vadd.f32 %v3389, 1.0
    %v3665 = vadd.f32 %v3391, 1.0
    %v3666 = vadd.f32 %v3393, 1.0
    %v3667 = vadd.f32 %v3395, 1.0
    %v3668 = vadd.f32 %v3397, 1.0
    %v3669 = vadd.f32 %v3399, 1.0
    %v3670 = vadd.f32 %v3401, 1.0
    %v3671 = vadd.f32 %v3403, 1.0
    %v3672 = vadd.f32 %v3405, 1.0
    %v3673 = vadd.f32 %v3407, 1.0
    %v3674 = vadd.f32 %v3409, 1.0
    %v3675 = vadd.f32 %v3411, 1.0
    %v3676 = vadd.f32 %v3413, 1.0
    %v3677 = vadd.f32 %v3415, 1.0
    %v3678 = vadd.f32 %v3417, 1.0
    %v3679 = vadd.f32 %v3419, 1.0
    %v3680 = vadd.f32 %v3421, 1.0
    %v3681 = vadd.f32 %v3423, 1.0
    %v3682 = vadd.f32 %v3425, 1.0
    %v3683 = vadd.f32 %v3427, 1.0
    %v3684 = vrcp.pop %v3428
    %v3685 = vmul.f32 1.0, %v3684
    %v3686 = vrcp.pop %v3429
    %v3687 = vmul.f32 1.0, %v3686
    %v3688 = vrcp.pop %v3430
    %v3689 = vmul.f32 1.0, %v3688
    %v3690 = vrcp.pop %v3431
    %v3691 = vmul.f32 1.0, %v3690
    %v3692 = vrcp.pop %v3432
    %v3693 = vmul.f32 1.0, %v3692
    %v3694 = vrcp.pop %v3433
    %v3695 = vmul.f32 1.0, %v3694
    %v3696 = vrcp.pop %v3434
    %v3697 = vmul.f32 1.0, %v3696
    %v3698 = vrcp.pop %v3435
    %v3699 = vmul.f32 1.0, %v3698
    %v3700 = vrcp.pop %v3436
    %v3701 = vmul.f32 1.0, %v3700
    %v3702 = vrcp.pop %v3437
    %v3703 = vmul.f32 1.0, %v3702
    %v3704 = vrcp.pop %v3438
    %v3705 = vmul.f32 1.0, %v3704
    %v3706 = vrcp.pop %v3439
    %v3707 = vmul.f32 1.0, %v3706
    %v3708 = vrcp.pop %v3440
    %v3709 = vmul.f32 1.0, %v3708
    %v3710 = vrcp.pop %v3441
    %v3711 = vmul.f32 1.0, %v3710
    %v3712 = vrcp.pop %v3442
    %v3713 = vmul.f32 1.0, %v3712
    %v3714 = vrcp.pop %v3443
    %v3715 = vmul.f32 1.0, %v3714
    %v3716 = vrcp.pop %v3444
    %v3717 = vmul.f32 1.0, %v3716
    %v3718 = vrcp.pop %v3445
    %v3719 = vmul.f32 1.0, %v3718
    %v3720 = vrcp.pop %v3446
    %v3721 = vmul.f32 1.0, %v3720
    %v3722 = vrcp.pop %v3447
    %v3723 = vmul.f32 1.0, %v3722
    %v3724 = vrcp.pop %v3448
    %v3725 = vmul.f32 1.0, %v3724
    %v3726 = vrcp.pop %v3449
    %v3727 = vmul.f32 1.0, %v3726
    %v3728 = vrcp.pop %v3450
    %v3729 = vmul.f32 1.0, %v3728
    %v3730 = vrcp.pop %v3451
    %v3731 = vmul.f32 1.0, %v3730
    %v3732 = vrcp.pop %v3452
    %v3733 = vmul.f32 1.0, %v3732
    %v3734 = vrcp.pop %v3453
    %v3735 = vmul.f32 1.0, %v3734
    %v3736 = vrcp.pop %v3454
    %v3737 = vmul.f32 1.0, %v3736
    %v3738 = vrcp.pop %v3455
    %v3739 = vmul.f32 1.0, %v3738
    %v3740 = vrcp.pop %v3456
    %v3741 = vmul.f32 1.0, %v3740
    %v3742 = vrcp.pop %v3457
    %v3743 = vmul.f32 1.0, %v3742
    %v3744 = vrcp.pop %v3458
    %v3745 = vmul.f32 1.0, %v3744
    %v3746 = vrcp.pop %v3459
    %v3747 = vmul.f32 1.0, %v3746
    %v3748 = vrcp.pop %v3460
    %v3749 = vmul.f32 1.0, %v3748
    %v3750 = vrcp.pop %v3461
    %v3751 = vmul.f32 1.0, %v3750
    %v3752 = vrcp.pop %v3462
    %v3753 = vmul.f32 1.0, %v3752
    %v3754 = vrcp.pop %v3463
    %v3755 = vmul.f32 1.0, %v3754
    %v3756 = vrcp.pop %v3464
    %v3757 = vmul.f32 1.0, %v3756
    %v3758 = vrcp.pop %v3465
    %v3759 = vmul.f32 1.0, %v3758
    %v3760 = vrcp.pop %v3466
    %v3761 = vmul.f32 1.0, %v3760
    %v3762 = vrcp.pop %v3467
    %v3763 = vmul.f32 1.0, %v3762
    %v3764 = vrcp.pop %v3468
    %v3765 = vmul.f32 1.0, %v3764
    %v3766 = vrcp.pop %v3469
    %v3767 = vmul.f32 1.0, %v3766
    %v3768 = vrcp.pop %v3470
    %v3769 = vmul.f32 1.0, %v3768
    %v3770 = vrcp.pop %v3471
    %v3771 = vmul.f32 1.0, %v3770
    %v3772 = vrcp.pop %v3472
    %v3773 = vmul.f32 1.0, %v3772
    %v3774 = vrcp.pop %v3473
    %v3775 = vmul.f32 1.0, %v3774
    %v3776 = vrcp.pop %v3474
    %v3777 = vmul.f32 1.0, %v3776
    %v3778 = vrcp.pop %v3475
    %v3779 = vmul.f32 1.0, %v3778
    %v3780 = vrcp.pop %v3476
    %v3781 = vmul.f32 1.0, %v3780
    %v3782 = vrcp.pop %v3477
    %v3783 = vmul.f32 1.0, %v3782
    %v3784 = vrcp.pop %v3478
    %v3785 = vmul.f32 1.0, %v3784
    %v3786 = vrcp.pop %v3479
    %v3787 = vmul.f32 1.0, %v3786
    %v3788 = vrcp.pop %v3480
    %v3789 = vmul.f32 1.0, %v3788
    %v3790 = vrcp.pop %v3481
    %v3791 = vmul.f32 1.0, %v3790
    %v3792 = vrcp.pop %v3482
    %v3793 = vmul.f32 1.0, %v3792
    %v3794 = vrcp.pop %v3483
    %v3795 = vmul.f32 1.0, %v3794
    %v3796 = vrcp.pop %v3484
    %v3797 = vmul.f32 1.0, %v3796
    %v3798 = vrcp.pop %v3485
    %v3799 = vmul.f32 1.0, %v3798
    %v3800 = vrcp.pop %v3486
    %v3801 = vmul.f32 1.0, %v3800
    %v3802 = vrcp.pop %v3487
    %v3803 = vmul.f32 1.0, %v3802
    %v3804 = vrcp.pop %v3488
    %v3805 = vmul.f32 1.0, %v3804
    %v3806 = vrcp.pop %v3489
    %v3807 = vmul.f32 1.0, %v3806
    %v3808 = vrcp.pop %v3490
    %v3809 = vmul.f32 1.0, %v3808
    %v3810 = vrcp.pop %v3491
    %v3811 = vmul.f32 1.0, %v3810
    %v3812 = vrcp.pop %v3492
    %v3813 = vmul.f32 1.0, %v3812
    %v3814 = vrcp.pop %v3493
    %v3815 = vmul.f32 1.0, %v3814
    %v3816 = vrcp.pop %v3494
    %v3817 = vmul.f32 1.0, %v3816
    %v3818 = vrcp.pop %v3495
    %v3819 = vmul.f32 1.0, %v3818
    %v3820 = vrcp.pop %v3496
    %v3821 = vmul.f32 1.0, %v3820
    %v3822 = vrcp.pop %v3497
    %v3823 = vmul.f32 1.0, %v3822
    %v3824 = vrcp.pop %v3498
    %v3825 = vmul.f32 1.0, %v3824
    %v3826 = vrcp.pop %v3499
    %v3827 = vmul.f32 1.0, %v3826
    %v3828 = vrcp.pop %v3500
    %v3829 = vmul.f32 1.0, %v3828
    %v3830 = vrcp.pop %v3501
    %v3831 = vmul.f32 1.0, %v3830
    %v3832 = vrcp.pop %v3502
    %v3833 = vmul.f32 1.0, %v3832
    %v3834 = vrcp.pop %v3503
    %v3835 = vmul.f32 1.0, %v3834
    %v3836 = vrcp.pop %v3504
    %v3837 = vmul.f32 1.0, %v3836
    %v3838 = vrcp.pop %v3505
    %v3839 = vmul.f32 1.0, %v3838
    %v3840 = vrcp.pop %v3506
    %v3841 = vmul.f32 1.0, %v3840
    %v3842 = vrcp.pop %v3507
    %v3843 = vmul.f32 1.0, %v3842
    %v3844 = vrcp.pop %v3508
    %v3845 = vmul.f32 1.0, %v3844
    %v3846 = vrcp.pop %v3509
    %v3847 = vmul.f32 1.0, %v3846
    %v3848 = vrcp.pop %v3510
    %v3849 = vmul.f32 1.0, %v3848
    %v3850 = vrcp.pop %v3511
    %v3851 = vmul.f32 1.0, %v3850
    %v3852 = vrcp.pop %v3512
    %v3853 = vmul.f32 1.0, %v3852
    %v3854 = vrcp.pop %v3513
    %v3855 = vmul.f32 1.0, %v3854
    %v3856 = vrcp.pop %v3514
    %v3857 = vmul.f32 1.0, %v3856
    %v3858 = vrcp.pop %v3515
    %v3859 = vmul.f32 1.0, %v3858
    %v3860 = vrcp.pop %v3516
    %v3861 = vmul.f32 1.0, %v3860
    %v3862 = vrcp.pop %v3517
    %v3863 = vmul.f32 1.0, %v3862
    %v3864 = vrcp.pop %v3518
    %v3865 = vmul.f32 1.0, %v3864
    %v3866 = vrcp.pop %v3519
    %v3867 = vmul.f32 1.0, %v3866
    %v3868 = vrcp.pop %v3520
    %v3869 = vmul.f32 1.0, %v3868
    %v3870 = vrcp.pop %v3521
    %v3871 = vmul.f32 1.0, %v3870
    %v3872 = vrcp.pop %v3522
    %v3873 = vmul.f32 1.0, %v3872
    %v3874 = vrcp.pop %v3523
    %v3875 = vmul.f32 1.0, %v3874
    %v3876 = vrcp.pop %v3524
    %v3877 = vmul.f32 1.0, %v3876
    %v3878 = vrcp.pop %v3525
    %v3879 = vmul.f32 1.0, %v3878
    %v3880 = vrcp.pop %v3526
    %v3881 = vmul.f32 1.0, %v3880
    %v3882 = vrcp.pop %v3527
    %v3883 = vmul.f32 1.0, %v3882
    %v3884 = vrcp.pop %v3528
    %v3885 = vmul.f32 1.0, %v3884
    %v3886 = vrcp.pop %v3529
    %v3887 = vmul.f32 1.0, %v3886
    %v3888 = vrcp.pop %v3530
    %v3889 = vmul.f32 1.0, %v3888
    %v3890 = vrcp.pop %v3531
    %v3891 = vmul.f32 1.0, %v3890
    %v3892 = vrcp.pop %v3532
    %v3893 = vmul.f32 1.0, %v3892
    %v3894 = vrcp.pop %v3533
    %v3895 = vmul.f32 1.0, %v3894
    %v3896 = vrcp.pop %v3534
    %v3897 = vmul.f32 1.0, %v3896
    %v3898 = vrcp.pop %v3535
    %v3899 = vmul.f32 1.0, %v3898
    %v3900 = vrcp.pop %v3536
    %v3901 = vmul.f32 1.0, %v3900
    %v3902 = vrcp.pop %v3537
    %v3903 = vmul.f32 1.0, %v3902
    %v3904 = vrcp.pop %v3538
    %v3905 = vmul.f32 1.0, %v3904
    %v3906 = vrcp.pop %v3539
    %v3907 = vmul.f32 1.0, %v3906
    %v3908 = vrcp.pop %v3540
    %v3909 = vmul.f32 1.0, %v3908
    %v3910 = vrcp.pop %v3541
    %v3911 = vmul.f32 1.0, %v3910
    %v3912 = vrcp.pop %v3542
    %v3913 = vmul.f32 1.0, %v3912
    %v3914 = vrcp.pop %v3543
    %v3915 = vmul.f32 1.0, %v3914
    %v3916 = vrcp.pop %v3544
    %v3917 = vmul.f32 1.0, %v3916
    %v3918 = vrcp.pop %v3545
    %v3919 = vmul.f32 1.0, %v3918
    %v3920 = vrcp.pop %v3546
    %v3921 = vmul.f32 1.0, %v3920
    %v3922 = vrcp.pop %v3547
    %v3923 = vmul.f32 1.0, %v3922
    %v3924 = vrcp.pop %v3548
    %v3925 = vmul.f32 1.0, %v3924
    %v3926 = vrcp.pop %v3549
    %v3927 = vmul.f32 1.0, %v3926
    %v3928 = vrcp.pop %v3550
    %v3929 = vmul.f32 1.0, %v3928
    %v3930 = vrcp.pop %v3551
    %v3931 = vmul.f32 1.0, %v3930
    %v3932 = vrcp.pop %v3552
    %v3933 = vmul.f32 1.0, %v3932
    %v3934 = vrcp.pop %v3553
    %v3935 = vmul.f32 1.0, %v3934
    %v3936 = vrcp.pop %v3554
    %v3937 = vmul.f32 1.0, %v3936
    %v3938 = vrcp.pop %v3555
    %v3939 = vmul.f32 1.0, %v3938
    %v3940 = vrcp.pop %v3556
    %v3941 = vmul.f32 1.0, %v3940
    %v3942 = vrcp.pop %v3557
    %v3943 = vmul.f32 1.0, %v3942
    %v3944 = vrcp.pop %v3558
    %v3945 = vmul.f32 1.0, %v3944
    %v3946 = vrcp.pop %v3559
    %v3947 = vmul.f32 1.0, %v3946
    %v3948 = vrcp.pop %v3560
    %v3949 = vmul.f32 1.0, %v3948
    %v3950 = vrcp.pop %v3561
    %v3951 = vmul.f32 1.0, %v3950
    %v3952 = vrcp.pop %v3562
    %v3953 = vmul.f32 1.0, %v3952
    %v3954 = vrcp.pop %v3563
    %v3955 = vmul.f32 1.0, %v3954
    %v3956 = vrcp.pop %v3564
    %v3957 = vmul.f32 1.0, %v3956
    %v3958 = vrcp.pop %v3565
    %v3959 = vmul.f32 1.0, %v3958
    %v3960 = vrcp.pop %v3566
    %v3961 = vmul.f32 1.0, %v3960
    %v3962 = vrcp.pop %v3567
    %v3963 = vmul.f32 1.0, %v3962
    %v3964 = vrcp.pop %v3568
    %v3965 = vmul.f32 1.0, %v3964
    %v3966 = vrcp.pop %v3569
    %v3967 = vmul.f32 1.0, %v3966
    %v3968 = vrcp.pop %v3570
    %v3969 = vmul.f32 1.0, %v3968
    %v3970 = vrcp.pop %v3571
    %v3971 = vmul.f32 1.0, %v3970
    %v3972 = vrcp.pop %v3572
    %v3973 = vmul.f32 1.0, %v3972
    %v3974 = vrcp.pop %v3573
    %v3975 = vmul.f32 1.0, %v3974
    %v3976 = vrcp.pop %v3574
    %v3977 = vmul.f32 1.0, %v3976
    %v3978 = vrcp.pop %v3575
    %v3979 = vmul.f32 1.0, %v3978
    %v3980 = vrcp.pop %v3576
    %v3981 = vmul.f32 1.0, %v3980
    %v3982 = vrcp.pop %v3577
    %v3983 = vmul.f32 1.0, %v3982
    %v3984 = vrcp.pop %v3578
    %v3985 = vmul.f32 1.0, %v3984
    %v3986 = vrcp.pop %v3579
    %v3987 = vmul.f32 1.0, %v3986
    %v3988 = vrcp.pop %v3580
    %v3989 = vmul.f32 1.0, %v3988
    %v3990 = vrcp.pop %v3581
    %v3991 = vmul.f32 1.0, %v3990
    %v3992 = vrcp.pop %v3582
    %v3993 = vmul.f32 1.0, %v3992
    %v3994 = vrcp.pop %v3583
    %v3995 = vmul.f32 1.0, %v3994
    %v3996 = vrcp.pop %v3584
    %v3997 = vmul.f32 1.0, %v3996
    %v3998 = vrcp.pop %v3585
    %v3999 = vmul.f32 1.0, %v3998
    %v4000 = vrcp.pop %v3586
    %v4001 = vmul.f32 1.0, %v4000
    %v4002 = vrcp.pop %v3587
    %v4003 = vmul.f32 1.0, %v4002
    %v4004 = vrcp.pop %v3588
    %v4005 = vmul.f32 1.0, %v4004
    %v4006 = vrcp.pop %v3589
    %v4007 = vmul.f32 1.0, %v4006
    %v4008 = vrcp.pop %v3590
    %v4009 = vmul.f32 1.0, %v4008
    %v4010 = vrcp.pop %v3591
    %v4011 = vmul.f32 1.0, %v4010
    %v4012 = vrcp.pop %v3592
    %v4013 = vmul.f32 1.0, %v4012
    %v4014 = vrcp.pop %v3593
    %v4015 = vmul.f32 1.0, %v4014
    %v4016 = vrcp.pop %v3594
    %v4017 = vmul.f32 1.0, %v4016
    %v4018 = vrcp.pop %v3595
    %v4019 = vmul.f32 1.0, %v4018
    %v4020 = vrcp.pop %v3596
    %v4021 = vmul.f32 1.0, %v4020
    %v4022 = vrcp.pop %v3597
    %v4023 = vmul.f32 1.0, %v4022
    %v4024 = vrcp.pop %v3598
    %v4025 = vmul.f32 1.0, %v4024
    %v4026 = vrcp.pop %v3599
    %v4027 = vmul.f32 1.0, %v4026
    %v4028 = vrcp.pop %v3600
    %v4029 = vmul.f32 1.0, %v4028
    %v4030 = vrcp.pop %v3601
    %v4031 = vmul.f32 1.0, %v4030
    %v4032 = vrcp.pop %v3602
    %v4033 = vmul.f32 1.0, %v4032
    %v4034 = vrcp.pop %v3603
    %v4035 = vmul.f32 1.0, %v4034
    %v4036 = vrcp.pop %v3604
    %v4037 = vmul.f32 1.0, %v4036
    %v4038 = vrcp.pop %v3605
    %v4039 = vmul.f32 1.0, %v4038
    %v4040 = vrcp.pop %v3606
    %v4041 = vmul.f32 1.0, %v4040
    %v4042 = vrcp.pop %v3607
    %v4043 = vmul.f32 1.0, %v4042
    %v4044 = vrcp.pop %v3608
    %v4045 = vmul.f32 1.0, %v4044
    %v4046 = vrcp.pop %v3609
    %v4047 = vmul.f32 1.0, %v4046
    %v4048 = vrcp.pop %v3610
    %v4049 = vmul.f32 1.0, %v4048
    %v4050 = vrcp.pop %v3611
    %v4051 = vmul.f32 1.0, %v4050
    %v4052 = vrcp.pop %v3612
    %v4053 = vmul.f32 1.0, %v4052
    %v4054 = vrcp.pop %v3613
    %v4055 = vmul.f32 1.0, %v4054
    %v4056 = vrcp.pop %v3614
    %v4057 = vmul.f32 1.0, %v4056
    %v4058 = vrcp.pop %v3615
    %v4059 = vmul.f32 1.0, %v4058
    %v4060 = vrcp.pop %v3616
    %v4061 = vmul.f32 1.0, %v4060
    %v4062 = vrcp.pop %v3617
    %v4063 = vmul.f32 1.0, %v4062
    %v4064 = vrcp.pop %v3618
    %v4065 = vmul.f32 1.0, %v4064
    %v4066 = vrcp.pop %v3619
    %v4067 = vmul.f32 1.0, %v4066
    %v4068 = vrcp.pop %v3620
    %v4069 = vmul.f32 1.0, %v4068
    %v4070 = vrcp.pop %v3621
    %v4071 = vmul.f32 1.0, %v4070
    %v4072 = vrcp.pop %v3622
    %v4073 = vmul.f32 1.0, %v4072
    %v4074 = vrcp.pop %v3623
    %v4075 = vmul.f32 1.0, %v4074
    %v4076 = vrcp.pop %v3624
    %v4077 = vmul.f32 1.0, %v4076
    %v4078 = vrcp.pop %v3625
    %v4079 = vmul.f32 1.0, %v4078
    %v4080 = vrcp.pop %v3626
    %v4081 = vmul.f32 1.0, %v4080
    %v4082 = vrcp.pop %v3627
    %v4083 = vmul.f32 1.0, %v4082
    %v4084 = vrcp.pop %v3628
    %v4085 = vmul.f32 1.0, %v4084
    %v4086 = vrcp.pop %v3629
    %v4087 = vmul.f32 1.0, %v4086
    %v4088 = vrcp.pop %v3630
    %v4089 = vmul.f32 1.0, %v4088
    %v4090 = vrcp.pop %v3631
    %v4091 = vmul.f32 1.0, %v4090
    %v4092 = vrcp.pop %v3632
    %v4093 = vmul.f32 1.0, %v4092
    %v4094 = vrcp.pop %v3633
    %v4095 = vmul.f32 1.0, %v4094
    %v4096 = vrcp.pop %v3634
    %v4097 = vmul.f32 1.0, %v4096
    %v4098 = vrcp.pop %v3635
    %v4099 = vmul.f32 1.0, %v4098
    %v4100 = vrcp.pop %v3636
    %v4101 = vmul.f32 1.0, %v4100
    %v4102 = vrcp.pop %v3637
    %v4103 = vmul.f32 1.0, %v4102
    %v4104 = vrcp.pop %v3638
    %v4105 = vmul.f32 1.0, %v4104
    %v4106 = vrcp.pop %v3639
    %v4107 = vmul.f32 1.0, %v4106
    %v4108 = vrcp.pop %v3640
    %v4109 = vmul.f32 1.0, %v4108
    %v4110 = vrcp.pop %v3641
    %v4111 = vmul.f32 1.0, %v4110
    %v4112 = vrcp.pop %v3642
    %v4113 = vmul.f32 1.0, %v4112
    %v4114 = vrcp.pop %v3643
    %v4115 = vmul.f32 1.0, %v4114
    %v4116 = vrcp.pop %v3644
    %v4117 = vmul.f32 1.0, %v4116
    %v4118 = vrcp.pop %v3645
    %v4119 = vmul.f32 1.0, %v4118
    %v4120 = vrcp.pop %v3646
    %v4121 = vmul.f32 1.0, %v4120
    %v4122 = vrcp.pop %v3647
    %v4123 = vmul.f32 1.0, %v4122
    %v4124 = vrcp.pop %v3648
    %v4125 = vmul.f32 1.0, %v4124
    %v4126 = vrcp.pop %v3649
    %v4127 = vmul.f32 1.0, %v4126
    %v4128 = vrcp.pop %v3650
    %v4129 = vmul.f32 1.0, %v4128
    %v4130 = vrcp.pop %v3651
    %v4131 = vmul.f32 1.0, %v4130
    %v4132 = vrcp.pop %v3652
    %v4133 = vmul.f32 1.0, %v4132
    %v4134 = vrcp.pop %v3653
    %v4135 = vmul.f32 1.0, %v4134
    %v4136 = vrcp.pop %v3654
    %v4137 = vmul.f32 1.0, %v4136
    %v4138 = vrcp.pop %v3655
    %v4139 = vmul.f32 1.0, %v4138
    %v4140 = vrcp.pop %v3656
    %v4141 = vmul.f32 1.0, %v4140
    %v4142 = vrcp.pop %v3657
    %v4143 = vmul.f32 1.0, %v4142
    %v4144 = vrcp.pop %v3658
    %v4145 = vmul.f32 1.0, %v4144
    %v4146 = vrcp.pop %v3659
    %v4147 = vmul.f32 1.0, %v4146
    %v4148 = vrcp.pop %v3660
    %v4149 = vmul.f32 1.0, %v4148
    %v4150 = vrcp.pop %v3661
    %v4151 = vmul.f32 1.0, %v4150
    %v4152 = vrcp.pop %v3662
    %v4153 = vmul.f32 1.0, %v4152
    %v4154 = vrcp.pop %v3663
    %v4155 = vmul.f32 1.0, %v4154
    %v4156 = vrcp.pop %v3664
    %v4157 = vmul.f32 1.0, %v4156
    %v4158 = vrcp.pop %v3665
    %v4159 = vmul.f32 1.0, %v4158
    %v4160 = vrcp.pop %v3666
    %v4161 = vmul.f32 1.0, %v4160
    %v4162 = vrcp.pop %v3667
    %v4163 = vmul.f32 1.0, %v4162
    %v4164 = vrcp.pop %v3668
    %v4165 = vmul.f32 1.0, %v4164
    %v4166 = vrcp.pop %v3669
    %v4167 = vmul.f32 1.0, %v4166
    %v4168 = vrcp.pop %v3670
    %v4169 = vmul.f32 1.0, %v4168
    %v4170 = vrcp.pop %v3671
    %v4171 = vmul.f32 1.0, %v4170
    %v4172 = vrcp.pop %v3672
    %v4173 = vmul.f32 1.0, %v4172
    %v4174 = vrcp.pop %v3673
    %v4175 = vmul.f32 1.0, %v4174
    %v4176 = vrcp.pop %v3674
    %v4177 = vmul.f32 1.0, %v4176
    %v4178 = vrcp.pop %v3675
    %v4179 = vmul.f32 1.0, %v4178
    %v4180 = vrcp.pop %v3676
    %v4181 = vmul.f32 1.0, %v4180
    %v4182 = vrcp.pop %v3677
    %v4183 = vmul.f32 1.0, %v4182
    %v4184 = vrcp.pop %v3678
    %v4185 = vmul.f32 1.0, %v4184
    %v4186 = vrcp.pop %v3679
    %v4187 = vmul.f32 1.0, %v4186
    %v4188 = vrcp.pop %v3680
    %v4189 = vmul.f32 1.0, %v4188
    %v4190 = vrcp.pop %v3681
    %v4191 = vmul.f32 1.0, %v4190
    %v4192 = vrcp.pop %v3682
    %v4193 = vmul.f32 1.0, %v4192
    %v4194 = vrcp.pop %v3683
    %v4195 = vmul.f32 1.0, %v4194
    %v4196 = vmul.f32 %v1636, %v3685
    %v4197 = vmul.f32 %v1638, %v3687
    %v4198 = vmul.f32 %v2342, %v3689
    %v4199 = vmul.f32 %v2344, %v3691
    %v4200 = vmul.f32 %v1640, %v3693
    %v4201 = vmul.f32 %v1642, %v3695
    %v4202 = vmul.f32 %v2346, %v3697
    %v4203 = vmul.f32 %v2348, %v3699
    %v4204 = vmul.f32 %v1646, %v3701
    %v4205 = vmul.f32 %v1648, %v3703
    %v4206 = vmul.f32 %v2352, %v3705
    %v4207 = vmul.f32 %v2354, %v3707
    %v4208 = vmul.f32 %v1650, %v3709
    %v4209 = vmul.f32 %v1652, %v3711
    %v4210 = vmul.f32 %v2356, %v3713
    %v4211 = vmul.f32 %v2358, %v3715
    %v4212 = vmul.f32 %v1656, %v3717
    %v4213 = vmul.f32 %v1658, %v3719
    %v4214 = vmul.f32 %v2362, %v3721
    %v4215 = vmul.f32 %v2364, %v3723
    %v4216 = vmul.f32 %v1660, %v3725
    %v4217 = vmul.f32 %v1662, %v3727
    %v4218 = vmul.f32 %v2366, %v3729
    %v4219 = vmul.f32 %v2368, %v3731
    %v4220 = vmul.f32 %v1666, %v3733
    %v4221 = vmul.f32 %v1668, %v3735
    %v4222 = vmul.f32 %v2372, %v3737
    %v4223 = vmul.f32 %v2374, %v3739
    %v4224 = vmul.f32 %v1670, %v3741
    %v4225 = vmul.f32 %v1672, %v3743
    %v4226 = vmul.f32 %v2376, %v3745
    %v4227 = vmul.f32 %v2378, %v3747
    %v4228 = vmul.f32 %v1676, %v3749
    %v4229 = vmul.f32 %v1678, %v3751
    %v4230 = vmul.f32 %v2382, %v3753
    %v4231 = vmul.f32 %v2384, %v3755
    %v4232 = vmul.f32 %v1680, %v3757
    %v4233 = vmul.f32 %v1682, %v3759
    %v4234 = vmul.f32 %v2386, %v3761
    %v4235 = vmul.f32 %v2388, %v3763
    %v4236 = vmul.f32 %v1686, %v3765
    %v4237 = vmul.f32 %v1688, %v3767
    %v4238 = vmul.f32 %v2392, %v3769
    %v4239 = vmul.f32 %v2394, %v3771
    %v4240 = vmul.f32 %v1690, %v3773
    %v4241 = vmul.f32 %v1692, %v3775
    %v4242 = vmul.f32 %v2396, %v3777
    %v4243 = vmul.f32 %v2398, %v3779
    %v4244 = vmul.f32 %v1696, %v3781
    %v4245 = vmul.f32 %v1698, %v3783
    %v4246 = vmul.f32 %v2402, %v3785
    %v4247 = vmul.f32 %v2404, %v3787
    %v4248 = vmul.f32 %v1700, %v3789
    %v4249 = vmul.f32 %v1702, %v3791
    %v4250 = vmul.f32 %v2406, %v3793
    %v4251 = vmul.f32 %v2408, %v3795
    %v4252 = vmul.f32 %v1706, %v3797
    %v4253 = vmul.f32 %v1708, %v3799
    %v4254 = vmul.f32 %v2412, %v3801
    %v4255 = vmul.f32 %v2414, %v3803
    %v4256 = vmul.f32 %v1710, %v3805
    %v4257 = vmul.f32 %v1712, %v3807
    %v4258 = vmul.f32 %v2416, %v3809
    %v4259 = vmul.f32 %v2418, %v3811
    %v4260 = vmul.f32 %v1716, %v3813
    %v4261 = vmul.f32 %v1718, %v3815
    %v4262 = vmul.f32 %v2422, %v3817
    %v4263 = vmul.f32 %v2424, %v3819
    %v4264 = vmul.f32 %v1720, %v3821
    %v4265 = vmul.f32 %v1722, %v3823
    %v4266 = vmul.f32 %v2426, %v3825
    %v4267 = vmul.f32 %v2428, %v3827
    %v4268 = vmul.f32 %v1726, %v3829
    %v4269 = vmul.f32 %v1728, %v3831
    %v4270 = vmul.f32 %v2432, %v3833
    %v4271 = vmul.f32 %v2434, %v3835
    %v4272 = vmul.f32 %v1730, %v3837
    %v4273 = vmul.f32 %v1732, %v3839
    %v4274 = vmul.f32 %v2436, %v3841
    %v4275 = vmul.f32 %v2438, %v3843
    %v4276 = vmul.f32 %v1736, %v3845
    %v4277 = vmul.f32 %v1738, %v3847
    %v4278 = vmul.f32 %v2442, %v3849
    %v4279 = vmul.f32 %v2444, %v3851
    %v4280 = vmul.f32 %v1740, %v3853
    %v4281 = vmul.f32 %v1742, %v3855
    %v4282 = vmul.f32 %v2446, %v3857
    %v4283 = vmul.f32 %v2448, %v3859
    %v4284 = vmul.f32 %v1746, %v3861
    %v4285 = vmul.f32 %v1748, %v3863
    %v4286 = vmul.f32 %v2452, %v3865
    %v4287 = vmul.f32 %v2454, %v3867
    %v4288 = vmul.f32 %v1750, %v3869
    %v4289 = vmul.f32 %v1752, %v3871
    %v4290 = vmul.f32 %v2456, %v3873
    %v4291 = vmul.f32 %v2458, %v3875
    %v4292 = vmul.f32 %v1756, %v3877
    %v4293 = vmul.f32 %v1758, %v3879
    %v4294 = vmul.f32 %v2462, %v3881
    %v4295 = vmul.f32 %v2464, %v3883
    %v4296 = vmul.f32 %v1760, %v3885
    %v4297 = vmul.f32 %v1762, %v3887
    %v4298 = vmul.f32 %v2466, %v3889
    %v4299 = vmul.f32 %v2468, %v3891
    %v4300 = vmul.f32 %v1766, %v3893
    %v4301 = vmul.f32 %v1768, %v3895
    %v4302 = vmul.f32 %v2472, %v3897
    %v4303 = vmul.f32 %v2474, %v3899
    %v4304 = vmul.f32 %v1770, %v3901
    %v4305 = vmul.f32 %v1772, %v3903
    %v4306 = vmul.f32 %v2476, %v3905
    %v4307 = vmul.f32 %v2478, %v3907
    %v4308 = vmul.f32 %v1776, %v3909
    %v4309 = vmul.f32 %v1778, %v3911
    %v4310 = vmul.f32 %v2482, %v3913
    %v4311 = vmul.f32 %v2484, %v3915
    %v4312 = vmul.f32 %v1780, %v3917
    %v4313 = vmul.f32 %v1782, %v3919
    %v4314 = vmul.f32 %v2486, %v3921
    %v4315 = vmul.f32 %v2488, %v3923
    %v4316 = vmul.f32 %v1786, %v3925
    %v4317 = vmul.f32 %v1788, %v3927
    %v4318 = vmul.f32 %v2492, %v3929
    %v4319 = vmul.f32 %v2494, %v3931
    %v4320 = vmul.f32 %v1790, %v3933
    %v4321 = vmul.f32 %v1792, %v3935
    %v4322 = vmul.f32 %v2496, %v3937
    %v4323 = vmul.f32 %v2498, %v3939
    %v4324 = vmul.f32 %v1796, %v3941
    %v4325 = vmul.f32 %v1798, %v3943
    %v4326 = vmul.f32 %v2502, %v3945
    %v4327 = vmul.f32 %v2504, %v3947
    %v4328 = vmul.f32 %v1800, %v3949
    %v4329 = vmul.f32 %v1802, %v3951
    %v4330 = vmul.f32 %v2506, %v3953
    %v4331 = vmul.f32 %v2508, %v3955
    %v4332 = vmul.f32 %v1806, %v3957
    %v4333 = vmul.f32 %v1808, %v3959
    %v4334 = vmul.f32 %v2512, %v3961
    %v4335 = vmul.f32 %v2514, %v3963
    %v4336 = vmul.f32 %v1810, %v3965
    %v4337 = vmul.f32 %v1812, %v3967
    %v4338 = vmul.f32 %v2516, %v3969
    %v4339 = vmul.f32 %v2518, %v3971
    %v4340 = vmul.f32 %v1816, %v3973
    %v4341 = vmul.f32 %v1818, %v3975
    %v4342 = vmul.f32 %v2522, %v3977
    %v4343 = vmul.f32 %v2524, %v3979
    %v4344 = vmul.f32 %v1820, %v3981
    %v4345 = vmul.f32 %v1822, %v3983
    %v4346 = vmul.f32 %v2526, %v3985
    %v4347 = vmul.f32 %v2528, %v3987
    %v4348 = vmul.f32 %v1826, %v3989
    %v4349 = vmul.f32 %v1828, %v3991
    %v4350 = vmul.f32 %v2532, %v3993
    %v4351 = vmul.f32 %v2534, %v3995
    %v4352 = vmul.f32 %v1830, %v3997
    %v4353 = vmul.f32 %v1832, %v3999
    %v4354 = vmul.f32 %v2536, %v4001
    %v4355 = vmul.f32 %v2538, %v4003
    %v4356 = vmul.f32 %v1836, %v4005
    %v4357 = vmul.f32 %v1838, %v4007
    %v4358 = vmul.f32 %v2542, %v4009
    %v4359 = vmul.f32 %v2544, %v4011
    %v4360 = vmul.f32 %v1840, %v4013
    %v4361 = vmul.f32 %v1842, %v4015
    %v4362 = vmul.f32 %v2546, %v4017
    %v4363 = vmul.f32 %v2548, %v4019
    %v4364 = vmul.f32 %v1846, %v4021
    %v4365 = vmul.f32 %v1848, %v4023
    %v4366 = vmul.f32 %v2552, %v4025
    %v4367 = vmul.f32 %v2554, %v4027
    %v4368 = vmul.f32 %v1850, %v4029
    %v4369 = vmul.f32 %v1852, %v4031
    %v4370 = vmul.f32 %v2556, %v4033
    %v4371 = vmul.f32 %v2558, %v4035
    %v4372 = vmul.f32 %v1856, %v4037
    %v4373 = vmul.f32 %v1858, %v4039
    %v4374 = vmul.f32 %v2562, %v4041
    %v4375 = vmul.f32 %v2564, %v4043
    %v4376 = vmul.f32 %v1860, %v4045
    %v4377 = vmul.f32 %v1862, %v4047
    %v4378 = vmul.f32 %v2566, %v4049
    %v4379 = vmul.f32 %v2568, %v4051
    %v4380 = vmul.f32 %v1866, %v4053
    %v4381 = vmul.f32 %v1868, %v4055
    %v4382 = vmul.f32 %v2572, %v4057
    %v4383 = vmul.f32 %v2574, %v4059
    %v4384 = vmul.f32 %v1870, %v4061
    %v4385 = vmul.f32 %v1872, %v4063
    %v4386 = vmul.f32 %v2576, %v4065
    %v4387 = vmul.f32 %v2578, %v4067
    %v4388 = vmul.f32 %v1876, %v4069
    %v4389 = vmul.f32 %v1878, %v4071
    %v4390 = vmul.f32 %v2582, %v4073
    %v4391 = vmul.f32 %v2584, %v4075
    %v4392 = vmul.f32 %v1880, %v4077
    %v4393 = vmul.f32 %v1882, %v4079
    %v4394 = vmul.f32 %v2586, %v4081
    %v4395 = vmul.f32 %v2588, %v4083
    %v4396 = vmul.f32 %v1886, %v4085
    %v4397 = vmul.f32 %v1888, %v4087
    %v4398 = vmul.f32 %v2592, %v4089
    %v4399 = vmul.f32 %v2594, %v4091
    %v4400 = vmul.f32 %v1890, %v4093
    %v4401 = vmul.f32 %v1892, %v4095
    %v4402 = vmul.f32 %v2596, %v4097
    %v4403 = vmul.f32 %v2598, %v4099
    %v4404 = vmul.f32 %v1896, %v4101
    %v4405 = vmul.f32 %v1898, %v4103
    %v4406 = vmul.f32 %v2602, %v4105
    %v4407 = vmul.f32 %v2604, %v4107
    %v4408 = vmul.f32 %v1900, %v4109
    %v4409 = vmul.f32 %v1902, %v4111
    %v4410 = vmul.f32 %v2606, %v4113
    %v4411 = vmul.f32 %v2608, %v4115
    %v4412 = vmul.f32 %v1906, %v4117
    %v4413 = vmul.f32 %v1908, %v4119
    %v4414 = vmul.f32 %v2612, %v4121
    %v4415 = vmul.f32 %v2614, %v4123
    %v4416 = vmul.f32 %v1910, %v4125
    %v4417 = vmul.f32 %v1912, %v4127
    %v4418 = vmul.f32 %v2616, %v4129
    %v4419 = vmul.f32 %v2618, %v4131
    %v4420 = vmul.f32 %v1916, %v4133
    %v4421 = vmul.f32 %v1918, %v4135
    %v4422 = vmul.f32 %v2622, %v4137
    %v4423 = vmul.f32 %v2624, %v4139
    %v4424 = vmul.f32 %v1920, %v4141
    %v4425 = vmul.f32 %v1922, %v4143
    %v4426 = vmul.f32 %v2626, %v4145
    %v4427 = vmul.f32 %v2628, %v4147
    %v4428 = vmul.f32 %v1926, %v4149
    %v4429 = vmul.f32 %v1928, %v4151
    %v4430 = vmul.f32 %v2632, %v4153
    %v4431 = vmul.f32 %v2634, %v4155
    %v4432 = vmul.f32 %v1930, %v4157
    %v4433 = vmul.f32 %v1932, %v4159
    %v4434 = vmul.f32 %v2636, %v4161
    %v4435 = vmul.f32 %v2638, %v4163
    %v4436 = vmul.f32 %v1936, %v4165
    %v4437 = vmul.f32 %v1938, %v4167
    %v4438 = vmul.f32 %v2642, %v4169
    %v4439 = vmul.f32 %v2644, %v4171
    %v4440 = vmul.f32 %v1940, %v4173
    %v4441 = vmul.f32 %v1942, %v4175
    %v4442 = vmul.f32 %v2646, %v4177
    %v4443 = vmul.f32 %v2648, %v4179
    %v4444 = vmul.f32 %v1946, %v4181
    %v4445 = vmul.f32 %v1948, %v4183
    %v4446 = vmul.f32 %v2652, %v4185
    %v4447 = vmul.f32 %v2654, %v4187
    %v4448 = vmul.f32 %v1950, %v4189
    %v4449 = vmul.f32 %v1952, %v4191
    %v4450 = vmul.f32 %v2656, %v4193
    %v4451 = vmul.f32 %v2658, %v4195
    %v4452 = vpack.c.bf16 %v4200, %v4196
    %v4453 = vpack.c.bf16 %v4201, %v4197
    %v4454 = vpack.c.bf16 %v4202, %v4198
    %v4455 = vpack.c.bf16 %v4203, %v4199
    %v4456 = vpack.c.bf16 %v4208, %v4204
    %v4457 = vpack.c.bf16 %v4209, %v4205
    %v4458 = vpack.c.bf16 %v4210, %v4206
    %v4459 = vpack.c.bf16 %v4211, %v4207
    %v4460 = vpack.c.bf16 %v4216, %v4212
    %v4461 = vpack.c.bf16 %v4217, %v4213
    %v4462 = vpack.c.bf16 %v4218, %v4214
    %v4463 = vpack.c.bf16 %v4219, %v4215
    %v4464 = vpack.c.bf16 %v4224, %v4220
    %v4465 = vpack.c.bf16 %v4225, %v4221
    %v4466 = vpack.c.bf16 %v4226, %v4222
    %v4467 = vpack.c.bf16 %v4227, %v4223
    %v4468 = vpack.c.bf16 %v4232, %v4228
    %v4469 = vpack.c.bf16 %v4233, %v4229
    %v4470 = vpack.c.bf16 %v4234, %v4230
    %v4471 = vpack.c.bf16 %v4235, %v4231
    %v4472 = vpack.c.bf16 %v4240, %v4236
    %v4473 = vpack.c.bf16 %v4241, %v4237
    %v4474 = vpack.c.bf16 %v4242, %v4238
    %v4475 = vpack.c.bf16 %v4243, %v4239
    %v4476 = vpack.c.bf16 %v4248, %v4244
    %v4477 = vpack.c.bf16 %v4249, %v4245
    %v4478 = vpack.c.bf16 %v4250, %v4246
    %v4479 = vpack.c.bf16 %v4251, %v4247
    %v4480 = vpack.c.bf16 %v4256, %v4252
    %v4481 = vpack.c.bf16 %v4257, %v4253
    %v4482 = vpack.c.bf16 %v4258, %v4254
    %v4483 = vpack.c.bf16 %v4259, %v4255
    %v4484 = vpack.c.bf16 %v4264, %v4260
    %v4485 = vpack.c.bf16 %v4265, %v4261
    %v4486 = vpack.c.bf16 %v4266, %v4262
    %v4487 = vpack.c.bf16 %v4267, %v4263
    %v4488 = vpack.c.bf16 %v4272, %v4268
    %v4489 = vpack.c.bf16 %v4273, %v4269
    %v4490 = vpack.c.bf16 %v4274, %v4270
    %v4491 = vpack.c.bf16 %v4275, %v4271
    %v4492 = vpack.c.bf16 %v4280, %v4276
    %v4493 = vpack.c.bf16 %v4281, %v4277
    %v4494 = vpack.c.bf16 %v4282, %v4278
    %v4495 = vpack.c.bf16 %v4283, %v4279
    %v4496 = vpack.c.bf16 %v4288, %v4284
    %v4497 = vpack.c.bf16 %v4289, %v4285
    %v4498 = vpack.c.bf16 %v4290, %v4286
    %v4499 = vpack.c.bf16 %v4291, %v4287
    %v4500 = vpack.c.bf16 %v4296, %v4292
    %v4501 = vpack.c.bf16 %v4297, %v4293
    %v4502 = vpack.c.bf16 %v4298, %v4294
    %v4503 = vpack.c.bf16 %v4299, %v4295
    %v4504 = vpack.c.bf16 %v4304, %v4300
    %v4505 = vpack.c.bf16 %v4305, %v4301
    %v4506 = vpack.c.bf16 %v4306, %v4302
    %v4507 = vpack.c.bf16 %v4307, %v4303
    %v4508 = vpack.c.bf16 %v4312, %v4308
    %v4509 = vpack.c.bf16 %v4313, %v4309
    %v4510 = vpack.c.bf16 %v4314, %v4310
    %v4511 = vpack.c.bf16 %v4315, %v4311
    %v4512 = vpack.c.bf16 %v4320, %v4316
    %v4513 = vpack.c.bf16 %v4321, %v4317
    %v4514 = vpack.c.bf16 %v4322, %v4318
    %v4515 = vpack.c.bf16 %v4323, %v4319
    %v4516 = vpack.c.bf16 %v4328, %v4324
    %v4517 = vpack.c.bf16 %v4329, %v4325
    %v4518 = vpack.c.bf16 %v4330, %v4326
    %v4519 = vpack.c.bf16 %v4331, %v4327
    %v4520 = vpack.c.bf16 %v4336, %v4332
    %v4521 = vpack.c.bf16 %v4337, %v4333
    %v4522 = vpack.c.bf16 %v4338, %v4334
    %v4523 = vpack.c.bf16 %v4339, %v4335
    %v4524 = vpack.c.bf16 %v4344, %v4340
    %v4525 = vpack.c.bf16 %v4345, %v4341
    %v4526 = vpack.c.bf16 %v4346, %v4342
    %v4527 = vpack.c.bf16 %v4347, %v4343
    %v4528 = vpack.c.bf16 %v4352, %v4348
    %v4529 = vpack.c.bf16 %v4353, %v4349
    %v4530 = vpack.c.bf16 %v4354, %v4350
    %v4531 = vpack.c.bf16 %v4355, %v4351
    %v4532 = vpack.c.bf16 %v4360, %v4356
    %v4533 = vpack.c.bf16 %v4361, %v4357
    %v4534 = vpack.c.bf16 %v4362, %v4358
    %v4535 = vpack.c.bf16 %v4363, %v4359
    %v4536 = vpack.c.bf16 %v4368, %v4364
    %v4537 = vpack.c.bf16 %v4369, %v4365
    %v4538 = vpack.c.bf16 %v4370, %v4366
    %v4539 = vpack.c.bf16 %v4371, %v4367
    %v4540 = vpack.c.bf16 %v4376, %v4372
    %v4541 = vpack.c.bf16 %v4377, %v4373
    %v4542 = vpack.c.bf16 %v4378, %v4374
    %v4543 = vpack.c.bf16 %v4379, %v4375
    %v4544 = vpack.c.bf16 %v4384, %v4380
    %v4545 = vpack.c.bf16 %v4385, %v4381
    %v4546 = vpack.c.bf16 %v4386, %v4382
    %v4547 = vpack.c.bf16 %v4387, %v4383
    %v4548 = vpack.c.bf16 %v4392, %v4388
    %v4549 = vpack.c.bf16 %v4393, %v4389
    %v4550 = vpack.c.bf16 %v4394, %v4390
    %v4551 = vpack.c.bf16 %v4395, %v4391
    %v4552 = vpack.c.bf16 %v4400, %v4396
    %v4553 = vpack.c.bf16 %v4401, %v4397
    %v4554 = vpack.c.bf16 %v4402, %v4398
    %v4555 = vpack.c.bf16 %v4403, %v4399
    %v4556 = vpack.c.bf16 %v4408, %v4404
    %v4557 = vpack.c.bf16 %v4409, %v4405
    %v4558 = vpack.c.bf16 %v4410, %v4406
    %v4559 = vpack.c.bf16 %v4411, %v4407
    %v4560 = vpack.c.bf16 %v4416, %v4412
    %v4561 = vpack.c.bf16 %v4417, %v4413
    %v4562 = vpack.c.bf16 %v4418, %v4414
    %v4563 = vpack.c.bf16 %v4419, %v4415
    %v4564 = vpack.c.bf16 %v4424, %v4420
    %v4565 = vpack.c.bf16 %v4425, %v4421
    %v4566 = vpack.c.bf16 %v4426, %v4422
    %v4567 = vpack.c.bf16 %v4427, %v4423
    %v4568 = vpack.c.bf16 %v4432, %v4428
    %v4569 = vpack.c.bf16 %v4433, %v4429
    %v4570 = vpack.c.bf16 %v4434, %v4430
    %v4571 = vpack.c.bf16 %v4435, %v4431
    %v4572 = vpack.c.bf16 %v4440, %v4436
    %v4573 = vpack.c.bf16 %v4441, %v4437
    %v4574 = vpack.c.bf16 %v4442, %v4438
    %v4575 = vpack.c.bf16 %v4443, %v4439
    %v4576 = vpack.c.bf16 %v4448, %v4444
    %v4577 = vpack.c.bf16 %v4449, %v4445
    %v4578 = vpack.c.bf16 %v4450, %v4446
    %v4579 = vpack.c.bf16 %v4451, %v4447
    %v4580 = vld [vmem:[#allocation8] sm:$0xff]
    %v4581 = vld [vmem:[#allocation8 + $0x8] sm:$0xff]
    %v4582 = vld [vmem:[#allocation8 + $0x10] sm:$0xff]
    %v4583 = vld [vmem:[#allocation8 + $0x18] sm:$0xff]
    %v4584 = vld [vmem:[#allocation8 + $0x20] sm:$0xff]
    %v4585 = vld [vmem:[#allocation8 + $0x28] sm:$0xff]
    %v4586 = vld [vmem:[#allocation8 + $0x30] sm:$0xff]
    %v4587 = vld [vmem:[#allocation8 + $0x38] sm:$0xff]
    %v4588 = vld [vmem:[#allocation8 + $0x40] sm:$0xff]
    %v4589 = vld [vmem:[#allocation8 + $0x48] sm:$0xff]
    %v4590 = vld [vmem:[#allocation8 + $0x50] sm:$0xff]
    %v4591 = vld [vmem:[#allocation8 + $0x58] sm:$0xff]
    %v4592 = vld [vmem:[#allocation8 + $0x60] sm:$0xff]
    %v4593 = vld [vmem:[#allocation8 + $0x68] sm:$0xff]
    %v4594 = vld [vmem:[#allocation8 + $0x70] sm:$0xff]
    %v4595 = vld [vmem:[#allocation8 + $0x78] sm:$0xff]
    %v4596 = vld [vmem:[#allocation8 + $0x80] sm:$0xff]
    %v4597 = vld [vmem:[#allocation8 + $0x88] sm:$0xff]
    %v4598 = vld [vmem:[#allocation8 + $0x90] sm:$0xff]
    %v4599 = vld [vmem:[#allocation8 + $0x98] sm:$0xff]
    %v4600 = vld [vmem:[#allocation8 + $0xa0] sm:$0xff]
    %v4601 = vld [vmem:[#allocation8 + $0xa8] sm:$0xff]
    %v4602 = vld [vmem:[#allocation8 + $0xb0] sm:$0xff]
    %v4603 = vld [vmem:[#allocation8 + $0xb8] sm:$0xff]
    %v4604 = vld [vmem:[#allocation8 + $0xc0] sm:$0xff]
    %v4605 = vld [vmem:[#allocation8 + $0xc8] sm:$0xff]
    %v4606 = vld [vmem:[#allocation8 + $0xd0] sm:$0xff]
    %v4607 = vld [vmem:[#allocation8 + $0xd8] sm:$0xff]
    %v4608 = vld [vmem:[#allocation8 + $0xe0] sm:$0xff]
    %v4609 = vld [vmem:[#allocation8 + $0xe8] sm:$0xff]
    %v4610 = vld [vmem:[#allocation8 + $0xf0] sm:$0xff]
    %v4611 = vld [vmem:[#allocation8 + $0xf8] sm:$0xff]
    %v4612 = vld [vmem:[#allocation8 + $0x100] sm:$0xff]
    %v4613 = vld [vmem:[#allocation8 + $0x108] sm:$0xff]
    %v4614 = vld [vmem:[#allocation8 + $0x110] sm:$0xff]
    %v4615 = vld [vmem:[#allocation8 + $0x118] sm:$0xff]
    %v4616 = vld [vmem:[#allocation8 + $0x120] sm:$0xff]
    %v4617 = vld [vmem:[#allocation8 + $0x128] sm:$0xff]
    %v4618 = vld [vmem:[#allocation8 + $0x130] sm:$0xff]
    %v4619 = vld [vmem:[#allocation8 + $0x138] sm:$0xff]
    %v4620 = vld [vmem:[#allocation8 + $0x140] sm:$0xff]
    %v4621 = vld [vmem:[#allocation8 + $0x148] sm:$0xff]
    %v4622 = vld [vmem:[#allocation8 + $0x150] sm:$0xff]
    %v4623 = vld [vmem:[#allocation8 + $0x158] sm:$0xff]
    %v4624 = vld [vmem:[#allocation8 + $0x160] sm:$0xff]
    %v4625 = vld [vmem:[#allocation8 + $0x168] sm:$0xff]
    %v4626 = vld [vmem:[#allocation8 + $0x170] sm:$0xff]
    %v4627 = vld [vmem:[#allocation8 + $0x178] sm:$0xff]
    %v4628 = vld [vmem:[#allocation8 + $0x180] sm:$0xff]
    %v4629 = vld [vmem:[#allocation8 + $0x188] sm:$0xff]
    %v4630 = vld [vmem:[#allocation8 + $0x190] sm:$0xff]
    %v4631 = vld [vmem:[#allocation8 + $0x198] sm:$0xff]
    %v4632 = vld [vmem:[#allocation8 + $0x1a0] sm:$0xff]
    %v4633 = vld [vmem:[#allocation8 + $0x1a8] sm:$0xff]
    %v4634 = vld [vmem:[#allocation8 + $0x1b0] sm:$0xff]
    %v4635 = vld [vmem:[#allocation8 + $0x1b8] sm:$0xff]
    %v4636 = vld [vmem:[#allocation8 + $0x1c0] sm:$0xff]
    %v4637 = vld [vmem:[#allocation8 + $0x1c8] sm:$0xff]
    %v4638 = vld [vmem:[#allocation8 + $0x1d0] sm:$0xff]
    %v4639 = vld [vmem:[#allocation8 + $0x1d8] sm:$0xff]
    %v4640 = vld [vmem:[#allocation8 + $0x1e0] sm:$0xff]
    %v4641 = vld [vmem:[#allocation8 + $0x1e8] sm:$0xff]
    %v4642 = vld [vmem:[#allocation8 + $0x1f0] sm:$0xff]
    %v4643 = vld [vmem:[#allocation8 + $0x1f8] sm:$0xff]
    %v4644 = vld [vmem:[#allocation8 + $0x200] sm:$0xff]
    %v4645 = vld [vmem:[#allocation8 + $0x208] sm:$0xff]
    %v4646 = vld [vmem:[#allocation8 + $0x210] sm:$0xff]
    %v4647 = vld [vmem:[#allocation8 + $0x218] sm:$0xff]
    %v4648 = vld [vmem:[#allocation8 + $0x220] sm:$0xff]
    %v4649 = vld [vmem:[#allocation8 + $0x228] sm:$0xff]
    %v4650 = vld [vmem:[#allocation8 + $0x230] sm:$0xff]
    %v4651 = vld [vmem:[#allocation8 + $0x238] sm:$0xff]
    %v4652 = vld [vmem:[#allocation8 + $0x240] sm:$0xff]
    %v4653 = vld [vmem:[#allocation8 + $0x248] sm:$0xff]
    %v4654 = vld [vmem:[#allocation8 + $0x250] sm:$0xff]
    %v4655 = vld [vmem:[#allocation8 + $0x258] sm:$0xff]
    %v4656 = vld [vmem:[#allocation8 + $0x260] sm:$0xff]
    %v4657 = vld [vmem:[#allocation8 + $0x268] sm:$0xff]
    %v4658 = vld [vmem:[#allocation8 + $0x270] sm:$0xff]
    %v4659 = vld [vmem:[#allocation8 + $0x278] sm:$0xff]
    %v4660 = vld [vmem:[#allocation8 + $0x280] sm:$0xff]
    %v4661 = vld [vmem:[#allocation8 + $0x288] sm:$0xff]
    %v4662 = vld [vmem:[#allocation8 + $0x290] sm:$0xff]
    %v4663 = vld [vmem:[#allocation8 + $0x298] sm:$0xff]
    %v4664 = vld [vmem:[#allocation8 + $0x2a0] sm:$0xff]
    %v4665 = vld [vmem:[#allocation8 + $0x2a8] sm:$0xff]
    %v4666 = vld [vmem:[#allocation8 + $0x2b0] sm:$0xff]
    %v4667 = vld [vmem:[#allocation8 + $0x2b8] sm:$0xff]
    %v4668 = vld [vmem:[#allocation8 + $0x2c0] sm:$0xff]
    %v4669 = vld [vmem:[#allocation8 + $0x2c8] sm:$0xff]
    %v4670 = vld [vmem:[#allocation8 + $0x2d0] sm:$0xff]
    %v4671 = vld [vmem:[#allocation8 + $0x2d8] sm:$0xff]
    %v4672 = vld [vmem:[#allocation8 + $0x2e0] sm:$0xff]
    %v4673 = vld [vmem:[#allocation8 + $0x2e8] sm:$0xff]
    %v4674 = vld [vmem:[#allocation8 + $0x2f0] sm:$0xff]
    %v4675 = vld [vmem:[#allocation8 + $0x2f8] sm:$0xff]
    %v4676 = vld [vmem:[#allocation8 + $0x300] sm:$0xff]
    %v4677 = vld [vmem:[#allocation8 + $0x308] sm:$0xff]
    %v4678 = vld [vmem:[#allocation8 + $0x310] sm:$0xff]
    %v4679 = vld [vmem:[#allocation8 + $0x318] sm:$0xff]
    %v4680 = vld [vmem:[#allocation8 + $0x320] sm:$0xff]
    %v4681 = vld [vmem:[#allocation8 + $0x328] sm:$0xff]
    %v4682 = vld [vmem:[#allocation8 + $0x330] sm:$0xff]
    %v4683 = vld [vmem:[#allocation8 + $0x338] sm:$0xff]
    %v4684 = vld [vmem:[#allocation8 + $0x340] sm:$0xff]
    %v4685 = vld [vmem:[#allocation8 + $0x348] sm:$0xff]
    %v4686 = vld [vmem:[#allocation8 + $0x350] sm:$0xff]
    %v4687 = vld [vmem:[#allocation8 + $0x358] sm:$0xff]
    %v4688 = vld [vmem:[#allocation8 + $0x360] sm:$0xff]
    %v4689 = vld [vmem:[#allocation8 + $0x368] sm:$0xff]
    %v4690 = vld [vmem:[#allocation8 + $0x370] sm:$0xff]
    %v4691 = vld [vmem:[#allocation8 + $0x378] sm:$0xff]
    %v4692 = vld [vmem:[#allocation8 + $0x380] sm:$0xff]
    %v4693 = vld [vmem:[#allocation8 + $0x388] sm:$0xff]
    %v4694 = vld [vmem:[#allocation8 + $0x390] sm:$0xff]
    %v4695 = vld [vmem:[#allocation8 + $0x398] sm:$0xff]
    %v4696 = vld [vmem:[#allocation8 + $0x3a0] sm:$0xff]
    %v4697 = vld [vmem:[#allocation8 + $0x3a8] sm:$0xff]
    %v4698 = vld [vmem:[#allocation8 + $0x3b0] sm:$0xff]
    %v4699 = vld [vmem:[#allocation8 + $0x3b8] sm:$0xff]
    %v4700 = vld [vmem:[#allocation8 + $0x3c0] sm:$0xff]
    %v4701 = vld [vmem:[#allocation8 + $0x3c8] sm:$0xff]
    %v4702 = vld [vmem:[#allocation8 + $0x3d0] sm:$0xff]
    %v4703 = vld [vmem:[#allocation8 + $0x3d8] sm:$0xff]
    %v4704 = vld [vmem:[#allocation8 + $0x3e0] sm:$0xff]
    %v4705 = vld [vmem:[#allocation8 + $0x3e8] sm:$0xff]
    %v4706 = vld [vmem:[#allocation8 + $0x3f0] sm:$0xff]
    %v4707 = vld [vmem:[#allocation8 + $0x3f8] sm:$0xff]
    %v4708 = vld [vmem:[%s4] sm:$0xf]
    %v4710 = vlaneseq
    %v4711 = vshrl.u32 %v4710, 7
    %v4712 = vsub.s32 0, %v4711
    %v4713 = vrot.slane %v4708, %v4712
    %v4714 = vlaneseq
    %v4715 = vshrl.u32 %v4714, 7
    %v4716 = vsub.s32 1, %v4715
    %v4717 = vrot.slane %v4708, %v4716
    %v4718 = vlaneseq
    %v4719 = vshrl.u32 %v4718, 7
    %v4720 = vsub.s32 2, %v4719
    %v4721 = vrot.slane %v4708, %v4720
    %v4722 = vlaneseq
    %v4723 = vshrl.u32 %v4722, 7
    %v4724 = vsub.s32 3, %v4723
    %v4725 = vrot.slane %v4708, %v4724
    %v4858 = vunpack.c.l.b16 %v4580
    %v4859 = vunpack.c.h.b16 %v4580
    %v4860 = vunpack.c.l.b16 %v4581
    %v4861 = vunpack.c.h.b16 %v4581
    %v4862 = vunpack.c.l.b16 %v4582
    %v4863 = vunpack.c.h.b16 %v4582
    %v4864 = vunpack.c.l.b16 %v4583
    %v4865 = vunpack.c.h.b16 %v4583
    %v4866 = vunpack.c.l.b16 %v4584
    %v4867 = vunpack.c.h.b16 %v4584
    %v4868 = vunpack.c.l.b16 %v4585
    %v4869 = vunpack.c.h.b16 %v4585
    %v4870 = vunpack.c.l.b16 %v4586
    %v4871 = vunpack.c.h.b16 %v4586
    %v4872 = vunpack.c.l.b16 %v4587
    %v4873 = vunpack.c.h.b16 %v4587
    %v4874 = vunpack.c.l.b16 %v4588
    %v4875 = vunpack.c.h.b16 %v4588
    %v4876 = vunpack.c.l.b16 %v4589
    %v4877 = vunpack.c.h.b16 %v4589
    %v4878 = vunpack.c.l.b16 %v4590
    %v4879 = vunpack.c.h.b16 %v4590
    %v4880 = vunpack.c.l.b16 %v4591
    %v4881 = vunpack.c.h.b16 %v4591
    %v4882 = vunpack.c.l.b16 %v4592
    %v4883 = vunpack.c.h.b16 %v4592
    %v4884 = vunpack.c.l.b16 %v4593
    %v4885 = vunpack.c.h.b16 %v4593
    %v4886 = vunpack.c.l.b16 %v4594
    %v4887 = vunpack.c.h.b16 %v4594
    %v4888 = vunpack.c.l.b16 %v4595
    %v4889 = vunpack.c.h.b16 %v4595
    %v4890 = vunpack.c.l.b16 %v4596
    %v4891 = vunpack.c.h.b16 %v4596
    %v4892 = vunpack.c.l.b16 %v4597
    %v4893 = vunpack.c.h.b16 %v4597
    %v4894 = vunpack.c.l.b16 %v4598
    %v4895 = vunpack.c.h.b16 %v4598
    %v4896 = vunpack.c.l.b16 %v4599
    %v4897 = vunpack.c.h.b16 %v4599
    %v4898 = vunpack.c.l.b16 %v4600
    %v4899 = vunpack.c.h.b16 %v4600
    %v4900 = vunpack.c.l.b16 %v4601
    %v4901 = vunpack.c.h.b16 %v4601
    %v4902 = vunpack.c.l.b16 %v4602
    %v4903 = vunpack.c.h.b16 %v4602
    %v4904 = vunpack.c.l.b16 %v4603
    %v4905 = vunpack.c.h.b16 %v4603
    %v4906 = vunpack.c.l.b16 %v4604
    %v4907 = vunpack.c.h.b16 %v4604
    %v4908 = vunpack.c.l.b16 %v4605
    %v4909 = vunpack.c.h.b16 %v4605
    %v4910 = vunpack.c.l.b16 %v4606
    %v4911 = vunpack.c.h.b16 %v4606
    %v4912 = vunpack.c.l.b16 %v4607
    %v4913 = vunpack.c.h.b16 %v4607
    %v4914 = vunpack.c.l.b16 %v4608
    %v4915 = vunpack.c.h.b16 %v4608
    %v4916 = vunpack.c.l.b16 %v4609
    %v4917 = vunpack.c.h.b16 %v4609
    %v4918 = vunpack.c.l.b16 %v4610
    %v4919 = vunpack.c.h.b16 %v4610
    %v4920 = vunpack.c.l.b16 %v4611
    %v4921 = vunpack.c.h.b16 %v4611
    %v4922 = vunpack.c.l.b16 %v4612
    %v4923 = vunpack.c.h.b16 %v4612
    %v4924 = vunpack.c.l.b16 %v4613
    %v4925 = vunpack.c.h.b16 %v4613
    %v4926 = vunpack.c.l.b16 %v4614
    %v4927 = vunpack.c.h.b16 %v4614
    %v4928 = vunpack.c.l.b16 %v4615
    %v4929 = vunpack.c.h.b16 %v4615
    %v4930 = vunpack.c.l.b16 %v4616
    %v4931 = vunpack.c.h.b16 %v4616
    %v4932 = vunpack.c.l.b16 %v4617
    %v4933 = vunpack.c.h.b16 %v4617
    %v4934 = vunpack.c.l.b16 %v4618
    %v4935 = vunpack.c.h.b16 %v4618
    %v4936 = vunpack.c.l.b16 %v4619
    %v4937 = vunpack.c.h.b16 %v4619
    %v4938 = vunpack.c.l.b16 %v4620
    %v4939 = vunpack.c.h.b16 %v4620
    %v4940 = vunpack.c.l.b16 %v4621
    %v4941 = vunpack.c.h.b16 %v4621
    %v4942 = vunpack.c.l.b16 %v4622
    %v4943 = vunpack.c.h.b16 %v4622
    %v4944 = vunpack.c.l.b16 %v4623
    %v4945 = vunpack.c.h.b16 %v4623
    %v4946 = vunpack.c.l.b16 %v4624
    %v4947 = vunpack.c.h.b16 %v4624
    %v4948 = vunpack.c.l.b16 %v4625
    %v4949 = vunpack.c.h.b16 %v4625
    %v4950 = vunpack.c.l.b16 %v4626
    %v4951 = vunpack.c.h.b16 %v4626
    %v4952 = vunpack.c.l.b16 %v4627
    %v4953 = vunpack.c.h.b16 %v4627
    %v4954 = vunpack.c.l.b16 %v4628
    %v4955 = vunpack.c.h.b16 %v4628
    %v4956 = vunpack.c.l.b16 %v4629
    %v4957 = vunpack.c.h.b16 %v4629
    %v4958 = vunpack.c.l.b16 %v4630
    %v4959 = vunpack.c.h.b16 %v4630
    %v4960 = vunpack.c.l.b16 %v4631
    %v4961 = vunpack.c.h.b16 %v4631
    %v4962 = vunpack.c.l.b16 %v4632
    %v4963 = vunpack.c.h.b16 %v4632
    %v4964 = vunpack.c.l.b16 %v4633
    %v4965 = vunpack.c.h.b16 %v4633
    %v4966 = vunpack.c.l.b16 %v4634
    %v4967 = vunpack.c.h.b16 %v4634
    %v4968 = vunpack.c.l.b16 %v4635
    %v4969 = vunpack.c.h.b16 %v4635
    %v4970 = vunpack.c.l.b16 %v4636
    %v4971 = vunpack.c.h.b16 %v4636
    %v4972 = vunpack.c.l.b16 %v4637
    %v4973 = vunpack.c.h.b16 %v4637
    %v4974 = vunpack.c.l.b16 %v4638
    %v4975 = vunpack.c.h.b16 %v4638
    %v4976 = vunpack.c.l.b16 %v4639
    %v4977 = vunpack.c.h.b16 %v4639
    %v4978 = vunpack.c.l.b16 %v4640
    %v4979 = vunpack.c.h.b16 %v4640
    %v4980 = vunpack.c.l.b16 %v4641
    %v4981 = vunpack.c.h.b16 %v4641
    %v4982 = vunpack.c.l.b16 %v4642
    %v4983 = vunpack.c.h.b16 %v4642
    %v4984 = vunpack.c.l.b16 %v4643
    %v4985 = vunpack.c.h.b16 %v4643
    %v4986 = vunpack.c.l.b16 %v4644
    %v4987 = vunpack.c.h.b16 %v4644
    %v4988 = vunpack.c.l.b16 %v4645
    %v4989 = vunpack.c.h.b16 %v4645
    %v4990 = vunpack.c.l.b16 %v4646
    %v4991 = vunpack.c.h.b16 %v4646
    %v4992 = vunpack.c.l.b16 %v4647
    %v4993 = vunpack.c.h.b16 %v4647
    %v4994 = vunpack.c.l.b16 %v4648
    %v4995 = vunpack.c.h.b16 %v4648
    %v4996 = vunpack.c.l.b16 %v4649
    %v4997 = vunpack.c.h.b16 %v4649
    %v4998 = vunpack.c.l.b16 %v4650
    %v4999 = vunpack.c.h.b16 %v4650
    %v5000 = vunpack.c.l.b16 %v4651
    %v5001 = vunpack.c.h.b16 %v4651
    %v5002 = vunpack.c.l.b16 %v4652
    %v5003 = vunpack.c.h.b16 %v4652
    %v5004 = vunpack.c.l.b16 %v4653
    %v5005 = vunpack.c.h.b16 %v4653
    %v5006 = vunpack.c.l.b16 %v4654
    %v5007 = vunpack.c.h.b16 %v4654
    %v5008 = vunpack.c.l.b16 %v4655
    %v5009 = vunpack.c.h.b16 %v4655
    %v5010 = vunpack.c.l.b16 %v4656
    %v5011 = vunpack.c.h.b16 %v4656
    %v5012 = vunpack.c.l.b16 %v4657
    %v5013 = vunpack.c.h.b16 %v4657
    %v5014 = vunpack.c.l.b16 %v4658
    %v5015 = vunpack.c.h.b16 %v4658
    %v5016 = vunpack.c.l.b16 %v4659
    %v5017 = vunpack.c.h.b16 %v4659
    %v5018 = vunpack.c.l.b16 %v4660
    %v5019 = vunpack.c.h.b16 %v4660
    %v5020 = vunpack.c.l.b16 %v4661
    %v5021 = vunpack.c.h.b16 %v4661
    %v5022 = vunpack.c.l.b16 %v4662
    %v5023 = vunpack.c.h.b16 %v4662
    %v5024 = vunpack.c.l.b16 %v4663
    %v5025 = vunpack.c.h.b16 %v4663
    %v5026 = vunpack.c.l.b16 %v4664
    %v5027 = vunpack.c.h.b16 %v4664
    %v5028 = vunpack.c.l.b16 %v4665
    %v5029 = vunpack.c.h.b16 %v4665
    %v5030 = vunpack.c.l.b16 %v4666
    %v5031 = vunpack.c.h.b16 %v4666
    %v5032 = vunpack.c.l.b16 %v4667
    %v5033 = vunpack.c.h.b16 %v4667
    %v5034 = vunpack.c.l.b16 %v4668
    %v5035 = vunpack.c.h.b16 %v4668
    %v5036 = vunpack.c.l.b16 %v4669
    %v5037 = vunpack.c.h.b16 %v4669
    %v5038 = vunpack.c.l.b16 %v4670
    %v5039 = vunpack.c.h.b16 %v4670
    %v5040 = vunpack.c.l.b16 %v4671
    %v5041 = vunpack.c.h.b16 %v4671
    %v5042 = vunpack.c.l.b16 %v4672
    %v5043 = vunpack.c.h.b16 %v4672
    %v5044 = vunpack.c.l.b16 %v4673
    %v5045 = vunpack.c.h.b16 %v4673
    %v5046 = vunpack.c.l.b16 %v4674
    %v5047 = vunpack.c.h.b16 %v4674
    %v5048 = vunpack.c.l.b16 %v4675
    %v5049 = vunpack.c.h.b16 %v4675
    %v5050 = vunpack.c.l.b16 %v4676
    %v5051 = vunpack.c.h.b16 %v4676
    %v5052 = vunpack.c.l.b16 %v4677
    %v5053 = vunpack.c.h.b16 %v4677
    %v5054 = vunpack.c.l.b16 %v4678
    %v5055 = vunpack.c.h.b16 %v4678
    %v5056 = vunpack.c.l.b16 %v4679
    %v5057 = vunpack.c.h.b16 %v4679
    %v5058 = vunpack.c.l.b16 %v4680
    %v5059 = vunpack.c.h.b16 %v4680
    %v5060 = vunpack.c.l.b16 %v4681
    %v5061 = vunpack.c.h.b16 %v4681
    %v5062 = vunpack.c.l.b16 %v4682
    %v5063 = vunpack.c.h.b16 %v4682
    %v5064 = vunpack.c.l.b16 %v4683
    %v5065 = vunpack.c.h.b16 %v4683
    %v5066 = vunpack.c.l.b16 %v4684
    %v5067 = vunpack.c.h.b16 %v4684
    %v5068 = vunpack.c.l.b16 %v4685
    %v5069 = vunpack.c.h.b16 %v4685
    %v5070 = vunpack.c.l.b16 %v4686
    %v5071 = vunpack.c.h.b16 %v4686
    %v5072 = vunpack.c.l.b16 %v4687
    %v5073 = vunpack.c.h.b16 %v4687
    %v5074 = vunpack.c.l.b16 %v4688
    %v5075 = vunpack.c.h.b16 %v4688
    %v5076 = vunpack.c.l.b16 %v4689
    %v5077 = vunpack.c.h.b16 %v4689
    %v5078 = vunpack.c.l.b16 %v4690
    %v5079 = vunpack.c.h.b16 %v4690
    %v5080 = vunpack.c.l.b16 %v4691
    %v5081 = vunpack.c.h.b16 %v4691
    %v5082 = vunpack.c.l.b16 %v4692
    %v5083 = vunpack.c.h.b16 %v4692
    %v5084 = vunpack.c.l.b16 %v4693
    %v5085 = vunpack.c.h.b16 %v4693
    %v5086 = vunpack.c.l.b16 %v4694
    %v5087 = vunpack.c.h.b16 %v4694
    %v5088 = vunpack.c.l.b16 %v4695
    %v5089 = vunpack.c.h.b16 %v4695
    %v5090 = vunpack.c.l.b16 %v4696
    %v5091 = vunpack.c.h.b16 %v4696
    %v5092 = vunpack.c.l.b16 %v4697
    %v5093 = vunpack.c.h.b16 %v4697
    %v5094 = vunpack.c.l.b16 %v4698
    %v5095 = vunpack.c.h.b16 %v4698
    %v5096 = vunpack.c.l.b16 %v4699
    %v5097 = vunpack.c.h.b16 %v4699
    %v5098 = vunpack.c.l.b16 %v4700
    %v5099 = vunpack.c.h.b16 %v4700
    %v5100 = vunpack.c.l.b16 %v4701
    %v5101 = vunpack.c.h.b16 %v4701
    %v5102 = vunpack.c.l.b16 %v4702
    %v5103 = vunpack.c.h.b16 %v4702
    %v5104 = vunpack.c.l.b16 %v4703
    %v5105 = vunpack.c.h.b16 %v4703
    %v5106 = vunpack.c.l.b16 %v4704
    %v5107 = vunpack.c.h.b16 %v4704
    %v5108 = vunpack.c.l.b16 %v4705
    %v5109 = vunpack.c.h.b16 %v4705
    %v5110 = vunpack.c.l.b16 %v4706
    %v5111 = vunpack.c.h.b16 %v4706
    %v5112 = vunpack.c.l.b16 %v4707
    %v5113 = vunpack.c.h.b16 %v4707
    %v5114 = vpack.c.b16 %v4862, %v4858
    %v5115 = vpack.c.b16 %v4863, %v4859
    %v5116 = vpack.c.b16 %v4864, %v4860
    %v5117 = vpack.c.b16 %v4865, %v4861
    %v5118 = vpack.c.b16 %v4870, %v4866
    %v5119 = vpack.c.b16 %v4871, %v4867
    %v5120 = vpack.c.b16 %v4872, %v4868
    %v5121 = vpack.c.b16 %v4873, %v4869
    %v5122 = vpack.c.b16 %v4878, %v4874
    %v5123 = vpack.c.b16 %v4879, %v4875
    %v5124 = vpack.c.b16 %v4880, %v4876
    %v5125 = vpack.c.b16 %v4881, %v4877
    %v5126 = vpack.c.b16 %v4886, %v4882
    %v5127 = vpack.c.b16 %v4887, %v4883
    %v5128 = vpack.c.b16 %v4888, %v4884
    %v5129 = vpack.c.b16 %v4889, %v4885
    %v5130 = vpack.c.b16 %v4894, %v4890
    %v5131 = vpack.c.b16 %v4895, %v4891
    %v5132 = vpack.c.b16 %v4896, %v4892
    %v5133 = vpack.c.b16 %v4897, %v4893
    %v5134 = vpack.c.b16 %v4902, %v4898
    %v5135 = vpack.c.b16 %v4903, %v4899
    %v5136 = vpack.c.b16 %v4904, %v4900
    %v5137 = vpack.c.b16 %v4905, %v4901
    %v5138 = vpack.c.b16 %v4910, %v4906
    %v5139 = vpack.c.b16 %v4911, %v4907
    %v5140 = vpack.c.b16 %v4912, %v4908
    %v5141 = vpack.c.b16 %v4913, %v4909
    %v5142 = vpack.c.b16 %v4918, %v4914
    %v5143 = vpack.c.b16 %v4919, %v4915
    %v5144 = vpack.c.b16 %v4920, %v4916
    %v5145 = vpack.c.b16 %v4921, %v4917
    %v5146 = vpack.c.b16 %v4926, %v4922
    %v5147 = vpack.c.b16 %v4927, %v4923
    %v5148 = vpack.c.b16 %v4928, %v4924
    %v5149 = vpack.c.b16 %v4929, %v4925
    %v5150 = vpack.c.b16 %v4934, %v4930
    %v5151 = vpack.c.b16 %v4935, %v4931
    %v5152 = vpack.c.b16 %v4936, %v4932
    %v5153 = vpack.c.b16 %v4937, %v4933
    %v5154 = vpack.c.b16 %v4942, %v4938
    %v5155 = vpack.c.b16 %v4943, %v4939
    %v5156 = vpack.c.b16 %v4944, %v4940
    %v5157 = vpack.c.b16 %v4945, %v4941
    %v5158 = vpack.c.b16 %v4950, %v4946
    %v5159 = vpack.c.b16 %v4951, %v4947
    %v5160 = vpack.c.b16 %v4952, %v4948
    %v5161 = vpack.c.b16 %v4953, %v4949
    %v5162 = vpack.c.b16 %v4958, %v4954
    %v5163 = vpack.c.b16 %v4959, %v4955
    %v5164 = vpack.c.b16 %v4960, %v4956
    %v5165 = vpack.c.b16 %v4961, %v4957
    %v5166 = vpack.c.b16 %v4966, %v4962
    %v5167 = vpack.c.b16 %v4967, %v4963
    %v5168 = vpack.c.b16 %v4968, %v4964
    %v5169 = vpack.c.b16 %v4969, %v4965
    %v5170 = vpack.c.b16 %v4974, %v4970
    %v5171 = vpack.c.b16 %v4975, %v4971
    %v5172 = vpack.c.b16 %v4976, %v4972
    %v5173 = vpack.c.b16 %v4977, %v4973
    %v5174 = vpack.c.b16 %v4982, %v4978
    %v5175 = vpack.c.b16 %v4983, %v4979
    %v5176 = vpack.c.b16 %v4984, %v4980
    %v5177 = vpack.c.b16 %v4985, %v4981
    %v5178 = vpack.c.b16 %v4990, %v4986
    %v5179 = vpack.c.b16 %v4991, %v4987
    %v5180 = vpack.c.b16 %v4992, %v4988
    %v5181 = vpack.c.b16 %v4993, %v4989
    %v5182 = vpack.c.b16 %v4998, %v4994
    %v5183 = vpack.c.b16 %v4999, %v4995
    %v5184 = vpack.c.b16 %v5000, %v4996
    %v5185 = vpack.c.b16 %v5001, %v4997
    %v5186 = vpack.c.b16 %v5006, %v5002
    %v5187 = vpack.c.b16 %v5007, %v5003
    %v5188 = vpack.c.b16 %v5008, %v5004
    %v5189 = vpack.c.b16 %v5009, %v5005
    %v5190 = vpack.c.b16 %v5014, %v5010
    %v5191 = vpack.c.b16 %v5015, %v5011
    %v5192 = vpack.c.b16 %v5016, %v5012
    %v5193 = vpack.c.b16 %v5017, %v5013
    %v5194 = vpack.c.b16 %v5022, %v5018
    %v5195 = vpack.c.b16 %v5023, %v5019
    %v5196 = vpack.c.b16 %v5024, %v5020
    %v5197 = vpack.c.b16 %v5025, %v5021
    %v5198 = vpack.c.b16 %v5030, %v5026
    %v5199 = vpack.c.b16 %v5031, %v5027
    %v5200 = vpack.c.b16 %v5032, %v5028
    %v5201 = vpack.c.b16 %v5033, %v5029
    %v5202 = vpack.c.b16 %v5038, %v5034
    %v5203 = vpack.c.b16 %v5039, %v5035
    %v5204 = vpack.c.b16 %v5040, %v5036
    %v5205 = vpack.c.b16 %v5041, %v5037
    %v5206 = vpack.c.b16 %v5046, %v5042
    %v5207 = vpack.c.b16 %v5047, %v5043
    %v5208 = vpack.c.b16 %v5048, %v5044
    %v5209 = vpack.c.b16 %v5049, %v5045
    %v5210 = vpack.c.b16 %v5054, %v5050
    %v5211 = vpack.c.b16 %v5055, %v5051
    %v5212 = vpack.c.b16 %v5056, %v5052
    %v5213 = vpack.c.b16 %v5057, %v5053
    %v5214 = vpack.c.b16 %v5062, %v5058
    %v5215 = vpack.c.b16 %v5063, %v5059
    %v5216 = vpack.c.b16 %v5064, %v5060
    %v5217 = vpack.c.b16 %v5065, %v5061
    %v5218 = vpack.c.b16 %v5070, %v5066
    %v5219 = vpack.c.b16 %v5071, %v5067
    %v5220 = vpack.c.b16 %v5072, %v5068
    %v5221 = vpack.c.b16 %v5073, %v5069
    %v5222 = vpack.c.b16 %v5078, %v5074
    %v5223 = vpack.c.b16 %v5079, %v5075
    %v5224 = vpack.c.b16 %v5080, %v5076
    %v5225 = vpack.c.b16 %v5081, %v5077
    %v5226 = vpack.c.b16 %v5086, %v5082
    %v5227 = vpack.c.b16 %v5087, %v5083
    %v5228 = vpack.c.b16 %v5088, %v5084
    %v5229 = vpack.c.b16 %v5089, %v5085
    %v5230 = vpack.c.b16 %v5094, %v5090
    %v5231 = vpack.c.b16 %v5095, %v5091
    %v5232 = vpack.c.b16 %v5096, %v5092
    %v5233 = vpack.c.b16 %v5097, %v5093
    %v5234 = vpack.c.b16 %v5102, %v5098
    %v5235 = vpack.c.b16 %v5103, %v5099
    %v5236 = vpack.c.b16 %v5104, %v5100
    %v5237 = vpack.c.b16 %v5105, %v5101
    %v5238 = vpack.c.b16 %v5110, %v5106
    %v5239 = vpack.c.b16 %v5111, %v5107
    %v5240 = vpack.c.b16 %v5112, %v5108
    %v5241 = vpack.c.b16 %v5113, %v5109
    %5370 = vmatprep.subr.bf16.mxu0 %v5143
    %5371 = vmatpush1.bf16.msra.mxu0 %v5142
    %5372 = vmatprep.subr.bf16.mxu0 %v5139
    %5373 = vmatpush1.bf16.msra.mxu0 %v5138
    %5374 = vmatprep.subr.bf16.mxu0 %v5135
    %5375 = vmatpush1.bf16.msra.mxu0 %v5134
    %5376 = vmatprep.subr.bf16.mxu0 %v5131
    %5377 = vmatpush1.bf16.msra.mxu0 %v5130
    %5378 = vmatprep.subr.bf16.mxu0 %v5127
    %5379 = vmatpush1.bf16.msra.mxu0 %v5126
    %5380 = vmatprep.subr.bf16.mxu0 %v5123
    %5381 = vmatpush1.bf16.msra.mxu0 %v5122
    %5382 = vmatprep.subr.bf16.mxu0 %v5119
    %5383 = vmatpush1.bf16.msra.mxu0 %v5118
    %5384 = vmatprep.subr.bf16.mxu0 %v5115
    %5385 = vmatpush1.bf16.msra.mxu0 %v5114
    %5386 = vmatprep.subr.bf16.mxu0 %v5175
    %5387 = vmatpush2.bf16.msra.mxu0 %v5174
    %5388 = vmatprep.subr.bf16.mxu0 %v5171
    %5389 = vmatpush2.bf16.msra.mxu0 %v5170
    %5390 = vmatprep.subr.bf16.mxu0 %v5167
    %5391 = vmatpush2.bf16.msra.mxu0 %v5166
    %5392 = vmatprep.subr.bf16.mxu0 %v5163
    %5393 = vmatpush2.bf16.msra.mxu0 %v5162
    %5394 = vmatprep.subr.bf16.mxu0 %v5159
    %5395 = vmatpush2.bf16.msra.mxu0 %v5158
    %5396 = vmatprep.subr.bf16.mxu0 %v5155
    %5397 = vmatpush2.bf16.msra.mxu0 %v5154
    %5398 = vmatprep.subr.bf16.mxu0 %v5151
    %5399 = vmatpush2.bf16.msra.mxu0 %v5150
    %5400 = vmatprep.subr.bf16.mxu0 %v5147
    %5401 = vmatpush2.bf16.msra.mxu0 %v5146
    %5402 = vmatprep.mubr.bf16.mxu0 %v4453
    %5403 = vmatmul.mubr.bf16.gmra.mxu0 %v4452
    %v5404 = vpop.f32.mrf.mxu0
    %v5405 = vadd.f32 %v4713, %v5404
    %v5406 = vpop.f32.mrf.mxu0
    %v5407 = vadd.f32 %v4717, %v5406
    %v5408 = vpop.f32.mrf.mxu0
    %v5409 = vadd.f32 %v4713, %v5408
    %v5410 = vpop.f32.mrf.mxu0
    %v5411 = vadd.f32 %v4717, %v5410
    %5412 = vmatprep.mubr.bf16.mxu0 %v4457
    %5413 = vmatmul.mubr.bf16.gmra.mxu0 %v4456
    %v5414 = vpop.f32.mrf.mxu0
    %v5415 = vadd.f32 %v4713, %v5414
    %v5416 = vpop.f32.mrf.mxu0
    %v5417 = vadd.f32 %v4717, %v5416
    %v5418 = vpop.f32.mrf.mxu0
    %v5419 = vadd.f32 %v4713, %v5418
    %v5420 = vpop.f32.mrf.mxu0
    %v5421 = vadd.f32 %v4717, %v5420
    %5422 = vmatprep.mubr.bf16.mxu0 %v4461
    %5423 = vmatmul.mubr.bf16.gmra.mxu0 %v4460
    %v5424 = vpop.f32.mrf.mxu0
    %v5425 = vadd.f32 %v4713, %v5424
    %v5426 = vpop.f32.mrf.mxu0
    %v5427 = vadd.f32 %v4717, %v5426
    %v5428 = vpop.f32.mrf.mxu0
    %v5429 = vadd.f32 %v4713, %v5428
    %v5430 = vpop.f32.mrf.mxu0
    %v5431 = vadd.f32 %v4717, %v5430
    %5432 = vmatprep.mubr.bf16.mxu0 %v4465
    %5433 = vmatmul.mubr.bf16.gmra.mxu0 %v4464
    %v5434 = vpop.f32.mrf.mxu0
    %v5435 = vadd.f32 %v4713, %v5434
    %v5436 = vpop.f32.mrf.mxu0
    %v5437 = vadd.f32 %v4717, %v5436
    %v5438 = vpop.f32.mrf.mxu0
    %v5439 = vadd.f32 %v4713, %v5438
    %v5440 = vpop.f32.mrf.mxu0
    %v5441 = vadd.f32 %v4717, %v5440
    %5442 = vmatprep.mubr.bf16.mxu0 %v4469
    %5443 = vmatmul.mubr.bf16.gmra.mxu0 %v4468
    %v5444 = vpop.f32.mrf.mxu0
    %v5445 = vadd.f32 %v4713, %v5444
    %v5446 = vpop.f32.mrf.mxu0
    %v5447 = vadd.f32 %v4717, %v5446
    %v5448 = vpop.f32.mrf.mxu0
    %v5449 = vadd.f32 %v4713, %v5448
    %v5450 = vpop.f32.mrf.mxu0
    %v5451 = vadd.f32 %v4717, %v5450
    %5452 = vmatprep.mubr.bf16.mxu0 %v4473
    %5453 = vmatmul.mubr.bf16.gmra.mxu0 %v4472
    %v5454 = vpop.f32.mrf.mxu0
    %v5455 = vadd.f32 %v4713, %v5454
    %v5456 = vpop.f32.mrf.mxu0
    %v5457 = vadd.f32 %v4717, %v5456
    %v5458 = vpop.f32.mrf.mxu0
    %v5459 = vadd.f32 %v4713, %v5458
    %v5460 = vpop.f32.mrf.mxu0
    %v5461 = vadd.f32 %v4717, %v5460
    %5462 = vmatprep.mubr.bf16.mxu0 %v4477
    %5463 = vmatmul.mubr.bf16.gmra.mxu0 %v4476
    %v5464 = vpop.f32.mrf.mxu0
    %v5465 = vadd.f32 %v4713, %v5464
    %v5466 = vpop.f32.mrf.mxu0
    %v5467 = vadd.f32 %v4717, %v5466
    %v5468 = vpop.f32.mrf.mxu0
    %v5469 = vadd.f32 %v4713, %v5468
    %v5470 = vpop.f32.mrf.mxu0
    %v5471 = vadd.f32 %v4717, %v5470
    %5472 = vmatprep.mubr.bf16.mxu0 %v4481
    %5473 = vmatmul.mubr.bf16.gmra.mxu0 %v4480
    %v5474 = vpop.f32.mrf.mxu0
    %v5475 = vadd.f32 %v4713, %v5474
    %v5476 = vpop.f32.mrf.mxu0
    %v5477 = vadd.f32 %v4717, %v5476
    %v5478 = vpop.f32.mrf.mxu0
    %v5479 = vadd.f32 %v4713, %v5478
    %v5480 = vpop.f32.mrf.mxu0
    %v5481 = vadd.f32 %v4717, %v5480
    %5482 = vmatprep.mubr.bf16.mxu0 %v4485
    %5483 = vmatmul.mubr.bf16.gmra.mxu0 %v4484
    %v5484 = vpop.f32.mrf.mxu0
    %v5485 = vadd.f32 %v4713, %v5484
    %v5486 = vpop.f32.mrf.mxu0
    %v5487 = vadd.f32 %v4717, %v5486
    %v5488 = vpop.f32.mrf.mxu0
    %v5489 = vadd.f32 %v4713, %v5488
    %v5490 = vpop.f32.mrf.mxu0
    %v5491 = vadd.f32 %v4717, %v5490
    %5492 = vmatprep.mubr.bf16.mxu0 %v4489
    %5493 = vmatmul.mubr.bf16.gmra.mxu0 %v4488
    %v5494 = vpop.f32.mrf.mxu0
    %v5495 = vadd.f32 %v4713, %v5494
    %v5496 = vpop.f32.mrf.mxu0
    %v5497 = vadd.f32 %v4717, %v5496
    %v5498 = vpop.f32.mrf.mxu0
    %v5499 = vadd.f32 %v4713, %v5498
    %v5500 = vpop.f32.mrf.mxu0
    %v5501 = vadd.f32 %v4717, %v5500
    %5502 = vmatprep.mubr.bf16.mxu0 %v4493
    %5503 = vmatmul.mubr.bf16.gmra.mxu0 %v4492
    %v5504 = vpop.f32.mrf.mxu0
    %v5505 = vadd.f32 %v4713, %v5504
    %v5506 = vpop.f32.mrf.mxu0
    %v5507 = vadd.f32 %v4717, %v5506
    %v5508 = vpop.f32.mrf.mxu0
    %v5509 = vadd.f32 %v4713, %v5508
    %v5510 = vpop.f32.mrf.mxu0
    %v5511 = vadd.f32 %v4717, %v5510
    %5512 = vmatprep.mubr.bf16.mxu0 %v4497
    %5513 = vmatmul.mubr.bf16.gmra.mxu0 %v4496
    %v5514 = vpop.f32.mrf.mxu0
    %v5515 = vadd.f32 %v4713, %v5514
    %v5516 = vpop.f32.mrf.mxu0
    %v5517 = vadd.f32 %v4717, %v5516
    %v5518 = vpop.f32.mrf.mxu0
    %v5519 = vadd.f32 %v4713, %v5518
    %v5520 = vpop.f32.mrf.mxu0
    %v5521 = vadd.f32 %v4717, %v5520
    %5522 = vmatprep.mubr.bf16.mxu0 %v4501
    %5523 = vmatmul.mubr.bf16.gmra.mxu0 %v4500
    %v5524 = vpop.f32.mrf.mxu0
    %v5525 = vadd.f32 %v4713, %v5524
    %v5526 = vpop.f32.mrf.mxu0
    %v5527 = vadd.f32 %v4717, %v5526
    %v5528 = vpop.f32.mrf.mxu0
    %v5529 = vadd.f32 %v4713, %v5528
    %v5530 = vpop.f32.mrf.mxu0
    %v5531 = vadd.f32 %v4717, %v5530
    %5532 = vmatprep.mubr.bf16.mxu0 %v4505
    %5533 = vmatmul.mubr.bf16.gmra.mxu0 %v4504
    %v5534 = vpop.f32.mrf.mxu0
    %v5535 = vadd.f32 %v4713, %v5534
    %v5536 = vpop.f32.mrf.mxu0
    %v5537 = vadd.f32 %v4717, %v5536
    %v5538 = vpop.f32.mrf.mxu0
    %v5539 = vadd.f32 %v4713, %v5538
    %v5540 = vpop.f32.mrf.mxu0
    %v5541 = vadd.f32 %v4717, %v5540
    %5542 = vmatprep.mubr.bf16.mxu0 %v4509
    %5543 = vmatmul.mubr.bf16.gmra.mxu0 %v4508
    %v5544 = vpop.f32.mrf.mxu0
    %v5545 = vadd.f32 %v4713, %v5544
    %v5546 = vpop.f32.mrf.mxu0
    %v5547 = vadd.f32 %v4717, %v5546
    %v5548 = vpop.f32.mrf.mxu0
    %v5549 = vadd.f32 %v4713, %v5548
    %v5550 = vpop.f32.mrf.mxu0
    %v5551 = vadd.f32 %v4717, %v5550
    %5552 = vmatprep.mubr.bf16.mxu0 %v4513
    %5553 = vmatmul.mubr.bf16.gmra.mxu0 %v4512
    %v5554 = vpop.f32.mrf.mxu0
    %v5555 = vadd.f32 %v4713, %v5554
    %v5556 = vpop.f32.mrf.mxu0
    %v5557 = vadd.f32 %v4717, %v5556
    %v5558 = vpop.f32.mrf.mxu0
    %v5559 = vadd.f32 %v4713, %v5558
    %v5560 = vpop.f32.mrf.mxu0
    %v5561 = vadd.f32 %v4717, %v5560
    %5562 = vmatprep.mubr.bf16.mxu0 %v4517
    %5563 = vmatmul.mubr.bf16.gmra.mxu0 %v4516
    %v5564 = vpop.f32.mrf.mxu0
    %v5565 = vadd.f32 %v4713, %v5564
    %v5566 = vpop.f32.mrf.mxu0
    %v5567 = vadd.f32 %v4717, %v5566
    %v5568 = vpop.f32.mrf.mxu0
    %v5569 = vadd.f32 %v4713, %v5568
    %v5570 = vpop.f32.mrf.mxu0
    %v5571 = vadd.f32 %v4717, %v5570
    %5572 = vmatprep.mubr.bf16.mxu0 %v4521
    %5573 = vmatmul.mubr.bf16.gmra.mxu0 %v4520
    %v5574 = vpop.f32.mrf.mxu0
    %v5575 = vadd.f32 %v4713, %v5574
    %v5576 = vpop.f32.mrf.mxu0
    %v5577 = vadd.f32 %v4717, %v5576
    %v5578 = vpop.f32.mrf.mxu0
    %v5579 = vadd.f32 %v4713, %v5578
    %v5580 = vpop.f32.mrf.mxu0
    %v5581 = vadd.f32 %v4717, %v5580
    %5582 = vmatprep.mubr.bf16.mxu0 %v4525
    %5583 = vmatmul.mubr.bf16.gmra.mxu0 %v4524
    %v5584 = vpop.f32.mrf.mxu0
    %v5585 = vadd.f32 %v4713, %v5584
    %v5586 = vpop.f32.mrf.mxu0
    %v5587 = vadd.f32 %v4717, %v5586
    %v5588 = vpop.f32.mrf.mxu0
    %v5589 = vadd.f32 %v4713, %v5588
    %v5590 = vpop.f32.mrf.mxu0
    %v5591 = vadd.f32 %v4717, %v5590
    %5592 = vmatprep.mubr.bf16.mxu0 %v4529
    %5593 = vmatmul.mubr.bf16.gmra.mxu0 %v4528
    %v5594 = vpop.f32.mrf.mxu0
    %v5595 = vadd.f32 %v4713, %v5594
    %v5596 = vpop.f32.mrf.mxu0
    %v5597 = vadd.f32 %v4717, %v5596
    %v5598 = vpop.f32.mrf.mxu0
    %v5599 = vadd.f32 %v4713, %v5598
    %v5600 = vpop.f32.mrf.mxu0
    %v5601 = vadd.f32 %v4717, %v5600
    %5602 = vmatprep.mubr.bf16.mxu0 %v4533
    %5603 = vmatmul.mubr.bf16.gmra.mxu0 %v4532
    %v5604 = vpop.f32.mrf.mxu0
    %v5605 = vadd.f32 %v4713, %v5604
    %v5606 = vpop.f32.mrf.mxu0
    %v5607 = vadd.f32 %v4717, %v5606
    %v5608 = vpop.f32.mrf.mxu0
    %v5609 = vadd.f32 %v4713, %v5608
    %v5610 = vpop.f32.mrf.mxu0
    %v5611 = vadd.f32 %v4717, %v5610
    %5612 = vmatprep.mubr.bf16.mxu0 %v4537
    %5613 = vmatmul.mubr.bf16.gmra.mxu0 %v4536
    %v5614 = vpop.f32.mrf.mxu0
    %v5615 = vadd.f32 %v4713, %v5614
    %v5616 = vpop.f32.mrf.mxu0
    %v5617 = vadd.f32 %v4717, %v5616
    %v5618 = vpop.f32.mrf.mxu0
    %v5619 = vadd.f32 %v4713, %v5618
    %v5620 = vpop.f32.mrf.mxu0
    %v5621 = vadd.f32 %v4717, %v5620
    %5622 = vmatprep.mubr.bf16.mxu0 %v4541
    %5623 = vmatmul.mubr.bf16.gmra.mxu0 %v4540
    %v5624 = vpop.f32.mrf.mxu0
    %v5625 = vadd.f32 %v4713, %v5624
    %v5626 = vpop.f32.mrf.mxu0
    %v5627 = vadd.f32 %v4717, %v5626
    %v5628 = vpop.f32.mrf.mxu0
    %v5629 = vadd.f32 %v4713, %v5628
    %v5630 = vpop.f32.mrf.mxu0
    %v5631 = vadd.f32 %v4717, %v5630
    %5632 = vmatprep.mubr.bf16.mxu0 %v4545
    %5633 = vmatmul.mubr.bf16.gmra.mxu0 %v4544
    %v5634 = vpop.f32.mrf.mxu0
    %v5635 = vadd.f32 %v4713, %v5634
    %v5636 = vpop.f32.mrf.mxu0
    %v5637 = vadd.f32 %v4717, %v5636
    %v5638 = vpop.f32.mrf.mxu0
    %v5639 = vadd.f32 %v4713, %v5638
    %v5640 = vpop.f32.mrf.mxu0
    %v5641 = vadd.f32 %v4717, %v5640
    %5642 = vmatprep.mubr.bf16.mxu0 %v4549
    %5643 = vmatmul.mubr.bf16.gmra.mxu0 %v4548
    %v5644 = vpop.f32.mrf.mxu0
    %v5645 = vadd.f32 %v4713, %v5644
    %v5646 = vpop.f32.mrf.mxu0
    %v5647 = vadd.f32 %v4717, %v5646
    %v5648 = vpop.f32.mrf.mxu0
    %v5649 = vadd.f32 %v4713, %v5648
    %v5650 = vpop.f32.mrf.mxu0
    %v5651 = vadd.f32 %v4717, %v5650
    %5652 = vmatprep.mubr.bf16.mxu0 %v4553
    %5653 = vmatmul.mubr.bf16.gmra.mxu0 %v4552
    %v5654 = vpop.f32.mrf.mxu0
    %v5655 = vadd.f32 %v4713, %v5654
    %v5656 = vpop.f32.mrf.mxu0
    %v5657 = vadd.f32 %v4717, %v5656
    %v5658 = vpop.f32.mrf.mxu0
    %v5659 = vadd.f32 %v4713, %v5658
    %v5660 = vpop.f32.mrf.mxu0
    %v5661 = vadd.f32 %v4717, %v5660
    %5662 = vmatprep.mubr.bf16.mxu0 %v4557
    %5663 = vmatmul.mubr.bf16.gmra.mxu0 %v4556
    %v5664 = vpop.f32.mrf.mxu0
    %v5665 = vadd.f32 %v4713, %v5664
    %v5666 = vpop.f32.mrf.mxu0
    %v5667 = vadd.f32 %v4717, %v5666
    %v5668 = vpop.f32.mrf.mxu0
    %v5669 = vadd.f32 %v4713, %v5668
    %v5670 = vpop.f32.mrf.mxu0
    %v5671 = vadd.f32 %v4717, %v5670
    %5672 = vmatprep.mubr.bf16.mxu0 %v4561
    %5673 = vmatmul.mubr.bf16.gmra.mxu0 %v4560
    %v5674 = vpop.f32.mrf.mxu0
    %v5675 = vadd.f32 %v4713, %v5674
    %v5676 = vpop.f32.mrf.mxu0
    %v5677 = vadd.f32 %v4717, %v5676
    %v5678 = vpop.f32.mrf.mxu0
    %v5679 = vadd.f32 %v4713, %v5678
    %v5680 = vpop.f32.mrf.mxu0
    %v5681 = vadd.f32 %v4717, %v5680
    %5682 = vmatprep.mubr.bf16.mxu0 %v4565
    %5683 = vmatmul.mubr.bf16.gmra.mxu0 %v4564
    %v5684 = vpop.f32.mrf.mxu0
    %v5685 = vadd.f32 %v4713, %v5684
    %v5686 = vpop.f32.mrf.mxu0
    %v5687 = vadd.f32 %v4717, %v5686
    %v5688 = vpop.f32.mrf.mxu0
    %v5689 = vadd.f32 %v4713, %v5688
    %v5690 = vpop.f32.mrf.mxu0
    %v5691 = vadd.f32 %v4717, %v5690
    %5692 = vmatprep.mubr.bf16.mxu0 %v4569
    %5693 = vmatmul.mubr.bf16.gmra.mxu0 %v4568
    %v5694 = vpop.f32.mrf.mxu0
    %v5695 = vadd.f32 %v4713, %v5694
    %v5696 = vpop.f32.mrf.mxu0
    %v5697 = vadd.f32 %v4717, %v5696
    %v5698 = vpop.f32.mrf.mxu0
    %v5699 = vadd.f32 %v4713, %v5698
    %v5700 = vpop.f32.mrf.mxu0
    %v5701 = vadd.f32 %v4717, %v5700
    %5702 = vmatprep.mubr.bf16.mxu0 %v4573
    %5703 = vmatmul.mubr.bf16.gmra.mxu0 %v4572
    %v5704 = vpop.f32.mrf.mxu0
    %v5705 = vadd.f32 %v4713, %v5704
    %v5706 = vpop.f32.mrf.mxu0
    %v5707 = vadd.f32 %v4717, %v5706
    %v5708 = vpop.f32.mrf.mxu0
    %v5709 = vadd.f32 %v4713, %v5708
    %v5710 = vpop.f32.mrf.mxu0
    %v5711 = vadd.f32 %v4717, %v5710
    %5712 = vmatprep.mubr.bf16.mxu0 %v4577
    %5713 = vmatmul.mubr.bf16.gmra.mxu0 %v4576
    %v5714 = vpop.f32.mrf.mxu0
    %v5715 = vadd.f32 %v4713, %v5714
    %v5716 = vpop.f32.mrf.mxu0
    %v5717 = vadd.f32 %v4717, %v5716
    %v5718 = vpop.f32.mrf.mxu0
    %v5719 = vadd.f32 %v4713, %v5718
    %v5720 = vpop.f32.mrf.mxu0
    %v5721 = vadd.f32 %v4717, %v5720
    %5722 = vdwg.mxu0
    %5723 = vmatprep.subr.bf16.mxu0 %v5207
    %5724 = vmatpush1.bf16.msra.mxu0 %v5206
    %5725 = vmatprep.subr.bf16.mxu0 %v5203
    %5726 = vmatpush1.bf16.msra.mxu0 %v5202
    %5727 = vmatprep.subr.bf16.mxu0 %v5199
    %5728 = vmatpush1.bf16.msra.mxu0 %v5198
    %5729 = vmatprep.subr.bf16.mxu0 %v5195
    %5730 = vmatpush1.bf16.msra.mxu0 %v5194
    %5731 = vmatprep.subr.bf16.mxu0 %v5191
    %5732 = vmatpush1.bf16.msra.mxu0 %v5190
    %5733 = vmatprep.subr.bf16.mxu0 %v5187
    %5734 = vmatpush1.bf16.msra.mxu0 %v5186
    %5735 = vmatprep.subr.bf16.mxu0 %v5183
    %5736 = vmatpush1.bf16.msra.mxu0 %v5182
    %5737 = vmatprep.subr.bf16.mxu0 %v5179
    %5738 = vmatpush1.bf16.msra.mxu0 %v5178
    %5739 = vmatprep.subr.bf16.mxu0 %v5239
    %5740 = vmatpush2.bf16.msra.mxu0 %v5238
    %5741 = vmatprep.subr.bf16.mxu0 %v5235
    %5742 = vmatpush2.bf16.msra.mxu0 %v5234
    %5743 = vmatprep.subr.bf16.mxu0 %v5231
    %5744 = vmatpush2.bf16.msra.mxu0 %v5230
    %5745 = vmatprep.subr.bf16.mxu0 %v5227
    %5746 = vmatpush2.bf16.msra.mxu0 %v5226
    %5747 = vmatprep.subr.bf16.mxu0 %v5223
    %5748 = vmatpush2.bf16.msra.mxu0 %v5222
    %5749 = vmatprep.subr.bf16.mxu0 %v5219
    %5750 = vmatpush2.bf16.msra.mxu0 %v5218
    %5751 = vmatprep.subr.bf16.mxu0 %v5215
    %5752 = vmatpush2.bf16.msra.mxu0 %v5214
    %5753 = vmatprep.subr.bf16.mxu0 %v5211
    %5754 = vmatpush2.bf16.msra.mxu0 %v5210
    %5755 = vmatprep.mubr.bf16.mxu0 %v4455
    %5756 = vmatmul.mubr.bf16.gmra.mxu0 %v4454
    %v5757 = vpop.f32.mrf.mxu0
    %v5758 = vadd.f32 %v5405, %v5757
    %v5759 = vpop.f32.mrf.mxu0
    %v5760 = vadd.f32 %v5407, %v5759
    %v5761 = vpop.f32.mrf.mxu0
    %v5762 = vadd.f32 %v5409, %v5761
    %v5763 = vpop.f32.mrf.mxu0
    %v5764 = vadd.f32 %v5411, %v5763
    %5765 = vmatprep.mubr.bf16.mxu0 %v4459
    %5766 = vmatmul.mubr.bf16.gmra.mxu0 %v4458
    %v5767 = vpop.f32.mrf.mxu0
    %v5768 = vadd.f32 %v5415, %v5767
    %v5769 = vpop.f32.mrf.mxu0
    %v5770 = vadd.f32 %v5417, %v5769
    %v5771 = vpop.f32.mrf.mxu0
    %v5772 = vadd.f32 %v5419, %v5771
    %v5773 = vpop.f32.mrf.mxu0
    %v5774 = vadd.f32 %v5421, %v5773
    %5775 = vmatprep.mubr.bf16.mxu0 %v4463
    %5776 = vmatmul.mubr.bf16.gmra.mxu0 %v4462
    %v5777 = vpop.f32.mrf.mxu0
    %v5778 = vadd.f32 %v5425, %v5777
    %v5779 = vpop.f32.mrf.mxu0
    %v5780 = vadd.f32 %v5427, %v5779
    %v5781 = vpop.f32.mrf.mxu0
    %v5782 = vadd.f32 %v5429, %v5781
    %v5783 = vpop.f32.mrf.mxu0
    %v5784 = vadd.f32 %v5431, %v5783
    %5785 = vmatprep.mubr.bf16.mxu0 %v4467
    %5786 = vmatmul.mubr.bf16.gmra.mxu0 %v4466
    %v5787 = vpop.f32.mrf.mxu0
    %v5788 = vadd.f32 %v5435, %v5787
    %v5789 = vpop.f32.mrf.mxu0
    %v5790 = vadd.f32 %v5437, %v5789
    %v5791 = vpop.f32.mrf.mxu0
    %v5792 = vadd.f32 %v5439, %v5791
    %v5793 = vpop.f32.mrf.mxu0
    %v5794 = vadd.f32 %v5441, %v5793
    %5795 = vmatprep.mubr.bf16.mxu0 %v4471
    %5796 = vmatmul.mubr.bf16.gmra.mxu0 %v4470
    %v5797 = vpop.f32.mrf.mxu0
    %v5798 = vadd.f32 %v5445, %v5797
    %v5799 = vpop.f32.mrf.mxu0
    %v5800 = vadd.f32 %v5447, %v5799
    %v5801 = vpop.f32.mrf.mxu0
    %v5802 = vadd.f32 %v5449, %v5801
    %v5803 = vpop.f32.mrf.mxu0
    %v5804 = vadd.f32 %v5451, %v5803
    %5805 = vmatprep.mubr.bf16.mxu0 %v4475
    %5806 = vmatmul.mubr.bf16.gmra.mxu0 %v4474
    %v5807 = vpop.f32.mrf.mxu0
    %v5808 = vadd.f32 %v5455, %v5807
    %v5809 = vpop.f32.mrf.mxu0
    %v5810 = vadd.f32 %v5457, %v5809
    %v5811 = vpop.f32.mrf.mxu0
    %v5812 = vadd.f32 %v5459, %v5811
    %v5813 = vpop.f32.mrf.mxu0
    %v5814 = vadd.f32 %v5461, %v5813
    %5815 = vmatprep.mubr.bf16.mxu0 %v4479
    %5816 = vmatmul.mubr.bf16.gmra.mxu0 %v4478
    %v5817 = vpop.f32.mrf.mxu0
    %v5818 = vadd.f32 %v5465, %v5817
    %v5819 = vpop.f32.mrf.mxu0
    %v5820 = vadd.f32 %v5467, %v5819
    %v5821 = vpop.f32.mrf.mxu0
    %v5822 = vadd.f32 %v5469, %v5821
    %v5823 = vpop.f32.mrf.mxu0
    %v5824 = vadd.f32 %v5471, %v5823
    %5825 = vmatprep.mubr.bf16.mxu0 %v4483
    %5826 = vmatmul.mubr.bf16.gmra.mxu0 %v4482
    %v5827 = vpop.f32.mrf.mxu0
    %v5828 = vadd.f32 %v5475, %v5827
    %v5829 = vpop.f32.mrf.mxu0
    %v5830 = vadd.f32 %v5477, %v5829
    %v5831 = vpop.f32.mrf.mxu0
    %v5832 = vadd.f32 %v5479, %v5831
    %v5833 = vpop.f32.mrf.mxu0
    %v5834 = vadd.f32 %v5481, %v5833
    %5835 = vmatprep.mubr.bf16.mxu0 %v4487
    %5836 = vmatmul.mubr.bf16.gmra.mxu0 %v4486
    %v5837 = vpop.f32.mrf.mxu0
    %v5838 = vadd.f32 %v5485, %v5837
    %v5839 = vpop.f32.mrf.mxu0
    %v5840 = vadd.f32 %v5487, %v5839
    %v5841 = vpop.f32.mrf.mxu0
    %v5842 = vadd.f32 %v5489, %v5841
    %v5843 = vpop.f32.mrf.mxu0
    %v5844 = vadd.f32 %v5491, %v5843
    %5845 = vmatprep.mubr.bf16.mxu0 %v4491
    %5846 = vmatmul.mubr.bf16.gmra.mxu0 %v4490
    %v5847 = vpop.f32.mrf.mxu0
    %v5848 = vadd.f32 %v5495, %v5847
    %v5849 = vpop.f32.mrf.mxu0
    %v5850 = vadd.f32 %v5497, %v5849
    %v5851 = vpop.f32.mrf.mxu0
    %v5852 = vadd.f32 %v5499, %v5851
    %v5853 = vpop.f32.mrf.mxu0
    %v5854 = vadd.f32 %v5501, %v5853
    %5855 = vmatprep.mubr.bf16.mxu0 %v4495
    %5856 = vmatmul.mubr.bf16.gmra.mxu0 %v4494
    %v5857 = vpop.f32.mrf.mxu0
    %v5858 = vadd.f32 %v5505, %v5857
    %v5859 = vpop.f32.mrf.mxu0
    %v5860 = vadd.f32 %v5507, %v5859
    %v5861 = vpop.f32.mrf.mxu0
    %v5862 = vadd.f32 %v5509, %v5861
    %v5863 = vpop.f32.mrf.mxu0
    %v5864 = vadd.f32 %v5511, %v5863
    %5865 = vmatprep.mubr.bf16.mxu0 %v4499
    %5866 = vmatmul.mubr.bf16.gmra.mxu0 %v4498
    %v5867 = vpop.f32.mrf.mxu0
    %v5868 = vadd.f32 %v5515, %v5867
    %v5869 = vpop.f32.mrf.mxu0
    %v5870 = vadd.f32 %v5517, %v5869
    %v5871 = vpop.f32.mrf.mxu0
    %v5872 = vadd.f32 %v5519, %v5871
    %v5873 = vpop.f32.mrf.mxu0
    %v5874 = vadd.f32 %v5521, %v5873
    %5875 = vmatprep.mubr.bf16.mxu0 %v4503
    %5876 = vmatmul.mubr.bf16.gmra.mxu0 %v4502
    %v5877 = vpop.f32.mrf.mxu0
    %v5878 = vadd.f32 %v5525, %v5877
    %v5879 = vpop.f32.mrf.mxu0
    %v5880 = vadd.f32 %v5527, %v5879
    %v5881 = vpop.f32.mrf.mxu0
    %v5882 = vadd.f32 %v5529, %v5881
    %v5883 = vpop.f32.mrf.mxu0
    %v5884 = vadd.f32 %v5531, %v5883
    %5885 = vmatprep.mubr.bf16.mxu0 %v4507
    %5886 = vmatmul.mubr.bf16.gmra.mxu0 %v4506
    %v5887 = vpop.f32.mrf.mxu0
    %v5888 = vadd.f32 %v5535, %v5887
    %v5889 = vpop.f32.mrf.mxu0
    %v5890 = vadd.f32 %v5537, %v5889
    %v5891 = vpop.f32.mrf.mxu0
    %v5892 = vadd.f32 %v5539, %v5891
    %v5893 = vpop.f32.mrf.mxu0
    %v5894 = vadd.f32 %v5541, %v5893
    %5895 = vmatprep.mubr.bf16.mxu0 %v4511
    %5896 = vmatmul.mubr.bf16.gmra.mxu0 %v4510
    %v5897 = vpop.f32.mrf.mxu0
    %v5898 = vadd.f32 %v5545, %v5897
    %v5899 = vpop.f32.mrf.mxu0
    %v5900 = vadd.f32 %v5547, %v5899
    %v5901 = vpop.f32.mrf.mxu0
    %v5902 = vadd.f32 %v5549, %v5901
    %v5903 = vpop.f32.mrf.mxu0
    %v5904 = vadd.f32 %v5551, %v5903
    %5905 = vmatprep.mubr.bf16.mxu0 %v4515
    %5906 = vmatmul.mubr.bf16.gmra.mxu0 %v4514
    %v5907 = vpop.f32.mrf.mxu0
    %v5908 = vadd.f32 %v5555, %v5907
    %v5909 = vpop.f32.mrf.mxu0
    %v5910 = vadd.f32 %v5557, %v5909
    %v5911 = vpop.f32.mrf.mxu0
    %v5912 = vadd.f32 %v5559, %v5911
    %v5913 = vpop.f32.mrf.mxu0
    %v5914 = vadd.f32 %v5561, %v5913
    %5915 = vmatprep.mubr.bf16.mxu0 %v4519
    %5916 = vmatmul.mubr.bf16.gmra.mxu0 %v4518
    %v5917 = vpop.f32.mrf.mxu0
    %v5918 = vadd.f32 %v5565, %v5917
    %v5919 = vpop.f32.mrf.mxu0
    %v5920 = vadd.f32 %v5567, %v5919
    %v5921 = vpop.f32.mrf.mxu0
    %v5922 = vadd.f32 %v5569, %v5921
    %v5923 = vpop.f32.mrf.mxu0
    %v5924 = vadd.f32 %v5571, %v5923
    %5925 = vmatprep.mubr.bf16.mxu0 %v4523
    %5926 = vmatmul.mubr.bf16.gmra.mxu0 %v4522
    %v5927 = vpop.f32.mrf.mxu0
    %v5928 = vadd.f32 %v5575, %v5927
    %v5929 = vpop.f32.mrf.mxu0
    %v5930 = vadd.f32 %v5577, %v5929
    %v5931 = vpop.f32.mrf.mxu0
    %v5932 = vadd.f32 %v5579, %v5931
    %v5933 = vpop.f32.mrf.mxu0
    %v5934 = vadd.f32 %v5581, %v5933
    %5935 = vmatprep.mubr.bf16.mxu0 %v4527
    %5936 = vmatmul.mubr.bf16.gmra.mxu0 %v4526
    %v5937 = vpop.f32.mrf.mxu0
    %v5938 = vadd.f32 %v5585, %v5937
    %v5939 = vpop.f32.mrf.mxu0
    %v5940 = vadd.f32 %v5587, %v5939
    %v5941 = vpop.f32.mrf.mxu0
    %v5942 = vadd.f32 %v5589, %v5941
    %v5943 = vpop.f32.mrf.mxu0
    %v5944 = vadd.f32 %v5591, %v5943
    %5945 = vmatprep.mubr.bf16.mxu0 %v4531
    %5946 = vmatmul.mubr.bf16.gmra.mxu0 %v4530
    %v5947 = vpop.f32.mrf.mxu0
    %v5948 = vadd.f32 %v5595, %v5947
    %v5949 = vpop.f32.mrf.mxu0
    %v5950 = vadd.f32 %v5597, %v5949
    %v5951 = vpop.f32.mrf.mxu0
    %v5952 = vadd.f32 %v5599, %v5951
    %v5953 = vpop.f32.mrf.mxu0
    %v5954 = vadd.f32 %v5601, %v5953
    %5955 = vmatprep.mubr.bf16.mxu0 %v4535
    %5956 = vmatmul.mubr.bf16.gmra.mxu0 %v4534
    %v5957 = vpop.f32.mrf.mxu0
    %v5958 = vadd.f32 %v5605, %v5957
    %v5959 = vpop.f32.mrf.mxu0
    %v5960 = vadd.f32 %v5607, %v5959
    %v5961 = vpop.f32.mrf.mxu0
    %v5962 = vadd.f32 %v5609, %v5961
    %v5963 = vpop.f32.mrf.mxu0
    %v5964 = vadd.f32 %v5611, %v5963
    %5965 = vmatprep.mubr.bf16.mxu0 %v4539
    %5966 = vmatmul.mubr.bf16.gmra.mxu0 %v4538
    %v5967 = vpop.f32.mrf.mxu0
    %v5968 = vadd.f32 %v5615, %v5967
    %v5969 = vpop.f32.mrf.mxu0
    %v5970 = vadd.f32 %v5617, %v5969
    %v5971 = vpop.f32.mrf.mxu0
    %v5972 = vadd.f32 %v5619, %v5971
    %v5973 = vpop.f32.mrf.mxu0
    %v5974 = vadd.f32 %v5621, %v5973
    %5975 = vmatprep.mubr.bf16.mxu0 %v4543
    %5976 = vmatmul.mubr.bf16.gmra.mxu0 %v4542
    %v5977 = vpop.f32.mrf.mxu0
    %v5978 = vadd.f32 %v5625, %v5977
    %v5979 = vpop.f32.mrf.mxu0
    %v5980 = vadd.f32 %v5627, %v5979
    %v5981 = vpop.f32.mrf.mxu0
    %v5982 = vadd.f32 %v5629, %v5981
    %v5983 = vpop.f32.mrf.mxu0
    %v5984 = vadd.f32 %v5631, %v5983
    %5985 = vmatprep.mubr.bf16.mxu0 %v4547
    %5986 = vmatmul.mubr.bf16.gmra.mxu0 %v4546
    %v5987 = vpop.f32.mrf.mxu0
    %v5988 = vadd.f32 %v5635, %v5987
    %v5989 = vpop.f32.mrf.mxu0
    %v5990 = vadd.f32 %v5637, %v5989
    %v5991 = vpop.f32.mrf.mxu0
    %v5992 = vadd.f32 %v5639, %v5991
    %v5993 = vpop.f32.mrf.mxu0
    %v5994 = vadd.f32 %v5641, %v5993
    %5995 = vmatprep.mubr.bf16.mxu0 %v4551
    %5996 = vmatmul.mubr.bf16.gmra.mxu0 %v4550
    %v5997 = vpop.f32.mrf.mxu0
    %v5998 = vadd.f32 %v5645, %v5997
    %v5999 = vpop.f32.mrf.mxu0
    %v6000 = vadd.f32 %v5647, %v5999
    %v6001 = vpop.f32.mrf.mxu0
    %v6002 = vadd.f32 %v5649, %v6001
    %v6003 = vpop.f32.mrf.mxu0
    %v6004 = vadd.f32 %v5651, %v6003
    %6005 = vmatprep.mubr.bf16.mxu0 %v4555
    %6006 = vmatmul.mubr.bf16.gmra.mxu0 %v4554
    %v6007 = vpop.f32.mrf.mxu0
    %v6008 = vadd.f32 %v5655, %v6007
    %v6009 = vpop.f32.mrf.mxu0
    %v6010 = vadd.f32 %v5657, %v6009
    %v6011 = vpop.f32.mrf.mxu0
    %v6012 = vadd.f32 %v5659, %v6011
    %v6013 = vpop.f32.mrf.mxu0
    %v6014 = vadd.f32 %v5661, %v6013
    %6015 = vmatprep.mubr.bf16.mxu0 %v4559
    %6016 = vmatmul.mubr.bf16.gmra.mxu0 %v4558
    %v6017 = vpop.f32.mrf.mxu0
    %v6018 = vadd.f32 %v5665, %v6017
    %v6019 = vpop.f32.mrf.mxu0
    %v6020 = vadd.f32 %v5667, %v6019
    %v6021 = vpop.f32.mrf.mxu0
    %v6022 = vadd.f32 %v5669, %v6021
    %v6023 = vpop.f32.mrf.mxu0
    %v6024 = vadd.f32 %v5671, %v6023
    %6025 = vmatprep.mubr.bf16.mxu0 %v4563
    %6026 = vmatmul.mubr.bf16.gmra.mxu0 %v4562
    %v6027 = vpop.f32.mrf.mxu0
    %v6028 = vadd.f32 %v5675, %v6027
    %v6029 = vpop.f32.mrf.mxu0
    %v6030 = vadd.f32 %v5677, %v6029
    %v6031 = vpop.f32.mrf.mxu0
    %v6032 = vadd.f32 %v5679, %v6031
    %v6033 = vpop.f32.mrf.mxu0
    %v6034 = vadd.f32 %v5681, %v6033
    %6035 = vmatprep.mubr.bf16.mxu0 %v4567
    %6036 = vmatmul.mubr.bf16.gmra.mxu0 %v4566
    %v6037 = vpop.f32.mrf.mxu0
    %v6038 = vadd.f32 %v5685, %v6037
    %v6039 = vpop.f32.mrf.mxu0
    %v6040 = vadd.f32 %v5687, %v6039
    %v6041 = vpop.f32.mrf.mxu0
    %v6042 = vadd.f32 %v5689, %v6041
    %v6043 = vpop.f32.mrf.mxu0
    %v6044 = vadd.f32 %v5691, %v6043
    %6045 = vmatprep.mubr.bf16.mxu0 %v4571
    %6046 = vmatmul.mubr.bf16.gmra.mxu0 %v4570
    %v6047 = vpop.f32.mrf.mxu0
    %v6048 = vadd.f32 %v5695, %v6047
    %v6049 = vpop.f32.mrf.mxu0
    %v6050 = vadd.f32 %v5697, %v6049
    %v6051 = vpop.f32.mrf.mxu0
    %v6052 = vadd.f32 %v5699, %v6051
    %v6053 = vpop.f32.mrf.mxu0
    %v6054 = vadd.f32 %v5701, %v6053
    %6055 = vmatprep.mubr.bf16.mxu0 %v4575
    %6056 = vmatmul.mubr.bf16.gmra.mxu0 %v4574
    %v6057 = vpop.f32.mrf.mxu0
    %v6058 = vadd.f32 %v5705, %v6057
    %v6059 = vpop.f32.mrf.mxu0
    %v6060 = vadd.f32 %v5707, %v6059
    %v6061 = vpop.f32.mrf.mxu0
    %v6062 = vadd.f32 %v5709, %v6061
    %v6063 = vpop.f32.mrf.mxu0
    %v6064 = vadd.f32 %v5711, %v6063
    %6065 = vmatprep.mubr.bf16.mxu0 %v4579
    %6066 = vmatmul.mubr.bf16.gmra.mxu0 %v4578
    %v6067 = vpop.f32.mrf.mxu0
    %v6068 = vadd.f32 %v5715, %v6067
    %v6069 = vpop.f32.mrf.mxu0
    %v6070 = vadd.f32 %v5717, %v6069
    %v6071 = vpop.f32.mrf.mxu0
    %v6072 = vadd.f32 %v5719, %v6071
    %v6073 = vpop.f32.mrf.mxu0
    %v6074 = vadd.f32 %v5721, %v6073
    %6075 = vdwg.mxu0
    %6076 = vmatprep.subr.bf16.mxu0 %v5145
    %6077 = vmatpush1.bf16.msra.mxu0 %v5144
    %6078 = vmatprep.subr.bf16.mxu0 %v5141
    %6079 = vmatpush1.bf16.msra.mxu0 %v5140
    %6080 = vmatprep.subr.bf16.mxu0 %v5137
    %6081 = vmatpush1.bf16.msra.mxu0 %v5136
    %6082 = vmatprep.subr.bf16.mxu0 %v5133
    %6083 = vmatpush1.bf16.msra.mxu0 %v5132
    %6084 = vmatprep.subr.bf16.mxu0 %v5129
    %6085 = vmatpush1.bf16.msra.mxu0 %v5128
    %6086 = vmatprep.subr.bf16.mxu0 %v5125
    %6087 = vmatpush1.bf16.msra.mxu0 %v5124
    %6088 = vmatprep.subr.bf16.mxu0 %v5121
    %6089 = vmatpush1.bf16.msra.mxu0 %v5120
    %6090 = vmatprep.subr.bf16.mxu0 %v5117
    %6091 = vmatpush1.bf16.msra.mxu0 %v5116
    %6092 = vmatprep.subr.bf16.mxu0 %v5177
    %6093 = vmatpush2.bf16.msra.mxu0 %v5176
    %6094 = vmatprep.subr.bf16.mxu0 %v5173
    %6095 = vmatpush2.bf16.msra.mxu0 %v5172
    %6096 = vmatprep.subr.bf16.mxu0 %v5169
    %6097 = vmatpush2.bf16.msra.mxu0 %v5168
    %6098 = vmatprep.subr.bf16.mxu0 %v5165
    %6099 = vmatpush2.bf16.msra.mxu0 %v5164
    %6100 = vmatprep.subr.bf16.mxu0 %v5161
    %6101 = vmatpush2.bf16.msra.mxu0 %v5160
    %6102 = vmatprep.subr.bf16.mxu0 %v5157
    %6103 = vmatpush2.bf16.msra.mxu0 %v5156
    %6104 = vmatprep.subr.bf16.mxu0 %v5153
    %6105 = vmatpush2.bf16.msra.mxu0 %v5152
    %6106 = vmatprep.subr.bf16.mxu0 %v5149
    %6107 = vmatpush2.bf16.msra.mxu0 %v5148
    %6108 = vmatprep.mubr.bf16.mxu0 %v4453
    %6109 = vmatmul.mubr.bf16.gmra.mxu0 %v4452
    %v6110 = vpop.f32.mrf.mxu0
    %v6111 = vadd.f32 %v4721, %v6110
    %v6112 = vpop.f32.mrf.mxu0
    %v6113 = vadd.f32 %v4725, %v6112
    %v6114 = vpop.f32.mrf.mxu0
    %v6115 = vadd.f32 %v4721, %v6114
    %v6116 = vpop.f32.mrf.mxu0
    %v6117 = vadd.f32 %v4725, %v6116
    %6118 = vmatprep.mubr.bf16.mxu0 %v4457
    %6119 = vmatmul.mubr.bf16.gmra.mxu0 %v4456
    %v6120 = vpop.f32.mrf.mxu0
    %v6121 = vadd.f32 %v4721, %v6120
    %v6122 = vpop.f32.mrf.mxu0
    %v6123 = vadd.f32 %v4725, %v6122
    %v6124 = vpop.f32.mrf.mxu0
    %v6125 = vadd.f32 %v4721, %v6124
    %v6126 = vpop.f32.mrf.mxu0
    %v6127 = vadd.f32 %v4725, %v6126
    %6128 = vmatprep.mubr.bf16.mxu0 %v4461
    %6129 = vmatmul.mubr.bf16.gmra.mxu0 %v4460
    %v6130 = vpop.f32.mrf.mxu0
    %v6131 = vadd.f32 %v4721, %v6130
    %v6132 = vpop.f32.mrf.mxu0
    %v6133 = vadd.f32 %v4725, %v6132
    %v6134 = vpop.f32.mrf.mxu0
    %v6135 = vadd.f32 %v4721, %v6134
    %v6136 = vpop.f32.mrf.mxu0
    %v6137 = vadd.f32 %v4725, %v6136
    %6138 = vmatprep.mubr.bf16.mxu0 %v4465
    %6139 = vmatmul.mubr.bf16.gmra.mxu0 %v4464
    %v6140 = vpop.f32.mrf.mxu0
    %v6141 = vadd.f32 %v4721, %v6140
    %v6142 = vpop.f32.mrf.mxu0
    %v6143 = vadd.f32 %v4725, %v6142
    %v6144 = vpop.f32.mrf.mxu0
    %v6145 = vadd.f32 %v4721, %v6144
    %v6146 = vpop.f32.mrf.mxu0
    %v6147 = vadd.f32 %v4725, %v6146
    %6148 = vmatprep.mubr.bf16.mxu0 %v4469
    %6149 = vmatmul.mubr.bf16.gmra.mxu0 %v4468
    %v6150 = vpop.f32.mrf.mxu0
    %v6151 = vadd.f32 %v4721, %v6150
    %v6152 = vpop.f32.mrf.mxu0
    %v6153 = vadd.f32 %v4725, %v6152
    %v6154 = vpop.f32.mrf.mxu0
    %v6155 = vadd.f32 %v4721, %v6154
    %v6156 = vpop.f32.mrf.mxu0
    %v6157 = vadd.f32 %v4725, %v6156
    %6158 = vmatprep.mubr.bf16.mxu0 %v4473
    %6159 = vmatmul.mubr.bf16.gmra.mxu0 %v4472
    %v6160 = vpop.f32.mrf.mxu0
    %v6161 = vadd.f32 %v4721, %v6160
    %v6162 = vpop.f32.mrf.mxu0
    %v6163 = vadd.f32 %v4725, %v6162
    %v6164 = vpop.f32.mrf.mxu0
    %v6165 = vadd.f32 %v4721, %v6164
    %v6166 = vpop.f32.mrf.mxu0
    %v6167 = vadd.f32 %v4725, %v6166
    %6168 = vmatprep.mubr.bf16.mxu0 %v4477
    %6169 = vmatmul.mubr.bf16.gmra.mxu0 %v4476
    %v6170 = vpop.f32.mrf.mxu0
    %v6171 = vadd.f32 %v4721, %v6170
    %v6172 = vpop.f32.mrf.mxu0
    %v6173 = vadd.f32 %v4725, %v6172
    %v6174 = vpop.f32.mrf.mxu0
    %v6175 = vadd.f32 %v4721, %v6174
    %v6176 = vpop.f32.mrf.mxu0
    %v6177 = vadd.f32 %v4725, %v6176
    %6178 = vmatprep.mubr.bf16.mxu0 %v4481
    %6179 = vmatmul.mubr.bf16.gmra.mxu0 %v4480
    %v6180 = vpop.f32.mrf.mxu0
    %v6181 = vadd.f32 %v4721, %v6180
    %v6182 = vpop.f32.mrf.mxu0
    %v6183 = vadd.f32 %v4725, %v6182
    %v6184 = vpop.f32.mrf.mxu0
    %v6185 = vadd.f32 %v4721, %v6184
    %v6186 = vpop.f32.mrf.mxu0
    %v6187 = vadd.f32 %v4725, %v6186
    %6188 = vmatprep.mubr.bf16.mxu0 %v4485
    %6189 = vmatmul.mubr.bf16.gmra.mxu0 %v4484
    %v6190 = vpop.f32.mrf.mxu0
    %v6191 = vadd.f32 %v4721, %v6190
    %v6192 = vpop.f32.mrf.mxu0
    %v6193 = vadd.f32 %v4725, %v6192
    %v6194 = vpop.f32.mrf.mxu0
    %v6195 = vadd.f32 %v4721, %v6194
    %v6196 = vpop.f32.mrf.mxu0
    %v6197 = vadd.f32 %v4725, %v6196
    %6198 = vmatprep.mubr.bf16.mxu0 %v4489
    %6199 = vmatmul.mubr.bf16.gmra.mxu0 %v4488
    %v6200 = vpop.f32.mrf.mxu0
    %v6201 = vadd.f32 %v4721, %v6200
    %v6202 = vpop.f32.mrf.mxu0
    %v6203 = vadd.f32 %v4725, %v6202
    %v6204 = vpop.f32.mrf.mxu0
    %v6205 = vadd.f32 %v4721, %v6204
    %v6206 = vpop.f32.mrf.mxu0
    %v6207 = vadd.f32 %v4725, %v6206
    %6208 = vmatprep.mubr.bf16.mxu0 %v4493
    %6209 = vmatmul.mubr.bf16.gmra.mxu0 %v4492
    %v6210 = vpop.f32.mrf.mxu0
    %v6211 = vadd.f32 %v4721, %v6210
    %v6212 = vpop.f32.mrf.mxu0
    %v6213 = vadd.f32 %v4725, %v6212
    %v6214 = vpop.f32.mrf.mxu0
    %v6215 = vadd.f32 %v4721, %v6214
    %v6216 = vpop.f32.mrf.mxu0
    %v6217 = vadd.f32 %v4725, %v6216
    %6218 = vmatprep.mubr.bf16.mxu0 %v4497
    %6219 = vmatmul.mubr.bf16.gmra.mxu0 %v4496
    %v6220 = vpop.f32.mrf.mxu0
    %v6221 = vadd.f32 %v4721, %v6220
    %v6222 = vpop.f32.mrf.mxu0
    %v6223 = vadd.f32 %v4725, %v6222
    %v6224 = vpop.f32.mrf.mxu0
    %v6225 = vadd.f32 %v4721, %v6224
    %v6226 = vpop.f32.mrf.mxu0
    %v6227 = vadd.f32 %v4725, %v6226
    %6228 = vmatprep.mubr.bf16.mxu0 %v4501
    %6229 = vmatmul.mubr.bf16.gmra.mxu0 %v4500
    %v6230 = vpop.f32.mrf.mxu0
    %v6231 = vadd.f32 %v4721, %v6230
    %v6232 = vpop.f32.mrf.mxu0
    %v6233 = vadd.f32 %v4725, %v6232
    %v6234 = vpop.f32.mrf.mxu0
    %v6235 = vadd.f32 %v4721, %v6234
    %v6236 = vpop.f32.mrf.mxu0
    %v6237 = vadd.f32 %v4725, %v6236
    %6238 = vmatprep.mubr.bf16.mxu0 %v4505
    %6239 = vmatmul.mubr.bf16.gmra.mxu0 %v4504
    %v6240 = vpop.f32.mrf.mxu0
    %v6241 = vadd.f32 %v4721, %v6240
    %v6242 = vpop.f32.mrf.mxu0
    %v6243 = vadd.f32 %v4725, %v6242
    %v6244 = vpop.f32.mrf.mxu0
    %v6245 = vadd.f32 %v4721, %v6244
    %v6246 = vpop.f32.mrf.mxu0
    %v6247 = vadd.f32 %v4725, %v6246
    %6248 = vmatprep.mubr.bf16.mxu0 %v4509
    %6249 = vmatmul.mubr.bf16.gmra.mxu0 %v4508
    %v6250 = vpop.f32.mrf.mxu0
    %v6251 = vadd.f32 %v4721, %v6250
    %v6252 = vpop.f32.mrf.mxu0
    %v6253 = vadd.f32 %v4725, %v6252
    %v6254 = vpop.f32.mrf.mxu0
    %v6255 = vadd.f32 %v4721, %v6254
    %v6256 = vpop.f32.mrf.mxu0
    %v6257 = vadd.f32 %v4725, %v6256
    %6258 = vmatprep.mubr.bf16.mxu0 %v4513
    %6259 = vmatmul.mubr.bf16.gmra.mxu0 %v4512
    %v6260 = vpop.f32.mrf.mxu0
    %v6261 = vadd.f32 %v4721, %v6260
    %v6262 = vpop.f32.mrf.mxu0
    %v6263 = vadd.f32 %v4725, %v6262
    %v6264 = vpop.f32.mrf.mxu0
    %v6265 = vadd.f32 %v4721, %v6264
    %v6266 = vpop.f32.mrf.mxu0
    %v6267 = vadd.f32 %v4725, %v6266
    %6268 = vmatprep.mubr.bf16.mxu0 %v4517
    %6269 = vmatmul.mubr.bf16.gmra.mxu0 %v4516
    %v6270 = vpop.f32.mrf.mxu0
    %v6271 = vadd.f32 %v4721, %v6270
    %v6272 = vpop.f32.mrf.mxu0
    %v6273 = vadd.f32 %v4725, %v6272
    %v6274 = vpop.f32.mrf.mxu0
    %v6275 = vadd.f32 %v4721, %v6274
    %v6276 = vpop.f32.mrf.mxu0
    %v6277 = vadd.f32 %v4725, %v6276
    %6278 = vmatprep.mubr.bf16.mxu0 %v4521
    %6279 = vmatmul.mubr.bf16.gmra.mxu0 %v4520
    %v6280 = vpop.f32.mrf.mxu0
    %v6281 = vadd.f32 %v4721, %v6280
    %v6282 = vpop.f32.mrf.mxu0
    %v6283 = vadd.f32 %v4725, %v6282
    %v6284 = vpop.f32.mrf.mxu0
    %v6285 = vadd.f32 %v4721, %v6284
    %v6286 = vpop.f32.mrf.mxu0
    %v6287 = vadd.f32 %v4725, %v6286
    %6288 = vmatprep.mubr.bf16.mxu0 %v4525
    %6289 = vmatmul.mubr.bf16.gmra.mxu0 %v4524
    %v6290 = vpop.f32.mrf.mxu0
    %v6291 = vadd.f32 %v4721, %v6290
    %v6292 = vpop.f32.mrf.mxu0
    %v6293 = vadd.f32 %v4725, %v6292
    %v6294 = vpop.f32.mrf.mxu0
    %v6295 = vadd.f32 %v4721, %v6294
    %v6296 = vpop.f32.mrf.mxu0
    %v6297 = vadd.f32 %v4725, %v6296
    %6298 = vmatprep.mubr.bf16.mxu0 %v4529
    %6299 = vmatmul.mubr.bf16.gmra.mxu0 %v4528
    %v6300 = vpop.f32.mrf.mxu0
    %v6301 = vadd.f32 %v4721, %v6300
    %v6302 = vpop.f32.mrf.mxu0
    %v6303 = vadd.f32 %v4725, %v6302
    %v6304 = vpop.f32.mrf.mxu0
    %v6305 = vadd.f32 %v4721, %v6304
    %v6306 = vpop.f32.mrf.mxu0
    %v6307 = vadd.f32 %v4725, %v6306
    %6308 = vmatprep.mubr.bf16.mxu0 %v4533
    %6309 = vmatmul.mubr.bf16.gmra.mxu0 %v4532
    %v6310 = vpop.f32.mrf.mxu0
    %v6311 = vadd.f32 %v4721, %v6310
    %v6312 = vpop.f32.mrf.mxu0
    %v6313 = vadd.f32 %v4725, %v6312
    %v6314 = vpop.f32.mrf.mxu0
    %v6315 = vadd.f32 %v4721, %v6314
    %v6316 = vpop.f32.mrf.mxu0
    %v6317 = vadd.f32 %v4725, %v6316
    %6318 = vmatprep.mubr.bf16.mxu0 %v4537
    %6319 = vmatmul.mubr.bf16.gmra.mxu0 %v4536
    %v6320 = vpop.f32.mrf.mxu0
    %v6321 = vadd.f32 %v4721, %v6320
    %v6322 = vpop.f32.mrf.mxu0
    %v6323 = vadd.f32 %v4725, %v6322
    %v6324 = vpop.f32.mrf.mxu0
    %v6325 = vadd.f32 %v4721, %v6324
    %v6326 = vpop.f32.mrf.mxu0
    %v6327 = vadd.f32 %v4725, %v6326
    %6328 = vmatprep.mubr.bf16.mxu0 %v4541
    %6329 = vmatmul.mubr.bf16.gmra.mxu0 %v4540
    %v6330 = vpop.f32.mrf.mxu0
    %v6331 = vadd.f32 %v4721, %v6330
    %v6332 = vpop.f32.mrf.mxu0
    %v6333 = vadd.f32 %v4725, %v6332
    %v6334 = vpop.f32.mrf.mxu0
    %v6335 = vadd.f32 %v4721, %v6334
    %v6336 = vpop.f32.mrf.mxu0
    %v6337 = vadd.f32 %v4725, %v6336
    %6338 = vmatprep.mubr.bf16.mxu0 %v4545
    %6339 = vmatmul.mubr.bf16.gmra.mxu0 %v4544
    %v6340 = vpop.f32.mrf.mxu0
    %v6341 = vadd.f32 %v4721, %v6340
    %v6342 = vpop.f32.mrf.mxu0
    %v6343 = vadd.f32 %v4725, %v6342
    %v6344 = vpop.f32.mrf.mxu0
    %v6345 = vadd.f32 %v4721, %v6344
    %v6346 = vpop.f32.mrf.mxu0
    %v6347 = vadd.f32 %v4725, %v6346
    %6348 = vmatprep.mubr.bf16.mxu0 %v4549
    %6349 = vmatmul.mubr.bf16.gmra.mxu0 %v4548
    %v6350 = vpop.f32.mrf.mxu0
    %v6351 = vadd.f32 %v4721, %v6350
    %v6352 = vpop.f32.mrf.mxu0
    %v6353 = vadd.f32 %v4725, %v6352
    %v6354 = vpop.f32.mrf.mxu0
    %v6355 = vadd.f32 %v4721, %v6354
    %v6356 = vpop.f32.mrf.mxu0
    %v6357 = vadd.f32 %v4725, %v6356
    %6358 = vmatprep.mubr.bf16.mxu0 %v4553
    %6359 = vmatmul.mubr.bf16.gmra.mxu0 %v4552
    %v6360 = vpop.f32.mrf.mxu0
    %v6361 = vadd.f32 %v4721, %v6360
    %v6362 = vpop.f32.mrf.mxu0
    %v6363 = vadd.f32 %v4725, %v6362
    %v6364 = vpop.f32.mrf.mxu0
    %v6365 = vadd.f32 %v4721, %v6364
    %v6366 = vpop.f32.mrf.mxu0
    %v6367 = vadd.f32 %v4725, %v6366
    %6368 = vmatprep.mubr.bf16.mxu0 %v4557
    %6369 = vmatmul.mubr.bf16.gmra.mxu0 %v4556
    %v6370 = vpop.f32.mrf.mxu0
    %v6371 = vadd.f32 %v4721, %v6370
    %v6372 = vpop.f32.mrf.mxu0
    %v6373 = vadd.f32 %v4725, %v6372
    %v6374 = vpop.f32.mrf.mxu0
    %v6375 = vadd.f32 %v4721, %v6374
    %v6376 = vpop.f32.mrf.mxu0
    %v6377 = vadd.f32 %v4725, %v6376
    %6378 = vmatprep.mubr.bf16.mxu0 %v4561
    %6379 = vmatmul.mubr.bf16.gmra.mxu0 %v4560
    %v6380 = vpop.f32.mrf.mxu0
    %v6381 = vadd.f32 %v4721, %v6380
    %v6382 = vpop.f32.mrf.mxu0
    %v6383 = vadd.f32 %v4725, %v6382
    %v6384 = vpop.f32.mrf.mxu0
    %v6385 = vadd.f32 %v4721, %v6384
    %v6386 = vpop.f32.mrf.mxu0
    %v6387 = vadd.f32 %v4725, %v6386
    %6388 = vmatprep.mubr.bf16.mxu0 %v4565
    %6389 = vmatmul.mubr.bf16.gmra.mxu0 %v4564
    %v6390 = vpop.f32.mrf.mxu0
    %v6391 = vadd.f32 %v4721, %v6390
    %v6392 = vpop.f32.mrf.mxu0
    %v6393 = vadd.f32 %v4725, %v6392
    %v6394 = vpop.f32.mrf.mxu0
    %v6395 = vadd.f32 %v4721, %v6394
    %v6396 = vpop.f32.mrf.mxu0
    %v6397 = vadd.f32 %v4725, %v6396
    %6398 = vmatprep.mubr.bf16.mxu0 %v4569
    %6399 = vmatmul.mubr.bf16.gmra.mxu0 %v4568
    %v6400 = vpop.f32.mrf.mxu0
    %v6401 = vadd.f32 %v4721, %v6400
    %v6402 = vpop.f32.mrf.mxu0
    %v6403 = vadd.f32 %v4725, %v6402
    %v6404 = vpop.f32.mrf.mxu0
    %v6405 = vadd.f32 %v4721, %v6404
    %v6406 = vpop.f32.mrf.mxu0
    %v6407 = vadd.f32 %v4725, %v6406
    %6408 = vmatprep.mubr.bf16.mxu0 %v4573
    %6409 = vmatmul.mubr.bf16.gmra.mxu0 %v4572
    %v6410 = vpop.f32.mrf.mxu0
    %v6411 = vadd.f32 %v4721, %v6410
    %v6412 = vpop.f32.mrf.mxu0
    %v6413 = vadd.f32 %v4725, %v6412
    %v6414 = vpop.f32.mrf.mxu0
    %v6415 = vadd.f32 %v4721, %v6414
    %v6416 = vpop.f32.mrf.mxu0
    %v6417 = vadd.f32 %v4725, %v6416
    %6418 = vmatprep.mubr.bf16.mxu0 %v4577
    %6419 = vmatmul.mubr.bf16.gmra.mxu0 %v4576
    %v6420 = vpop.f32.mrf.mxu0
    %v6421 = vadd.f32 %v4721, %v6420
    %v6422 = vpop.f32.mrf.mxu0
    %v6423 = vadd.f32 %v4725, %v6422
    %v6424 = vpop.f32.mrf.mxu0
    %v6425 = vadd.f32 %v4721, %v6424
    %v6426 = vpop.f32.mrf.mxu0
    %v6427 = vadd.f32 %v4725, %v6426
    %6428 = vdwg.mxu0
    %6429 = vmatprep.subr.bf16.mxu0 %v5209
    %6430 = vmatpush1.bf16.msra.mxu0 %v5208
    %6431 = vmatprep.subr.bf16.mxu0 %v5205
    %6432 = vmatpush1.bf16.msra.mxu0 %v5204
    %6433 = vmatprep.subr.bf16.mxu0 %v5201
    %6434 = vmatpush1.bf16.msra.mxu0 %v5200
    %6435 = vmatprep.subr.bf16.mxu0 %v5197
    %6436 = vmatpush1.bf16.msra.mxu0 %v5196
    %6437 = vmatprep.subr.bf16.mxu0 %v5193
    %6438 = vmatpush1.bf16.msra.mxu0 %v5192
    %6439 = vmatprep.subr.bf16.mxu0 %v5189
    %6440 = vmatpush1.bf16.msra.mxu0 %v5188
    %6441 = vmatprep.subr.bf16.mxu0 %v5185
    %6442 = vmatpush1.bf16.msra.mxu0 %v5184
    %6443 = vmatprep.subr.bf16.mxu0 %v5181
    %6444 = vmatpush1.bf16.msra.mxu0 %v5180
    %6445 = vmatprep.subr.bf16.mxu0 %v5241
    %6446 = vmatpush2.bf16.msra.mxu0 %v5240
    %6447 = vmatprep.subr.bf16.mxu0 %v5237
    %6448 = vmatpush2.bf16.msra.mxu0 %v5236
    %6449 = vmatprep.subr.bf16.mxu0 %v5233
    %6450 = vmatpush2.bf16.msra.mxu0 %v5232
    %6451 = vmatprep.subr.bf16.mxu0 %v5229
    %6452 = vmatpush2.bf16.msra.mxu0 %v5228
    %6453 = vmatprep.subr.bf16.mxu0 %v5225
    %6454 = vmatpush2.bf16.msra.mxu0 %v5224
    %6455 = vmatprep.subr.bf16.mxu0 %v5221
    %6456 = vmatpush2.bf16.msra.mxu0 %v5220
    %6457 = vmatprep.subr.bf16.mxu0 %v5217
    %6458 = vmatpush2.bf16.msra.mxu0 %v5216
    %6459 = vmatprep.subr.bf16.mxu0 %v5213
    %6460 = vmatpush2.bf16.msra.mxu0 %v5212
    %6461 = vmatprep.mubr.bf16.mxu0 %v4455
    %6462 = vmatmul.mubr.bf16.gmra.mxu0 %v4454
    %v6463 = vpop.f32.mrf.mxu0
    %v6464 = vadd.f32 %v6111, %v6463
    %v6465 = vpop.f32.mrf.mxu0
    %v6466 = vadd.f32 %v6113, %v6465
    %v6467 = vpop.f32.mrf.mxu0
    %v6468 = vadd.f32 %v6115, %v6467
    %v6469 = vpop.f32.mrf.mxu0
    %v6470 = vadd.f32 %v6117, %v6469
    %6471 = vmatprep.mubr.bf16.mxu0 %v4459
    %6472 = vmatmul.mubr.bf16.gmra.mxu0 %v4458
    %v6473 = vpop.f32.mrf.mxu0
    %v6474 = vadd.f32 %v6121, %v6473
    %v6475 = vpop.f32.mrf.mxu0
    %v6476 = vadd.f32 %v6123, %v6475
    %v6477 = vpop.f32.mrf.mxu0
    %v6478 = vadd.f32 %v6125, %v6477
    %v6479 = vpop.f32.mrf.mxu0
    %v6480 = vadd.f32 %v6127, %v6479
    %6481 = vmatprep.mubr.bf16.mxu0 %v4463
    %6482 = vmatmul.mubr.bf16.gmra.mxu0 %v4462
    %v6483 = vpop.f32.mrf.mxu0
    %v6484 = vadd.f32 %v6131, %v6483
    %v6485 = vpop.f32.mrf.mxu0
    %v6486 = vadd.f32 %v6133, %v6485
    %v6487 = vpop.f32.mrf.mxu0
    %v6488 = vadd.f32 %v6135, %v6487
    %v6489 = vpop.f32.mrf.mxu0
    %v6490 = vadd.f32 %v6137, %v6489
    %6491 = vmatprep.mubr.bf16.mxu0 %v4467
    %6492 = vmatmul.mubr.bf16.gmra.mxu0 %v4466
    %v6493 = vpop.f32.mrf.mxu0
    %v6494 = vadd.f32 %v6141, %v6493
    %v6495 = vpop.f32.mrf.mxu0
    %v6496 = vadd.f32 %v6143, %v6495
    %v6497 = vpop.f32.mrf.mxu0
    %v6498 = vadd.f32 %v6145, %v6497
    %v6499 = vpop.f32.mrf.mxu0
    %v6500 = vadd.f32 %v6147, %v6499
    %6501 = vmatprep.mubr.bf16.mxu0 %v4471
    %6502 = vmatmul.mubr.bf16.gmra.mxu0 %v4470
    %v6503 = vpop.f32.mrf.mxu0
    %v6504 = vadd.f32 %v6151, %v6503
    %v6505 = vpop.f32.mrf.mxu0
    %v6506 = vadd.f32 %v6153, %v6505
    %v6507 = vpop.f32.mrf.mxu0
    %v6508 = vadd.f32 %v6155, %v6507
    %v6509 = vpop.f32.mrf.mxu0
    %v6510 = vadd.f32 %v6157, %v6509
    %6511 = vmatprep.mubr.bf16.mxu0 %v4475
    %6512 = vmatmul.mubr.bf16.gmra.mxu0 %v4474
    %v6513 = vpop.f32.mrf.mxu0
    %v6514 = vadd.f32 %v6161, %v6513
    %v6515 = vpop.f32.mrf.mxu0
    %v6516 = vadd.f32 %v6163, %v6515
    %v6517 = vpop.f32.mrf.mxu0
    %v6518 = vadd.f32 %v6165, %v6517
    %v6519 = vpop.f32.mrf.mxu0
    %v6520 = vadd.f32 %v6167, %v6519
    %6521 = vmatprep.mubr.bf16.mxu0 %v4479
    %6522 = vmatmul.mubr.bf16.gmra.mxu0 %v4478
    %v6523 = vpop.f32.mrf.mxu0
    %v6524 = vadd.f32 %v6171, %v6523
    %v6525 = vpop.f32.mrf.mxu0
    %v6526 = vadd.f32 %v6173, %v6525
    %v6527 = vpop.f32.mrf.mxu0
    %v6528 = vadd.f32 %v6175, %v6527
    %v6529 = vpop.f32.mrf.mxu0
    %v6530 = vadd.f32 %v6177, %v6529
    %6531 = vmatprep.mubr.bf16.mxu0 %v4483
    %6532 = vmatmul.mubr.bf16.gmra.mxu0 %v4482
    %v6533 = vpop.f32.mrf.mxu0
    %v6534 = vadd.f32 %v6181, %v6533
    %v6535 = vpop.f32.mrf.mxu0
    %v6536 = vadd.f32 %v6183, %v6535
    %v6537 = vpop.f32.mrf.mxu0
    %v6538 = vadd.f32 %v6185, %v6537
    %v6539 = vpop.f32.mrf.mxu0
    %v6540 = vadd.f32 %v6187, %v6539
    %6541 = vmatprep.mubr.bf16.mxu0 %v4487
    %6542 = vmatmul.mubr.bf16.gmra.mxu0 %v4486
    %v6543 = vpop.f32.mrf.mxu0
    %v6544 = vadd.f32 %v6191, %v6543
    %v6545 = vpop.f32.mrf.mxu0
    %v6546 = vadd.f32 %v6193, %v6545
    %v6547 = vpop.f32.mrf.mxu0
    %v6548 = vadd.f32 %v6195, %v6547
    %v6549 = vpop.f32.mrf.mxu0
    %v6550 = vadd.f32 %v6197, %v6549
    %6551 = vmatprep.mubr.bf16.mxu0 %v4491
    %6552 = vmatmul.mubr.bf16.gmra.mxu0 %v4490
    %v6553 = vpop.f32.mrf.mxu0
    %v6554 = vadd.f32 %v6201, %v6553
    %v6555 = vpop.f32.mrf.mxu0
    %v6556 = vadd.f32 %v6203, %v6555
    %v6557 = vpop.f32.mrf.mxu0
    %v6558 = vadd.f32 %v6205, %v6557
    %v6559 = vpop.f32.mrf.mxu0
    %v6560 = vadd.f32 %v6207, %v6559
    %6561 = vmatprep.mubr.bf16.mxu0 %v4495
    %6562 = vmatmul.mubr.bf16.gmra.mxu0 %v4494
    %v6563 = vpop.f32.mrf.mxu0
    %v6564 = vadd.f32 %v6211, %v6563
    %v6565 = vpop.f32.mrf.mxu0
    %v6566 = vadd.f32 %v6213, %v6565
    %v6567 = vpop.f32.mrf.mxu0
    %v6568 = vadd.f32 %v6215, %v6567
    %v6569 = vpop.f32.mrf.mxu0
    %v6570 = vadd.f32 %v6217, %v6569
    %6571 = vmatprep.mubr.bf16.mxu0 %v4499
    %6572 = vmatmul.mubr.bf16.gmra.mxu0 %v4498
    %v6573 = vpop.f32.mrf.mxu0
    %v6574 = vadd.f32 %v6221, %v6573
    %v6575 = vpop.f32.mrf.mxu0
    %v6576 = vadd.f32 %v6223, %v6575
    %v6577 = vpop.f32.mrf.mxu0
    %v6578 = vadd.f32 %v6225, %v6577
    %v6579 = vpop.f32.mrf.mxu0
    %v6580 = vadd.f32 %v6227, %v6579
    %6581 = vmatprep.mubr.bf16.mxu0 %v4503
    %6582 = vmatmul.mubr.bf16.gmra.mxu0 %v4502
    %v6583 = vpop.f32.mrf.mxu0
    %v6584 = vadd.f32 %v6231, %v6583
    %v6585 = vpop.f32.mrf.mxu0
    %v6586 = vadd.f32 %v6233, %v6585
    %v6587 = vpop.f32.mrf.mxu0
    %v6588 = vadd.f32 %v6235, %v6587
    %v6589 = vpop.f32.mrf.mxu0
    %v6590 = vadd.f32 %v6237, %v6589
    %6591 = vmatprep.mubr.bf16.mxu0 %v4507
    %6592 = vmatmul.mubr.bf16.gmra.mxu0 %v4506
    %v6593 = vpop.f32.mrf.mxu0
    %v6594 = vadd.f32 %v6241, %v6593
    %v6595 = vpop.f32.mrf.mxu0
    %v6596 = vadd.f32 %v6243, %v6595
    %v6597 = vpop.f32.mrf.mxu0
    %v6598 = vadd.f32 %v6245, %v6597
    %v6599 = vpop.f32.mrf.mxu0
    %v6600 = vadd.f32 %v6247, %v6599
    %6601 = vmatprep.mubr.bf16.mxu0 %v4511
    %6602 = vmatmul.mubr.bf16.gmra.mxu0 %v4510
    %v6603 = vpop.f32.mrf.mxu0
    %v6604 = vadd.f32 %v6251, %v6603
    %v6605 = vpop.f32.mrf.mxu0
    %v6606 = vadd.f32 %v6253, %v6605
    %v6607 = vpop.f32.mrf.mxu0
    %v6608 = vadd.f32 %v6255, %v6607
    %v6609 = vpop.f32.mrf.mxu0
    %v6610 = vadd.f32 %v6257, %v6609
    %6611 = vmatprep.mubr.bf16.mxu0 %v4515
    %6612 = vmatmul.mubr.bf16.gmra.mxu0 %v4514
    %v6613 = vpop.f32.mrf.mxu0
    %v6614 = vadd.f32 %v6261, %v6613
    %v6615 = vpop.f32.mrf.mxu0
    %v6616 = vadd.f32 %v6263, %v6615
    %v6617 = vpop.f32.mrf.mxu0
    %v6618 = vadd.f32 %v6265, %v6617
    %v6619 = vpop.f32.mrf.mxu0
    %v6620 = vadd.f32 %v6267, %v6619
    %6621 = vmatprep.mubr.bf16.mxu0 %v4519
    %6622 = vmatmul.mubr.bf16.gmra.mxu0 %v4518
    %v6623 = vpop.f32.mrf.mxu0
    %v6624 = vadd.f32 %v6271, %v6623
    %v6625 = vpop.f32.mrf.mxu0
    %v6626 = vadd.f32 %v6273, %v6625
    %v6627 = vpop.f32.mrf.mxu0
    %v6628 = vadd.f32 %v6275, %v6627
    %v6629 = vpop.f32.mrf.mxu0
    %v6630 = vadd.f32 %v6277, %v6629
    %6631 = vmatprep.mubr.bf16.mxu0 %v4523
    %6632 = vmatmul.mubr.bf16.gmra.mxu0 %v4522
    %v6633 = vpop.f32.mrf.mxu0
    %v6634 = vadd.f32 %v6281, %v6633
    %v6635 = vpop.f32.mrf.mxu0
    %v6636 = vadd.f32 %v6283, %v6635
    %v6637 = vpop.f32.mrf.mxu0
    %v6638 = vadd.f32 %v6285, %v6637
    %v6639 = vpop.f32.mrf.mxu0
    %v6640 = vadd.f32 %v6287, %v6639
    %6641 = vmatprep.mubr.bf16.mxu0 %v4527
    %6642 = vmatmul.mubr.bf16.gmra.mxu0 %v4526
    %v6643 = vpop.f32.mrf.mxu0
    %v6644 = vadd.f32 %v6291, %v6643
    %v6645 = vpop.f32.mrf.mxu0
    %v6646 = vadd.f32 %v6293, %v6645
    %v6647 = vpop.f32.mrf.mxu0
    %v6648 = vadd.f32 %v6295, %v6647
    %v6649 = vpop.f32.mrf.mxu0
    %v6650 = vadd.f32 %v6297, %v6649
    %6651 = vmatprep.mubr.bf16.mxu0 %v4531
    %6652 = vmatmul.mubr.bf16.gmra.mxu0 %v4530
    %v6653 = vpop.f32.mrf.mxu0
    %v6654 = vadd.f32 %v6301, %v6653
    %v6655 = vpop.f32.mrf.mxu0
    %v6656 = vadd.f32 %v6303, %v6655
    %v6657 = vpop.f32.mrf.mxu0
    %v6658 = vadd.f32 %v6305, %v6657
    %v6659 = vpop.f32.mrf.mxu0
    %v6660 = vadd.f32 %v6307, %v6659
    %6661 = vmatprep.mubr.bf16.mxu0 %v4535
    %6662 = vmatmul.mubr.bf16.gmra.mxu0 %v4534
    %v6663 = vpop.f32.mrf.mxu0
    %v6664 = vadd.f32 %v6311, %v6663
    %v6665 = vpop.f32.mrf.mxu0
    %v6666 = vadd.f32 %v6313, %v6665
    %v6667 = vpop.f32.mrf.mxu0
    %v6668 = vadd.f32 %v6315, %v6667
    %v6669 = vpop.f32.mrf.mxu0
    %v6670 = vadd.f32 %v6317, %v6669
    %6671 = vmatprep.mubr.bf16.mxu0 %v4539
    %6672 = vmatmul.mubr.bf16.gmra.mxu0 %v4538
    %v6673 = vpop.f32.mrf.mxu0
    %v6674 = vadd.f32 %v6321, %v6673
    %v6675 = vpop.f32.mrf.mxu0
    %v6676 = vadd.f32 %v6323, %v6675
    %v6677 = vpop.f32.mrf.mxu0
    %v6678 = vadd.f32 %v6325, %v6677
    %v6679 = vpop.f32.mrf.mxu0
    %v6680 = vadd.f32 %v6327, %v6679
    %6681 = vmatprep.mubr.bf16.mxu0 %v4543
    %6682 = vmatmul.mubr.bf16.gmra.mxu0 %v4542
    %v6683 = vpop.f32.mrf.mxu0
    %v6684 = vadd.f32 %v6331, %v6683
    %v6685 = vpop.f32.mrf.mxu0
    %v6686 = vadd.f32 %v6333, %v6685
    %v6687 = vpop.f32.mrf.mxu0
    %v6688 = vadd.f32 %v6335, %v6687
    %v6689 = vpop.f32.mrf.mxu0
    %v6690 = vadd.f32 %v6337, %v6689
    %6691 = vmatprep.mubr.bf16.mxu0 %v4547
    %6692 = vmatmul.mubr.bf16.gmra.mxu0 %v4546
    %v6693 = vpop.f32.mrf.mxu0
    %v6694 = vadd.f32 %v6341, %v6693
    %v6695 = vpop.f32.mrf.mxu0
    %v6696 = vadd.f32 %v6343, %v6695
    %v6697 = vpop.f32.mrf.mxu0
    %v6698 = vadd.f32 %v6345, %v6697
    %v6699 = vpop.f32.mrf.mxu0
    %v6700 = vadd.f32 %v6347, %v6699
    %6701 = vmatprep.mubr.bf16.mxu0 %v4551
    %6702 = vmatmul.mubr.bf16.gmra.mxu0 %v4550
    %v6703 = vpop.f32.mrf.mxu0
    %v6704 = vadd.f32 %v6351, %v6703
    %v6705 = vpop.f32.mrf.mxu0
    %v6706 = vadd.f32 %v6353, %v6705
    %v6707 = vpop.f32.mrf.mxu0
    %v6708 = vadd.f32 %v6355, %v6707
    %v6709 = vpop.f32.mrf.mxu0
    %v6710 = vadd.f32 %v6357, %v6709
    %6711 = vmatprep.mubr.bf16.mxu0 %v4555
    %6712 = vmatmul.mubr.bf16.gmra.mxu0 %v4554
    %v6713 = vpop.f32.mrf.mxu0
    %v6714 = vadd.f32 %v6361, %v6713
    %v6715 = vpop.f32.mrf.mxu0
    %v6716 = vadd.f32 %v6363, %v6715
    %v6717 = vpop.f32.mrf.mxu0
    %v6718 = vadd.f32 %v6365, %v6717
    %v6719 = vpop.f32.mrf.mxu0
    %v6720 = vadd.f32 %v6367, %v6719
    %6721 = vmatprep.mubr.bf16.mxu0 %v4559
    %6722 = vmatmul.mubr.bf16.gmra.mxu0 %v4558
    %v6723 = vpop.f32.mrf.mxu0
    %v6724 = vadd.f32 %v6371, %v6723
    %v6725 = vpop.f32.mrf.mxu0
    %v6726 = vadd.f32 %v6373, %v6725
    %v6727 = vpop.f32.mrf.mxu0
    %v6728 = vadd.f32 %v6375, %v6727
    %v6729 = vpop.f32.mrf.mxu0
    %v6730 = vadd.f32 %v6377, %v6729
    %6731 = vmatprep.mubr.bf16.mxu0 %v4563
    %6732 = vmatmul.mubr.bf16.gmra.mxu0 %v4562
    %v6733 = vpop.f32.mrf.mxu0
    %v6734 = vadd.f32 %v6381, %v6733
    %v6735 = vpop.f32.mrf.mxu0
    %v6736 = vadd.f32 %v6383, %v6735
    %v6737 = vpop.f32.mrf.mxu0
    %v6738 = vadd.f32 %v6385, %v6737
    %v6739 = vpop.f32.mrf.mxu0
    %v6740 = vadd.f32 %v6387, %v6739
    %6741 = vmatprep.mubr.bf16.mxu0 %v4567
    %6742 = vmatmul.mubr.bf16.gmra.mxu0 %v4566
    %v6743 = vpop.f32.mrf.mxu0
    %v6744 = vadd.f32 %v6391, %v6743
    %v6745 = vpop.f32.mrf.mxu0
    %v6746 = vadd.f32 %v6393, %v6745
    %v6747 = vpop.f32.mrf.mxu0
    %v6748 = vadd.f32 %v6395, %v6747
    %v6749 = vpop.f32.mrf.mxu0
    %v6750 = vadd.f32 %v6397, %v6749
    %6751 = vmatprep.mubr.bf16.mxu0 %v4571
    %6752 = vmatmul.mubr.bf16.gmra.mxu0 %v4570
    %v6753 = vpop.f32.mrf.mxu0
    %v6754 = vadd.f32 %v6401, %v6753
    %v6755 = vpop.f32.mrf.mxu0
    %v6756 = vadd.f32 %v6403, %v6755
    %v6757 = vpop.f32.mrf.mxu0
    %v6758 = vadd.f32 %v6405, %v6757
    %v6759 = vpop.f32.mrf.mxu0
    %v6760 = vadd.f32 %v6407, %v6759
    %6761 = vmatprep.mubr.bf16.mxu0 %v4575
    %6762 = vmatmul.mubr.bf16.gmra.mxu0 %v4574
    %v6763 = vpop.f32.mrf.mxu0
    %v6764 = vadd.f32 %v6411, %v6763
    %v6765 = vpop.f32.mrf.mxu0
    %v6766 = vadd.f32 %v6413, %v6765
    %v6767 = vpop.f32.mrf.mxu0
    %v6768 = vadd.f32 %v6415, %v6767
    %v6769 = vpop.f32.mrf.mxu0
    %v6770 = vadd.f32 %v6417, %v6769
    %6771 = vmatprep.mubr.bf16.mxu0 %v4579
    %6772 = vmatmul.mubr.bf16.gmra.mxu0 %v4578
    %v6773 = vpop.f32.mrf.mxu0
    %v6774 = vadd.f32 %v6421, %v6773
    %v6775 = vpop.f32.mrf.mxu0
    %v6776 = vadd.f32 %v6423, %v6775
    %v6777 = vpop.f32.mrf.mxu0
    %v6778 = vadd.f32 %v6425, %v6777
    %v6779 = vpop.f32.mrf.mxu0
    %v6780 = vadd.f32 %v6427, %v6779
    %6781 = vdwg.mxu0
    %6782 = vst [vmem:[#allocation10] sm:$0xff] %v5758
    %6783 = vst [vmem:[#allocation10 + $0x8] sm:$0xff] %v5760
    %6784 = vst [vmem:[#allocation10 + $0x10] sm:$0xff] %v6464
    %6785 = vst [vmem:[#allocation10 + $0x18] sm:$0xff] %v6466
    %6786 = vst [vmem:[#allocation10 + $0x20] sm:$0xff] %v5762
    %6787 = vst [vmem:[#allocation10 + $0x28] sm:$0xff] %v5764
    %6788 = vst [vmem:[#allocation10 + $0x30] sm:$0xff] %v6468
    %6789 = vst [vmem:[#allocation10 + $0x38] sm:$0xff] %v6470
    %6790 = vst [vmem:[#allocation10 + $0x40] sm:$0xff] %v5768
    %6791 = vst [vmem:[#allocation10 + $0x48] sm:$0xff] %v5770
    %6792 = vst [vmem:[#allocation10 + $0x50] sm:$0xff] %v6474
    %6793 = vst [vmem:[#allocation10 + $0x58] sm:$0xff] %v6476
    %6794 = vst [vmem:[#allocation10 + $0x60] sm:$0xff] %v5772
    %6795 = vst [vmem:[#allocation10 + $0x68] sm:$0xff] %v5774
    %6796 = vst [vmem:[#allocation10 + $0x70] sm:$0xff] %v6478
    %6797 = vst [vmem:[#allocation10 + $0x78] sm:$0xff] %v6480
    %6798 = vst [vmem:[#allocation10 + $0x80] sm:$0xff] %v5778
    %6799 = vst [vmem:[#allocation10 + $0x88] sm:$0xff] %v5780
    %6800 = vst [vmem:[#allocation10 + $0x90] sm:$0xff] %v6484
    %6801 = vst [vmem:[#allocation10 + $0x98] sm:$0xff] %v6486
    %6802 = vst [vmem:[#allocation10 + $0xa0] sm:$0xff] %v5782
    %6803 = vst [vmem:[#allocation10 + $0xa8] sm:$0xff] %v5784
    %6804 = vst [vmem:[#allocation10 + $0xb0] sm:$0xff] %v6488
    %6805 = vst [vmem:[#allocation10 + $0xb8] sm:$0xff] %v6490
    %6806 = vst [vmem:[#allocation10 + $0xc0] sm:$0xff] %v5788
    %6807 = vst [vmem:[#allocation10 + $0xc8] sm:$0xff] %v5790
    %6808 = vst [vmem:[#allocation10 + $0xd0] sm:$0xff] %v6494
    %6809 = vst [vmem:[#allocation10 + $0xd8] sm:$0xff] %v6496
    %6810 = vst [vmem:[#allocation10 + $0xe0] sm:$0xff] %v5792
    %6811 = vst [vmem:[#allocation10 + $0xe8] sm:$0xff] %v5794
    %6812 = vst [vmem:[#allocation10 + $0xf0] sm:$0xff] %v6498
    %6813 = vst [vmem:[#allocation10 + $0xf8] sm:$0xff] %v6500
    %6814 = vst [vmem:[#allocation10 + $0x100] sm:$0xff] %v5798
    %6815 = vst [vmem:[#allocation10 + $0x108] sm:$0xff] %v5800
    %6816 = vst [vmem:[#allocation10 + $0x110] sm:$0xff] %v6504
    %6817 = vst [vmem:[#allocation10 + $0x118] sm:$0xff] %v6506
    %6818 = vst [vmem:[#allocation10 + $0x120] sm:$0xff] %v5802
    %6819 = vst [vmem:[#allocation10 + $0x128] sm:$0xff] %v5804
    %6820 = vst [vmem:[#allocation10 + $0x130] sm:$0xff] %v6508
    %6821 = vst [vmem:[#allocation10 + $0x138] sm:$0xff] %v6510
    %6822 = vst [vmem:[#allocation10 + $0x140] sm:$0xff] %v5808
    %6823 = vst [vmem:[#allocation10 + $0x148] sm:$0xff] %v5810
    %6824 = vst [vmem:[#allocation10 + $0x150] sm:$0xff] %v6514
    %6825 = vst [vmem:[#allocation10 + $0x158] sm:$0xff] %v6516
    %6826 = vst [vmem:[#allocation10 + $0x160] sm:$0xff] %v5812
    %6827 = vst [vmem:[#allocation10 + $0x168] sm:$0xff] %v5814
    %6828 = vst [vmem:[#allocation10 + $0x170] sm:$0xff] %v6518
    %6829 = vst [vmem:[#allocation10 + $0x178] sm:$0xff] %v6520
    %6830 = vst [vmem:[#allocation10 + $0x180] sm:$0xff] %v5818
    %6831 = vst [vmem:[#allocation10 + $0x188] sm:$0xff] %v5820
    %6832 = vst [vmem:[#allocation10 + $0x190] sm:$0xff] %v6524
    %6833 = vst [vmem:[#allocation10 + $0x198] sm:$0xff] %v6526
    %6834 = vst [vmem:[#allocation10 + $0x1a0] sm:$0xff] %v5822
    %6835 = vst [vmem:[#allocation10 + $0x1a8] sm:$0xff] %v5824
    %6836 = vst [vmem:[#allocation10 + $0x1b0] sm:$0xff] %v6528
    %6837 = vst [vmem:[#allocation10 + $0x1b8] sm:$0xff] %v6530
    %6838 = vst [vmem:[#allocation10 + $0x1c0] sm:$0xff] %v5828
    %6839 = vst [vmem:[#allocation10 + $0x1c8] sm:$0xff] %v5830
    %6840 = vst [vmem:[#allocation10 + $0x1d0] sm:$0xff] %v6534
    %6841 = vst [vmem:[#allocation10 + $0x1d8] sm:$0xff] %v6536
    %6842 = vst [vmem:[#allocation10 + $0x1e0] sm:$0xff] %v5832
    %6843 = vst [vmem:[#allocation10 + $0x1e8] sm:$0xff] %v5834
    %6844 = vst [vmem:[#allocation10 + $0x1f0] sm:$0xff] %v6538
    %6845 = vst [vmem:[#allocation10 + $0x1f8] sm:$0xff] %v6540
    %6846 = vst [vmem:[#allocation10 + $0x200] sm:$0xff] %v5838
    %6847 = vst [vmem:[#allocation10 + $0x208] sm:$0xff] %v5840
    %6848 = vst [vmem:[#allocation10 + $0x210] sm:$0xff] %v6544
    %6849 = vst [vmem:[#allocation10 + $0x218] sm:$0xff] %v6546
    %6850 = vst [vmem:[#allocation10 + $0x220] sm:$0xff] %v5842
    %6851 = vst [vmem:[#allocation10 + $0x228] sm:$0xff] %v5844
    %6852 = vst [vmem:[#allocation10 + $0x230] sm:$0xff] %v6548
    %6853 = vst [vmem:[#allocation10 + $0x238] sm:$0xff] %v6550
    %6854 = vst [vmem:[#allocation10 + $0x240] sm:$0xff] %v5848
    %6855 = vst [vmem:[#allocation10 + $0x248] sm:$0xff] %v5850
    %6856 = vst [vmem:[#allocation10 + $0x250] sm:$0xff] %v6554
    %6857 = vst [vmem:[#allocation10 + $0x258] sm:$0xff] %v6556
    %6858 = vst [vmem:[#allocation10 + $0x260] sm:$0xff] %v5852
    %6859 = vst [vmem:[#allocation10 + $0x268] sm:$0xff] %v5854
    %6860 = vst [vmem:[#allocation10 + $0x270] sm:$0xff] %v6558
    %6861 = vst [vmem:[#allocation10 + $0x278] sm:$0xff] %v6560
    %6862 = vst [vmem:[#allocation10 + $0x280] sm:$0xff] %v5858
    %6863 = vst [vmem:[#allocation10 + $0x288] sm:$0xff] %v5860
    %6864 = vst [vmem:[#allocation10 + $0x290] sm:$0xff] %v6564
    %6865 = vst [vmem:[#allocation10 + $0x298] sm:$0xff] %v6566
    %6866 = vst [vmem:[#allocation10 + $0x2a0] sm:$0xff] %v5862
    %6867 = vst [vmem:[#allocation10 + $0x2a8] sm:$0xff] %v5864
    %6868 = vst [vmem:[#allocation10 + $0x2b0] sm:$0xff] %v6568
    %6869 = vst [vmem:[#allocation10 + $0x2b8] sm:$0xff] %v6570
    %6870 = vst [vmem:[#allocation10 + $0x2c0] sm:$0xff] %v5868
    %6871 = vst [vmem:[#allocation10 + $0x2c8] sm:$0xff] %v5870
    %6872 = vst [vmem:[#allocation10 + $0x2d0] sm:$0xff] %v6574
    %6873 = vst [vmem:[#allocation10 + $0x2d8] sm:$0xff] %v6576
    %6874 = vst [vmem:[#allocation10 + $0x2e0] sm:$0xff] %v5872
    %6875 = vst [vmem:[#allocation10 + $0x2e8] sm:$0xff] %v5874
    %6876 = vst [vmem:[#allocation10 + $0x2f0] sm:$0xff] %v6578
    %6877 = vst [vmem:[#allocation10 + $0x2f8] sm:$0xff] %v6580
    %6878 = vst [vmem:[#allocation10 + $0x300] sm:$0xff] %v5878
    %6879 = vst [vmem:[#allocation10 + $0x308] sm:$0xff] %v5880
    %6880 = vst [vmem:[#allocation10 + $0x310] sm:$0xff] %v6584
    %6881 = vst [vmem:[#allocation10 + $0x318] sm:$0xff] %v6586
    %6882 = vst [vmem:[#allocation10 + $0x320] sm:$0xff] %v5882
    %6883 = vst [vmem:[#allocation10 + $0x328] sm:$0xff] %v5884
    %6884 = vst [vmem:[#allocation10 + $0x330] sm:$0xff] %v6588
    %6885 = vst [vmem:[#allocation10 + $0x338] sm:$0xff] %v6590
    %6886 = vst [vmem:[#allocation10 + $0x340] sm:$0xff] %v5888
    %6887 = vst [vmem:[#allocation10 + $0x348] sm:$0xff] %v5890
    %6888 = vst [vmem:[#allocation10 + $0x350] sm:$0xff] %v6594
    %6889 = vst [vmem:[#allocation10 + $0x358] sm:$0xff] %v6596
    %6890 = vst [vmem:[#allocation10 + $0x360] sm:$0xff] %v5892
    %6891 = vst [vmem:[#allocation10 + $0x368] sm:$0xff] %v5894
    %6892 = vst [vmem:[#allocation10 + $0x370] sm:$0xff] %v6598
    %6893 = vst [vmem:[#allocation10 + $0x378] sm:$0xff] %v6600
    %6894 = vst [vmem:[#allocation10 + $0x380] sm:$0xff] %v5898
    %6895 = vst [vmem:[#allocation10 + $0x388] sm:$0xff] %v5900
    %6896 = vst [vmem:[#allocation10 + $0x390] sm:$0xff] %v6604
    %6897 = vst [vmem:[#allocation10 + $0x398] sm:$0xff] %v6606
    %6898 = vst [vmem:[#allocation10 + $0x3a0] sm:$0xff] %v5902
    %6899 = vst [vmem:[#allocation10 + $0x3a8] sm:$0xff] %v5904
    %6900 = vst [vmem:[#allocation10 + $0x3b0] sm:$0xff] %v6608
    %6901 = vst [vmem:[#allocation10 + $0x3b8] sm:$0xff] %v6610
    %6902 = vst [vmem:[#allocation10 + $0x3c0] sm:$0xff] %v5908
    %6903 = vst [vmem:[#allocation10 + $0x3c8] sm:$0xff] %v5910
    %6904 = vst [vmem:[#allocation10 + $0x3d0] sm:$0xff] %v6614
    %6905 = vst [vmem:[#allocation10 + $0x3d8] sm:$0xff] %v6616
    %6906 = vst [vmem:[#allocation10 + $0x3e0] sm:$0xff] %v5912
    %6907 = vst [vmem:[#allocation10 + $0x3e8] sm:$0xff] %v5914
    %6908 = vst [vmem:[#allocation10 + $0x3f0] sm:$0xff] %v6618
    %6909 = vst [vmem:[#allocation10 + $0x3f8] sm:$0xff] %v6620
    %6910 = vst [vmem:[#allocation10 + $0x400] sm:$0xff] %v5918
    %6911 = vst [vmem:[#allocation10 + $0x408] sm:$0xff] %v5920
    %6912 = vst [vmem:[#allocation10 + $0x410] sm:$0xff] %v6624
    %6913 = vst [vmem:[#allocation10 + $0x418] sm:$0xff] %v6626
    %6914 = vst [vmem:[#allocation10 + $0x420] sm:$0xff] %v5922
    %6915 = vst [vmem:[#allocation10 + $0x428] sm:$0xff] %v5924
    %6916 = vst [vmem:[#allocation10 + $0x430] sm:$0xff] %v6628
    %6917 = vst [vmem:[#allocation10 + $0x438] sm:$0xff] %v6630
    %6918 = vst [vmem:[#allocation10 + $0x440] sm:$0xff] %v5928
    %6919 = vst [vmem:[#allocation10 + $0x448] sm:$0xff] %v5930
    %6920 = vst [vmem:[#allocation10 + $0x450] sm:$0xff] %v6634
    %6921 = vst [vmem:[#allocation10 + $0x458] sm:$0xff] %v6636
    %6922 = vst [vmem:[#allocation10 + $0x460] sm:$0xff] %v5932
    %6923 = vst [vmem:[#allocation10 + $0x468] sm:$0xff] %v5934
    %6924 = vst [vmem:[#allocation10 + $0x470] sm:$0xff] %v6638
    %6925 = vst [vmem:[#allocation10 + $0x478] sm:$0xff] %v6640
    %6926 = vst [vmem:[#allocation10 + $0x480] sm:$0xff] %v5938
    %6927 = vst [vmem:[#allocation10 + $0x488] sm:$0xff] %v5940
    %6928 = vst [vmem:[#allocation10 + $0x490] sm:$0xff] %v6644
    %6929 = vst [vmem:[#allocation10 + $0x498] sm:$0xff] %v6646
    %6930 = vst [vmem:[#allocation10 + $0x4a0] sm:$0xff] %v5942
    %6931 = vst [vmem:[#allocation10 + $0x4a8] sm:$0xff] %v5944
    %6932 = vst [vmem:[#allocation10 + $0x4b0] sm:$0xff] %v6648
    %6933 = vst [vmem:[#allocation10 + $0x4b8] sm:$0xff] %v6650
    %6934 = vst [vmem:[#allocation10 + $0x4c0] sm:$0xff] %v5948
    %6935 = vst [vmem:[#allocation10 + $0x4c8] sm:$0xff] %v5950
    %6936 = vst [vmem:[#allocation10 + $0x4d0] sm:$0xff] %v6654
    %6937 = vst [vmem:[#allocation10 + $0x4d8] sm:$0xff] %v6656
    %6938 = vst [vmem:[#allocation10 + $0x4e0] sm:$0xff] %v5952
    %6939 = vst [vmem:[#allocation10 + $0x4e8] sm:$0xff] %v5954
    %6940 = vst [vmem:[#allocation10 + $0x4f0] sm:$0xff] %v6658
    %6941 = vst [vmem:[#allocation10 + $0x4f8] sm:$0xff] %v6660
    %6942 = vst [vmem:[#allocation10 + $0x500] sm:$0xff] %v5958
    %6943 = vst [vmem:[#allocation10 + $0x508] sm:$0xff] %v5960
    %6944 = vst [vmem:[#allocation10 + $0x510] sm:$0xff] %v6664
    %6945 = vst [vmem:[#allocation10 + $0x518] sm:$0xff] %v6666
    %6946 = vst [vmem:[#allocation10 + $0x520] sm:$0xff] %v5962
    %6947 = vst [vmem:[#allocation10 + $0x528] sm:$0xff] %v5964
    %6948 = vst [vmem:[#allocation10 + $0x530] sm:$0xff] %v6668
    %6949 = vst [vmem:[#allocation10 + $0x538] sm:$0xff] %v6670
    %6950 = vst [vmem:[#allocation10 + $0x540] sm:$0xff] %v5968
    %6951 = vst [vmem:[#allocation10 + $0x548] sm:$0xff] %v5970
    %6952 = vst [vmem:[#allocation10 + $0x550] sm:$0xff] %v6674
    %6953 = vst [vmem:[#allocation10 + $0x558] sm:$0xff] %v6676
    %6954 = vst [vmem:[#allocation10 + $0x560] sm:$0xff] %v5972
    %6955 = vst [vmem:[#allocation10 + $0x568] sm:$0xff] %v5974
    %6956 = vst [vmem:[#allocation10 + $0x570] sm:$0xff] %v6678
    %6957 = vst [vmem:[#allocation10 + $0x578] sm:$0xff] %v6680
    %6958 = vst [vmem:[#allocation10 + $0x580] sm:$0xff] %v5978
    %6959 = vst [vmem:[#allocation10 + $0x588] sm:$0xff] %v5980
    %6960 = vst [vmem:[#allocation10 + $0x590] sm:$0xff] %v6684
    %6961 = vst [vmem:[#allocation10 + $0x598] sm:$0xff] %v6686
    %6962 = vst [vmem:[#allocation10 + $0x5a0] sm:$0xff] %v5982
    %6963 = vst [vmem:[#allocation10 + $0x5a8] sm:$0xff] %v5984
    %6964 = vst [vmem:[#allocation10 + $0x5b0] sm:$0xff] %v6688
    %6965 = vst [vmem:[#allocation10 + $0x5b8] sm:$0xff] %v6690
    %6966 = vst [vmem:[#allocation10 + $0x5c0] sm:$0xff] %v5988
    %6967 = vst [vmem:[#allocation10 + $0x5c8] sm:$0xff] %v5990
    %6968 = vst [vmem:[#allocation10 + $0x5d0] sm:$0xff] %v6694
    %6969 = vst [vmem:[#allocation10 + $0x5d8] sm:$0xff] %v6696
    %6970 = vst [vmem:[#allocation10 + $0x5e0] sm:$0xff] %v5992
    %6971 = vst [vmem:[#allocation10 + $0x5e8] sm:$0xff] %v5994
    %6972 = vst [vmem:[#allocation10 + $0x5f0] sm:$0xff] %v6698
    %6973 = vst [vmem:[#allocation10 + $0x5f8] sm:$0xff] %v6700
    %6974 = vst [vmem:[#allocation10 + $0x600] sm:$0xff] %v5998
    %6975 = vst [vmem:[#allocation10 + $0x608] sm:$0xff] %v6000
    %6976 = vst [vmem:[#allocation10 + $0x610] sm:$0xff] %v6704
    %6977 = vst [vmem:[#allocation10 + $0x618] sm:$0xff] %v6706
    %6978 = vst [vmem:[#allocation10 + $0x620] sm:$0xff] %v6002
    %6979 = vst [vmem:[#allocation10 + $0x628] sm:$0xff] %v6004
    %6980 = vst [vmem:[#allocation10 + $0x630] sm:$0xff] %v6708
    %6981 = vst [vmem:[#allocation10 + $0x638] sm:$0xff] %v6710
    %6982 = vst [vmem:[#allocation10 + $0x640] sm:$0xff] %v6008
    %6983 = vst [vmem:[#allocation10 + $0x648] sm:$0xff] %v6010
    %6984 = vst [vmem:[#allocation10 + $0x650] sm:$0xff] %v6714
    %6985 = vst [vmem:[#allocation10 + $0x658] sm:$0xff] %v6716
    %6986 = vst [vmem:[#allocation10 + $0x660] sm:$0xff] %v6012
    %6987 = vst [vmem:[#allocation10 + $0x668] sm:$0xff] %v6014
    %6988 = vst [vmem:[#allocation10 + $0x670] sm:$0xff] %v6718
    %6989 = vst [vmem:[#allocation10 + $0x678] sm:$0xff] %v6720
    %6990 = vst [vmem:[#allocation10 + $0x680] sm:$0xff] %v6018
    %6991 = vst [vmem:[#allocation10 + $0x688] sm:$0xff] %v6020
    %6992 = vst [vmem:[#allocation10 + $0x690] sm:$0xff] %v6724
    %6993 = vst [vmem:[#allocation10 + $0x698] sm:$0xff] %v6726
    %6994 = vst [vmem:[#allocation10 + $0x6a0] sm:$0xff] %v6022
    %6995 = vst [vmem:[#allocation10 + $0x6a8] sm:$0xff] %v6024
    %6996 = vst [vmem:[#allocation10 + $0x6b0] sm:$0xff] %v6728
    %6997 = vst [vmem:[#allocation10 + $0x6b8] sm:$0xff] %v6730
    %6998 = vst [vmem:[#allocation10 + $0x6c0] sm:$0xff] %v6028
    %6999 = vst [vmem:[#allocation10 + $0x6c8] sm:$0xff] %v6030
    %7000 = vst [vmem:[#allocation10 + $0x6d0] sm:$0xff] %v6734
    %7001 = vst [vmem:[#allocation10 + $0x6d8] sm:$0xff] %v6736
    %7002 = vst [vmem:[#allocation10 + $0x6e0] sm:$0xff] %v6032
    %7003 = vst [vmem:[#allocation10 + $0x6e8] sm:$0xff] %v6034
    %7004 = vst [vmem:[#allocation10 + $0x6f0] sm:$0xff] %v6738
    %7005 = vst [vmem:[#allocation10 + $0x6f8] sm:$0xff] %v6740
    %7006 = vst [vmem:[#allocation10 + $0x700] sm:$0xff] %v6038
    %7007 = vst [vmem:[#allocation10 + $0x708] sm:$0xff] %v6040
    %7008 = vst [vmem:[#allocation10 + $0x710] sm:$0xff] %v6744
    %7009 = vst [vmem:[#allocation10 + $0x718] sm:$0xff] %v6746
    %7010 = vst [vmem:[#allocation10 + $0x720] sm:$0xff] %v6042
    %7011 = vst [vmem:[#allocation10 + $0x728] sm:$0xff] %v6044
    %7012 = vst [vmem:[#allocation10 + $0x730] sm:$0xff] %v6748
    %7013 = vst [vmem:[#allocation10 + $0x738] sm:$0xff] %v6750
    %7014 = vst [vmem:[#allocation10 + $0x740] sm:$0xff] %v6048
    %7015 = vst [vmem:[#allocation10 + $0x748] sm:$0xff] %v6050
    %7016 = vst [vmem:[#allocation10 + $0x750] sm:$0xff] %v6754
    %7017 = vst [vmem:[#allocation10 + $0x758] sm:$0xff] %v6756
    %7018 = vst [vmem:[#allocation10 + $0x760] sm:$0xff] %v6052
    %7019 = vst [vmem:[#allocation10 + $0x768] sm:$0xff] %v6054
    %7020 = vst [vmem:[#allocation10 + $0x770] sm:$0xff] %v6758
    %7021 = vst [vmem:[#allocation10 + $0x778] sm:$0xff] %v6760
    %7022 = vst [vmem:[#allocation10 + $0x780] sm:$0xff] %v6058
    %7023 = vst [vmem:[#allocation10 + $0x788] sm:$0xff] %v6060
    %7024 = vst [vmem:[#allocation10 + $0x790] sm:$0xff] %v6764
    %7025 = vst [vmem:[#allocation10 + $0x798] sm:$0xff] %v6766
    %7026 = vst [vmem:[#allocation10 + $0x7a0] sm:$0xff] %v6062
    %7027 = vst [vmem:[#allocation10 + $0x7a8] sm:$0xff] %v6064
    %7028 = vst [vmem:[#allocation10 + $0x7b0] sm:$0xff] %v6768
    %7029 = vst [vmem:[#allocation10 + $0x7b8] sm:$0xff] %v6770
    %7030 = vst [vmem:[#allocation10 + $0x7c0] sm:$0xff] %v6068
    %7031 = vst [vmem:[#allocation10 + $0x7c8] sm:$0xff] %v6070
    %7032 = vst [vmem:[#allocation10 + $0x7d0] sm:$0xff] %v6774
    %7033 = vst [vmem:[#allocation10 + $0x7d8] sm:$0xff] %v6776
    %7034 = vst [vmem:[#allocation10 + $0x7e0] sm:$0xff] %v6072
    %7035 = vst [vmem:[#allocation10 + $0x7e8] sm:$0xff] %v6074
    %7036 = vst [vmem:[#allocation10 + $0x7f0] sm:$0xff] %v6778
    %7037 = vst [vmem:[#allocation10 + $0x7f8] sm:$0xff] %v6780
    // Predicated region
    $region38: #{_forward_jit.1} parent=1 // pred_check
      _
    $region39: #{_forward_jit.1} parent=1 // pred_check_branch
      %7039 = sbr.rel (0) target = $region41
    $region40: #{_forward_jit.1} parent=1 // pred_region
      %s7041 = ssub.s32 32768, 32768
      %7042 = vsyncadd [#allocation4], %s7041
      %s7043 = sshll.u32 [#allocation10], 4
      %s7044 = int_to_ptr.vmem [resolvable:$true] %s7043
      %7049 = dma.vmem_to_hbm [thread:$0]  %s7044, 32768, %s5, [#allocation4], 512, 512, 32
    $region41: #{_forward_jit.1} parent=1 // pred_fallthru
      _
    // Predicated region
    $region42: #{_forward_jit.1} parent=1 // pred_check
      _
    $region43: #{_forward_jit.1} parent=1 // pred_check_branch
      %7051 = sbr.rel (0) target = $region45
    $region44: #{_forward_jit.1} parent=1 // pred_region
      %7052 = dma.done [#allocation4], 32768
    $region45: #{_forward_jit.1} parent=1 // pred_fallthru
      _
    %7053 = vsyncpa [#allocation3], 1
    %7054 = vsyncpa [#allocation6], 1
    %7055 = vsyncpa [#allocation9], 1
    %7056 = vsyncpa [#allocation4], 1

</llo_original>
